<compile_context>
chip_gen: v7x
topology: tpu7x:2x2x1
jax: 0.10.0
libtpu: 0.0.40
codegen_flags: <defaults>
</compile_context>

<pallas_src>
import functools

import numpy as np
import jax
import jax.numpy as jnp
from jax.experimental import pallas as pl
from jax.experimental.pallas import tpu as pltpu

NUM_BLOCKS = 3          # SmoothNetSMPL default
SMPL_POSE_DIM = 144
SMPL_SHAPE_DIM = 10
SMPL_TRANS_DIM = 3


def _leaky_relu(x, slope):
    return jnp.where(x >= 0, x, slope * x)


def _round_up(x, m):
    return ((x + m - 1) // m) * m


# --------------------------------------------------------------------------
# Fused kernel: unfold + encoder + res-blocks + decoder + overlap-add ensemble
# --------------------------------------------------------------------------
def _smoothnet_fused_kernel(net_ref,        # scalar-prefetch (used by index_maps only)
                            x_ref,          # (T, R_TILE) f32   rows for this lane tile
                            an_ref,         # (T, NW*OUT) f32   overlap-add / averaging matrix
                            enc_w_ref,      # (H, W)      bf16
                            blk_w1_ref,     # (NB*RH, H)  bf16
                            blk_w2_ref,     # (NB*H, RH)  bf16
                            dec_w_ref,      # (OUT, H)    bf16
                            bias_ref,       # (BTOT, 1)   f32
                            o_ref,          # (T, R_TILE) f32
                            *, window_size, output_size, hidden_size,
                            res_hidden_size, num_blocks, num_windows):
    del net_ref  # only consumed by the BlockSpec index_maps

    x = x_ref[...]                       # (T, R_TILE) f32, rows lane-dense
    enc_w = enc_w_ref[...]
    w1_all = blk_w1_ref[...]
    w2_all = blk_w2_ref[...]
    dec_w = dec_w_ref[...]
    biases = bias_ref[...]               # (BTOT, 1)

    # Static unpack of the packed bias vector (column vectors -> lane broadcast).
    off = 0
    enc_b = biases[off:off + hidden_size]; off += hidden_size
    blk_b = []
    for _ in range(num_blocks):
        b1 = biases[off:off + res_hidden_size]; off += res_hidden_size
        b2 = biases[off:off + hidden_size]; off += hidden_size
        blk_b.append((b1, b2))
    dec_b = biases[off:off + output_size]

    # Per-window MLP, everything kept as (features, lanes).
    # num_windows is small for this model, so a static unroll is fine.
    # TODO(synk): for very long sequences switch to lax.fori_loop over windows.
    decs = []
    for t in range(num_windows):
        xw = x[t:t + window_size, :].astype(jnp.bfloat16)        # (W, R_TILE)
        h = jnp.dot(enc_w, xw, preferred_element_type=jnp.float32) + enc_b
        h = _leaky_relu(h, 0.1)
        for b in range(num_blocks):
            w1 = w1_all[b * res_hidden_size:(b + 1) * res_hidden_size, :]
            w2 = w2_all[b * hidden_size:(b + 1) * hidden_size, :]
            b1, b2 = blk_b[b]
            u = jnp.dot(w1, h.astype(jnp.bfloat16),
                        preferred_element_type=jnp.float32) + b1
            u = _leaky_relu(u, 0.2)
            u = jnp.dot(w2, u.astype(jnp.bfloat16),
                        preferred_element_type=jnp.float32) + b2
            u = _leaky_relu(u, 0.2)
            h = h + u                                            # residual
        d = jnp.dot(dec_w, h.astype(jnp.bfloat16),
                    preferred_element_type=jnp.float32) + dec_b
        decs.append(d)                                           # (OUT, R_TILE)

    dec_all = jnp.concatenate(decs, axis=0)                      # (NW*OUT, R_TILE)
    # Overlap-add + count normalisation in one f32 MXU matmul; output is
    # lane-dense (T, R_TILE) -> unmasked full-lane stores.
    o_ref[...] = jnp.dot(an_ref[...], dec_all,
                         preferred_element_type=jnp.float32)


# --------------------------------------------------------------------------
# Host-side helpers
# --------------------------------------------------------------------------
def _overlap_add_matrix(T, window_size, output_size):
    """A[tau, t*OUT+k] = 1/count[tau] if t+k == tau (stride-1 window ensemble)."""
    nw = T - window_size + 1
    a = np.zeros((T, nw * output_size), np.float32)
    for t in range(nw):
        for k in range(output_size):
            tau = t + k
            if tau < T:
                a[tau, t * output_size + k] = 1.0
    count = a.sum(axis=1)
    assert count.min() > 0, "some timesteps are not covered by any window"
    return a / count[:, None]


def _pack_smoothnet_params(params, num_blocks):
    """Pack torch-layout params into 4 bf16 weight slabs + 1 f32 bias column.

    params layout (torch nn.Linear): [enc_w(H,W), enc_b(H),
      (w1(RH,H), b1(RH), w2(H,RH), b2(H)) * num_blocks, dec_w(OUT,H), dec_b(OUT)]
    """
    enc_w, enc_b = params[0], params[1]
    dec_w, dec_b = params[-2], params[-1]
    w1s, w2s, bias_parts = [], [], [enc_b]
    for b in range(num_blocks):
        w1, b1, w2, b2 = params[2 + 4 * b: 6 + 4 * b]
        w1s.append(w1)
        w2s.append(w2)
        bias_parts += [b1, b2]
    bias_parts.append(dec_b)
    return (enc_w.astype(jnp.bfloat16),
            jnp.concatenate(w1s, axis=0).astype(jnp.bfloat16),
            jnp.concatenate(w2s, axis=0).astype(jnp.bfloat16),
            dec_w.astype(jnp.bfloat16),
            jnp.concatenate(bias_parts, axis=0)[:, None].astype(jnp.float32))


def smoothnet_smpl_forward(x, pose_params, trans_params, *,
                           num_blocks=NUM_BLOCKS, r_tile=128):
    """SmoothNetSMPL.forward.  x: (N, 157, T) f32 -> (N, 157, T) f32."""
    N, C, T = x.shape
    assert C == SMPL_POSE_DIM + SMPL_SHAPE_DIM + SMPL_TRANS_DIM, \
        f"invalid input shape: {x.shape}"

    hidden_size, window_size = pose_params[0].shape
    res_hidden_size = pose_params[2].shape[0]
    output_size = pose_params[-2].shape[0]
    assert T >= window_size
    num_windows = T - window_size + 1

    data_pose = x[:, :SMPL_POSE_DIM]
    data_shape = x[:, SMPL_POSE_DIM:SMPL_POSE_DIM + SMPL_SHAPE_DIM]
    data_trans = x[:, SMPL_POSE_DIM + SMPL_SHAPE_DIM:]

    # Transposed, lane-dense layout: rows (N*C) on the last (lane) axis.
    # For larger N*C raise r_tile (e.g. 512-1024) but keep >=2 tiles so the
    # "parallel" grid axis can shard across v7x's two TensorCores.
    r_pose = N * SMPL_POSE_DIM
    r_trans = N * SMPL_TRANS_DIM
    r_pose_pad = _round_up(r_pose, r_tile)
    r_trans_pad = _round_up(r_trans, r_tile)
    r_total = r_pose_pad + r_trans_pad

    pose_rows = data_pose.reshape(r_pose, T).T      # (T, r_pose)
    trans_rows = data_trans.reshape(r_trans, T).T   # (T, r_trans)
    x_all = jnp.concatenate([
        jnp.pad(pose_rows, ((0, 0), (0, r_pose_pad - r_pose))),
        jnp.pad(trans_rows, ((0, 0), (0, r_trans_pad - r_trans))),
    ], axis=1)                                      # (T, r_total)

    n_pose_tiles = r_pose_pad // r_tile
    n_trans_tiles = r_trans_pad // r_tile
    n_tiles = n_pose_tiles + n_trans_tiles
    # Scalar-prefetched tile -> net-id table (0 = pose net, 1 = trans net).
    tile_net = jnp.asarray([0] * n_pose_tiles + [1] * n_trans_tiles, jnp.int32)

    # Per-net packed params, stacked along a leading "net" axis of size 2.
    packed = [jnp.stack([pp, tp]) for pp, tp in zip(
        _pack_smoothnet_params(pose_params, num_blocks),
        _pack_smoothnet_params(trans_params, num_blocks))]
    enc_w, blk_w1, blk_w2, dec_w, biases = packed
    btot = biases.shape[1]

    a_norm = jnp.asarray(_overlap_add_matrix(T, window_size, output_size))

    kernel = functools.partial(
        _smoothnet_fused_kernel,
        window_size=window_size, output_size=output_size,
        hidden_size=hidden_size, res_hidden_size=res_hidden_size,
        num_blocks=num_blocks, num_windows=num_windows)

    def _param_map(i, net):
        return (net[i], 0, 0)

    grid_spec = pltpu.PrefetchScalarGridSpec(
        num_scalar_prefetch=1,
        grid=(n_tiles,),
        in_specs=[
            pl.BlockSpec((T, r_tile), lambda i, net: (0, i)),                # x_all
            pl.BlockSpec((T, num_windows * output_size),
                         lambda i, net: (0, 0)),                             # a_norm
            pl.BlockSpec((None, hidden_size, window_size), _param_map),      # enc_w
            pl.BlockSpec((None, num_blocks * res_hidden_size, hidden_size),
                         _param_map),                                        # blk_w1
            pl.BlockSpec((None, num_blocks * hidden_size, res_hidden_size),
                         _param_map),                                        # blk_w2
            pl.BlockSpec((None, output_size, hidden_size), _param_map),      # dec_w
            pl.BlockSpec((None, btot, 1), _param_map),                       # biases
        ],
        out_specs=pl.BlockSpec((T, r_tile), lambda i, net: (0, i)),
    )

    out = pl.pallas_call(
        kernel,
        out_shape=jax.ShapeDtypeStruct((T, r_total), jnp.float32),
        grid_spec=grid_spec,
        compiler_params=pltpu.CompilerParams(
            dimension_semantics=("parallel",)),
    )(tile_net, x_all, a_norm, enc_w, blk_w1, blk_w2, dec_w, biases)

    pose_smooth = out[:, :r_pose].T.reshape(N, SMPL_POSE_DIM, T)
    trans_smooth = out[:, r_pose_pad:r_pose_pad + r_trans].T.reshape(
        N, SMPL_TRANS_DIM, T)
    return jnp.concatenate([pose_smooth, data_shape, trans_smooth], axis=1)


# --------------------------------------------------------------------------
# Synthetic params (torch nn.Linear layout) and a pure-JAX f32 reference
# --------------------------------------------------------------------------
def init_smoothnet_params(key, window_size, output_size, hidden_size,
                          res_hidden_size, num_blocks):
    def lin(k, fan_out, fan_in):
        kw, kb = jax.random.split(k)
        w = jax.random.normal(kw, (fan_out, fan_in), jnp.float32) * 0.1
        b = jax.random.normal(kb, (fan_out,), jnp.float32) * 0.05
        return w, b

    keys = jax.random.split(key, 2 + 2 * num_blocks)
    params = []
    w, b = lin(keys[0], hidden_size, window_size)
    params += [w, b]
    for i in range(num_blocks):
        w1, b1 = lin(keys[1 + 2 * i], res_hidden_size, hidden_size)
        w2, b2 = lin(keys[2 + 2 * i], hidden_size, res_hidden_size)
        params += [w1, b1, w2, b2]
    w, b = lin(keys[1 + 2 * num_blocks], output_size, hidden_size)
    params += [w, b]
    return params


def _smoothnet_reference(x_nct, params, window_size, output_size, num_blocks):
    N, C, T = x_nct.shape
    nw = T - window_size + 1
    idx = jnp.arange(nw)[:, None] + jnp.arange(window_size)[None, :]
    win = x_nct[:, :, idx]                                   # (N, C, nw, W)

    def lin(h, w, b):
        return jnp.einsum('...i,oi->...o', h, w) + b

    h = jax.nn.leaky_relu(lin(win, params[0], params[1]), 0.1)
    for blk in range(num_blocks):
        w1, b1, w2, b2 = params[2 + 4 * blk: 6 + 4 * blk]
        u = jax.nn.leaky_relu(lin(h, w1, b1), 0.2)
        u = jax.nn.leaky_relu(lin(u, w2, b2), 0.2)
        h = h + u
    dec = lin(h, params[-2], params[-1])                      # (N, C, nw, OUT)

    out = jnp.zeros((N, C, T), jnp.float32)
    count = jnp.zeros((T,), jnp.float32)
    for t in range(nw):
        span = min(output_size, T - t)
        out = out.at[..., t:t + span].add(dec[:, :, t, :span])
        count = count.at[t:t + span].add(1.0)
    return out / count


def _smpl_reference(x, pose_params, trans_params, window_size, output_size,
                    num_blocks):
    pose = _smoothnet_reference(x[:, :SMPL_POSE_DIM], pose_params,
                                window_size, output_size, num_blocks)
    trans = _smoothnet_reference(x[:, SMPL_POSE_DIM + SMPL_SHAPE_DIM:],
                                 trans_params, window_size, output_size,
                                 num_blocks)
    return jnp.concatenate(
        [pose, x[:, SMPL_POSE_DIM:SMPL_POSE_DIM + SMPL_SHAPE_DIM], trans],
        axis=1)


if __name__ == "__main__":
    B = 2
    C = SMPL_POSE_DIM + SMPL_SHAPE_DIM + SMPL_TRANS_DIM   # 157
    T = 16
    window_size = 8
    output_size = 8
    hidden_size = 32
    res_hidden_size = 16

    key = jax.random.PRNGKey(0)
    kx, kp, kt = jax.random.split(key, 3)
    x = jax.random.normal(kx, (B, C, T), jnp.float32)
    pose_params = init_smoothnet_params(kp, window_size, output_size,
                                        hidden_size, res_hidden_size,
                                        NUM_BLOCKS)
    trans_params = init_smoothnet_params(kt, window_size, output_size,
                                         hidden_size, res_hidden_size,
                                         NUM_BLOCKS)

    fwd = jax.jit(functools.partial(smoothnet_smpl_forward,
                                    num_blocks=NUM_BLOCKS))
    out = jax.block_until_ready(fwd(x, pose_params, trans_params))
    assert out.shape == (B, C, T), out.shape

    # Loose sanity check vs a pure-JAX f32 reference (kernel matmuls use bf16).
    ref = _smpl_reference(x, pose_params, trans_params, window_size,
                          output_size, NUM_BLOCKS)
    max_err = float(jnp.max(jnp.abs(out - ref)))
    assert max_err < 5e-2, f"max abs error vs reference: {max_err}"
    print("KERNEL_OK")
</pallas_src>

<mosaic_0001>
module attributes {stable_mosaic.version = 11 : i64} {
  func.func @_smoothnet_fused_kernel(%arg0: i32, %arg1: memref<4xi32, #tpu.memory_space<smem>>, %arg2: memref<16x128xf32, #tpu.memory_space<vmem>>, %arg3: memref<16x72xf32, #tpu.memory_space<vmem>>, %arg4: memref<1x32x8xbf16, #tpu.memory_space<vmem>>, %arg5: memref<1x48x32xbf16, #tpu.memory_space<vmem>>, %arg6: memref<1x96x16xbf16, #tpu.memory_space<vmem>>, %arg7: memref<1x8x32xbf16, #tpu.memory_space<vmem>>, %arg8: memref<1x184x1xf32, #tpu.memory_space<vmem>>, %arg9: memref<16x128xf32, #tpu.memory_space<vmem>>) attributes {dimension_semantics = [#tpu.dimension_semantics<parallel>], iteration_bounds = array<i64: 4>, scalar_prefetch = 1 : i64, scratch_operands = 0 : i64, tpu.core_type = #tpu.core_type<tc>, window_params = [{transform_indices = @transform_0, window_bounds = array<i64: 16, 128>}, {pipeline_mode = #tpu.pipeline_mode<synchronous>, transform_indices = @transform_1, window_bounds = array<i64: 16, 72>}, {transform_indices = @transform_2, window_bounds = array<i64: 1, 32, 8>}, {transform_indices = @transform_3, window_bounds = array<i64: 1, 48, 32>}, {transform_indices = @transform_4, window_bounds = array<i64: 1, 96, 16>}, {transform_indices = @transform_5, window_bounds = array<i64: 1, 8, 32>}, {transform_indices = @transform_6, window_bounds = array<i64: 1, 184, 1>}, {transform_indices = @transform_7, window_bounds = array<i64: 16, 128>}]} {
    %c0 = arith.constant 0 : index
    %c0_0 = arith.constant 0 : index
    %0 = vector.load %arg2[%c0, %c0_0] : memref<16x128xf32, #tpu.memory_space<vmem>>, vector<16x128xf32>
    %c0_1 = arith.constant 0 : index
    %c0_2 = arith.constant 0 : index
    %c0_3 = arith.constant 0 : index
    %1 = vector.load %arg4[%c0_1, %c0_2, %c0_3] : memref<1x32x8xbf16, #tpu.memory_space<vmem>>, vector<1x32x8xbf16>
    %2 = vector.shape_cast %1 : vector<1x32x8xbf16> to vector<32x8xbf16>
    %c0_4 = arith.constant 0 : index
    %c0_5 = arith.constant 0 : index
    %c0_6 = arith.constant 0 : index
    %3 = vector.load %arg5[%c0_4, %c0_5, %c0_6] : memref<1x48x32xbf16, #tpu.memory_space<vmem>>, vector<1x48x32xbf16>
    %4 = vector.shape_cast %3 : vector<1x48x32xbf16> to vector<48x32xbf16>
    %c0_7 = arith.constant 0 : index
    %c0_8 = arith.constant 0 : index
    %c0_9 = arith.constant 0 : index
    %5 = vector.load %arg6[%c0_7, %c0_8, %c0_9] : memref<1x96x16xbf16, #tpu.memory_space<vmem>>, vector<1x96x16xbf16>
    %6 = vector.shape_cast %5 : vector<1x96x16xbf16> to vector<96x16xbf16>
    %c0_10 = arith.constant 0 : index
    %c0_11 = arith.constant 0 : index
    %c0_12 = arith.constant 0 : index
    %7 = vector.load %arg7[%c0_10, %c0_11, %c0_12] : memref<1x8x32xbf16, #tpu.memory_space<vmem>>, vector<1x8x32xbf16>
    %8 = vector.shape_cast %7 : vector<1x8x32xbf16> to vector<8x32xbf16>
    %c0_13 = arith.constant 0 : index
    %c0_14 = arith.constant 0 : index
    %c0_15 = arith.constant 0 : index
    %9 = vector.load %arg8[%c0_13, %c0_14, %c0_15] : memref<1x184x1xf32, #tpu.memory_space<vmem>>, vector<1x184x1xf32>
    %10 = vector.shape_cast %9 : vector<1x184x1xf32> to vector<184x1xf32>
    %11 = vector.extract_strided_slice %10 {offsets = [0, 0], sizes = [32, 1], strides = [1, 1]} : vector<184x1xf32> to vector<32x1xf32>
    %12 = vector.extract_strided_slice %10 {offsets = [32, 0], sizes = [16, 1], strides = [1, 1]} : vector<184x1xf32> to vector<16x1xf32>
    %13 = vector.extract_strided_slice %10 {offsets = [48, 0], sizes = [32, 1], strides = [1, 1]} : vector<184x1xf32> to vector<32x1xf32>
    %14 = vector.extract_strided_slice %10 {offsets = [80, 0], sizes = [16, 1], strides = [1, 1]} : vector<184x1xf32> to vector<16x1xf32>
    %15 = vector.extract_strided_slice %10 {offsets = [96, 0], sizes = [32, 1], strides = [1, 1]} : vector<184x1xf32> to vector<32x1xf32>
    %16 = vector.extract_strided_slice %10 {offsets = [128, 0], sizes = [16, 1], strides = [1, 1]} : vector<184x1xf32> to vector<16x1xf32>
    %17 = vector.extract_strided_slice %10 {offsets = [144, 0], sizes = [32, 1], strides = [1, 1]} : vector<184x1xf32> to vector<32x1xf32>
    %18 = vector.extract_strided_slice %10 {offsets = [176, 0], sizes = [8, 1], strides = [1, 1]} : vector<184x1xf32> to vector<8x1xf32>
    %19 = vector.extract_strided_slice %0 {offsets = [0, 0], sizes = [8, 128], strides = [1, 1]} : vector<16x128xf32> to vector<8x128xf32>
    %20 = arith.truncf %19 : vector<8x128xf32> to vector<8x128xbf16>
    %cst = arith.constant dense<0.000000e+00> : vector<32x128xf32>
    %21 = tpu.matmul %2, %20, %cst {dimension_numbers = #tpu.dot_dimension_numbers<[1], [0], [0], [1], [0, 0, 1, 1], [], []>} : vector<32x8xbf16>, vector<8x128xbf16>, vector<32x128xf32> -> vector<32x128xf32>
    %22 = vector.broadcast %11 : vector<32x1xf32> to vector<32x128xf32>
    %23 = arith.addf %21, %22 : vector<32x128xf32>
    %cst_16 = arith.constant 0.000000e+00 : f32
    %24 = vector.broadcast %cst_16 : f32 to vector<32x128xf32>
    %25 = arith.cmpf oge, %23, %24 : vector<32x128xf32>
    %cst_17 = arith.constant 1.000000e-01 : f32
    %26 = vector.broadcast %cst_17 : f32 to vector<32x128xf32>
    %27 = arith.mulf %26, %23 : vector<32x128xf32>
    %28 = arith.select %25, %23, %27 : vector<32x128xi1>, vector<32x128xf32>
    %29 = vector.extract_strided_slice %4 {offsets = [0, 0], sizes = [16, 32], strides = [1, 1]} : vector<48x32xbf16> to vector<16x32xbf16>
    %30 = vector.extract_strided_slice %6 {offsets = [0, 0], sizes = [32, 16], strides = [1, 1]} : vector<96x16xbf16> to vector<32x16xbf16>
    %31 = arith.truncf %28 : vector<32x128xf32> to vector<32x128xbf16>
    %cst_18 = arith.constant dense<0.000000e+00> : vector<16x128xf32>
    %32 = tpu.matmul %29, %31, %cst_18 {dimension_numbers = #tpu.dot_dimension_numbers<[1], [0], [0], [1], [0, 0, 1, 1], [], []>} : vector<16x32xbf16>, vector<32x128xbf16>, vector<16x128xf32> -> vector<16x128xf32>
    %33 = vector.broadcast %12 : vector<16x1xf32> to vector<16x128xf32>
    %34 = arith.addf %32, %33 : vector<16x128xf32>
    %cst_19 = arith.constant 0.000000e+00 : f32
    %35 = vector.broadcast %cst_19 : f32 to vector<16x128xf32>
    %36 = arith.cmpf oge, %34, %35 : vector<16x128xf32>
    %cst_20 = arith.constant 2.000000e-01 : f32
    %37 = vector.broadcast %cst_20 : f32 to vector<16x128xf32>
    %38 = arith.mulf %37, %34 : vector<16x128xf32>
    %39 = arith.select %36, %34, %38 : vector<16x128xi1>, vector<16x128xf32>
    %40 = arith.truncf %39 : vector<16x128xf32> to vector<16x128xbf16>
    %cst_21 = arith.constant dense<0.000000e+00> : vector<32x128xf32>
    %41 = tpu.matmul %30, %40, %cst_21 {dimension_numbers = #tpu.dot_dimension_numbers<[1], [0], [0], [1], [0, 0, 1, 1], [], []>} : vector<32x16xbf16>, vector<16x128xbf16>, vector<32x128xf32> -> vector<32x128xf32>
    %42 = vector.broadcast %13 : vector<32x1xf32> to vector<32x128xf32>
    %43 = arith.addf %41, %42 : vector<32x128xf32>
    %cst_22 = arith.constant 0.000000e+00 : f32
    %44 = vector.broadcast %cst_22 : f32 to vector<32x128xf32>
    %45 = arith.cmpf oge, %43, %44 : vector<32x128xf32>
    %cst_23 = arith.constant 2.000000e-01 : f32
    %46 = vector.broadcast %cst_23 : f32 to vector<32x128xf32>
    %47 = arith.mulf %46, %43 : vector<32x128xf32>
    %48 = arith.select %45, %43, %47 : vector<32x128xi1>, vector<32x128xf32>
    %49 = arith.addf %28, %48 : vector<32x128xf32>
    %50 = vector.extract_strided_slice %4 {offsets = [16, 0], sizes = [16, 32], strides = [1, 1]} : vector<48x32xbf16> to vector<16x32xbf16>
    %51 = vector.extract_strided_slice %6 {offsets = [32, 0], sizes = [32, 16], strides = [1, 1]} : vector<96x16xbf16> to vector<32x16xbf16>
    %52 = arith.truncf %49 : vector<32x128xf32> to vector<32x128xbf16>
    %cst_24 = arith.constant dense<0.000000e+00> : vector<16x128xf32>
    %53 = tpu.matmul %50, %52, %cst_24 {dimension_numbers = #tpu.dot_dimension_numbers<[1], [0], [0], [1], [0, 0, 1, 1], [], []>} : vector<16x32xbf16>, vector<32x128xbf16>, vector<16x128xf32> -> vector<16x128xf32>
    %54 = vector.broadcast %14 : vector<16x1xf32> to vector<16x128xf32>
    %55 = arith.addf %53, %54 : vector<16x128xf32>
    %cst_25 = arith.constant 0.000000e+00 : f32
    %56 = vector.broadcast %cst_25 : f32 to vector<16x128xf32>
    %57 = arith.cmpf oge, %55, %56 : vector<16x128xf32>
    %cst_26 = arith.constant 2.000000e-01 : f32
    %58 = vector.broadcast %cst_26 : f32 to vector<16x128xf32>
    %59 = arith.mulf %58, %55 : vector<16x128xf32>
    %60 = arith.select %57, %55, %59 : vector<16x128xi1>, vector<16x128xf32>
    %61 = arith.truncf %60 : vector<16x128xf32> to vector<16x128xbf16>
    %cst_27 = arith.constant dense<0.000000e+00> : vector<32x128xf32>
    %62 = tpu.matmul %51, %61, %cst_27 {dimension_numbers = #tpu.dot_dimension_numbers<[1], [0], [0], [1], [0, 0, 1, 1], [], []>} : vector<32x16xbf16>, vector<16x128xbf16>, vector<32x128xf32> -> vector<32x128xf32>
    %63 = vector.broadcast %15 : vector<32x1xf32> to vector<32x128xf32>
    %64 = arith.addf %62, %63 : vector<32x128xf32>
    %cst_28 = arith.constant 0.000000e+00 : f32
    %65 = vector.broadcast %cst_28 : f32 to vector<32x128xf32>
    %66 = arith.cmpf oge, %64, %65 : vector<32x128xf32>
    %cst_29 = arith.constant 2.000000e-01 : f32
    %67 = vector.broadcast %cst_29 : f32 to vector<32x128xf32>
    %68 = arith.mulf %67, %64 : vector<32x128xf32>
    %69 = arith.select %66, %64, %68 : vector<32x128xi1>, vector<32x128xf32>
    %70 = arith.addf %49, %69 : vector<32x128xf32>
    %71 = vector.extract_strided_slice %4 {offsets = [32, 0], sizes = [16, 32], strides = [1, 1]} : vector<48x32xbf16> to vector<16x32xbf16>
    %72 = vector.extract_strided_slice %6 {offsets = [64, 0], sizes = [32, 16], strides = [1, 1]} : vector<96x16xbf16> to vector<32x16xbf16>
    %73 = arith.truncf %70 : vector<32x128xf32> to vector<32x128xbf16>
    %cst_30 = arith.constant dense<0.000000e+00> : vector<16x128xf32>
    %74 = tpu.matmul %71, %73, %cst_30 {dimension_numbers = #tpu.dot_dimension_numbers<[1], [0], [0], [1], [0, 0, 1, 1], [], []>} : vector<16x32xbf16>, vector<32x128xbf16>, vector<16x128xf32> -> vector<16x128xf32>
    %75 = vector.broadcast %16 : vector<16x1xf32> to vector<16x128xf32>
    %76 = arith.addf %74, %75 : vector<16x128xf32>
    %cst_31 = arith.constant 0.000000e+00 : f32
    %77 = vector.broadcast %cst_31 : f32 to vector<16x128xf32>
    %78 = arith.cmpf oge, %76, %77 : vector<16x128xf32>
    %cst_32 = arith.constant 2.000000e-01 : f32
    %79 = vector.broadcast %cst_32 : f32 to vector<16x128xf32>
    %80 = arith.mulf %79, %76 : vector<16x128xf32>
    %81 = arith.select %78, %76, %80 : vector<16x128xi1>, vector<16x128xf32>
    %82 = arith.truncf %81 : vector<16x128xf32> to vector<16x128xbf16>
    %cst_33 = arith.constant dense<0.000000e+00> : vector<32x128xf32>
    %83 = tpu.matmul %72, %82, %cst_33 {dimension_numbers = #tpu.dot_dimension_numbers<[1], [0], [0], [1], [0, 0, 1, 1], [], []>} : vector<32x16xbf16>, vector<16x128xbf16>, vector<32x128xf32> -> vector<32x128xf32>
    %84 = vector.broadcast %17 : vector<32x1xf32> to vector<32x128xf32>
    %85 = arith.addf %83, %84 : vector<32x128xf32>
    %cst_34 = arith.constant 0.000000e+00 : f32
    %86 = vector.broadcast %cst_34 : f32 to vector<32x128xf32>
    %87 = arith.cmpf oge, %85, %86 : vector<32x128xf32>
    %cst_35 = arith.constant 2.000000e-01 : f32
    %88 = vector.broadcast %cst_35 : f32 to vector<32x128xf32>
    %89 = arith.mulf %88, %85 : vector<32x128xf32>
    %90 = arith.select %87, %85, %89 : vector<32x128xi1>, vector<32x128xf32>
    %91 = arith.addf %70, %90 : vector<32x128xf32>
    %92 = arith.truncf %91 : vector<32x128xf32> to vector<32x128xbf16>
    %cst_36 = arith.constant dense<0.000000e+00> : vector<8x128xf32>
    %93 = tpu.matmul %8, %92, %cst_36 {dimension_numbers = #tpu.dot_dimension_numbers<[1], [0], [0], [1], [0, 0, 1, 1], [], []>} : vector<8x32xbf16>, vector<32x128xbf16>, vector<8x128xf32> -> vector<8x128xf32>
    %94 = vector.broadcast %18 : vector<8x1xf32> to vector<8x128xf32>
    %95 = arith.addf %93, %94 : vector<8x128xf32>
    %96 = vector.extract_strided_slice %0 {offsets = [1, 0], sizes = [8, 128], strides = [1, 1]} : vector<16x128xf32> to vector<8x128xf32>
    %97 = arith.truncf %96 : vector<8x128xf32> to vector<8x128xbf16>
    %cst_37 = arith.constant dense<0.000000e+00> : vector<32x128xf32>
    %98 = tpu.matmul %2, %97, %cst_37 {dimension_numbers = #tpu.dot_dimension_numbers<[1], [0], [0], [1], [0, 0, 1, 1], [], []>} : vector<32x8xbf16>, vector<8x128xbf16>, vector<32x128xf32> -> vector<32x128xf32>
    %99 = vector.broadcast %11 : vector<32x1xf32> to vector<32x128xf32>
    %100 = arith.addf %98, %99 : vector<32x128xf32>
    %cst_38 = arith.constant 0.000000e+00 : f32
    %101 = vector.broadcast %cst_38 : f32 to vector<32x128xf32>
    %102 = arith.cmpf oge, %100, %101 : vector<32x128xf32>
    %cst_39 = arith.constant 1.000000e-01 : f32
    %103 = vector.broadcast %cst_39 : f32 to vector<32x128xf32>
    %104 = arith.mulf %103, %100 : vector<32x128xf32>
    %105 = arith.select %102, %100, %104 : vector<32x128xi1>, vector<32x128xf32>
    %106 = vector.extract_strided_slice %4 {offsets = [0, 0], sizes = [16, 32], strides = [1, 1]} : vector<48x32xbf16> to vector<16x32xbf16>
    %107 = vector.extract_strided_slice %6 {offsets = [0, 0], sizes = [32, 16], strides = [1, 1]} : vector<96x16xbf16> to vector<32x16xbf16>
    %108 = arith.truncf %105 : vector<32x128xf32> to vector<32x128xbf16>
    %cst_40 = arith.constant dense<0.000000e+00> : vector<16x128xf32>
    %109 = tpu.matmul %106, %108, %cst_40 {dimension_numbers = #tpu.dot_dimension_numbers<[1], [0], [0], [1], [0, 0, 1, 1], [], []>} : vector<16x32xbf16>, vector<32x128xbf16>, vector<16x128xf32> -> vector<16x128xf32>
    %110 = vector.broadcast %12 : vector<16x1xf32> to vector<16x128xf32>
    %111 = arith.addf %109, %110 : vector<16x128xf32>
    %cst_41 = arith.constant 0.000000e+00 : f32
    %112 = vector.broadcast %cst_41 : f32 to vector<16x128xf32>
    %113 = arith.cmpf oge, %111, %112 : vector<16x128xf32>
    %cst_42 = arith.constant 2.000000e-01 : f32
    %114 = vector.broadcast %cst_42 : f32 to vector<16x128xf32>
    %115 = arith.mulf %114, %111 : vector<16x128xf32>
    %116 = arith.select %113, %111, %115 : vector<16x128xi1>, vector<16x128xf32>
    %117 = arith.truncf %116 : vector<16x128xf32> to vector<16x128xbf16>
    %cst_43 = arith.constant dense<0.000000e+00> : vector<32x128xf32>
    %118 = tpu.matmul %107, %117, %cst_43 {dimension_numbers = #tpu.dot_dimension_numbers<[1], [0], [0], [1], [0, 0, 1, 1], [], []>} : vector<32x16xbf16>, vector<16x128xbf16>, vector<32x128xf32> -> vector<32x128xf32>
    %119 = vector.broadcast %13 : vector<32x1xf32> to vector<32x128xf32>
    %120 = arith.addf %118, %119 : vector<32x128xf32>
    %cst_44 = arith.constant 0.000000e+00 : f32
    %121 = vector.broadcast %cst_44 : f32 to vector<32x128xf32>
    %122 = arith.cmpf oge, %120, %121 : vector<32x128xf32>
    %cst_45 = arith.constant 2.000000e-01 : f32
    %123 = vector.broadcast %cst_45 : f32 to vector<32x128xf32>
    %124 = arith.mulf %123, %120 : vector<32x128xf32>
    %125 = arith.select %122, %120, %124 : vector<32x128xi1>, vector<32x128xf32>
    %126 = arith.addf %105, %125 : vector<32x128xf32>
    %127 = vector.extract_strided_slice %4 {offsets = [16, 0], sizes = [16, 32], strides = [1, 1]} : vector<48x32xbf16> to vector<16x32xbf16>
    %128 = vector.extract_strided_slice %6 {offsets = [32, 0], sizes = [32, 16], strides = [1, 1]} : vector<96x16xbf16> to vector<32x16xbf16>
    %129 = arith.truncf %126 : vector<32x128xf32> to vector<32x128xbf16>
    %cst_46 = arith.constant dense<0.000000e+00> : vector<16x128xf32>
    %130 = tpu.matmul %127, %129, %cst_46 {dimension_numbers = #tpu.dot_dimension_numbers<[1], [0], [0], [1], [0, 0, 1, 1], [], []>} : vector<16x32xbf16>, vector<32x128xbf16>, vector<16x128xf32> -> vector<16x128xf32>
    %131 = vector.broadcast %14 : vector<16x1xf32> to vector<16x128xf32>
    %132 = arith.addf %130, %131 : vector<16x128xf32>
    %cst_47 = arith.constant 0.000000e+00 : f32
    %133 = vector.broadcast %cst_47 : f32 to vector<16x128xf32>
    %134 = arith.cmpf oge, %132, %133 : vector<16x128xf32>
    %cst_48 = arith.constant 2.000000e-01 : f32
    %135 = vector.broadcast %cst_48 : f32 to vector<16x128xf32>
    %136 = arith.mulf %135, %132 : vector<16x128xf32>
    %137 = arith.select %134, %132, %136 : vector<16x128xi1>, vector<16x128xf32>
    %138 = arith.truncf %137 : vector<16x128xf32> to vector<16x128xbf16>
    %cst_49 = arith.constant dense<0.000000e+00> : vector<32x128xf32>
    %139 = tpu.matmul %128, %138, %cst_49 {dimension_numbers = #tpu.dot_dimension_numbers<[1], [0], [0], [1], [0, 0, 1, 1], [], []>} : vector<32x16xbf16>, vector<16x128xbf16>, vector<32x128xf32> -> vector<32x128xf32>
    %140 = vector.broadcast %15 : vector<32x1xf32> to vector<32x128xf32>
    %141 = arith.addf %139, %140 : vector<32x128xf32>
    %cst_50 = arith.constant 0.000000e+00 : f32
    %142 = vector.broadcast %cst_50 : f32 to vector<32x128xf32>
    %143 = arith.cmpf oge, %141, %142 : vector<32x128xf32>
    %cst_51 = arith.constant 2.000000e-01 : f32
    %144 = vector.broadcast %cst_51 : f32 to vector<32x128xf32>
    %145 = arith.mulf %144, %141 : vector<32x128xf32>
    %146 = arith.select %143, %141, %145 : vector<32x128xi1>, vector<32x128xf32>
    %147 = arith.addf %126, %146 : vector<32x128xf32>
    %148 = vector.extract_strided_slice %4 {offsets = [32, 0], sizes = [16, 32], strides = [1, 1]} : vector<48x32xbf16> to vector<16x32xbf16>
    %149 = vector.extract_strided_slice %6 {offsets = [64, 0], sizes = [32, 16], strides = [1, 1]} : vector<96x16xbf16> to vector<32x16xbf16>
    %150 = arith.truncf %147 : vector<32x128xf32> to vector<32x128xbf16>
    %cst_52 = arith.constant dense<0.000000e+00> : vector<16x128xf32>
    %151 = tpu.matmul %148, %150, %cst_52 {dimension_numbers = #tpu.dot_dimension_numbers<[1], [0], [0], [1], [0, 0, 1, 1], [], []>} : vector<16x32xbf16>, vector<32x128xbf16>, vector<16x128xf32> -> vector<16x128xf32>
    %152 = vector.broadcast %16 : vector<16x1xf32> to vector<16x128xf32>
    %153 = arith.addf %151, %152 : vector<16x128xf32>
    %cst_53 = arith.constant 0.000000e+00 : f32
    %154 = vector.broadcast %cst_53 : f32 to vector<16x128xf32>
    %155 = arith.cmpf oge, %153, %154 : vector<16x128xf32>
    %cst_54 = arith.constant 2.000000e-01 : f32
    %156 = vector.broadcast %cst_54 : f32 to vector<16x128xf32>
    %157 = arith.mulf %156, %153 : vector<16x128xf32>
    %158 = arith.select %155, %153, %157 : vector<16x128xi1>, vector<16x128xf32>
    %159 = arith.truncf %158 : vector<16x128xf32> to vector<16x128xbf16>
    %cst_55 = arith.constant dense<0.000000e+00> : vector<32x128xf32>
    %160 = tpu.matmul %149, %159, %cst_55 {dimension_numbers = #tpu.dot_dimension_numbers<[1], [0], [0], [1], [0, 0, 1, 1], [], []>} : vector<32x16xbf16>, vector<16x128xbf16>, vector<32x128xf32> -> vector<32x128xf32>
    %161 = vector.broadcast %17 : vector<32x1xf32> to vector<32x128xf32>
    %162 = arith.addf %160, %161 : vector<32x128xf32>
    %cst_56 = arith.constant 0.000000e+00 : f32
    %163 = vector.broadcast %cst_56 : f32 to vector<32x128xf32>
    %164 = arith.cmpf oge, %162, %163 : vector<32x128xf32>
    %cst_57 = arith.constant 2.000000e-01 : f32
    %165 = vector.broadcast %cst_57 : f32 to vector<32x128xf32>
    %166 = arith.mulf %165, %162 : vector<32x128xf32>
    %167 = arith.select %164, %162, %166 : vector<32x128xi1>, vector<32x128xf32>
    %168 = arith.addf %147, %167 : vector<32x128xf32>
    %169 = arith.truncf %168 : vector<32x128xf32> to vector<32x128xbf16>
    %cst_58 = arith.constant dense<0.000000e+00> : vector<8x128xf32>
    %170 = tpu.matmul %8, %169, %cst_58 {dimension_numbers = #tpu.dot_dimension_numbers<[1], [0], [0], [1], [0, 0, 1, 1], [], []>} : vector<8x32xbf16>, vector<32x128xbf16>, vector<8x128xf32> -> vector<8x128xf32>
    %171 = vector.broadcast %18 : vector<8x1xf32> to vector<8x128xf32>
    %172 = arith.addf %170, %171 : vector<8x128xf32>
    %173 = vector.extract_strided_slice %0 {offsets = [2, 0], sizes = [8, 128], strides = [1, 1]} : vector<16x128xf32> to vector<8x128xf32>
    %174 = arith.truncf %173 : vector<8x128xf32> to vector<8x128xbf16>
    %cst_59 = arith.constant dense<0.000000e+00> : vector<32x128xf32>
    %175 = tpu.matmul %2, %174, %cst_59 {dimension_numbers = #tpu.dot_dimension_numbers<[1], [0], [0], [1], [0, 0, 1, 1], [], []>} : vector<32x8xbf16>, vector<8x128xbf16>, vector<32x128xf32> -> vector<32x128xf32>
    %176 = vector.broadcast %11 : vector<32x1xf32> to vector<32x128xf32>
    %177 = arith.addf %175, %176 : vector<32x128xf32>
    %cst_60 = arith.constant 0.000000e+00 : f32
    %178 = vector.broadcast %cst_60 : f32 to vector<32x128xf32>
    %179 = arith.cmpf oge, %177, %178 : vector<32x128xf32>
    %cst_61 = arith.constant 1.000000e-01 : f32
    %180 = vector.broadcast %cst_61 : f32 to vector<32x128xf32>
    %181 = arith.mulf %180, %177 : vector<32x128xf32>
    %182 = arith.select %179, %177, %181 : vector<32x128xi1>, vector<32x128xf32>
    %183 = vector.extract_strided_slice %4 {offsets = [0, 0], sizes = [16, 32], strides = [1, 1]} : vector<48x32xbf16> to vector<16x32xbf16>
    %184 = vector.extract_strided_slice %6 {offsets = [0, 0], sizes = [32, 16], strides = [1, 1]} : vector<96x16xbf16> to vector<32x16xbf16>
    %185 = arith.truncf %182 : vector<32x128xf32> to vector<32x128xbf16>
    %cst_62 = arith.constant dense<0.000000e+00> : vector<16x128xf32>
    %186 = tpu.matmul %183, %185, %cst_62 {dimension_numbers = #tpu.dot_dimension_numbers<[1], [0], [0], [1], [0, 0, 1, 1], [], []>} : vector<16x32xbf16>, vector<32x128xbf16>, vector<16x128xf32> -> vector<16x128xf32>
    %187 = vector.broadcast %12 : vector<16x1xf32> to vector<16x128xf32>
    %188 = arith.addf %186, %187 : vector<16x128xf32>
    %cst_63 = arith.constant 0.000000e+00 : f32
    %189 = vector.broadcast %cst_63 : f32 to vector<16x128xf32>
    %190 = arith.cmpf oge, %188, %189 : vector<16x128xf32>
    %cst_64 = arith.constant 2.000000e-01 : f32
    %191 = vector.broadcast %cst_64 : f32 to vector<16x128xf32>
    %192 = arith.mulf %191, %188 : vector<16x128xf32>
    %193 = arith.select %190, %188, %192 : vector<16x128xi1>, vector<16x128xf32>
    %194 = arith.truncf %193 : vector<16x128xf32> to vector<16x128xbf16>
    %cst_65 = arith.constant dense<0.000000e+00> : vector<32x128xf32>
    %195 = tpu.matmul %184, %194, %cst_65 {dimension_numbers = #tpu.dot_dimension_numbers<[1], [0], [0], [1], [0, 0, 1, 1], [], []>} : vector<32x16xbf16>, vector<16x128xbf16>, vector<32x128xf32> -> vector<32x128xf32>
    %196 = vector.broadcast %13 : vector<32x1xf32> to vector<32x128xf32>
    %197 = arith.addf %195, %196 : vector<32x128xf32>
    %cst_66 = arith.constant 0.000000e+00 : f32
    %198 = vector.broadcast %cst_66 : f32 to vector<32x128xf32>
    %199 = arith.cmpf oge, %197, %198 : vector<32x128xf32>
    %cst_67 = arith.constant 2.000000e-01 : f32
    %200 = vector.broadcast %cst_67 : f32 to vector<32x128xf32>
    %201 = arith.mulf %200, %197 : vector<32x128xf32>
    %202 = arith.select %199, %197, %201 : vector<32x128xi1>, vector<32x128xf32>
    %203 = arith.addf %182, %202 : vector<32x128xf32>
    %204 = vector.extract_strided_slice %4 {offsets = [16, 0], sizes = [16, 32], strides = [1, 1]} : vector<48x32xbf16> to vector<16x32xbf16>
    %205 = vector.extract_strided_slice %6 {offsets = [32, 0], sizes = [32, 16], strides = [1, 1]} : vector<96x16xbf16> to vector<32x16xbf16>
    %206 = arith.truncf %203 : vector<32x128xf32> to vector<32x128xbf16>
    %cst_68 = arith.constant dense<0.000000e+00> : vector<16x128xf32>
    %207 = tpu.matmul %204, %206, %cst_68 {dimension_numbers = #tpu.dot_dimension_numbers<[1], [0], [0], [1], [0, 0, 1, 1], [], []>} : vector<16x32xbf16>, vector<32x128xbf16>, vector<16x128xf32> -> vector<16x128xf32>
    %208 = vector.broadcast %14 : vector<16x1xf32> to vector<16x128xf32>
    %209 = arith.addf %207, %208 : vector<16x128xf32>
    %cst_69 = arith.constant 0.000000e+00 : f32
    %210 = vector.broadcast %cst_69 : f32 to vector<16x128xf32>
    %211 = arith.cmpf oge, %209, %210 : vector<16x128xf32>
    %cst_70 = arith.constant 2.000000e-01 : f32
    %212 = vector.broadcast %cst_70 : f32 to vector<16x128xf32>
    %213 = arith.mulf %212, %209 : vector<16x128xf32>
    %214 = arith.select %211, %209, %213 : vector<16x128xi1>, vector<16x128xf32>
    %215 = arith.truncf %214 : vector<16x128xf32> to vector<16x128xbf16>
    %cst_71 = arith.constant dense<0.000000e+00> : vector<32x128xf32>
    %216 = tpu.matmul %205, %215, %cst_71 {dimension_numbers = #tpu.dot_dimension_numbers<[1], [0], [0], [1], [0, 0, 1, 1], [], []>} : vector<32x16xbf16>, vector<16x128xbf16>, vector<32x128xf32> -> vector<32x128xf32>
    %217 = vector.broadcast %15 : vector<32x1xf32> to vector<32x128xf32>
    %218 = arith.addf %216, %217 : vector<32x128xf32>
    %cst_72 = arith.constant 0.000000e+00 : f32
    %219 = vector.broadcast %cst_72 : f32 to vector<32x128xf32>
    %220 = arith.cmpf oge, %218, %219 : vector<32x128xf32>
    %cst_73 = arith.constant 2.000000e-01 : f32
    %221 = vector.broadcast %cst_73 : f32 to vector<32x128xf32>
    %222 = arith.mulf %221, %218 : vector<32x128xf32>
    %223 = arith.select %220, %218, %222 : vector<32x128xi1>, vector<32x128xf32>
    %224 = arith.addf %203, %223 : vector<32x128xf32>
    %225 = vector.extract_strided_slice %4 {offsets = [32, 0], sizes = [16, 32], strides = [1, 1]} : vector<48x32xbf16> to vector<16x32xbf16>
    %226 = vector.extract_strided_slice %6 {offsets = [64, 0], sizes = [32, 16], strides = [1, 1]} : vector<96x16xbf16> to vector<32x16xbf16>
    %227 = arith.truncf %224 : vector<32x128xf32> to vector<32x128xbf16>
    %cst_74 = arith.constant dense<0.000000e+00> : vector<16x128xf32>
    %228 = tpu.matmul %225, %227, %cst_74 {dimension_numbers = #tpu.dot_dimension_numbers<[1], [0], [0], [1], [0, 0, 1, 1], [], []>} : vector<16x32xbf16>, vector<32x128xbf16>, vector<16x128xf32> -> vector<16x128xf32>
    %229 = vector.broadcast %16 : vector<16x1xf32> to vector<16x128xf32>
    %230 = arith.addf %228, %229 : vector<16x128xf32>
    %cst_75 = arith.constant 0.000000e+00 : f32
    %231 = vector.broadcast %cst_75 : f32 to vector<16x128xf32>
    %232 = arith.cmpf oge, %230, %231 : vector<16x128xf32>
    %cst_76 = arith.constant 2.000000e-01 : f32
    %233 = vector.broadcast %cst_76 : f32 to vector<16x128xf32>
    %234 = arith.mulf %233, %230 : vector<16x128xf32>
    %235 = arith.select %232, %230, %234 : vector<16x128xi1>, vector<16x128xf32>
    %236 = arith.truncf %235 : vector<16x128xf32> to vector<16x128xbf16>
    %cst_77 = arith.constant dense<0.000000e+00> : vector<32x128xf32>
    %237 = tpu.matmul %226, %236, %cst_77 {dimension_numbers = #tpu.dot_dimension_numbers<[1], [0], [0], [1], [0, 0, 1, 1], [], []>} : vector<32x16xbf16>, vector<16x128xbf16>, vector<32x128xf32> -> vector<32x128xf32>
    %238 = vector.broadcast %17 : vector<32x1xf32> to vector<32x128xf32>
    %239 = arith.addf %237, %238 : vector<32x128xf32>
    %cst_78 = arith.constant 0.000000e+00 : f32
    %240 = vector.broadcast %cst_78 : f32 to vector<32x128xf32>
    %241 = arith.cmpf oge, %239, %240 : vector<32x128xf32>
    %cst_79 = arith.constant 2.000000e-01 : f32
    %242 = vector.broadcast %cst_79 : f32 to vector<32x128xf32>
    %243 = arith.mulf %242, %239 : vector<32x128xf32>
    %244 = arith.select %241, %239, %243 : vector<32x128xi1>, vector<32x128xf32>
    %245 = arith.addf %224, %244 : vector<32x128xf32>
    %246 = arith.truncf %245 : vector<32x128xf32> to vector<32x128xbf16>
    %cst_80 = arith.constant dense<0.000000e+00> : vector<8x128xf32>
    %247 = tpu.matmul %8, %246, %cst_80 {dimension_numbers = #tpu.dot_dimension_numbers<[1], [0], [0], [1], [0, 0, 1, 1], [], []>} : vector<8x32xbf16>, vector<32x128xbf16>, vector<8x128xf32> -> vector<8x128xf32>
    %248 = vector.broadcast %18 : vector<8x1xf32> to vector<8x128xf32>
    %249 = arith.addf %247, %248 : vector<8x128xf32>
    %250 = vector.extract_strided_slice %0 {offsets = [3, 0], sizes = [8, 128], strides = [1, 1]} : vector<16x128xf32> to vector<8x128xf32>
    %251 = arith.truncf %250 : vector<8x128xf32> to vector<8x128xbf16>
    %cst_81 = arith.constant dense<0.000000e+00> : vector<32x128xf32>
    %252 = tpu.matmul %2, %251, %cst_81 {dimension_numbers = #tpu.dot_dimension_numbers<[1], [0], [0], [1], [0, 0, 1, 1], [], []>} : vector<32x8xbf16>, vector<8x128xbf16>, vector<32x128xf32> -> vector<32x128xf32>
    %253 = vector.broadcast %11 : vector<32x1xf32> to vector<32x128xf32>
    %254 = arith.addf %252, %253 : vector<32x128xf32>
    %cst_82 = arith.constant 0.000000e+00 : f32
    %255 = vector.broadcast %cst_82 : f32 to vector<32x128xf32>
    %256 = arith.cmpf oge, %254, %255 : vector<32x128xf32>
    %cst_83 = arith.constant 1.000000e-01 : f32
    %257 = vector.broadcast %cst_83 : f32 to vector<32x128xf32>
    %258 = arith.mulf %257, %254 : vector<32x128xf32>
    %259 = arith.select %256, %254, %258 : vector<32x128xi1>, vector<32x128xf32>
    %260 = vector.extract_strided_slice %4 {offsets = [0, 0], sizes = [16, 32], strides = [1, 1]} : vector<48x32xbf16> to vector<16x32xbf16>
    %261 = vector.extract_strided_slice %6 {offsets = [0, 0], sizes = [32, 16], strides = [1, 1]} : vector<96x16xbf16> to vector<32x16xbf16>
    %262 = arith.truncf %259 : vector<32x128xf32> to vector<32x128xbf16>
    %cst_84 = arith.constant dense<0.000000e+00> : vector<16x128xf32>
    %263 = tpu.matmul %260, %262, %cst_84 {dimension_numbers = #tpu.dot_dimension_numbers<[1], [0], [0], [1], [0, 0, 1, 1], [], []>} : vector<16x32xbf16>, vector<32x128xbf16>, vector<16x128xf32> -> vector<16x128xf32>
    %264 = vector.broadcast %12 : vector<16x1xf32> to vector<16x128xf32>
    %265 = arith.addf %263, %264 : vector<16x128xf32>
    %cst_85 = arith.constant 0.000000e+00 : f32
    %266 = vector.broadcast %cst_85 : f32 to vector<16x128xf32>
    %267 = arith.cmpf oge, %265, %266 : vector<16x128xf32>
    %cst_86 = arith.constant 2.000000e-01 : f32
    %268 = vector.broadcast %cst_86 : f32 to vector<16x128xf32>
    %269 = arith.mulf %268, %265 : vector<16x128xf32>
    %270 = arith.select %267, %265, %269 : vector<16x128xi1>, vector<16x128xf32>
    %271 = arith.truncf %270 : vector<16x128xf32> to vector<16x128xbf16>
    %cst_87 = arith.constant dense<0.000000e+00> : vector<32x128xf32>
    %272 = tpu.matmul %261, %271, %cst_87 {dimension_numbers = #tpu.dot_dimension_numbers<[1], [0], [0], [1], [0, 0, 1, 1], [], []>} : vector<32x16xbf16>, vector<16x128xbf16>, vector<32x128xf32> -> vector<32x128xf32>
    %273 = vector.broadcast %13 : vector<32x1xf32> to vector<32x128xf32>
    %274 = arith.addf %272, %273 : vector<32x128xf32>
    %cst_88 = arith.constant 0.000000e+00 : f32
    %275 = vector.broadcast %cst_88 : f32 to vector<32x128xf32>
    %276 = arith.cmpf oge, %274, %275 : vector<32x128xf32>
    %cst_89 = arith.constant 2.000000e-01 : f32
    %277 = vector.broadcast %cst_89 : f32 to vector<32x128xf32>
    %278 = arith.mulf %277, %274 : vector<32x128xf32>
    %279 = arith.select %276, %274, %278 : vector<32x128xi1>, vector<32x128xf32>
    %280 = arith.addf %259, %279 : vector<32x128xf32>
    %281 = vector.extract_strided_slice %4 {offsets = [16, 0], sizes = [16, 32], strides = [1, 1]} : vector<48x32xbf16> to vector<16x32xbf16>
    %282 = vector.extract_strided_slice %6 {offsets = [32, 0], sizes = [32, 16], strides = [1, 1]} : vector<96x16xbf16> to vector<32x16xbf16>
    %283 = arith.truncf %280 : vector<32x128xf32> to vector<32x128xbf16>
    %cst_90 = arith.constant dense<0.000000e+00> : vector<16x128xf32>
    %284 = tpu.matmul %281, %283, %cst_90 {dimension_numbers = #tpu.dot_dimension_numbers<[1], [0], [0], [1], [0, 0, 1, 1], [], []>} : vector<16x32xbf16>, vector<32x128xbf16>, vector<16x128xf32> -> vector<16x128xf32>
    %285 = vector.broadcast %14 : vector<16x1xf32> to vector<16x128xf32>
    %286 = arith.addf %284, %285 : vector<16x128xf32>
    %cst_91 = arith.constant 0.000000e+00 : f32
    %287 = vector.broadcast %cst_91 : f32 to vector<16x128xf32>
    %288 = arith.cmpf oge, %286, %287 : vector<16x128xf32>
    %cst_92 = arith.constant 2.000000e-01 : f32
    %289 = vector.broadcast %cst_92 : f32 to vector<16x128xf32>
    %290 = arith.mulf %289, %286 : vector<16x128xf32>
    %291 = arith.select %288, %286, %290 : vector<16x128xi1>, vector<16x128xf32>
    %292 = arith.truncf %291 : vector<16x128xf32> to vector<16x128xbf16>
    %cst_93 = arith.constant dense<0.000000e+00> : vector<32x128xf32>
    %293 = tpu.matmul %282, %292, %cst_93 {dimension_numbers = #tpu.dot_dimension_numbers<[1], [0], [0], [1], [0, 0, 1, 1], [], []>} : vector<32x16xbf16>, vector<16x128xbf16>, vector<32x128xf32> -> vector<32x128xf32>
    %294 = vector.broadcast %15 : vector<32x1xf32> to vector<32x128xf32>
    %295 = arith.addf %293, %294 : vector<32x128xf32>
    %cst_94 = arith.constant 0.000000e+00 : f32
    %296 = vector.broadcast %cst_94 : f32 to vector<32x128xf32>
    %297 = arith.cmpf oge, %295, %296 : vector<32x128xf32>
    %cst_95 = arith.constant 2.000000e-01 : f32
    %298 = vector.broadcast %cst_95 : f32 to vector<32x128xf32>
    %299 = arith.mulf %298, %295 : vector<32x128xf32>
    %300 = arith.select %297, %295, %299 : vector<32x128xi1>, vector<32x128xf32>
    %301 = arith.addf %280, %300 : vector<32x128xf32>
    %302 = vector.extract_strided_slice %4 {offsets = [32, 0], sizes = [16, 32], strides = [1, 1]} : vector<48x32xbf16> to vector<16x32xbf16>
    %303 = vector.extract_strided_slice %6 {offsets = [64, 0], sizes = [32, 16], strides = [1, 1]} : vector<96x16xbf16> to vector<32x16xbf16>
    %304 = arith.truncf %301 : vector<32x128xf32> to vector<32x128xbf16>
    %cst_96 = arith.constant dense<0.000000e+00> : vector<16x128xf32>
    %305 = tpu.matmul %302, %304, %cst_96 {dimension_numbers = #tpu.dot_dimension_numbers<[1], [0], [0], [1], [0, 0, 1, 1], [], []>} : vector<16x32xbf16>, vector<32x128xbf16>, vector<16x128xf32> -> vector<16x128xf32>
    %306 = vector.broadcast %16 : vector<16x1xf32> to vector<16x128xf32>
    %307 = arith.addf %305, %306 : vector<16x128xf32>
    %cst_97 = arith.constant 0.000000e+00 : f32
    %308 = vector.broadcast %cst_97 : f32 to vector<16x128xf32>
    %309 = arith.cmpf oge, %307, %308 : vector<16x128xf32>
    %cst_98 = arith.constant 2.000000e-01 : f32
    %310 = vector.broadcast %cst_98 : f32 to vector<16x128xf32>
    %311 = arith.mulf %310, %307 : vector<16x128xf32>
    %312 = arith.select %309, %307, %311 : vector<16x128xi1>, vector<16x128xf32>
    %313 = arith.truncf %312 : vector<16x128xf32> to vector<16x128xbf16>
    %cst_99 = arith.constant dense<0.000000e+00> : vector<32x128xf32>
    %314 = tpu.matmul %303, %313, %cst_99 {dimension_numbers = #tpu.dot_dimension_numbers<[1], [0], [0], [1], [0, 0, 1, 1], [], []>} : vector<32x16xbf16>, vector<16x128xbf16>, vector<32x128xf32> -> vector<32x128xf32>
    %315 = vector.broadcast %17 : vector<32x1xf32> to vector<32x128xf32>
    %316 = arith.addf %314, %315 : vector<32x128xf32>
    %cst_100 = arith.constant 0.000000e+00 : f32
    %317 = vector.broadcast %cst_100 : f32 to vector<32x128xf32>
    %318 = arith.cmpf oge, %316, %317 : vector<32x128xf32>
    %cst_101 = arith.constant 2.000000e-01 : f32
    %319 = vector.broadcast %cst_101 : f32 to vector<32x128xf32>
    %320 = arith.mulf %319, %316 : vector<32x128xf32>
    %321 = arith.select %318, %316, %320 : vector<32x128xi1>, vector<32x128xf32>
    %322 = arith.addf %301, %321 : vector<32x128xf32>
    %323 = arith.truncf %322 : vector<32x128xf32> to vector<32x128xbf16>
    %cst_102 = arith.constant dense<0.000000e+00> : vector<8x128xf32>
    %324 = tpu.matmul %8, %323, %cst_102 {dimension_numbers = #tpu.dot_dimension_numbers<[1], [0], [0], [1], [0, 0, 1, 1], [], []>} : vector<8x32xbf16>, vector<32x128xbf16>, vector<8x128xf32> -> vector<8x128xf32>
    %325 = vector.broadcast %18 : vector<8x1xf32> to vector<8x128xf32>
    %326 = arith.addf %324, %325 : vector<8x128xf32>
    %327 = vector.extract_strided_slice %0 {offsets = [4, 0], sizes = [8, 128], strides = [1, 1]} : vector<16x128xf32> to vector<8x128xf32>
    %328 = arith.truncf %327 : vector<8x128xf32> to vector<8x128xbf16>
    %cst_103 = arith.constant dense<0.000000e+00> : vector<32x128xf32>
    %329 = tpu.matmul %2, %328, %cst_103 {dimension_numbers = #tpu.dot_dimension_numbers<[1], [0], [0], [1], [0, 0, 1, 1], [], []>} : vector<32x8xbf16>, vector<8x128xbf16>, vector<32x128xf32> -> vector<32x128xf32>
    %330 = vector.broadcast %11 : vector<32x1xf32> to vector<32x128xf32>
    %331 = arith.addf %329, %330 : vector<32x128xf32>
    %cst_104 = arith.constant 0.000000e+00 : f32
    %332 = vector.broadcast %cst_104 : f32 to vector<32x128xf32>
    %333 = arith.cmpf oge, %331, %332 : vector<32x128xf32>
    %cst_105 = arith.constant 1.000000e-01 : f32
    %334 = vector.broadcast %cst_105 : f32 to vector<32x128xf32>
    %335 = arith.mulf %334, %331 : vector<32x128xf32>
    %336 = arith.select %333, %331, %335 : vector<32x128xi1>, vector<32x128xf32>
    %337 = vector.extract_strided_slice %4 {offsets = [0, 0], sizes = [16, 32], strides = [1, 1]} : vector<48x32xbf16> to vector<16x32xbf16>
    %338 = vector.extract_strided_slice %6 {offsets = [0, 0], sizes = [32, 16], strides = [1, 1]} : vector<96x16xbf16> to vector<32x16xbf16>
    %339 = arith.truncf %336 : vector<32x128xf32> to vector<32x128xbf16>
    %cst_106 = arith.constant dense<0.000000e+00> : vector<16x128xf32>
    %340 = tpu.matmul %337, %339, %cst_106 {dimension_numbers = #tpu.dot_dimension_numbers<[1], [0], [0], [1], [0, 0, 1, 1], [], []>} : vector<16x32xbf16>, vector<32x128xbf16>, vector<16x128xf32> -> vector<16x128xf32>
    %341 = vector.broadcast %12 : vector<16x1xf32> to vector<16x128xf32>
    %342 = arith.addf %340, %341 : vector<16x128xf32>
    %cst_107 = arith.constant 0.000000e+00 : f32
    %343 = vector.broadcast %cst_107 : f32 to vector<16x128xf32>
    %344 = arith.cmpf oge, %342, %343 : vector<16x128xf32>
    %cst_108 = arith.constant 2.000000e-01 : f32
    %345 = vector.broadcast %cst_108 : f32 to vector<16x128xf32>
    %346 = arith.mulf %345, %342 : vector<16x128xf32>
    %347 = arith.select %344, %342, %346 : vector<16x128xi1>, vector<16x128xf32>
    %348 = arith.truncf %347 : vector<16x128xf32> to vector<16x128xbf16>
    %cst_109 = arith.constant dense<0.000000e+00> : vector<32x128xf32>
    %349 = tpu.matmul %338, %348, %cst_109 {dimension_numbers = #tpu.dot_dimension_numbers<[1], [0], [0], [1], [0, 0, 1, 1], [], []>} : vector<32x16xbf16>, vector<16x128xbf16>, vector<32x128xf32> -> vector<32x128xf32>
    %350 = vector.broadcast %13 : vector<32x1xf32> to vector<32x128xf32>
    %351 = arith.addf %349, %350 : vector<32x128xf32>
    %cst_110 = arith.constant 0.000000e+00 : f32
    %352 = vector.broadcast %cst_110 : f32 to vector<32x128xf32>
    %353 = arith.cmpf oge, %351, %352 : vector<32x128xf32>
    %cst_111 = arith.constant 2.000000e-01 : f32
    %354 = vector.broadcast %cst_111 : f32 to vector<32x128xf32>
    %355 = arith.mulf %354, %351 : vector<32x128xf32>
    %356 = arith.select %353, %351, %355 : vector<32x128xi1>, vector<32x128xf32>
    %357 = arith.addf %336, %356 : vector<32x128xf32>
    %358 = vector.extract_strided_slice %4 {offsets = [16, 0], sizes = [16, 32], strides = [1, 1]} : vector<48x32xbf16> to vector<16x32xbf16>
    %359 = vector.extract_strided_slice %6 {offsets = [32, 0], sizes = [32, 16], strides = [1, 1]} : vector<96x16xbf16> to vector<32x16xbf16>
    %360 = arith.truncf %357 : vector<32x128xf32> to vector<32x128xbf16>
    %cst_112 = arith.constant dense<0.000000e+00> : vector<16x128xf32>
    %361 = tpu.matmul %358, %360, %cst_112 {dimension_numbers = #tpu.dot_dimension_numbers<[1], [0], [0], [1], [0, 0, 1, 1], [], []>} : vector<16x32xbf16>, vector<32x128xbf16>, vector<16x128xf32> -> vector<16x128xf32>
    %362 = vector.broadcast %14 : vector<16x1xf32> to vector<16x128xf32>
    %363 = arith.addf %361, %362 : vector<16x128xf32>
    %cst_113 = arith.constant 0.000000e+00 : f32
    %364 = vector.broadcast %cst_113 : f32 to vector<16x128xf32>
    %365 = arith.cmpf oge, %363, %364 : vector<16x128xf32>
    %cst_114 = arith.constant 2.000000e-01 : f32
    %366 = vector.broadcast %cst_114 : f32 to vector<16x128xf32>
    %367 = arith.mulf %366, %363 : vector<16x128xf32>
    %368 = arith.select %365, %363, %367 : vector<16x128xi1>, vector<16x128xf32>
    %369 = arith.truncf %368 : vector<16x128xf32> to vector<16x128xbf16>
    %cst_115 = arith.constant dense<0.000000e+00> : vector<32x128xf32>
    %370 = tpu.matmul %359, %369, %cst_115 {dimension_numbers = #tpu.dot_dimension_numbers<[1], [0], [0], [1], [0, 0, 1, 1], [], []>} : vector<32x16xbf16>, vector<16x128xbf16>, vector<32x128xf32> -> vector<32x128xf32>
    %371 = vector.broadcast %15 : vector<32x1xf32> to vector<32x128xf32>
    %372 = arith.addf %370, %371 : vector<32x128xf32>
    %cst_116 = arith.constant 0.000000e+00 : f32
    %373 = vector.broadcast %cst_116 : f32 to vector<32x128xf32>
    %374 = arith.cmpf oge, %372, %373 : vector<32x128xf32>
    %cst_117 = arith.constant 2.000000e-01 : f32
    %375 = vector.broadcast %cst_117 : f32 to vector<32x128xf32>
    %376 = arith.mulf %375, %372 : vector<32x128xf32>
    %377 = arith.select %374, %372, %376 : vector<32x128xi1>, vector<32x128xf32>
    %378 = arith.addf %357, %377 : vector<32x128xf32>
    %379 = vector.extract_strided_slice %4 {offsets = [32, 0], sizes = [16, 32], strides = [1, 1]} : vector<48x32xbf16> to vector<16x32xbf16>
    %380 = vector.extract_strided_slice %6 {offsets = [64, 0], sizes = [32, 16], strides = [1, 1]} : vector<96x16xbf16> to vector<32x16xbf16>
    %381 = arith.truncf %378 : vector<32x128xf32> to vector<32x128xbf16>
    %cst_118 = arith.constant dense<0.000000e+00> : vector<16x128xf32>
    %382 = tpu.matmul %379, %381, %cst_118 {dimension_numbers = #tpu.dot_dimension_numbers<[1], [0], [0], [1], [0, 0, 1, 1], [], []>} : vector<16x32xbf16>, vector<32x128xbf16>, vector<16x128xf32> -> vector<16x128xf32>
    %383 = vector.broadcast %16 : vector<16x1xf32> to vector<16x128xf32>
    %384 = arith.addf %382, %383 : vector<16x128xf32>
    %cst_119 = arith.constant 0.000000e+00 : f32
    %385 = vector.broadcast %cst_119 : f32 to vector<16x128xf32>
    %386 = arith.cmpf oge, %384, %385 : vector<16x128xf32>
    %cst_120 = arith.constant 2.000000e-01 : f32
    %387 = vector.broadcast %cst_120 : f32 to vector<16x128xf32>
    %388 = arith.mulf %387, %384 : vector<16x128xf32>
    %389 = arith.select %386, %384, %388 : vector<16x128xi1>, vector<16x128xf32>
    %390 = arith.truncf %389 : vector<16x128xf32> to vector<16x128xbf16>
    %cst_121 = arith.constant dense<0.000000e+00> : vector<32x128xf32>
    %391 = tpu.matmul %380, %390, %cst_121 {dimension_numbers = #tpu.dot_dimension_numbers<[1], [0], [0], [1], [0, 0, 1, 1], [], []>} : vector<32x16xbf16>, vector<16x128xbf16>, vector<32x128xf32> -> vector<32x128xf32>
    %392 = vector.broadcast %17 : vector<32x1xf32> to vector<32x128xf32>
    %393 = arith.addf %391, %392 : vector<32x128xf32>
    %cst_122 = arith.constant 0.000000e+00 : f32
    %394 = vector.broadcast %cst_122 : f32 to vector<32x128xf32>
    %395 = arith.cmpf oge, %393, %394 : vector<32x128xf32>
    %cst_123 = arith.constant 2.000000e-01 : f32
    %396 = vector.broadcast %cst_123 : f32 to vector<32x128xf32>
    %397 = arith.mulf %396, %393 : vector<32x128xf32>
    %398 = arith.select %395, %393, %397 : vector<32x128xi1>, vector<32x128xf32>
    %399 = arith.addf %378, %398 : vector<32x128xf32>
    %400 = arith.truncf %399 : vector<32x128xf32> to vector<32x128xbf16>
    %cst_124 = arith.constant dense<0.000000e+00> : vector<8x128xf32>
    %401 = tpu.matmul %8, %400, %cst_124 {dimension_numbers = #tpu.dot_dimension_numbers<[1], [0], [0], [1], [0, 0, 1, 1], [], []>} : vector<8x32xbf16>, vector<32x128xbf16>, vector<8x128xf32> -> vector<8x128xf32>
    %402 = vector.broadcast %18 : vector<8x1xf32> to vector<8x128xf32>
    %403 = arith.addf %401, %402 : vector<8x128xf32>
    %404 = vector.extract_strided_slice %0 {offsets = [5, 0], sizes = [8, 128], strides = [1, 1]} : vector<16x128xf32> to vector<8x128xf32>
    %405 = arith.truncf %404 : vector<8x128xf32> to vector<8x128xbf16>
    %cst_125 = arith.constant dense<0.000000e+00> : vector<32x128xf32>
    %406 = tpu.matmul %2, %405, %cst_125 {dimension_numbers = #tpu.dot_dimension_numbers<[1], [0], [0], [1], [0, 0, 1, 1], [], []>} : vector<32x8xbf16>, vector<8x128xbf16>, vector<32x128xf32> -> vector<32x128xf32>
    %407 = vector.broadcast %11 : vector<32x1xf32> to vector<32x128xf32>
    %408 = arith.addf %406, %407 : vector<32x128xf32>
    %cst_126 = arith.constant 0.000000e+00 : f32
    %409 = vector.broadcast %cst_126 : f32 to vector<32x128xf32>
    %410 = arith.cmpf oge, %408, %409 : vector<32x128xf32>
    %cst_127 = arith.constant 1.000000e-01 : f32
    %411 = vector.broadcast %cst_127 : f32 to vector<32x128xf32>
    %412 = arith.mulf %411, %408 : vector<32x128xf32>
    %413 = arith.select %410, %408, %412 : vector<32x128xi1>, vector<32x128xf32>
    %414 = vector.extract_strided_slice %4 {offsets = [0, 0], sizes = [16, 32], strides = [1, 1]} : vector<48x32xbf16> to vector<16x32xbf16>
    %415 = vector.extract_strided_slice %6 {offsets = [0, 0], sizes = [32, 16], strides = [1, 1]} : vector<96x16xbf16> to vector<32x16xbf16>
    %416 = arith.truncf %413 : vector<32x128xf32> to vector<32x128xbf16>
    %cst_128 = arith.constant dense<0.000000e+00> : vector<16x128xf32>
    %417 = tpu.matmul %414, %416, %cst_128 {dimension_numbers = #tpu.dot_dimension_numbers<[1], [0], [0], [1], [0, 0, 1, 1], [], []>} : vector<16x32xbf16>, vector<32x128xbf16>, vector<16x128xf32> -> vector<16x128xf32>
    %418 = vector.broadcast %12 : vector<16x1xf32> to vector<16x128xf32>
    %419 = arith.addf %417, %418 : vector<16x128xf32>
    %cst_129 = arith.constant 0.000000e+00 : f32
    %420 = vector.broadcast %cst_129 : f32 to vector<16x128xf32>
    %421 = arith.cmpf oge, %419, %420 : vector<16x128xf32>
    %cst_130 = arith.constant 2.000000e-01 : f32
    %422 = vector.broadcast %cst_130 : f32 to vector<16x128xf32>
    %423 = arith.mulf %422, %419 : vector<16x128xf32>
    %424 = arith.select %421, %419, %423 : vector<16x128xi1>, vector<16x128xf32>
    %425 = arith.truncf %424 : vector<16x128xf32> to vector<16x128xbf16>
    %cst_131 = arith.constant dense<0.000000e+00> : vector<32x128xf32>
    %426 = tpu.matmul %415, %425, %cst_131 {dimension_numbers = #tpu.dot_dimension_numbers<[1], [0], [0], [1], [0, 0, 1, 1], [], []>} : vector<32x16xbf16>, vector<16x128xbf16>, vector<32x128xf32> -> vector<32x128xf32>
    %427 = vector.broadcast %13 : vector<32x1xf32> to vector<32x128xf32>
    %428 = arith.addf %426, %427 : vector<32x128xf32>
    %cst_132 = arith.constant 0.000000e+00 : f32
    %429 = vector.broadcast %cst_132 : f32 to vector<32x128xf32>
    %430 = arith.cmpf oge, %428, %429 : vector<32x128xf32>
    %cst_133 = arith.constant 2.000000e-01 : f32
    %431 = vector.broadcast %cst_133 : f32 to vector<32x128xf32>
    %432 = arith.mulf %431, %428 : vector<32x128xf32>
    %433 = arith.select %430, %428, %432 : vector<32x128xi1>, vector<32x128xf32>
    %434 = arith.addf %413, %433 : vector<32x128xf32>
    %435 = vector.extract_strided_slice %4 {offsets = [16, 0], sizes = [16, 32], strides = [1, 1]} : vector<48x32xbf16> to vector<16x32xbf16>
    %436 = vector.extract_strided_slice %6 {offsets = [32, 0], sizes = [32, 16], strides = [1, 1]} : vector<96x16xbf16> to vector<32x16xbf16>
    %437 = arith.truncf %434 : vector<32x128xf32> to vector<32x128xbf16>
    %cst_134 = arith.constant dense<0.000000e+00> : vector<16x128xf32>
    %438 = tpu.matmul %435, %437, %cst_134 {dimension_numbers = #tpu.dot_dimension_numbers<[1], [0], [0], [1], [0, 0, 1, 1], [], []>} : vector<16x32xbf16>, vector<32x128xbf16>, vector<16x128xf32> -> vector<16x128xf32>
    %439 = vector.broadcast %14 : vector<16x1xf32> to vector<16x128xf32>
    %440 = arith.addf %438, %439 : vector<16x128xf32>
    %cst_135 = arith.constant 0.000000e+00 : f32
    %441 = vector.broadcast %cst_135 : f32 to vector<16x128xf32>
    %442 = arith.cmpf oge, %440, %441 : vector<16x128xf32>
    %cst_136 = arith.constant 2.000000e-01 : f32
    %443 = vector.broadcast %cst_136 : f32 to vector<16x128xf32>
    %444 = arith.mulf %443, %440 : vector<16x128xf32>
    %445 = arith.select %442, %440, %444 : vector<16x128xi1>, vector<16x128xf32>
    %446 = arith.truncf %445 : vector<16x128xf32> to vector<16x128xbf16>
    %cst_137 = arith.constant dense<0.000000e+00> : vector<32x128xf32>
    %447 = tpu.matmul %436, %446, %cst_137 {dimension_numbers = #tpu.dot_dimension_numbers<[1], [0], [0], [1], [0, 0, 1, 1], [], []>} : vector<32x16xbf16>, vector<16x128xbf16>, vector<32x128xf32> -> vector<32x128xf32>
    %448 = vector.broadcast %15 : vector<32x1xf32> to vector<32x128xf32>
    %449 = arith.addf %447, %448 : vector<32x128xf32>
    %cst_138 = arith.constant 0.000000e+00 : f32
    %450 = vector.broadcast %cst_138 : f32 to vector<32x128xf32>
    %451 = arith.cmpf oge, %449, %450 : vector<32x128xf32>
    %cst_139 = arith.constant 2.000000e-01 : f32
    %452 = vector.broadcast %cst_139 : f32 to vector<32x128xf32>
    %453 = arith.mulf %452, %449 : vector<32x128xf32>
    %454 = arith.select %451, %449, %453 : vector<32x128xi1>, vector<32x128xf32>
    %455 = arith.addf %434, %454 : vector<32x128xf32>
    %456 = vector.extract_strided_slice %4 {offsets = [32, 0], sizes = [16, 32], strides = [1, 1]} : vector<48x32xbf16> to vector<16x32xbf16>
    %457 = vector.extract_strided_slice %6 {offsets = [64, 0], sizes = [32, 16], strides = [1, 1]} : vector<96x16xbf16> to vector<32x16xbf16>
    %458 = arith.truncf %455 : vector<32x128xf32> to vector<32x128xbf16>
    %cst_140 = arith.constant dense<0.000000e+00> : vector<16x128xf32>
    %459 = tpu.matmul %456, %458, %cst_140 {dimension_numbers = #tpu.dot_dimension_numbers<[1], [0], [0], [1], [0, 0, 1, 1], [], []>} : vector<16x32xbf16>, vector<32x128xbf16>, vector<16x128xf32> -> vector<16x128xf32>
    %460 = vector.broadcast %16 : vector<16x1xf32> to vector<16x128xf32>
    %461 = arith.addf %459, %460 : vector<16x128xf32>
    %cst_141 = arith.constant 0.000000e+00 : f32
    %462 = vector.broadcast %cst_141 : f32 to vector<16x128xf32>
    %463 = arith.cmpf oge, %461, %462 : vector<16x128xf32>
    %cst_142 = arith.constant 2.000000e-01 : f32
    %464 = vector.broadcast %cst_142 : f32 to vector<16x128xf32>
    %465 = arith.mulf %464, %461 : vector<16x128xf32>
    %466 = arith.select %463, %461, %465 : vector<16x128xi1>, vector<16x128xf32>
    %467 = arith.truncf %466 : vector<16x128xf32> to vector<16x128xbf16>
    %cst_143 = arith.constant dense<0.000000e+00> : vector<32x128xf32>
    %468 = tpu.matmul %457, %467, %cst_143 {dimension_numbers = #tpu.dot_dimension_numbers<[1], [0], [0], [1], [0, 0, 1, 1], [], []>} : vector<32x16xbf16>, vector<16x128xbf16>, vector<32x128xf32> -> vector<32x128xf32>
    %469 = vector.broadcast %17 : vector<32x1xf32> to vector<32x128xf32>
    %470 = arith.addf %468, %469 : vector<32x128xf32>
    %cst_144 = arith.constant 0.000000e+00 : f32
    %471 = vector.broadcast %cst_144 : f32 to vector<32x128xf32>
    %472 = arith.cmpf oge, %470, %471 : vector<32x128xf32>
    %cst_145 = arith.constant 2.000000e-01 : f32
    %473 = vector.broadcast %cst_145 : f32 to vector<32x128xf32>
    %474 = arith.mulf %473, %470 : vector<32x128xf32>
    %475 = arith.select %472, %470, %474 : vector<32x128xi1>, vector<32x128xf32>
    %476 = arith.addf %455, %475 : vector<32x128xf32>
    %477 = arith.truncf %476 : vector<32x128xf32> to vector<32x128xbf16>
    %cst_146 = arith.constant dense<0.000000e+00> : vector<8x128xf32>
    %478 = tpu.matmul %8, %477, %cst_146 {dimension_numbers = #tpu.dot_dimension_numbers<[1], [0], [0], [1], [0, 0, 1, 1], [], []>} : vector<8x32xbf16>, vector<32x128xbf16>, vector<8x128xf32> -> vector<8x128xf32>
    %479 = vector.broadcast %18 : vector<8x1xf32> to vector<8x128xf32>
    %480 = arith.addf %478, %479 : vector<8x128xf32>
    %481 = vector.extract_strided_slice %0 {offsets = [6, 0], sizes = [8, 128], strides = [1, 1]} : vector<16x128xf32> to vector<8x128xf32>
    %482 = arith.truncf %481 : vector<8x128xf32> to vector<8x128xbf16>
    %cst_147 = arith.constant dense<0.000000e+00> : vector<32x128xf32>
    %483 = tpu.matmul %2, %482, %cst_147 {dimension_numbers = #tpu.dot_dimension_numbers<[1], [0], [0], [1], [0, 0, 1, 1], [], []>} : vector<32x8xbf16>, vector<8x128xbf16>, vector<32x128xf32> -> vector<32x128xf32>
    %484 = vector.broadcast %11 : vector<32x1xf32> to vector<32x128xf32>
    %485 = arith.addf %483, %484 : vector<32x128xf32>
    %cst_148 = arith.constant 0.000000e+00 : f32
    %486 = vector.broadcast %cst_148 : f32 to vector<32x128xf32>
    %487 = arith.cmpf oge, %485, %486 : vector<32x128xf32>
    %cst_149 = arith.constant 1.000000e-01 : f32
    %488 = vector.broadcast %cst_149 : f32 to vector<32x128xf32>
    %489 = arith.mulf %488, %485 : vector<32x128xf32>
    %490 = arith.select %487, %485, %489 : vector<32x128xi1>, vector<32x128xf32>
    %491 = vector.extract_strided_slice %4 {offsets = [0, 0], sizes = [16, 32], strides = [1, 1]} : vector<48x32xbf16> to vector<16x32xbf16>
    %492 = vector.extract_strided_slice %6 {offsets = [0, 0], sizes = [32, 16], strides = [1, 1]} : vector<96x16xbf16> to vector<32x16xbf16>
    %493 = arith.truncf %490 : vector<32x128xf32> to vector<32x128xbf16>
    %cst_150 = arith.constant dense<0.000000e+00> : vector<16x128xf32>
    %494 = tpu.matmul %491, %493, %cst_150 {dimension_numbers = #tpu.dot_dimension_numbers<[1], [0], [0], [1], [0, 0, 1, 1], [], []>} : vector<16x32xbf16>, vector<32x128xbf16>, vector<16x128xf32> -> vector<16x128xf32>
    %495 = vector.broadcast %12 : vector<16x1xf32> to vector<16x128xf32>
    %496 = arith.addf %494, %495 : vector<16x128xf32>
    %cst_151 = arith.constant 0.000000e+00 : f32
    %497 = vector.broadcast %cst_151 : f32 to vector<16x128xf32>
    %498 = arith.cmpf oge, %496, %497 : vector<16x128xf32>
    %cst_152 = arith.constant 2.000000e-01 : f32
    %499 = vector.broadcast %cst_152 : f32 to vector<16x128xf32>
    %500 = arith.mulf %499, %496 : vector<16x128xf32>
    %501 = arith.select %498, %496, %500 : vector<16x128xi1>, vector<16x128xf32>
    %502 = arith.truncf %501 : vector<16x128xf32> to vector<16x128xbf16>
    %cst_153 = arith.constant dense<0.000000e+00> : vector<32x128xf32>
    %503 = tpu.matmul %492, %502, %cst_153 {dimension_numbers = #tpu.dot_dimension_numbers<[1], [0], [0], [1], [0, 0, 1, 1], [], []>} : vector<32x16xbf16>, vector<16x128xbf16>, vector<32x128xf32> -> vector<32x128xf32>
    %504 = vector.broadcast %13 : vector<32x1xf32> to vector<32x128xf32>
    %505 = arith.addf %503, %504 : vector<32x128xf32>
    %cst_154 = arith.constant 0.000000e+00 : f32
    %506 = vector.broadcast %cst_154 : f32 to vector<32x128xf32>
    %507 = arith.cmpf oge, %505, %506 : vector<32x128xf32>
    %cst_155 = arith.constant 2.000000e-01 : f32
    %508 = vector.broadcast %cst_155 : f32 to vector<32x128xf32>
    %509 = arith.mulf %508, %505 : vector<32x128xf32>
    %510 = arith.select %507, %505, %509 : vector<32x128xi1>, vector<32x128xf32>
    %511 = arith.addf %490, %510 : vector<32x128xf32>
    %512 = vector.extract_strided_slice %4 {offsets = [16, 0], sizes = [16, 32], strides = [1, 1]} : vector<48x32xbf16> to vector<16x32xbf16>
    %513 = vector.extract_strided_slice %6 {offsets = [32, 0], sizes = [32, 16], strides = [1, 1]} : vector<96x16xbf16> to vector<32x16xbf16>
    %514 = arith.truncf %511 : vector<32x128xf32> to vector<32x128xbf16>
    %cst_156 = arith.constant dense<0.000000e+00> : vector<16x128xf32>
    %515 = tpu.matmul %512, %514, %cst_156 {dimension_numbers = #tpu.dot_dimension_numbers<[1], [0], [0], [1], [0, 0, 1, 1], [], []>} : vector<16x32xbf16>, vector<32x128xbf16>, vector<16x128xf32> -> vector<16x128xf32>
    %516 = vector.broadcast %14 : vector<16x1xf32> to vector<16x128xf32>
    %517 = arith.addf %515, %516 : vector<16x128xf32>
    %cst_157 = arith.constant 0.000000e+00 : f32
    %518 = vector.broadcast %cst_157 : f32 to vector<16x128xf32>
    %519 = arith.cmpf oge, %517, %518 : vector<16x128xf32>
    %cst_158 = arith.constant 2.000000e-01 : f32
    %520 = vector.broadcast %cst_158 : f32 to vector<16x128xf32>
    %521 = arith.mulf %520, %517 : vector<16x128xf32>
    %522 = arith.select %519, %517, %521 : vector<16x128xi1>, vector<16x128xf32>
    %523 = arith.truncf %522 : vector<16x128xf32> to vector<16x128xbf16>
    %cst_159 = arith.constant dense<0.000000e+00> : vector<32x128xf32>
    %524 = tpu.matmul %513, %523, %cst_159 {dimension_numbers = #tpu.dot_dimension_numbers<[1], [0], [0], [1], [0, 0, 1, 1], [], []>} : vector<32x16xbf16>, vector<16x128xbf16>, vector<32x128xf32> -> vector<32x128xf32>
    %525 = vector.broadcast %15 : vector<32x1xf32> to vector<32x128xf32>
    %526 = arith.addf %524, %525 : vector<32x128xf32>
    %cst_160 = arith.constant 0.000000e+00 : f32
    %527 = vector.broadcast %cst_160 : f32 to vector<32x128xf32>
    %528 = arith.cmpf oge, %526, %527 : vector<32x128xf32>
    %cst_161 = arith.constant 2.000000e-01 : f32
    %529 = vector.broadcast %cst_161 : f32 to vector<32x128xf32>
    %530 = arith.mulf %529, %526 : vector<32x128xf32>
    %531 = arith.select %528, %526, %530 : vector<32x128xi1>, vector<32x128xf32>
    %532 = arith.addf %511, %531 : vector<32x128xf32>
    %533 = vector.extract_strided_slice %4 {offsets = [32, 0], sizes = [16, 32], strides = [1, 1]} : vector<48x32xbf16> to vector<16x32xbf16>
    %534 = vector.extract_strided_slice %6 {offsets = [64, 0], sizes = [32, 16], strides = [1, 1]} : vector<96x16xbf16> to vector<32x16xbf16>
    %535 = arith.truncf %532 : vector<32x128xf32> to vector<32x128xbf16>
    %cst_162 = arith.constant dense<0.000000e+00> : vector<16x128xf32>
    %536 = tpu.matmul %533, %535, %cst_162 {dimension_numbers = #tpu.dot_dimension_numbers<[1], [0], [0], [1], [0, 0, 1, 1], [], []>} : vector<16x32xbf16>, vector<32x128xbf16>, vector<16x128xf32> -> vector<16x128xf32>
    %537 = vector.broadcast %16 : vector<16x1xf32> to vector<16x128xf32>
    %538 = arith.addf %536, %537 : vector<16x128xf32>
    %cst_163 = arith.constant 0.000000e+00 : f32
    %539 = vector.broadcast %cst_163 : f32 to vector<16x128xf32>
    %540 = arith.cmpf oge, %538, %539 : vector<16x128xf32>
    %cst_164 = arith.constant 2.000000e-01 : f32
    %541 = vector.broadcast %cst_164 : f32 to vector<16x128xf32>
    %542 = arith.mulf %541, %538 : vector<16x128xf32>
    %543 = arith.select %540, %538, %542 : vector<16x128xi1>, vector<16x128xf32>
    %544 = arith.truncf %543 : vector<16x128xf32> to vector<16x128xbf16>
    %cst_165 = arith.constant dense<0.000000e+00> : vector<32x128xf32>
    %545 = tpu.matmul %534, %544, %cst_165 {dimension_numbers = #tpu.dot_dimension_numbers<[1], [0], [0], [1], [0, 0, 1, 1], [], []>} : vector<32x16xbf16>, vector<16x128xbf16>, vector<32x128xf32> -> vector<32x128xf32>
    %546 = vector.broadcast %17 : vector<32x1xf32> to vector<32x128xf32>
    %547 = arith.addf %545, %546 : vector<32x128xf32>
    %cst_166 = arith.constant 0.000000e+00 : f32
    %548 = vector.broadcast %cst_166 : f32 to vector<32x128xf32>
    %549 = arith.cmpf oge, %547, %548 : vector<32x128xf32>
    %cst_167 = arith.constant 2.000000e-01 : f32
    %550 = vector.broadcast %cst_167 : f32 to vector<32x128xf32>
    %551 = arith.mulf %550, %547 : vector<32x128xf32>
    %552 = arith.select %549, %547, %551 : vector<32x128xi1>, vector<32x128xf32>
    %553 = arith.addf %532, %552 : vector<32x128xf32>
    %554 = arith.truncf %553 : vector<32x128xf32> to vector<32x128xbf16>
    %cst_168 = arith.constant dense<0.000000e+00> : vector<8x128xf32>
    %555 = tpu.matmul %8, %554, %cst_168 {dimension_numbers = #tpu.dot_dimension_numbers<[1], [0], [0], [1], [0, 0, 1, 1], [], []>} : vector<8x32xbf16>, vector<32x128xbf16>, vector<8x128xf32> -> vector<8x128xf32>
    %556 = vector.broadcast %18 : vector<8x1xf32> to vector<8x128xf32>
    %557 = arith.addf %555, %556 : vector<8x128xf32>
    %558 = vector.extract_strided_slice %0 {offsets = [7, 0], sizes = [8, 128], strides = [1, 1]} : vector<16x128xf32> to vector<8x128xf32>
    %559 = arith.truncf %558 : vector<8x128xf32> to vector<8x128xbf16>
    %cst_169 = arith.constant dense<0.000000e+00> : vector<32x128xf32>
    %560 = tpu.matmul %2, %559, %cst_169 {dimension_numbers = #tpu.dot_dimension_numbers<[1], [0], [0], [1], [0, 0, 1, 1], [], []>} : vector<32x8xbf16>, vector<8x128xbf16>, vector<32x128xf32> -> vector<32x128xf32>
    %561 = vector.broadcast %11 : vector<32x1xf32> to vector<32x128xf32>
    %562 = arith.addf %560, %561 : vector<32x128xf32>
    %cst_170 = arith.constant 0.000000e+00 : f32
    %563 = vector.broadcast %cst_170 : f32 to vector<32x128xf32>
    %564 = arith.cmpf oge, %562, %563 : vector<32x128xf32>
    %cst_171 = arith.constant 1.000000e-01 : f32
    %565 = vector.broadcast %cst_171 : f32 to vector<32x128xf32>
    %566 = arith.mulf %565, %562 : vector<32x128xf32>
    %567 = arith.select %564, %562, %566 : vector<32x128xi1>, vector<32x128xf32>
    %568 = vector.extract_strided_slice %4 {offsets = [0, 0], sizes = [16, 32], strides = [1, 1]} : vector<48x32xbf16> to vector<16x32xbf16>
    %569 = vector.extract_strided_slice %6 {offsets = [0, 0], sizes = [32, 16], strides = [1, 1]} : vector<96x16xbf16> to vector<32x16xbf16>
    %570 = arith.truncf %567 : vector<32x128xf32> to vector<32x128xbf16>
    %cst_172 = arith.constant dense<0.000000e+00> : vector<16x128xf32>
    %571 = tpu.matmul %568, %570, %cst_172 {dimension_numbers = #tpu.dot_dimension_numbers<[1], [0], [0], [1], [0, 0, 1, 1], [], []>} : vector<16x32xbf16>, vector<32x128xbf16>, vector<16x128xf32> -> vector<16x128xf32>
    %572 = vector.broadcast %12 : vector<16x1xf32> to vector<16x128xf32>
    %573 = arith.addf %571, %572 : vector<16x128xf32>
    %cst_173 = arith.constant 0.000000e+00 : f32
    %574 = vector.broadcast %cst_173 : f32 to vector<16x128xf32>
    %575 = arith.cmpf oge, %573, %574 : vector<16x128xf32>
    %cst_174 = arith.constant 2.000000e-01 : f32
    %576 = vector.broadcast %cst_174 : f32 to vector<16x128xf32>
    %577 = arith.mulf %576, %573 : vector<16x128xf32>
    %578 = arith.select %575, %573, %577 : vector<16x128xi1>, vector<16x128xf32>
    %579 = arith.truncf %578 : vector<16x128xf32> to vector<16x128xbf16>
    %cst_175 = arith.constant dense<0.000000e+00> : vector<32x128xf32>
    %580 = tpu.matmul %569, %579, %cst_175 {dimension_numbers = #tpu.dot_dimension_numbers<[1], [0], [0], [1], [0, 0, 1, 1], [], []>} : vector<32x16xbf16>, vector<16x128xbf16>, vector<32x128xf32> -> vector<32x128xf32>
    %581 = vector.broadcast %13 : vector<32x1xf32> to vector<32x128xf32>
    %582 = arith.addf %580, %581 : vector<32x128xf32>
    %cst_176 = arith.constant 0.000000e+00 : f32
    %583 = vector.broadcast %cst_176 : f32 to vector<32x128xf32>
    %584 = arith.cmpf oge, %582, %583 : vector<32x128xf32>
    %cst_177 = arith.constant 2.000000e-01 : f32
    %585 = vector.broadcast %cst_177 : f32 to vector<32x128xf32>
    %586 = arith.mulf %585, %582 : vector<32x128xf32>
    %587 = arith.select %584, %582, %586 : vector<32x128xi1>, vector<32x128xf32>
    %588 = arith.addf %567, %587 : vector<32x128xf32>
    %589 = vector.extract_strided_slice %4 {offsets = [16, 0], sizes = [16, 32], strides = [1, 1]} : vector<48x32xbf16> to vector<16x32xbf16>
    %590 = vector.extract_strided_slice %6 {offsets = [32, 0], sizes = [32, 16], strides = [1, 1]} : vector<96x16xbf16> to vector<32x16xbf16>
    %591 = arith.truncf %588 : vector<32x128xf32> to vector<32x128xbf16>
    %cst_178 = arith.constant dense<0.000000e+00> : vector<16x128xf32>
    %592 = tpu.matmul %589, %591, %cst_178 {dimension_numbers = #tpu.dot_dimension_numbers<[1], [0], [0], [1], [0, 0, 1, 1], [], []>} : vector<16x32xbf16>, vector<32x128xbf16>, vector<16x128xf32> -> vector<16x128xf32>
    %593 = vector.broadcast %14 : vector<16x1xf32> to vector<16x128xf32>
    %594 = arith.addf %592, %593 : vector<16x128xf32>
    %cst_179 = arith.constant 0.000000e+00 : f32
    %595 = vector.broadcast %cst_179 : f32 to vector<16x128xf32>
    %596 = arith.cmpf oge, %594, %595 : vector<16x128xf32>
    %cst_180 = arith.constant 2.000000e-01 : f32
    %597 = vector.broadcast %cst_180 : f32 to vector<16x128xf32>
    %598 = arith.mulf %597, %594 : vector<16x128xf32>
    %599 = arith.select %596, %594, %598 : vector<16x128xi1>, vector<16x128xf32>
    %600 = arith.truncf %599 : vector<16x128xf32> to vector<16x128xbf16>
    %cst_181 = arith.constant dense<0.000000e+00> : vector<32x128xf32>
    %601 = tpu.matmul %590, %600, %cst_181 {dimension_numbers = #tpu.dot_dimension_numbers<[1], [0], [0], [1], [0, 0, 1, 1], [], []>} : vector<32x16xbf16>, vector<16x128xbf16>, vector<32x128xf32> -> vector<32x128xf32>
    %602 = vector.broadcast %15 : vector<32x1xf32> to vector<32x128xf32>
    %603 = arith.addf %601, %602 : vector<32x128xf32>
    %cst_182 = arith.constant 0.000000e+00 : f32
    %604 = vector.broadcast %cst_182 : f32 to vector<32x128xf32>
    %605 = arith.cmpf oge, %603, %604 : vector<32x128xf32>
    %cst_183 = arith.constant 2.000000e-01 : f32
    %606 = vector.broadcast %cst_183 : f32 to vector<32x128xf32>
    %607 = arith.mulf %606, %603 : vector<32x128xf32>
    %608 = arith.select %605, %603, %607 : vector<32x128xi1>, vector<32x128xf32>
    %609 = arith.addf %588, %608 : vector<32x128xf32>
    %610 = vector.extract_strided_slice %4 {offsets = [32, 0], sizes = [16, 32], strides = [1, 1]} : vector<48x32xbf16> to vector<16x32xbf16>
    %611 = vector.extract_strided_slice %6 {offsets = [64, 0], sizes = [32, 16], strides = [1, 1]} : vector<96x16xbf16> to vector<32x16xbf16>
    %612 = arith.truncf %609 : vector<32x128xf32> to vector<32x128xbf16>
    %cst_184 = arith.constant dense<0.000000e+00> : vector<16x128xf32>
    %613 = tpu.matmul %610, %612, %cst_184 {dimension_numbers = #tpu.dot_dimension_numbers<[1], [0], [0], [1], [0, 0, 1, 1], [], []>} : vector<16x32xbf16>, vector<32x128xbf16>, vector<16x128xf32> -> vector<16x128xf32>
    %614 = vector.broadcast %16 : vector<16x1xf32> to vector<16x128xf32>
    %615 = arith.addf %613, %614 : vector<16x128xf32>
    %cst_185 = arith.constant 0.000000e+00 : f32
    %616 = vector.broadcast %cst_185 : f32 to vector<16x128xf32>
    %617 = arith.cmpf oge, %615, %616 : vector<16x128xf32>
    %cst_186 = arith.constant 2.000000e-01 : f32
    %618 = vector.broadcast %cst_186 : f32 to vector<16x128xf32>
    %619 = arith.mulf %618, %615 : vector<16x128xf32>
    %620 = arith.select %617, %615, %619 : vector<16x128xi1>, vector<16x128xf32>
    %621 = arith.truncf %620 : vector<16x128xf32> to vector<16x128xbf16>
    %cst_187 = arith.constant dense<0.000000e+00> : vector<32x128xf32>
    %622 = tpu.matmul %611, %621, %cst_187 {dimension_numbers = #tpu.dot_dimension_numbers<[1], [0], [0], [1], [0, 0, 1, 1], [], []>} : vector<32x16xbf16>, vector<16x128xbf16>, vector<32x128xf32> -> vector<32x128xf32>
    %623 = vector.broadcast %17 : vector<32x1xf32> to vector<32x128xf32>
    %624 = arith.addf %622, %623 : vector<32x128xf32>
    %cst_188 = arith.constant 0.000000e+00 : f32
    %625 = vector.broadcast %cst_188 : f32 to vector<32x128xf32>
    %626 = arith.cmpf oge, %624, %625 : vector<32x128xf32>
    %cst_189 = arith.constant 2.000000e-01 : f32
    %627 = vector.broadcast %cst_189 : f32 to vector<32x128xf32>
    %628 = arith.mulf %627, %624 : vector<32x128xf32>
    %629 = arith.select %626, %624, %628 : vector<32x128xi1>, vector<32x128xf32>
    %630 = arith.addf %609, %629 : vector<32x128xf32>
    %631 = arith.truncf %630 : vector<32x128xf32> to vector<32x128xbf16>
    %cst_190 = arith.constant dense<0.000000e+00> : vector<8x128xf32>
    %632 = tpu.matmul %8, %631, %cst_190 {dimension_numbers = #tpu.dot_dimension_numbers<[1], [0], [0], [1], [0, 0, 1, 1], [], []>} : vector<8x32xbf16>, vector<32x128xbf16>, vector<8x128xf32> -> vector<8x128xf32>
    %633 = vector.broadcast %18 : vector<8x1xf32> to vector<8x128xf32>
    %634 = arith.addf %632, %633 : vector<8x128xf32>
    %635 = vector.extract_strided_slice %0 {offsets = [8, 0], sizes = [8, 128], strides = [1, 1]} : vector<16x128xf32> to vector<8x128xf32>
    %636 = arith.truncf %635 : vector<8x128xf32> to vector<8x128xbf16>
    %cst_191 = arith.constant dense<0.000000e+00> : vector<32x128xf32>
    %637 = tpu.matmul %2, %636, %cst_191 {dimension_numbers = #tpu.dot_dimension_numbers<[1], [0], [0], [1], [0, 0, 1, 1], [], []>} : vector<32x8xbf16>, vector<8x128xbf16>, vector<32x128xf32> -> vector<32x128xf32>
    %638 = vector.broadcast %11 : vector<32x1xf32> to vector<32x128xf32>
    %639 = arith.addf %637, %638 : vector<32x128xf32>
    %cst_192 = arith.constant 0.000000e+00 : f32
    %640 = vector.broadcast %cst_192 : f32 to vector<32x128xf32>
    %641 = arith.cmpf oge, %639, %640 : vector<32x128xf32>
    %cst_193 = arith.constant 1.000000e-01 : f32
    %642 = vector.broadcast %cst_193 : f32 to vector<32x128xf32>
    %643 = arith.mulf %642, %639 : vector<32x128xf32>
    %644 = arith.select %641, %639, %643 : vector<32x128xi1>, vector<32x128xf32>
    %645 = vector.extract_strided_slice %4 {offsets = [0, 0], sizes = [16, 32], strides = [1, 1]} : vector<48x32xbf16> to vector<16x32xbf16>
    %646 = vector.extract_strided_slice %6 {offsets = [0, 0], sizes = [32, 16], strides = [1, 1]} : vector<96x16xbf16> to vector<32x16xbf16>
    %647 = arith.truncf %644 : vector<32x128xf32> to vector<32x128xbf16>
    %cst_194 = arith.constant dense<0.000000e+00> : vector<16x128xf32>
    %648 = tpu.matmul %645, %647, %cst_194 {dimension_numbers = #tpu.dot_dimension_numbers<[1], [0], [0], [1], [0, 0, 1, 1], [], []>} : vector<16x32xbf16>, vector<32x128xbf16>, vector<16x128xf32> -> vector<16x128xf32>
    %649 = vector.broadcast %12 : vector<16x1xf32> to vector<16x128xf32>
    %650 = arith.addf %648, %649 : vector<16x128xf32>
    %cst_195 = arith.constant 0.000000e+00 : f32
    %651 = vector.broadcast %cst_195 : f32 to vector<16x128xf32>
    %652 = arith.cmpf oge, %650, %651 : vector<16x128xf32>
    %cst_196 = arith.constant 2.000000e-01 : f32
    %653 = vector.broadcast %cst_196 : f32 to vector<16x128xf32>
    %654 = arith.mulf %653, %650 : vector<16x128xf32>
    %655 = arith.select %652, %650, %654 : vector<16x128xi1>, vector<16x128xf32>
    %656 = arith.truncf %655 : vector<16x128xf32> to vector<16x128xbf16>
    %cst_197 = arith.constant dense<0.000000e+00> : vector<32x128xf32>
    %657 = tpu.matmul %646, %656, %cst_197 {dimension_numbers = #tpu.dot_dimension_numbers<[1], [0], [0], [1], [0, 0, 1, 1], [], []>} : vector<32x16xbf16>, vector<16x128xbf16>, vector<32x128xf32> -> vector<32x128xf32>
    %658 = vector.broadcast %13 : vector<32x1xf32> to vector<32x128xf32>
    %659 = arith.addf %657, %658 : vector<32x128xf32>
    %cst_198 = arith.constant 0.000000e+00 : f32
    %660 = vector.broadcast %cst_198 : f32 to vector<32x128xf32>
    %661 = arith.cmpf oge, %659, %660 : vector<32x128xf32>
    %cst_199 = arith.constant 2.000000e-01 : f32
    %662 = vector.broadcast %cst_199 : f32 to vector<32x128xf32>
    %663 = arith.mulf %662, %659 : vector<32x128xf32>
    %664 = arith.select %661, %659, %663 : vector<32x128xi1>, vector<32x128xf32>
    %665 = arith.addf %644, %664 : vector<32x128xf32>
    %666 = vector.extract_strided_slice %4 {offsets = [16, 0], sizes = [16, 32], strides = [1, 1]} : vector<48x32xbf16> to vector<16x32xbf16>
    %667 = vector.extract_strided_slice %6 {offsets = [32, 0], sizes = [32, 16], strides = [1, 1]} : vector<96x16xbf16> to vector<32x16xbf16>
    %668 = arith.truncf %665 : vector<32x128xf32> to vector<32x128xbf16>
    %cst_200 = arith.constant dense<0.000000e+00> : vector<16x128xf32>
    %669 = tpu.matmul %666, %668, %cst_200 {dimension_numbers = #tpu.dot_dimension_numbers<[1], [0], [0], [1], [0, 0, 1, 1], [], []>} : vector<16x32xbf16>, vector<32x128xbf16>, vector<16x128xf32> -> vector<16x128xf32>
    %670 = vector.broadcast %14 : vector<16x1xf32> to vector<16x128xf32>
    %671 = arith.addf %669, %670 : vector<16x128xf32>
    %cst_201 = arith.constant 0.000000e+00 : f32
    %672 = vector.broadcast %cst_201 : f32 to vector<16x128xf32>
    %673 = arith.cmpf oge, %671, %672 : vector<16x128xf32>
    %cst_202 = arith.constant 2.000000e-01 : f32
    %674 = vector.broadcast %cst_202 : f32 to vector<16x128xf32>
    %675 = arith.mulf %674, %671 : vector<16x128xf32>
    %676 = arith.select %673, %671, %675 : vector<16x128xi1>, vector<16x128xf32>
    %677 = arith.truncf %676 : vector<16x128xf32> to vector<16x128xbf16>
    %cst_203 = arith.constant dense<0.000000e+00> : vector<32x128xf32>
    %678 = tpu.matmul %667, %677, %cst_203 {dimension_numbers = #tpu.dot_dimension_numbers<[1], [0], [0], [1], [0, 0, 1, 1], [], []>} : vector<32x16xbf16>, vector<16x128xbf16>, vector<32x128xf32> -> vector<32x128xf32>
    %679 = vector.broadcast %15 : vector<32x1xf32> to vector<32x128xf32>
    %680 = arith.addf %678, %679 : vector<32x128xf32>
    %cst_204 = arith.constant 0.000000e+00 : f32
    %681 = vector.broadcast %cst_204 : f32 to vector<32x128xf32>
    %682 = arith.cmpf oge, %680, %681 : vector<32x128xf32>
    %cst_205 = arith.constant 2.000000e-01 : f32
    %683 = vector.broadcast %cst_205 : f32 to vector<32x128xf32>
    %684 = arith.mulf %683, %680 : vector<32x128xf32>
    %685 = arith.select %682, %680, %684 : vector<32x128xi1>, vector<32x128xf32>
    %686 = arith.addf %665, %685 : vector<32x128xf32>
    %687 = vector.extract_strided_slice %4 {offsets = [32, 0], sizes = [16, 32], strides = [1, 1]} : vector<48x32xbf16> to vector<16x32xbf16>
    %688 = vector.extract_strided_slice %6 {offsets = [64, 0], sizes = [32, 16], strides = [1, 1]} : vector<96x16xbf16> to vector<32x16xbf16>
    %689 = arith.truncf %686 : vector<32x128xf32> to vector<32x128xbf16>
    %cst_206 = arith.constant dense<0.000000e+00> : vector<16x128xf32>
    %690 = tpu.matmul %687, %689, %cst_206 {dimension_numbers = #tpu.dot_dimension_numbers<[1], [0], [0], [1], [0, 0, 1, 1], [], []>} : vector<16x32xbf16>, vector<32x128xbf16>, vector<16x128xf32> -> vector<16x128xf32>
    %691 = vector.broadcast %16 : vector<16x1xf32> to vector<16x128xf32>
    %692 = arith.addf %690, %691 : vector<16x128xf32>
    %cst_207 = arith.constant 0.000000e+00 : f32
    %693 = vector.broadcast %cst_207 : f32 to vector<16x128xf32>
    %694 = arith.cmpf oge, %692, %693 : vector<16x128xf32>
    %cst_208 = arith.constant 2.000000e-01 : f32
    %695 = vector.broadcast %cst_208 : f32 to vector<16x128xf32>
    %696 = arith.mulf %695, %692 : vector<16x128xf32>
    %697 = arith.select %694, %692, %696 : vector<16x128xi1>, vector<16x128xf32>
    %698 = arith.truncf %697 : vector<16x128xf32> to vector<16x128xbf16>
    %cst_209 = arith.constant dense<0.000000e+00> : vector<32x128xf32>
    %699 = tpu.matmul %688, %698, %cst_209 {dimension_numbers = #tpu.dot_dimension_numbers<[1], [0], [0], [1], [0, 0, 1, 1], [], []>} : vector<32x16xbf16>, vector<16x128xbf16>, vector<32x128xf32> -> vector<32x128xf32>
    %700 = vector.broadcast %17 : vector<32x1xf32> to vector<32x128xf32>
    %701 = arith.addf %699, %700 : vector<32x128xf32>
    %cst_210 = arith.constant 0.000000e+00 : f32
    %702 = vector.broadcast %cst_210 : f32 to vector<32x128xf32>
    %703 = arith.cmpf oge, %701, %702 : vector<32x128xf32>
    %cst_211 = arith.constant 2.000000e-01 : f32
    %704 = vector.broadcast %cst_211 : f32 to vector<32x128xf32>
    %705 = arith.mulf %704, %701 : vector<32x128xf32>
    %706 = arith.select %703, %701, %705 : vector<32x128xi1>, vector<32x128xf32>
    %707 = arith.addf %686, %706 : vector<32x128xf32>
    %708 = arith.truncf %707 : vector<32x128xf32> to vector<32x128xbf16>
    %cst_212 = arith.constant dense<0.000000e+00> : vector<8x128xf32>
    %709 = tpu.matmul %8, %708, %cst_212 {dimension_numbers = #tpu.dot_dimension_numbers<[1], [0], [0], [1], [0, 0, 1, 1], [], []>} : vector<8x32xbf16>, vector<32x128xbf16>, vector<8x128xf32> -> vector<8x128xf32>
    %710 = vector.broadcast %18 : vector<8x1xf32> to vector<8x128xf32>
    %711 = arith.addf %709, %710 : vector<8x128xf32>
    %712 = tpu.concatenate %95, %172, %249, %326, %403, %480, %557, %634, %711 in 0 : vector<8x128xf32>, vector<8x128xf32>, vector<8x128xf32>, vector<8x128xf32>, vector<8x128xf32>, vector<8x128xf32>, vector<8x128xf32>, vector<8x128xf32>, vector<8x128xf32> -> vector<72x128xf32>
    %c0_213 = arith.constant 0 : index
    %c0_214 = arith.constant 0 : index
    %713 = vector.load %arg3[%c0_213, %c0_214] : memref<16x72xf32, #tpu.memory_space<vmem>>, vector<16x72xf32>
    %cst_215 = arith.constant dense<0.000000e+00> : vector<16x128xf32>
    %714 = tpu.matmul %713, %712, %cst_215 {dimension_numbers = #tpu.dot_dimension_numbers<[1], [0], [0], [1], [0, 0, 1, 1], [], []>} : vector<16x72xf32>, vector<72x128xf32>, vector<16x128xf32> -> vector<16x128xf32>
    %c0_216 = arith.constant 0 : index
    %c0_217 = arith.constant 0 : index
    %715 = vector.load %arg9[%c0_216, %c0_217] : memref<16x128xf32, #tpu.memory_space<vmem>>, vector<16x128xf32>
    tpu.vector_store %arg9[%c0_216, %c0_217], %714 {strides = array<i32>} : memref<16x128xf32, #tpu.memory_space<vmem>>, vector<16x128xf32>,
    return
  }
  func.func @transform_0(%arg0: i32, %arg1: memref<4xi32, #tpu.memory_space<smem>>) -> (i32, i32) {
    %c0_i32 = arith.constant 0 : i32
    %c0_i32_0 = arith.constant 0 : i32
    return %c0_i32, %arg0 : i32, i32
  }
  func.func @transform_1(%arg0: i32, %arg1: memref<4xi32, #tpu.memory_space<smem>>) -> (i32, i32) {
    %c0_i32 = arith.constant 0 : i32
    %c0_i32_0 = arith.constant 0 : i32
    %c0_i32_1 = arith.constant 0 : i32
    return %c0_i32, %c0_i32_0 : i32, i32
  }
  func.func @transform_2(%arg0: i32, %arg1: memref<4xi32, #tpu.memory_space<smem>>) -> (i32, i32, i32) {
    %0 = arith.index_cast %arg0 : i32 to index
    %1 = memref.load %arg1[%0] : memref<4xi32, #tpu.memory_space<smem>>
    %c0_i32 = arith.constant 0 : i32
    %c0_i32_0 = arith.constant 0 : i32
    %c0_i32_1 = arith.constant 0 : i32
    return %1, %c0_i32, %c0_i32_0 : i32, i32, i32
  }
  func.func @transform_3(%arg0: i32, %arg1: memref<4xi32, #tpu.memory_space<smem>>) -> (i32, i32, i32) {
    %0 = arith.index_cast %arg0 : i32 to index
    %1 = memref.load %arg1[%0] : memref<4xi32, #tpu.memory_space<smem>>
    %c0_i32 = arith.constant 0 : i32
    %c0_i32_0 = arith.constant 0 : i32
    %c0_i32_1 = arith.constant 0 : i32
    return %1, %c0_i32, %c0_i32_0 : i32, i32, i32
  }
  func.func @transform_4(%arg0: i32, %arg1: memref<4xi32, #tpu.memory_space<smem>>) -> (i32, i32, i32) {
    %0 = arith.index_cast %arg0 : i32 to index
    %1 = memref.load %arg1[%0] : memref<4xi32, #tpu.memory_space<smem>>
    %c0_i32 = arith.constant 0 : i32
    %c0_i32_0 = arith.constant 0 : i32
    %c0_i32_1 = arith.constant 0 : i32
    return %1, %c0_i32, %c0_i32_0 : i32, i32, i32
  }
  func.func @transform_5(%arg0: i32, %arg1: memref<4xi32, #tpu.memory_space<smem>>) -> (i32, i32, i32) {
    %0 = arith.index_cast %arg0 : i32 to index
    %1 = memref.load %arg1[%0] : memref<4xi32, #tpu.memory_space<smem>>
    %c0_i32 = arith.constant 0 : i32
    %c0_i32_0 = arith.constant 0 : i32
    %c0_i32_1 = arith.constant 0 : i32
    return %1, %c0_i32, %c0_i32_0 : i32, i32, i32
  }
  func.func @transform_6(%arg0: i32, %arg1: memref<4xi32, #tpu.memory_space<smem>>) -> (i32, i32, i32) {
    %0 = arith.index_cast %arg0 : i32 to index
    %1 = memref.load %arg1[%0] : memref<4xi32, #tpu.memory_space<smem>>
    %c0_i32 = arith.constant 0 : i32
    %c0_i32_0 = arith.constant 0 : i32
    %c0_i32_1 = arith.constant 0 : i32
    return %1, %c0_i32, %c0_i32_0 : i32, i32, i32
  }
  func.func @transform_7(%arg0: i32, %arg1: memref<4xi32, #tpu.memory_space<smem>>) -> (i32, i32) {
    %c0_i32 = arith.constant 0 : i32
    %c0_i32_0 = arith.constant 0 : i32
    return %c0_i32, %arg0 : i32, i32
  }
}

</mosaic_0001>

<llo_original>
// kernel: smoothnet_smpl_forward.1
$region0: #{smoothnet_smpl_forward.1}
  #allocation0 [shape = 'u32[]', space=smem, size = 0x4, offset = 0x4, fixed_abs, tag = 'smem constant byte address 0x4 - core index']
  #allocation1 [shape = 'u32[144,128]{1,0:T(1,128)}', space=vmem, size = 0x12000, scoped, tag = 'internal scratch']
  #allocation2 [shape = 's32[1]{0}', space=sflag, size = 0x4, scoped, tag = 'scoped memory for smoothnet_smpl_forward.1']
  #allocation3 [shape = 'u8[512]{0}', space=smem, size = 0x200, scoped, tag = 'prefetched SMEM operand 0']
  %s0 = inlined_call_operand.vmem [shape: s32[4], index: 0, kind: input, shape index: {}]
  %s1 = inlined_call_operand.vmem [shape: f32[16,512], index: 1, kind: input, shape index: {}]
  %s2 = inlined_call_operand.vmem [shape: f32[16,72], index: 2, kind: input, shape index: {}]
  %s3 = inlined_call_operand.vmem [shape: bf16[2,32,8], index: 3, kind: input, shape index: {}]
  %s4 = inlined_call_operand.vmem [shape: bf16[2,48,32], index: 4, kind: input, shape index: {}]
  %s5 = inlined_call_operand.vmem [shape: bf16[2,96,16], index: 5, kind: input, shape index: {}]
  %s6 = inlined_call_operand.vmem [shape: bf16[2,8,32], index: 6, kind: input, shape index: {}]
  %s7 = inlined_call_operand.vmem [shape: f32[2,184,1], index: 7, kind: input, shape index: {}]
  %s8 = inlined_call_operand.vmem [shape: f32[16,512], index: 8, kind: output, shape index: {}]
  %s9 = sld [smem:[#allocation0]]
  $region133: #{smoothnet_smpl_forward.1} parent=0
    _
  %s11 = ssub.s32 1, %s9
  %s12 = scalar_select 0, %s11, %s9
  %s13 = sshll.u32 %s0, 4
  %s14 = int_to_ptr.vmem [resolvable:$true] %s13
  %16 = dma.vmem_to_smem %s14, 16, [#allocation3], [#allocation2]
  %17 = dma.done [#allocation2], 16
  %18 = sfence
  $region1: #{smoothnet_smpl_forward.1} parent=0
    #allocation4 [shape = 'u8[16384]{0}', space=vmem, size = 0x4000, scoped, tag = 'input window, operand 1']
    #allocation5 [shape = 'u8[16384]{0}', space=vmem, size = 0x4000, scoped, tag = 'output window, operand 0']
    loop: start=0, step=1, limit=6
    $region2: #{smoothnet_smpl_forward.1} parent=1 // loop_pre_header
      _
    $region3: #{smoothnet_smpl_forward.1} parent=1 // loop_header
      %s20 = sphi 0, %s24
      %p21 = scmp.ge.s32.totalorder %s20, 6
      %s30 = sphi 0, %s32
      %s33 = sphi 0, %s30
      %s34 = sphi 0, %s33
      %s50 = sphi 0, %s34
      %s54 = sphi 0, %s54
      %s56 = sphi 0, %s54
      %s57 = sphi 0, %s56
      %s71 = sphi 0, %s57
      %s79 = sphi 0, %s81
      %s82 = sphi 0, %s79
      %s83 = sphi 0, %s82
      %s99 = sphi 0, %s83
      %s107 = sphi 0, %s109
      %s110 = sphi 0, %s107
      %s111 = sphi 0, %s110
      %s127 = sphi 0, %s111
      %s135 = sphi 0, %s137
      %s138 = sphi 0, %s135
      %s139 = sphi 0, %s138
      %s155 = sphi 0, %s139
      %s163 = sphi 0, %s165
      %s166 = sphi 0, %s163
      %s167 = sphi 0, %s166
      %s183 = sphi 0, %s167
      %s191 = sphi 0, %s193
      %s194 = sphi 0, %s191
      %s195 = sphi 0, %s194
      %s211 = sphi 0, %s195
      %s217 = sphi 0, %s219
      %s220 = sphi 0, %s217
      %s221 = sphi 0, %s220
      %s237 = sphi 0, %s221
    $region4: #{smoothnet_smpl_forward.1} parent=1 // loop_header_branch
      %23 = sbr.rel (%p21) target = $region8
    $region5: #{smoothnet_smpl_forward.1} parent=1 // loop_body
      %s25 = ssub.s32 %s20, 1
      %s26 = ssub.s32 %s20, 2
      %s27 = sadd.s32 %s20, 1
      %s28 = ssub.s32 %s20, %s27
      %p29 = scmp.eq.s32.totalorder %s28, 0
      %s31 = sadd.s32 %s30, 1
      %s32 = scalar_select %p29, %s30, %s31
      %p35 = pneg %p29
      %p36 = scmp.eq.s32.totalorder %s20, 3
      %p37 = por %p35, %p36
      %p38 = scmp.ne.s32.totalorder %s30, %s33
      %p39 = scmp.eq.s32.totalorder %s20, 0
      %p40 = por %p38, %p39
      %p41 = scmp.ne.s32.totalorder %s30, %s33
      %p42 = scmp.eq.s32.totalorder %s25, 3
      %p43 = por %p41, %p42
      %p44 = scmp.ne.s32.totalorder %s33, %s34
      %p45 = scmp.eq.s32.totalorder %s25, 0
      %p46 = por %p44, %p45
      %p47 = scmp.ne.s32.totalorder %s33, %s34
      %p48 = scmp.eq.s32.totalorder %s26, 3
      %p49 = por %p47, %p48
      %p51 = scmp.ne.s32.totalorder %s34, %s50
      %p52 = scmp.eq.s32.totalorder %s26, 0
      %p53 = por %p51, %p52
      %s55 = sadd.s32 %s54, 1
      %p58 = scmp.eq.s32.totalorder %s20, 3
      %p59 = scmp.ne.s32.totalorder %s54, %s56
      %p60 = scmp.eq.s32.totalorder %s20, 0
      %p61 = por %p59, %p60
      %p62 = scmp.ne.s32.totalorder %s54, %s56
      %p63 = scmp.eq.s32.totalorder %s25, 3
      %p64 = por %p62, %p63
      %p65 = scmp.ne.s32.totalorder %s56, %s57
      %p66 = scmp.eq.s32.totalorder %s25, 0
      %p67 = por %p65, %p66
      %p68 = scmp.ne.s32.totalorder %s56, %s57
      %p69 = scmp.eq.s32.totalorder %s26, 3
      %p70 = por %p68, %p69
      %p72 = scmp.ne.s32.totalorder %s57, %s71
      %p73 = scmp.eq.s32.totalorder %s26, 0
      %p74 = por %p72, %p73
      %s75 = sld [smem:[#allocation3 + %s20]]
      %s76 = sld [smem:[#allocation3 + %s27]]
      %s77 = ssub.s32 %s75, %s76
      %p78 = scmp.eq.s32.totalorder %s77, 0
      %s80 = sadd.s32 %s79, 1
      %s81 = scalar_select %p78, %s79, %s80
      %p84 = pneg %p78
      %p85 = scmp.eq.s32.totalorder %s20, 3
      %p86 = por %p84, %p85
      %p87 = scmp.ne.s32.totalorder %s79, %s82
      %p88 = scmp.eq.s32.totalorder %s20, 0
      %p89 = por %p87, %p88
      %p90 = scmp.ne.s32.totalorder %s79, %s82
      %p91 = scmp.eq.s32.totalorder %s25, 3
      %p92 = por %p90, %p91
      %p93 = scmp.ne.s32.totalorder %s82, %s83
      %p94 = scmp.eq.s32.totalorder %s25, 0
      %p95 = por %p93, %p94
      %p96 = scmp.ne.s32.totalorder %s82, %s83
      %p97 = scmp.eq.s32.totalorder %s26, 3
      %p98 = por %p96, %p97
      %p100 = scmp.ne.s32.totalorder %s83, %s99
      %p101 = scmp.eq.s32.totalorder %s26, 0
      %p102 = por %p100, %p101
      %s103 = sld [smem:[#allocation3 + %s20]]
      %s104 = sld [smem:[#allocation3 + %s27]]
      %s105 = ssub.s32 %s103, %s104
      %p106 = scmp.eq.s32.totalorder %s105, 0
      %s108 = sadd.s32 %s107, 1
      %s109 = scalar_select %p106, %s107, %s108
      %p112 = pneg %p106
      %p113 = scmp.eq.s32.totalorder %s20, 3
      %p114 = por %p112, %p113
      %p115 = scmp.ne.s32.totalorder %s107, %s110
      %p116 = scmp.eq.s32.totalorder %s20, 0
      %p117 = por %p115, %p116
      %p118 = scmp.ne.s32.totalorder %s107, %s110
      %p119 = scmp.eq.s32.totalorder %s25, 3
      %p120 = por %p118, %p119
      %p121 = scmp.ne.s32.totalorder %s110, %s111
      %p122 = scmp.eq.s32.totalorder %s25, 0
      %p123 = por %p121, %p122
      %p124 = scmp.ne.s32.totalorder %s110, %s111
      %p125 = scmp.eq.s32.totalorder %s26, 3
      %p126 = por %p124, %p125
      %p128 = scmp.ne.s32.totalorder %s111, %s127
      %p129 = scmp.eq.s32.totalorder %s26, 0
      %p130 = por %p128, %p129
      %s131 = sld [smem:[#allocation3 + %s20]]
      %s132 = sld [smem:[#allocation3 + %s27]]
      %s133 = ssub.s32 %s131, %s132
      %p134 = scmp.eq.s32.totalorder %s133, 0
      %s136 = sadd.s32 %s135, 1
      %s137 = scalar_select %p134, %s135, %s136
      %p140 = pneg %p134
      %p141 = scmp.eq.s32.totalorder %s20, 3
      %p142 = por %p140, %p141
      %p143 = scmp.ne.s32.totalorder %s135, %s138
      %p144 = scmp.eq.s32.totalorder %s20, 0
      %p145 = por %p143, %p144
      %p146 = scmp.ne.s32.totalorder %s135, %s138
      %p147 = scmp.eq.s32.totalorder %s25, 3
      %p148 = por %p146, %p147
      %p149 = scmp.ne.s32.totalorder %s138, %s139
      %p150 = scmp.eq.s32.totalorder %s25, 0
      %p151 = por %p149, %p150
      %p152 = scmp.ne.s32.totalorder %s138, %s139
      %p153 = scmp.eq.s32.totalorder %s26, 3
      %p154 = por %p152, %p153
      %p156 = scmp.ne.s32.totalorder %s139, %s155
      %p157 = scmp.eq.s32.totalorder %s26, 0
      %p158 = por %p156, %p157
      %s159 = sld [smem:[#allocation3 + %s20]]
      %s160 = sld [smem:[#allocation3 + %s27]]
      %s161 = ssub.s32 %s159, %s160
      %p162 = scmp.eq.s32.totalorder %s161, 0
      %s164 = sadd.s32 %s163, 1
      %s165 = scalar_select %p162, %s163, %s164
      %p168 = pneg %p162
      %p169 = scmp.eq.s32.totalorder %s20, 3
      %p170 = por %p168, %p169
      %p171 = scmp.ne.s32.totalorder %s163, %s166
      %p172 = scmp.eq.s32.totalorder %s20, 0
      %p173 = por %p171, %p172
      %p174 = scmp.ne.s32.totalorder %s163, %s166
      %p175 = scmp.eq.s32.totalorder %s25, 3
      %p176 = por %p174, %p175
      %p177 = scmp.ne.s32.totalorder %s166, %s167
      %p178 = scmp.eq.s32.totalorder %s25, 0
      %p179 = por %p177, %p178
      %p180 = scmp.ne.s32.totalorder %s166, %s167
      %p181 = scmp.eq.s32.totalorder %s26, 3
      %p182 = por %p180, %p181
      %p184 = scmp.ne.s32.totalorder %s167, %s183
      %p185 = scmp.eq.s32.totalorder %s26, 0
      %p186 = por %p184, %p185
      %s187 = sld [smem:[#allocation3 + %s20]]
      %s188 = sld [smem:[#allocation3 + %s27]]
      %s189 = ssub.s32 %s187, %s188
      %p190 = scmp.eq.s32.totalorder %s189, 0
      %s192 = sadd.s32 %s191, 1
      %s193 = scalar_select %p190, %s191, %s192
      %p196 = pneg %p190
      %p197 = scmp.eq.s32.totalorder %s20, 3
      %p198 = por %p196, %p197
      %p199 = scmp.ne.s32.totalorder %s191, %s194
      %p200 = scmp.eq.s32.totalorder %s20, 0
      %p201 = por %p199, %p200
      %p202 = scmp.ne.s32.totalorder %s191, %s194
      %p203 = scmp.eq.s32.totalorder %s25, 3
      %p204 = por %p202, %p203
      %p205 = scmp.ne.s32.totalorder %s194, %s195
      %p206 = scmp.eq.s32.totalorder %s25, 0
      %p207 = por %p205, %p206
      %p208 = scmp.ne.s32.totalorder %s194, %s195
      %p209 = scmp.eq.s32.totalorder %s26, 3
      %p210 = por %p208, %p209
      %p212 = scmp.ne.s32.totalorder %s195, %s211
      %p213 = scmp.eq.s32.totalorder %s26, 0
      %p214 = por %p212, %p213
      %s215 = ssub.s32 %s20, %s27
      %p216 = scmp.eq.s32.totalorder %s215, 0
      %s218 = sadd.s32 %s217, 1
      %s219 = scalar_select %p216, %s217, %s218
      %p222 = pneg %p216
      %p223 = scmp.eq.s32.totalorder %s20, 3
      %p224 = por %p222, %p223
      %p225 = scmp.ne.s32.totalorder %s217, %s220
      %p226 = scmp.eq.s32.totalorder %s20, 0
      %p227 = por %p225, %p226
      %p228 = scmp.ne.s32.totalorder %s217, %s220
      %p229 = scmp.eq.s32.totalorder %s25, 3
      %p230 = por %p228, %p229
      %p231 = scmp.ne.s32.totalorder %s220, %s221
      %p232 = scmp.eq.s32.totalorder %s25, 0
      %p233 = por %p231, %p232
      %p234 = scmp.ne.s32.totalorder %s220, %s221
      %p235 = scmp.eq.s32.totalorder %s26, 3
      %p236 = por %p234, %p235
      %p238 = scmp.ne.s32.totalorder %s221, %s237
      %p239 = scmp.eq.s32.totalorder %s26, 0
      %p240 = por %p238, %p239
      %p241 = scmp.le.s32.totalorder 1, %s20
      %p242 = scmp.lt.s32.totalorder %s20, 5
      %p243 = pnand %p241, %p242
      %p244 = pneg %p243
      // Predicated region
      $region9: #{smoothnet_smpl_forward.1} parent=5 // pred_check
        _
      $region10: #{smoothnet_smpl_forward.1} parent=5 // pred_check_branch
        %246 = sbr.rel (%p243) target = $region12
      $region11: #{smoothnet_smpl_forward.1} parent=5 // pred_region
        %s247 = ssub.s32 %s20, 1
        // Predicated region
        $region13: #{smoothnet_smpl_forward.1} parent=11 // pred_check
          %p248 = pneg %p67
        $region14: #{smoothnet_smpl_forward.1} parent=11 // pred_check_branch
          %250 = sbr.rel (%p248) target = $region16
        $region15: #{smoothnet_smpl_forward.1} parent=11 // pred_region
          _
        $region16: #{smoothnet_smpl_forward.1} parent=11 // pred_fallthru
          _
      $region12: #{smoothnet_smpl_forward.1} parent=5 // pred_fallthru
        _
      %p251 = scmp.lt.s32.totalorder %s20, 4
      // Predicated region
      $region17: #{smoothnet_smpl_forward.1} parent=5 // pred_check
        %p252 = pneg %p251
      $region18: #{smoothnet_smpl_forward.1} parent=5 // pred_check_branch
        %254 = sbr.rel (%p252) target = $region20
      $region19: #{smoothnet_smpl_forward.1} parent=5 // pred_region
        // Predicated region
        $region21: #{smoothnet_smpl_forward.1} parent=19 // pred_check
          %p255 = pneg %p40
        $region22: #{smoothnet_smpl_forward.1} parent=19 // pred_check_branch
          %257 = sbr.rel (%p255) target = $region24
        $region23: #{smoothnet_smpl_forward.1} parent=19 // pred_region
          %s258 = sand.u32 %s30, 1
          %s259 = sand.u32 %s30, 1
          %s260 = smul.addr %s259, 16
          %s261 = scalar_lea.vmem [#allocation4], %s260
          %s262 = smul.addr %s20, 8
          %s263 = scalar_lea.vmem %s1, %s262
          // Predicated region
          $region25: #{smoothnet_smpl_forward.1} parent=23 // pred_check
            _
          $region26: #{smoothnet_smpl_forward.1} parent=23 // pred_check_branch
            %265 = sbr.rel (0) target = $region28
          $region27: #{smoothnet_smpl_forward.1} parent=23 // pred_region
            // Predicated region
            $region29: #{smoothnet_smpl_forward.1} parent=27 // pred_check
              _
            $region30: #{smoothnet_smpl_forward.1} parent=27 // pred_check_branch
              %267 = sbr.rel (0) target = $region32
            $region31: #{smoothnet_smpl_forward.1} parent=27 // pred_region
              // Predicated region
              $region44: #{smoothnet_smpl_forward.1} parent=31 // pred_check
                _
              $region45: #{smoothnet_smpl_forward.1} parent=31 // pred_check_branch
                %284 = sbr.rel (0) target = $region47
              $region46: #{smoothnet_smpl_forward.1} parent=31 // pred_region
                loop: start=0, step=1, limit=1
                $region48: #{smoothnet_smpl_forward.1} parent=46 // loop_pre_header
                  _
                $region49: #{smoothnet_smpl_forward.1} parent=46 // loop_header
                  %s286 = sphi 0, %s290
                  %p287 = scmp.ge.s32.totalorder %s286, 1
                  %s291 = sphi %s263, %s263
                  %s292 = sphi %s261, %s261
                $region50: #{smoothnet_smpl_forward.1} parent=46 // loop_header_branch
                  %289 = sbr.rel (%p287) target = $region54
                $region51: #{smoothnet_smpl_forward.1} parent=46 // loop_body
                  %v293 = vld [vmem:[%s291] sm:$0xff]
                  %294 = vst [vmem:[%s292] sm:$0xff] %v293
                  %v295 = vld [vmem:[%s291 + $0x20] sm:$0xff]
                  %296 = vst [vmem:[%s292 + $0x8] sm:$0xff] %v295
                $region52: #{smoothnet_smpl_forward.1} parent=46 // loop_footer
                  %s290 = sadd.s32 1, %s286
                $region53: #{smoothnet_smpl_forward.1} parent=46 // loop_footer_branch
                  %285 = sbr.rel target = $region49
                $region54: #{smoothnet_smpl_forward.1} parent=46 // loop_exit
                  _
              $region47: #{smoothnet_smpl_forward.1} parent=31 // pred_fallthru
                _
              // Predicated region
              $region55: #{smoothnet_smpl_forward.1} parent=31 // pred_check
                _
              $region56: #{smoothnet_smpl_forward.1} parent=31 // pred_check_branch
                %298 = sbr.rel target = $region58
              $region57: #{smoothnet_smpl_forward.1} parent=31 // pred_region
                _
              $region58: #{smoothnet_smpl_forward.1} parent=31 // pred_fallthru
                _
            $region32: #{smoothnet_smpl_forward.1} parent=27 // pred_fallthru
              _
            // Predicated region
            $region33: #{smoothnet_smpl_forward.1} parent=27 // pred_check
              _
            $region34: #{smoothnet_smpl_forward.1} parent=27 // pred_check_branch
              %269 = sbr.rel target = $region36
            $region35: #{smoothnet_smpl_forward.1} parent=27 // pred_region
              loop: start=0, step=1, limit=1
              $region37: #{smoothnet_smpl_forward.1} parent=35 // loop_pre_header
                _
              $region38: #{smoothnet_smpl_forward.1} parent=35 // loop_header
                %s272 = sphi 0, %s276
                %p273 = scmp.ge.s32.totalorder %s272, 1
                %s277 = sphi %s263, %s263
                %s278 = sphi %s261, %s261
              $region39: #{smoothnet_smpl_forward.1} parent=35 // loop_header_branch
                %275 = sbr.rel (%p273) target = $region43
              $region40: #{smoothnet_smpl_forward.1} parent=35 // loop_body
                %v279 = vld [vmem:[%s277] sm:$0xff]
                %280 = vst [vmem:[%s278] sm:$0xff] %v279
                %v281 = vld [vmem:[%s277 + $0x20] sm:$0xff]
                %282 = vst [vmem:[%s278 + $0x8] sm:$0xff] %v281
              $region41: #{smoothnet_smpl_forward.1} parent=35 // loop_footer
                %s276 = sadd.s32 1, %s272
              $region42: #{smoothnet_smpl_forward.1} parent=35 // loop_footer_branch
                %271 = sbr.rel target = $region38
              $region43: #{smoothnet_smpl_forward.1} parent=35 // loop_exit
                _
            $region36: #{smoothnet_smpl_forward.1} parent=27 // pred_fallthru
              _
          $region28: #{smoothnet_smpl_forward.1} parent=23 // pred_fallthru
            _
          %299 = vnop
        $region24: #{smoothnet_smpl_forward.1} parent=19 // pred_fallthru
          _
        // Predicated region
        $region59: #{smoothnet_smpl_forward.1} parent=19 // pred_check
          %p300 = pneg %p89
        $region60: #{smoothnet_smpl_forward.1} parent=19 // pred_check_branch
          %302 = sbr.rel (%p300) target = $region62
        $region61: #{smoothnet_smpl_forward.1} parent=19 // pred_region
          %s303 = sld [smem:[#allocation3 + %s20]]
          %p304 = scmp.lt.s32.totalorder %s303, 1
          %s305 = scalar_select %p304, %s303, 1
          %s306 = smul.addr %s305, 4
          %s307 = smul.addr %s306, 4
          %s308 = scalar_lea.vmem %s3, %s307
          %s309 = sld [smem:[#allocation3 + %s20]]
        $region62: #{smoothnet_smpl_forward.1} parent=19 // pred_fallthru
          _
        // Predicated region
        $region63: #{smoothnet_smpl_forward.1} parent=19 // pred_check
          %p310 = pneg %p117
        $region64: #{smoothnet_smpl_forward.1} parent=19 // pred_check_branch
          %312 = sbr.rel (%p310) target = $region66
        $region65: #{smoothnet_smpl_forward.1} parent=19 // pred_region
          %s313 = sld [smem:[#allocation3 + %s20]]
          %p314 = scmp.lt.s32.totalorder %s313, 1
          %s315 = scalar_select %p314, %s313, 1
          %s316 = smul.addr %s315, 6
          %s317 = smul.addr %s316, 4
          %s318 = scalar_lea.vmem %s4, %s317
          %s319 = sld [smem:[#allocation3 + %s20]]
        $region66: #{smoothnet_smpl_forward.1} parent=19 // pred_fallthru
          _
        // Predicated region
        $region67: #{smoothnet_smpl_forward.1} parent=19 // pred_check
          %p320 = pneg %p145
        $region68: #{smoothnet_smpl_forward.1} parent=19 // pred_check_branch
          %322 = sbr.rel (%p320) target = $region70
        $region69: #{smoothnet_smpl_forward.1} parent=19 // pred_region
          %s323 = sld [smem:[#allocation3 + %s20]]
          %p324 = scmp.lt.s32.totalorder %s323, 1
          %s325 = scalar_select %p324, %s323, 1
          %s326 = smul.addr %s325, 12
          %s327 = smul.addr %s326, 4
          %s328 = scalar_lea.vmem %s5, %s327
          %s329 = sld [smem:[#allocation3 + %s20]]
        $region70: #{smoothnet_smpl_forward.1} parent=19 // pred_fallthru
          _
        // Predicated region
        $region71: #{smoothnet_smpl_forward.1} parent=19 // pred_check
          %p330 = pneg %p173
        $region72: #{smoothnet_smpl_forward.1} parent=19 // pred_check_branch
          %332 = sbr.rel (%p330) target = $region74
        $region73: #{smoothnet_smpl_forward.1} parent=19 // pred_region
          %s333 = sld [smem:[#allocation3 + %s20]]
          %p334 = scmp.lt.s32.totalorder %s333, 1
          %s335 = scalar_select %p334, %s333, 1
          %s336 = smul.addr %s335, 4
          %s337 = scalar_lea.vmem %s6, %s336
          %s338 = sld [smem:[#allocation3 + %s20]]
        $region74: #{smoothnet_smpl_forward.1} parent=19 // pred_fallthru
          _
        // Predicated region
        $region75: #{smoothnet_smpl_forward.1} parent=19 // pred_check
          %p339 = pneg %p201
        $region76: #{smoothnet_smpl_forward.1} parent=19 // pred_check_branch
          %341 = sbr.rel (%p339) target = $region78
        $region77: #{smoothnet_smpl_forward.1} parent=19 // pred_region
          %s342 = sld [smem:[#allocation3 + %s20]]
          %p343 = scmp.lt.s32.totalorder %s342, 1
          %s344 = scalar_select %p343, %s342, 1
          %s345 = smul.addr %s344, 23
          %s346 = smul.addr %s345, 8
          %s347 = scalar_lea.vmem %s7, %s346
          %s348 = sld [smem:[#allocation3 + %s20]]
        $region78: #{smoothnet_smpl_forward.1} parent=19 // pred_fallthru
          _
      $region20: #{smoothnet_smpl_forward.1} parent=5 // pred_fallthru
        _
      %p349 = scmp.le.s32.totalorder 1, %s20
      %p350 = scmp.lt.s32.totalorder %s20, 5
      %p351 = pnand %p349, %p350
      %p352 = pneg %p351
      // Predicated region
      $region79: #{smoothnet_smpl_forward.1} parent=5 // pred_check
        _
      $region80: #{smoothnet_smpl_forward.1} parent=5 // pred_check_branch
        %354 = sbr.rel (%p351) target = $region82
      $region81: #{smoothnet_smpl_forward.1} parent=5 // pred_region
        %s355 = ssub.s32 %s20, 1
        %s356 = sand.u32 %s33, 1
        %s357 = sand.u32 %s33, 1
        %s358 = smul.addr %s357, 16
        %s359 = scalar_lea.vmem [#allocation4], %s358
        // Predicated region
        $region83: #{smoothnet_smpl_forward.1} parent=81 // pred_check
          %p360 = pneg %p46
        $region84: #{smoothnet_smpl_forward.1} parent=81 // pred_check_branch
          %362 = sbr.rel (%p360) target = $region86
        $region85: #{smoothnet_smpl_forward.1} parent=81 // pred_region
          _
        $region86: #{smoothnet_smpl_forward.1} parent=81 // pred_fallthru
          _
        %s363 = sand.u32 %s33, 1
        %s364 = sand.u32 %s33, 1
        %s365 = smul.addr %s364, 16
        %s366 = scalar_lea.vmem [#allocation4], %s365
        %p367 = pneg %p46
        %p368 = pneg %p43
        %p369 = pneg %p67
        %p370 = pneg %p64
        %s371 = sld [smem:[#allocation3 + %s25]]
        %p372 = scmp.lt.s32.totalorder %s371, 1
        %s373 = scalar_select %p372, %s371, 1
        %s374 = smul.addr %s373, 4
        %s375 = smul.addr %s374, 4
        %s376 = scalar_lea.vmem %s3, %s375
        %p377 = pneg %p95
        %p378 = pneg %p92
        %s379 = sld [smem:[#allocation3 + %s25]]
        %p380 = scmp.lt.s32.totalorder %s379, 1
        %s381 = scalar_select %p380, %s379, 1
        %s382 = smul.addr %s381, 6
        %s383 = smul.addr %s382, 4
        %s384 = scalar_lea.vmem %s4, %s383
        %p385 = pneg %p123
        %p386 = pneg %p120
        %s387 = sld [smem:[#allocation3 + %s25]]
        %p388 = scmp.lt.s32.totalorder %s387, 1
        %s389 = scalar_select %p388, %s387, 1
        %s390 = smul.addr %s389, 12
        %s391 = smul.addr %s390, 4
        %s392 = scalar_lea.vmem %s5, %s391
        %p393 = pneg %p151
        %p394 = pneg %p148
        %s395 = sld [smem:[#allocation3 + %s25]]
        %p396 = scmp.lt.s32.totalorder %s395, 1
        %s397 = scalar_select %p396, %s395, 1
        %s398 = smul.addr %s397, 4
        %s399 = scalar_lea.vmem %s6, %s398
        %p400 = pneg %p179
        %p401 = pneg %p176
        %s402 = sld [smem:[#allocation3 + %s25]]
        %p403 = scmp.lt.s32.totalorder %s402, 1
        %s404 = scalar_select %p403, %s402, 1
        %s405 = smul.addr %s404, 23
        %s406 = smul.addr %s405, 8
        %s407 = scalar_lea.vmem %s7, %s406
        %p408 = pneg %p207
        %p409 = pneg %p204
        %p410 = pneg %p233
        %p411 = pneg %p230
        %s412 = sand.u32 %s220, 1
        %s413 = sand.u32 %s220, 1
        %s414 = smul.addr %s413, 16
        %s415 = scalar_lea.vmem [#allocation5], %s414
        %s416 = sld [smem:[#allocation3 + %s25]]
        %p417 = scmp.lt.s32.totalorder %s416, 1
        %s418 = scalar_select %p417, %s416, 1
        %s419 = smul.addr %s418, 4
        %s420 = smul.addr %s419, 4
        %s421 = scalar_lea.vmem %s3, %s420
        %s422 = sld [smem:[#allocation3 + %s25]]
        %s423 = sld [smem:[#allocation3 + %s25]]
        %p424 = scmp.lt.s32.totalorder %s423, 1
        %s425 = scalar_select %p424, %s423, 1
        %s426 = smul.addr %s425, 6
        %s427 = smul.addr %s426, 4
        %s428 = scalar_lea.vmem %s4, %s427
        %s429 = sld [smem:[#allocation3 + %s25]]
        %s430 = sld [smem:[#allocation3 + %s25]]
        %p431 = scmp.lt.s32.totalorder %s430, 1
        %s432 = scalar_select %p431, %s430, 1
        %s433 = smul.addr %s432, 12
        %s434 = smul.addr %s433, 4
        %s435 = scalar_lea.vmem %s5, %s434
        %s436 = sld [smem:[#allocation3 + %s25]]
        %s437 = sld [smem:[#allocation3 + %s25]]
        %p438 = scmp.lt.s32.totalorder %s437, 1
        %s439 = scalar_select %p438, %s437, 1
        %s440 = smul.addr %s439, 4
        %s441 = scalar_lea.vmem %s6, %s440
        %s442 = sld [smem:[#allocation3 + %s25]]
        %s443 = sld [smem:[#allocation3 + %s25]]
        %p444 = scmp.lt.s32.totalorder %s443, 1
        %s445 = scalar_select %p444, %s443, 1
        %s446 = smul.addr %s445, 23
        %s447 = smul.addr %s446, 8
        %s448 = scalar_lea.vmem %s7, %s447
        %s449 = sld [smem:[#allocation3 + %s25]]
        %v451 = vld [vmem:[%s359] sm:$0xff]
        %v452 = vld [vmem:[%s359 + $0x8] sm:$0xff]
        %v453 = vld [vmem:[%s421] sm:$0xf]
        %v454 = vld [vmem:[%s421 + $0x4] sm:$0xf]
        %v455 = vld [vmem:[%s421 + $0x8] sm:$0xf]
        %v456 = vld [vmem:[%s421 + $0xc] sm:$0xf]
        %v457 = vld [vmem:[%s428] sm:$0xf]
        %v458 = vld [vmem:[%s428 + $0x4] sm:$0xf]
        %v459 = vld [vmem:[%s428 + $0x8] sm:$0xf]
        %v460 = vld [vmem:[%s428 + $0xc] sm:$0xf]
        %v461 = vld [vmem:[%s428 + $0x10] sm:$0xf]
        %v462 = vld [vmem:[%s428 + $0x14] sm:$0xf]
        %v463 = vld [vmem:[%s435] sm:$0xf]
        %v464 = vld [vmem:[%s435 + $0x4] sm:$0xf]
        %v465 = vld [vmem:[%s435 + $0x8] sm:$0xf]
        %v466 = vld [vmem:[%s435 + $0xc] sm:$0xf]
        %v467 = vld [vmem:[%s435 + $0x10] sm:$0xf]
        %v468 = vld [vmem:[%s435 + $0x14] sm:$0xf]
        %v469 = vld [vmem:[%s435 + $0x18] sm:$0xf]
        %v470 = vld [vmem:[%s435 + $0x1c] sm:$0xf]
        %v471 = vld [vmem:[%s435 + $0x20] sm:$0xf]
        %v472 = vld [vmem:[%s435 + $0x24] sm:$0xf]
        %v473 = vld [vmem:[%s435 + $0x28] sm:$0xf]
        %v474 = vld [vmem:[%s435 + $0x2c] sm:$0xf]
        %v475 = vld [vmem:[%s441] sm:$0xf]
        %v476 = vld [vmem:[%s448] sm:$0xff]
        %v477 = vld [vmem:[%s448 + $0x8] sm:$0xff]
        %v478 = vld [vmem:[%s448 + $0x10] sm:$0xff]
        %v479 = vld [vmem:[%s448 + $0x18] sm:$0xff]
        %v480 = vld [vmem:[%s448 + $0x20] sm:$0xff]
        %v481 = vld [vmem:[%s448 + $0x28] sm:$0xff]
        %v482 = vld [vmem:[%s448 + $0x30] sm:$0xff]
        %v483 = vld [vmem:[%s448 + $0x38] sm:$0xff]
        %v484 = vld [vmem:[%s448 + $0x40] sm:$0xff]
        %v485 = vld [vmem:[%s448 + $0x48] sm:$0xff]
        %v486 = vld [vmem:[%s448 + $0x50] sm:$0xff]
        %v487 = vld [vmem:[%s448 + $0x58] sm:$0xff]
        %v488 = vld [vmem:[%s448 + $0x60] sm:$0xff]
        %v489 = vld [vmem:[%s448 + $0x68] sm:$0xff]
        %v490 = vld [vmem:[%s448 + $0x70] sm:$0xff]
        %v491 = vld [vmem:[%s448 + $0x78] sm:$0xff]
        %v492 = vld [vmem:[%s448 + $0x80] sm:$0xff]
        %v493 = vld [vmem:[%s448 + $0x88] sm:$0xff]
        %v494 = vld [vmem:[%s448 + $0x90] sm:$0xff]
        %v495 = vld [vmem:[%s448 + $0x98] sm:$0xff]
        %v496 = vld [vmem:[%s448 + $0xa0] sm:$0xff]
        %v497 = vld [vmem:[%s448 + $0xa8] sm:$0xff]
        %v498 = vld [vmem:[%s448 + $0xb0] sm:$0xff]
        %v499 = vpack.c.bf16 %v451, %v451
        %501 = vset.pattern.permute.xlu0 0
        %502 = vperm.xlu0 %501, %v476
        %v503 = vpop.permute.xlu0 %502
        %506 = vset.pattern.permute.xlu0 0
        %507 = vperm.xlu0 %506, %v477
        %v508 = vpop.permute.xlu0 %507
        %511 = vset.pattern.permute.xlu0 0
        %512 = vperm.xlu0 %511, %v478
        %v513 = vpop.permute.xlu0 %512
        %516 = vset.pattern.permute.xlu0 0
        %517 = vperm.xlu0 %516, %v479
        %v518 = vpop.permute.xlu0 %517
        %v524 = vunpack.c.l.b16 %v453
        %v525 = vunpack.c.l.b16 %v454
        %v526 = vunpack.c.l.b16 %v455
        %v527 = vunpack.c.l.b16 %v456
        %v528 = vpack.c.b16 %v525, %v524
        %v529 = vpack.c.b16 %v527, %v526
        %vm530 = vcmask 64512
        %v532 = vsel %vm530, %v528, 0
        %v535 = vsel %vm530, %v529, 0
        %vm537 = vcmask 1043456
        %v539 = vsel %vm537, %v499, 0
        %541 = vmatprep.subr.bf16.mxu0 0
        %542 = vmatpush1.bf16.msra.mxu0 %v539
        %543 = vmatprep.subr.bf16.mxu0 0
        %544 = vmatpush1.bf16.msra.mxu0 0
        %545 = vmatprep.subr.bf16.mxu0 0
        %546 = vmatpush1.bf16.msra.mxu0 0
        %547 = vmatprep.subr.bf16.mxu0 0
        %548 = vmatpush1.bf16.msra.mxu0 0
        %549 = vmatprep.subr.bf16.mxu0 0
        %550 = vmatpush1.bf16.msra.mxu0 0
        %551 = vmatprep.subr.bf16.mxu0 0
        %552 = vmatpush1.bf16.msra.mxu0 0
        %553 = vmatprep.subr.bf16.mxu0 0
        %554 = vmatpush1.bf16.msra.mxu0 0
        %555 = vmatprep.subr.bf16.mxu0 0
        %556 = vmatpush1.bf16.msra.mxu0 0
        %557 = vmatprep.subr.bf16.mxu0 0
        %558 = vmatpush1.bf16.msra.mxu0 0
        %559 = vmatprep.subr.bf16.mxu0 0
        %560 = vmatpush1.bf16.msra.mxu0 0
        %561 = vmatprep.subr.bf16.mxu0 0
        %562 = vmatpush1.bf16.msra.mxu0 0
        %563 = vmatprep.subr.bf16.mxu0 0
        %564 = vmatpush1.bf16.msra.mxu0 0
        %565 = vmatprep.subr.bf16.mxu0 0
        %566 = vmatpush1.bf16.msra.mxu0 0
        %567 = vmatprep.subr.bf16.mxu0 0
        %568 = vmatpush1.bf16.msra.mxu0 0
        %569 = vmatprep.subr.bf16.mxu0 0
        %570 = vmatpush1.bf16.msra.mxu0 0
        %571 = vmatprep.subr.bf16.mxu0 0
        %572 = vmatpush1.bf16.msra.mxu0 0
        %573 = vmatprep.mubr.bf16.mxu0 0
        %574 = vmatmul.mubr.bf16.gmra.mrb[0].mxu0 %v532
        %v575 = vpop.f32.mrb[0].mxu0
        %v576 = vadd.f32 %v503, %v575
        %v577 = vpop.f32.mrb[0].mxu0
        %v578 = vpop.f32.mrb[0].mxu0
        %v579 = vadd.f32 %v508, %v578
        %v580 = vpop.f32.mrb[0].mxu0
        %581 = vmatprep.mubr.bf16.mxu0 0
        %582 = vmatmul.mubr.bf16.gmra.mrb[0].mxu0 %v535
        %v583 = vpop.f32.mrb[0].mxu0
        %v584 = vadd.f32 %v513, %v583
        %v585 = vpop.f32.mrb[0].mxu0
        %v586 = vpop.f32.mrb[0].mxu0
        %v587 = vadd.f32 %v518, %v586
        %v588 = vpop.f32.mrb[0].mxu0
        %589 = vdwg.mxu0
        %vm590 = vcmp.ge.f32.partialorder %v576, 0.0
        %vm591 = vcmp.ge.f32.partialorder %v579, 0.0
        %vm592 = vcmp.ge.f32.partialorder %v584, 0.0
        %vm593 = vcmp.ge.f32.partialorder %v587, 0.0
        %v594 = vmul.f32 %v576, 0.1
        %v595 = vmul.f32 %v579, 0.1
        %v596 = vmul.f32 %v584, 0.1
        %v597 = vmul.f32 %v587, 0.1
        %v598 = vsel %vm590, %v576, %v594
        %v599 = vsel %vm591, %v579, %v595
        %v600 = vsel %vm592, %v584, %v596
        %v601 = vsel %vm593, %v587, %v597
        %v602 = vpack.c.bf16 %v599, %v598
        %v603 = vpack.c.bf16 %v601, %v600
        %605 = vset.pattern.permute.xlu0 0
        %606 = vperm.xlu0 %605, %v480
        %v607 = vpop.permute.xlu0 %606
        %610 = vset.pattern.permute.xlu0 0
        %611 = vperm.xlu0 %610, %v481
        %v612 = vpop.permute.xlu0 %611
        %v616 = vunpack.c.l.b16 %v457
        %v617 = vunpack.c.l.b16 %v458
        %v618 = vpack.c.b16 %v617, %v616
        %vm619 = vcmask 261120
        %v621 = vsel %vm619, %v618, 0
        %623 = vmatprep.subr.bf16.mxu0 0
        %624 = vmatpush1.bf16.msra.mxu0 %v602
        %625 = vmatprep.subr.bf16.mxu0 0
        %626 = vmatpush1.bf16.msra.mxu0 %v603
        %627 = vmatprep.subr.bf16.mxu0 0
        %628 = vmatpush1.bf16.msra.mxu0 0
        %629 = vmatprep.subr.bf16.mxu0 0
        %630 = vmatpush1.bf16.msra.mxu0 0
        %631 = vmatprep.subr.bf16.mxu0 0
        %632 = vmatpush1.bf16.msra.mxu0 0
        %633 = vmatprep.subr.bf16.mxu0 0
        %634 = vmatpush1.bf16.msra.mxu0 0
        %635 = vmatprep.subr.bf16.mxu0 0
        %636 = vmatpush1.bf16.msra.mxu0 0
        %637 = vmatprep.subr.bf16.mxu0 0
        %638 = vmatpush1.bf16.msra.mxu0 0
        %639 = vmatprep.subr.bf16.mxu0 0
        %640 = vmatpush1.bf16.msra.mxu0 0
        %641 = vmatprep.subr.bf16.mxu0 0
        %642 = vmatpush1.bf16.msra.mxu0 0
        %643 = vmatprep.subr.bf16.mxu0 0
        %644 = vmatpush1.bf16.msra.mxu0 0
        %645 = vmatprep.subr.bf16.mxu0 0
        %646 = vmatpush1.bf16.msra.mxu0 0
        %647 = vmatprep.subr.bf16.mxu0 0
        %648 = vmatpush1.bf16.msra.mxu0 0
        %649 = vmatprep.subr.bf16.mxu0 0
        %650 = vmatpush1.bf16.msra.mxu0 0
        %651 = vmatprep.subr.bf16.mxu0 0
        %652 = vmatpush1.bf16.msra.mxu0 0
        %653 = vmatprep.subr.bf16.mxu0 0
        %654 = vmatpush1.bf16.msra.mxu0 0
        %655 = vmatprep.mubr.bf16.mxu0 0
        %656 = vmatmul.mubr.bf16.gmra.mrb[0].mxu0 %v621
        %v657 = vpop.f32.mrb[0].mxu0
        %v658 = vadd.f32 %v607, %v657
        %v659 = vpop.f32.mrb[0].mxu0
        %v660 = vpop.f32.mrb[0].mxu0
        %v661 = vadd.f32 %v612, %v660
        %v662 = vpop.f32.mrb[0].mxu0
        %663 = vdwg.mxu0
        %vm664 = vcmp.ge.f32.partialorder %v658, 0.0
        %vm665 = vcmp.ge.f32.partialorder %v661, 0.0
        %v666 = vmul.f32 %v658, 0.2
        %v667 = vmul.f32 %v661, 0.2
        %v668 = vsel %vm664, %v658, %v666
        %v669 = vsel %vm665, %v661, %v667
        %v670 = vpack.c.bf16 %v669, %v668
        %672 = vset.pattern.permute.xlu0 0
        %673 = vperm.xlu0 %672, %v482
        %v674 = vpop.permute.xlu0 %673
        %677 = vset.pattern.permute.xlu0 0
        %678 = vperm.xlu0 %677, %v483
        %v679 = vpop.permute.xlu0 %678
        %682 = vset.pattern.permute.xlu0 0
        %683 = vperm.xlu0 %682, %v484
        %v684 = vpop.permute.xlu0 %683
        %687 = vset.pattern.permute.xlu0 0
        %688 = vperm.xlu0 %687, %v485
        %v689 = vpop.permute.xlu0 %688
        %v695 = vunpack.c.l.b16 %v463
        %v696 = vunpack.c.l.b16 %v464
        %v697 = vunpack.c.l.b16 %v465
        %v698 = vunpack.c.l.b16 %v466
        %v699 = vpack.c.b16 %v696, %v695
        %v700 = vpack.c.b16 %v698, %v697
        %vm701 = vcmask 130048
        %v703 = vsel %vm701, %v699, 0
        %v706 = vsel %vm701, %v700, 0
        %708 = vmatprep.subr.bf16.mxu0 0
        %709 = vmatpush1.bf16.msra.mxu0 %v670
        %710 = vmatprep.subr.bf16.mxu0 0
        %711 = vmatpush1.bf16.msra.mxu0 0
        %712 = vmatprep.subr.bf16.mxu0 0
        %713 = vmatpush1.bf16.msra.mxu0 0
        %714 = vmatprep.subr.bf16.mxu0 0
        %715 = vmatpush1.bf16.msra.mxu0 0
        %716 = vmatprep.subr.bf16.mxu0 0
        %717 = vmatpush1.bf16.msra.mxu0 0
        %718 = vmatprep.subr.bf16.mxu0 0
        %719 = vmatpush1.bf16.msra.mxu0 0
        %720 = vmatprep.subr.bf16.mxu0 0
        %721 = vmatpush1.bf16.msra.mxu0 0
        %722 = vmatprep.subr.bf16.mxu0 0
        %723 = vmatpush1.bf16.msra.mxu0 0
        %724 = vmatprep.subr.bf16.mxu0 0
        %725 = vmatpush1.bf16.msra.mxu0 0
        %726 = vmatprep.subr.bf16.mxu0 0
        %727 = vmatpush1.bf16.msra.mxu0 0
        %728 = vmatprep.subr.bf16.mxu0 0
        %729 = vmatpush1.bf16.msra.mxu0 0
        %730 = vmatprep.subr.bf16.mxu0 0
        %731 = vmatpush1.bf16.msra.mxu0 0
        %732 = vmatprep.subr.bf16.mxu0 0
        %733 = vmatpush1.bf16.msra.mxu0 0
        %734 = vmatprep.subr.bf16.mxu0 0
        %735 = vmatpush1.bf16.msra.mxu0 0
        %736 = vmatprep.subr.bf16.mxu0 0
        %737 = vmatpush1.bf16.msra.mxu0 0
        %738 = vmatprep.subr.bf16.mxu0 0
        %739 = vmatpush1.bf16.msra.mxu0 0
        %740 = vmatprep.mubr.bf16.mxu0 0
        %741 = vmatmul.mubr.bf16.gmra.mrb[0].mxu0 %v703
        %v742 = vpop.f32.mrb[0].mxu0
        %v743 = vadd.f32 %v674, %v742
        %v744 = vpop.f32.mrb[0].mxu0
        %v745 = vpop.f32.mrb[0].mxu0
        %v746 = vadd.f32 %v679, %v745
        %v747 = vpop.f32.mrb[0].mxu0
        %748 = vmatprep.mubr.bf16.mxu0 0
        %749 = vmatmul.mubr.bf16.gmra.mrb[0].mxu0 %v706
        %v750 = vpop.f32.mrb[0].mxu0
        %v751 = vadd.f32 %v684, %v750
        %v752 = vpop.f32.mrb[0].mxu0
        %v753 = vpop.f32.mrb[0].mxu0
        %v754 = vadd.f32 %v689, %v753
        %v755 = vpop.f32.mrb[0].mxu0
        %756 = vdwg.mxu0
        %vm757 = vcmp.ge.f32.partialorder %v743, 0.0
        %vm758 = vcmp.ge.f32.partialorder %v746, 0.0
        %vm759 = vcmp.ge.f32.partialorder %v751, 0.0
        %vm760 = vcmp.ge.f32.partialorder %v754, 0.0
        %v761 = vmul.f32 %v743, 0.2
        %v762 = vmul.f32 %v746, 0.2
        %v763 = vmul.f32 %v751, 0.2
        %v764 = vmul.f32 %v754, 0.2
        %v765 = vsel %vm757, %v743, %v761
        %v766 = vsel %vm758, %v746, %v762
        %v767 = vsel %vm759, %v751, %v763
        %v768 = vsel %vm760, %v754, %v764
        %v769 = vadd.f32 %v598, %v765
        %v770 = vadd.f32 %v599, %v766
        %v771 = vadd.f32 %v600, %v767
        %v772 = vadd.f32 %v601, %v768
        %v773 = vpack.c.bf16 %v770, %v769
        %v774 = vpack.c.bf16 %v772, %v771
        %776 = vset.pattern.permute.xlu0 0
        %777 = vperm.xlu0 %776, %v486
        %v778 = vpop.permute.xlu0 %777
        %781 = vset.pattern.permute.xlu0 0
        %782 = vperm.xlu0 %781, %v487
        %v783 = vpop.permute.xlu0 %782
        %v787 = vunpack.c.l.b16 %v459
        %v788 = vunpack.c.l.b16 %v460
        %v789 = vpack.c.b16 %v788, %v787
        %v791 = vsel %vm619, %v789, 0
        %793 = vmatprep.subr.bf16.mxu0 0
        %794 = vmatpush1.bf16.msra.mxu0 %v773
        %795 = vmatprep.subr.bf16.mxu0 0
        %796 = vmatpush1.bf16.msra.mxu0 %v774
        %797 = vmatprep.subr.bf16.mxu0 0
        %798 = vmatpush1.bf16.msra.mxu0 0
        %799 = vmatprep.subr.bf16.mxu0 0
        %800 = vmatpush1.bf16.msra.mxu0 0
        %801 = vmatprep.subr.bf16.mxu0 0
        %802 = vmatpush1.bf16.msra.mxu0 0
        %803 = vmatprep.subr.bf16.mxu0 0
        %804 = vmatpush1.bf16.msra.mxu0 0
        %805 = vmatprep.subr.bf16.mxu0 0
        %806 = vmatpush1.bf16.msra.mxu0 0
        %807 = vmatprep.subr.bf16.mxu0 0
        %808 = vmatpush1.bf16.msra.mxu0 0
        %809 = vmatprep.subr.bf16.mxu0 0
        %810 = vmatpush1.bf16.msra.mxu0 0
        %811 = vmatprep.subr.bf16.mxu0 0
        %812 = vmatpush1.bf16.msra.mxu0 0
        %813 = vmatprep.subr.bf16.mxu0 0
        %814 = vmatpush1.bf16.msra.mxu0 0
        %815 = vmatprep.subr.bf16.mxu0 0
        %816 = vmatpush1.bf16.msra.mxu0 0
        %817 = vmatprep.subr.bf16.mxu0 0
        %818 = vmatpush1.bf16.msra.mxu0 0
        %819 = vmatprep.subr.bf16.mxu0 0
        %820 = vmatpush1.bf16.msra.mxu0 0
        %821 = vmatprep.subr.bf16.mxu0 0
        %822 = vmatpush1.bf16.msra.mxu0 0
        %823 = vmatprep.subr.bf16.mxu0 0
        %824 = vmatpush1.bf16.msra.mxu0 0
        %825 = vmatprep.mubr.bf16.mxu0 0
        %826 = vmatmul.mubr.bf16.gmra.mrb[0].mxu0 %v791
        %v827 = vpop.f32.mrb[0].mxu0
        %v828 = vadd.f32 %v778, %v827
        %v829 = vpop.f32.mrb[0].mxu0
        %v830 = vpop.f32.mrb[0].mxu0
        %v831 = vadd.f32 %v783, %v830
        %v832 = vpop.f32.mrb[0].mxu0
        %833 = vdwg.mxu0
        %vm834 = vcmp.ge.f32.partialorder %v828, 0.0
        %vm835 = vcmp.ge.f32.partialorder %v831, 0.0
        %v836 = vmul.f32 %v828, 0.2
        %v837 = vmul.f32 %v831, 0.2
        %v838 = vsel %vm834, %v828, %v836
        %v839 = vsel %vm835, %v831, %v837
        %v840 = vpack.c.bf16 %v839, %v838
        %842 = vset.pattern.permute.xlu0 0
        %843 = vperm.xlu0 %842, %v488
        %v844 = vpop.permute.xlu0 %843
        %847 = vset.pattern.permute.xlu0 0
        %848 = vperm.xlu0 %847, %v489
        %v849 = vpop.permute.xlu0 %848
        %852 = vset.pattern.permute.xlu0 0
        %853 = vperm.xlu0 %852, %v490
        %v854 = vpop.permute.xlu0 %853
        %857 = vset.pattern.permute.xlu0 0
        %858 = vperm.xlu0 %857, %v491
        %v859 = vpop.permute.xlu0 %858
        %v865 = vunpack.c.l.b16 %v467
        %v866 = vunpack.c.l.b16 %v468
        %v867 = vunpack.c.l.b16 %v469
        %v868 = vunpack.c.l.b16 %v470
        %v869 = vpack.c.b16 %v866, %v865
        %v870 = vpack.c.b16 %v868, %v867
        %v872 = vsel %vm701, %v869, 0
        %v875 = vsel %vm701, %v870, 0
        %877 = vmatprep.subr.bf16.mxu0 0
        %878 = vmatpush1.bf16.msra.mxu0 %v840
        %879 = vmatprep.subr.bf16.mxu0 0
        %880 = vmatpush1.bf16.msra.mxu0 0
        %881 = vmatprep.subr.bf16.mxu0 0
        %882 = vmatpush1.bf16.msra.mxu0 0
        %883 = vmatprep.subr.bf16.mxu0 0
        %884 = vmatpush1.bf16.msra.mxu0 0
        %885 = vmatprep.subr.bf16.mxu0 0
        %886 = vmatpush1.bf16.msra.mxu0 0
        %887 = vmatprep.subr.bf16.mxu0 0
        %888 = vmatpush1.bf16.msra.mxu0 0
        %889 = vmatprep.subr.bf16.mxu0 0
        %890 = vmatpush1.bf16.msra.mxu0 0
        %891 = vmatprep.subr.bf16.mxu0 0
        %892 = vmatpush1.bf16.msra.mxu0 0
        %893 = vmatprep.subr.bf16.mxu0 0
        %894 = vmatpush1.bf16.msra.mxu0 0
        %895 = vmatprep.subr.bf16.mxu0 0
        %896 = vmatpush1.bf16.msra.mxu0 0
        %897 = vmatprep.subr.bf16.mxu0 0
        %898 = vmatpush1.bf16.msra.mxu0 0
        %899 = vmatprep.subr.bf16.mxu0 0
        %900 = vmatpush1.bf16.msra.mxu0 0
        %901 = vmatprep.subr.bf16.mxu0 0
        %902 = vmatpush1.bf16.msra.mxu0 0
        %903 = vmatprep.subr.bf16.mxu0 0
        %904 = vmatpush1.bf16.msra.mxu0 0
        %905 = vmatprep.subr.bf16.mxu0 0
        %906 = vmatpush1.bf16.msra.mxu0 0
        %907 = vmatprep.subr.bf16.mxu0 0
        %908 = vmatpush1.bf16.msra.mxu0 0
        %909 = vmatprep.mubr.bf16.mxu0 0
        %910 = vmatmul.mubr.bf16.gmra.mrb[0].mxu0 %v872
        %v911 = vpop.f32.mrb[0].mxu0
        %v912 = vadd.f32 %v844, %v911
        %v913 = vpop.f32.mrb[0].mxu0
        %v914 = vpop.f32.mrb[0].mxu0
        %v915 = vadd.f32 %v849, %v914
        %v916 = vpop.f32.mrb[0].mxu0
        %917 = vmatprep.mubr.bf16.mxu0 0
        %918 = vmatmul.mubr.bf16.gmra.mrb[0].mxu0 %v875
        %v919 = vpop.f32.mrb[0].mxu0
        %v920 = vadd.f32 %v854, %v919
        %v921 = vpop.f32.mrb[0].mxu0
        %v922 = vpop.f32.mrb[0].mxu0
        %v923 = vadd.f32 %v859, %v922
        %v924 = vpop.f32.mrb[0].mxu0
        %925 = vdwg.mxu0
        %vm926 = vcmp.ge.f32.partialorder %v912, 0.0
        %vm927 = vcmp.ge.f32.partialorder %v915, 0.0
        %vm928 = vcmp.ge.f32.partialorder %v920, 0.0
        %vm929 = vcmp.ge.f32.partialorder %v923, 0.0
        %v930 = vmul.f32 %v912, 0.2
        %v931 = vmul.f32 %v915, 0.2
        %v932 = vmul.f32 %v920, 0.2
        %v933 = vmul.f32 %v923, 0.2
        %v934 = vsel %vm926, %v912, %v930
        %v935 = vsel %vm927, %v915, %v931
        %v936 = vsel %vm928, %v920, %v932
        %v937 = vsel %vm929, %v923, %v933
        %v938 = vadd.f32 %v769, %v934
        %v939 = vadd.f32 %v770, %v935
        %v940 = vadd.f32 %v771, %v936
        %v941 = vadd.f32 %v772, %v937
        %v942 = vpack.c.bf16 %v939, %v938
        %v943 = vpack.c.bf16 %v941, %v940
        %945 = vset.pattern.permute.xlu0 0
        %946 = vperm.xlu0 %945, %v492
        %v947 = vpop.permute.xlu0 %946
        %950 = vset.pattern.permute.xlu0 0
        %951 = vperm.xlu0 %950, %v493
        %v952 = vpop.permute.xlu0 %951
        %v956 = vunpack.c.l.b16 %v461
        %v957 = vunpack.c.l.b16 %v462
        %v958 = vpack.c.b16 %v957, %v956
        %v960 = vsel %vm619, %v958, 0
        %962 = vmatprep.subr.bf16.mxu0 0
        %963 = vmatpush1.bf16.msra.mxu0 %v942
        %964 = vmatprep.subr.bf16.mxu0 0
        %965 = vmatpush1.bf16.msra.mxu0 %v943
        %966 = vmatprep.subr.bf16.mxu0 0
        %967 = vmatpush1.bf16.msra.mxu0 0
        %968 = vmatprep.subr.bf16.mxu0 0
        %969 = vmatpush1.bf16.msra.mxu0 0
        %970 = vmatprep.subr.bf16.mxu0 0
        %971 = vmatpush1.bf16.msra.mxu0 0
        %972 = vmatprep.subr.bf16.mxu0 0
        %973 = vmatpush1.bf16.msra.mxu0 0
        %974 = vmatprep.subr.bf16.mxu0 0
        %975 = vmatpush1.bf16.msra.mxu0 0
        %976 = vmatprep.subr.bf16.mxu0 0
        %977 = vmatpush1.bf16.msra.mxu0 0
        %978 = vmatprep.subr.bf16.mxu0 0
        %979 = vmatpush1.bf16.msra.mxu0 0
        %980 = vmatprep.subr.bf16.mxu0 0
        %981 = vmatpush1.bf16.msra.mxu0 0
        %982 = vmatprep.subr.bf16.mxu0 0
        %983 = vmatpush1.bf16.msra.mxu0 0
        %984 = vmatprep.subr.bf16.mxu0 0
        %985 = vmatpush1.bf16.msra.mxu0 0
        %986 = vmatprep.subr.bf16.mxu0 0
        %987 = vmatpush1.bf16.msra.mxu0 0
        %988 = vmatprep.subr.bf16.mxu0 0
        %989 = vmatpush1.bf16.msra.mxu0 0
        %990 = vmatprep.subr.bf16.mxu0 0
        %991 = vmatpush1.bf16.msra.mxu0 0
        %992 = vmatprep.subr.bf16.mxu0 0
        %993 = vmatpush1.bf16.msra.mxu0 0
        %994 = vmatprep.mubr.bf16.mxu0 0
        %995 = vmatmul.mubr.bf16.gmra.mrb[0].mxu0 %v960
        %v996 = vpop.f32.mrb[0].mxu0
        %v997 = vadd.f32 %v947, %v996
        %v998 = vpop.f32.mrb[0].mxu0
        %v999 = vpop.f32.mrb[0].mxu0
        %v1000 = vadd.f32 %v952, %v999
        %v1001 = vpop.f32.mrb[0].mxu0
        %1002 = vdwg.mxu0
        %vm1003 = vcmp.ge.f32.partialorder %v997, 0.0
        %vm1004 = vcmp.ge.f32.partialorder %v1000, 0.0
        %v1005 = vmul.f32 %v997, 0.2
        %v1006 = vmul.f32 %v1000, 0.2
        %v1007 = vsel %vm1003, %v997, %v1005
        %v1008 = vsel %vm1004, %v1000, %v1006
        %v1009 = vpack.c.bf16 %v1008, %v1007
        %1011 = vset.pattern.permute.xlu0 0
        %1012 = vperm.xlu0 %1011, %v494
        %v1013 = vpop.permute.xlu0 %1012
        %1016 = vset.pattern.permute.xlu0 0
        %1017 = vperm.xlu0 %1016, %v495
        %v1018 = vpop.permute.xlu0 %1017
        %1021 = vset.pattern.permute.xlu0 0
        %1022 = vperm.xlu0 %1021, %v496
        %v1023 = vpop.permute.xlu0 %1022
        %1026 = vset.pattern.permute.xlu0 0
        %1027 = vperm.xlu0 %1026, %v497
        %v1028 = vpop.permute.xlu0 %1027
        %v1034 = vunpack.c.l.b16 %v471
        %v1035 = vunpack.c.l.b16 %v472
        %v1036 = vunpack.c.l.b16 %v473
        %v1037 = vunpack.c.l.b16 %v474
        %v1038 = vpack.c.b16 %v1035, %v1034
        %v1039 = vpack.c.b16 %v1037, %v1036
        %v1041 = vsel %vm701, %v1038, 0
        %v1044 = vsel %vm701, %v1039, 0
        %1046 = vmatprep.subr.bf16.mxu0 0
        %1047 = vmatpush1.bf16.msra.mxu0 %v1009
        %1048 = vmatprep.subr.bf16.mxu0 0
        %1049 = vmatpush1.bf16.msra.mxu0 0
        %1050 = vmatprep.subr.bf16.mxu0 0
        %1051 = vmatpush1.bf16.msra.mxu0 0
        %1052 = vmatprep.subr.bf16.mxu0 0
        %1053 = vmatpush1.bf16.msra.mxu0 0
        %1054 = vmatprep.subr.bf16.mxu0 0
        %1055 = vmatpush1.bf16.msra.mxu0 0
        %1056 = vmatprep.subr.bf16.mxu0 0
        %1057 = vmatpush1.bf16.msra.mxu0 0
        %1058 = vmatprep.subr.bf16.mxu0 0
        %1059 = vmatpush1.bf16.msra.mxu0 0
        %1060 = vmatprep.subr.bf16.mxu0 0
        %1061 = vmatpush1.bf16.msra.mxu0 0
        %1062 = vmatprep.subr.bf16.mxu0 0
        %1063 = vmatpush1.bf16.msra.mxu0 0
        %1064 = vmatprep.subr.bf16.mxu0 0
        %1065 = vmatpush1.bf16.msra.mxu0 0
        %1066 = vmatprep.subr.bf16.mxu0 0
        %1067 = vmatpush1.bf16.msra.mxu0 0
        %1068 = vmatprep.subr.bf16.mxu0 0
        %1069 = vmatpush1.bf16.msra.mxu0 0
        %1070 = vmatprep.subr.bf16.mxu0 0
        %1071 = vmatpush1.bf16.msra.mxu0 0
        %1072 = vmatprep.subr.bf16.mxu0 0
        %1073 = vmatpush1.bf16.msra.mxu0 0
        %1074 = vmatprep.subr.bf16.mxu0 0
        %1075 = vmatpush1.bf16.msra.mxu0 0
        %1076 = vmatprep.subr.bf16.mxu0 0
        %1077 = vmatpush1.bf16.msra.mxu0 0
        %1078 = vmatprep.mubr.bf16.mxu0 0
        %1079 = vmatmul.mubr.bf16.gmra.mrb[0].mxu0 %v1041
        %v1080 = vpop.f32.mrb[0].mxu0
        %v1081 = vadd.f32 %v1013, %v1080
        %v1082 = vpop.f32.mrb[0].mxu0
        %v1083 = vpop.f32.mrb[0].mxu0
        %v1084 = vadd.f32 %v1018, %v1083
        %v1085 = vpop.f32.mrb[0].mxu0
        %1086 = vmatprep.mubr.bf16.mxu0 0
        %1087 = vmatmul.mubr.bf16.gmra.mrb[0].mxu0 %v1044
        %v1088 = vpop.f32.mrb[0].mxu0
        %v1089 = vadd.f32 %v1023, %v1088
        %v1090 = vpop.f32.mrb[0].mxu0
        %v1091 = vpop.f32.mrb[0].mxu0
        %v1092 = vadd.f32 %v1028, %v1091
        %v1093 = vpop.f32.mrb[0].mxu0
        %1094 = vdwg.mxu0
        %vm1095 = vcmp.ge.f32.partialorder %v1081, 0.0
        %vm1096 = vcmp.ge.f32.partialorder %v1084, 0.0
        %vm1097 = vcmp.ge.f32.partialorder %v1089, 0.0
        %vm1098 = vcmp.ge.f32.partialorder %v1092, 0.0
        %v1099 = vmul.f32 %v1081, 0.2
        %v1100 = vmul.f32 %v1084, 0.2
        %v1101 = vmul.f32 %v1089, 0.2
        %v1102 = vmul.f32 %v1092, 0.2
        %v1103 = vsel %vm1095, %v1081, %v1099
        %v1104 = vsel %vm1096, %v1084, %v1100
        %v1105 = vsel %vm1097, %v1089, %v1101
        %v1106 = vsel %vm1098, %v1092, %v1102
        %v1107 = vadd.f32 %v938, %v1103
        %v1108 = vadd.f32 %v939, %v1104
        %v1109 = vadd.f32 %v940, %v1105
        %v1110 = vadd.f32 %v941, %v1106
        %v1111 = vpack.c.bf16 %v1108, %v1107
        %v1112 = vpack.c.bf16 %v1110, %v1109
        %1114 = vset.pattern.permute.xlu0 0
        %1115 = vperm.xlu0 %1114, %v498
        %v1116 = vpop.permute.xlu0 %1115
        %v1119 = vsel %vm619, %v475, 0
        %1121 = vmatprep.subr.bf16.mxu0 0
        %1122 = vmatpush1.bf16.msra.mxu0 %v1111
        %1123 = vmatprep.subr.bf16.mxu0 0
        %1124 = vmatpush1.bf16.msra.mxu0 %v1112
        %1125 = vmatprep.subr.bf16.mxu0 0
        %1126 = vmatpush1.bf16.msra.mxu0 0
        %1127 = vmatprep.subr.bf16.mxu0 0
        %1128 = vmatpush1.bf16.msra.mxu0 0
        %1129 = vmatprep.subr.bf16.mxu0 0
        %1130 = vmatpush1.bf16.msra.mxu0 0
        %1131 = vmatprep.subr.bf16.mxu0 0
        %1132 = vmatpush1.bf16.msra.mxu0 0
        %1133 = vmatprep.subr.bf16.mxu0 0
        %1134 = vmatpush1.bf16.msra.mxu0 0
        %1135 = vmatprep.subr.bf16.mxu0 0
        %1136 = vmatpush1.bf16.msra.mxu0 0
        %1137 = vmatprep.subr.bf16.mxu0 0
        %1138 = vmatpush1.bf16.msra.mxu0 0
        %1139 = vmatprep.subr.bf16.mxu0 0
        %1140 = vmatpush1.bf16.msra.mxu0 0
        %1141 = vmatprep.subr.bf16.mxu0 0
        %1142 = vmatpush1.bf16.msra.mxu0 0
        %1143 = vmatprep.subr.bf16.mxu0 0
        %1144 = vmatpush1.bf16.msra.mxu0 0
        %1145 = vmatprep.subr.bf16.mxu0 0
        %1146 = vmatpush1.bf16.msra.mxu0 0
        %1147 = vmatprep.subr.bf16.mxu0 0
        %1148 = vmatpush1.bf16.msra.mxu0 0
        %1149 = vmatprep.subr.bf16.mxu0 0
        %1150 = vmatpush1.bf16.msra.mxu0 0
        %1151 = vmatprep.subr.bf16.mxu0 0
        %1152 = vmatpush1.bf16.msra.mxu0 0
        %1153 = vmatprep.mubr.bf16.mxu0 0
        %1154 = vmatmul.mubr.bf16.gmra.mrb[0].mxu0 %v1119
        %v1155 = vpop.f32.mrb[0].mxu0
        %v1156 = vadd.f32 %v1116, %v1155
        %v1157 = vpop.f32.mrb[0].mxu0
        %v1158 = vpop.f32.mrb[0].mxu0
        %v1159 = vpop.f32.mrb[0].mxu0
        %1160 = vdwg.mxu0
        %v1161 = vpack.c.bf16 %v452, %v451
        %v1163 = vshrl.u32 %v1161, 16
        %v1165 = vshll.u32 %v1161, 16
        %v1167 = vrot.slane %v1165, 1
        %v1168 = vor.u32 %v1163, %v1167
        %v1170 = vsel %vm537, %v1168, 0
        %1172 = vmatprep.subr.bf16.mxu0 0
        %1173 = vmatpush1.bf16.msra.mxu0 %v1170
        %1174 = vmatprep.subr.bf16.mxu0 0
        %1175 = vmatpush1.bf16.msra.mxu0 0
        %1176 = vmatprep.subr.bf16.mxu0 0
        %1177 = vmatpush1.bf16.msra.mxu0 0
        %1178 = vmatprep.subr.bf16.mxu0 0
        %1179 = vmatpush1.bf16.msra.mxu0 0
        %1180 = vmatprep.subr.bf16.mxu0 0
        %1181 = vmatpush1.bf16.msra.mxu0 0
        %1182 = vmatprep.subr.bf16.mxu0 0
        %1183 = vmatpush1.bf16.msra.mxu0 0
        %1184 = vmatprep.subr.bf16.mxu0 0
        %1185 = vmatpush1.bf16.msra.mxu0 0
        %1186 = vmatprep.subr.bf16.mxu0 0
        %1187 = vmatpush1.bf16.msra.mxu0 0
        %1188 = vmatprep.subr.bf16.mxu0 0
        %1189 = vmatpush1.bf16.msra.mxu0 0
        %1190 = vmatprep.subr.bf16.mxu0 0
        %1191 = vmatpush1.bf16.msra.mxu0 0
        %1192 = vmatprep.subr.bf16.mxu0 0
        %1193 = vmatpush1.bf16.msra.mxu0 0
        %1194 = vmatprep.subr.bf16.mxu0 0
        %1195 = vmatpush1.bf16.msra.mxu0 0
        %1196 = vmatprep.subr.bf16.mxu0 0
        %1197 = vmatpush1.bf16.msra.mxu0 0
        %1198 = vmatprep.subr.bf16.mxu0 0
        %1199 = vmatpush1.bf16.msra.mxu0 0
        %1200 = vmatprep.subr.bf16.mxu0 0
        %1201 = vmatpush1.bf16.msra.mxu0 0
        %1202 = vmatprep.subr.bf16.mxu0 0
        %1203 = vmatpush1.bf16.msra.mxu0 0
        %1204 = vmatprep.mubr.bf16.mxu0 0
        %1205 = vmatmul.mubr.bf16.gmra.mrb[0].mxu0 %v532
        %v1206 = vpop.f32.mrb[0].mxu0
        %v1207 = vadd.f32 %v503, %v1206
        %v1208 = vpop.f32.mrb[0].mxu0
        %v1209 = vpop.f32.mrb[0].mxu0
        %v1210 = vadd.f32 %v508, %v1209
        %v1211 = vpop.f32.mrb[0].mxu0
        %1212 = vmatprep.mubr.bf16.mxu0 0
        %1213 = vmatmul.mubr.bf16.gmra.mrb[0].mxu0 %v535
        %v1214 = vpop.f32.mrb[0].mxu0
        %v1215 = vadd.f32 %v513, %v1214
        %v1216 = vpop.f32.mrb[0].mxu0
        %v1217 = vpop.f32.mrb[0].mxu0
        %v1218 = vadd.f32 %v518, %v1217
        %v1219 = vpop.f32.mrb[0].mxu0
        %1220 = vdwg.mxu0
        %vm1221 = vcmp.ge.f32.partialorder %v1207, 0.0
        %vm1222 = vcmp.ge.f32.partialorder %v1210, 0.0
        %vm1223 = vcmp.ge.f32.partialorder %v1215, 0.0
        %vm1224 = vcmp.ge.f32.partialorder %v1218, 0.0
        %v1225 = vmul.f32 %v1207, 0.1
        %v1226 = vmul.f32 %v1210, 0.1
        %v1227 = vmul.f32 %v1215, 0.1
        %v1228 = vmul.f32 %v1218, 0.1
        %v1229 = vsel %vm1221, %v1207, %v1225
        %v1230 = vsel %vm1222, %v1210, %v1226
        %v1231 = vsel %vm1223, %v1215, %v1227
        %v1232 = vsel %vm1224, %v1218, %v1228
        %v1233 = vpack.c.bf16 %v1230, %v1229
        %v1234 = vpack.c.bf16 %v1232, %v1231
        %1235 = vmatprep.subr.bf16.mxu0 0
        %1236 = vmatpush1.bf16.msra.mxu0 %v1233
        %1237 = vmatprep.subr.bf16.mxu0 0
        %1238 = vmatpush1.bf16.msra.mxu0 %v1234
        %1239 = vmatprep.subr.bf16.mxu0 0
        %1240 = vmatpush1.bf16.msra.mxu0 0
        %1241 = vmatprep.subr.bf16.mxu0 0
        %1242 = vmatpush1.bf16.msra.mxu0 0
        %1243 = vmatprep.subr.bf16.mxu0 0
        %1244 = vmatpush1.bf16.msra.mxu0 0
        %1245 = vmatprep.subr.bf16.mxu0 0
        %1246 = vmatpush1.bf16.msra.mxu0 0
        %1247 = vmatprep.subr.bf16.mxu0 0
        %1248 = vmatpush1.bf16.msra.mxu0 0
        %1249 = vmatprep.subr.bf16.mxu0 0
        %1250 = vmatpush1.bf16.msra.mxu0 0
        %1251 = vmatprep.subr.bf16.mxu0 0
        %1252 = vmatpush1.bf16.msra.mxu0 0
        %1253 = vmatprep.subr.bf16.mxu0 0
        %1254 = vmatpush1.bf16.msra.mxu0 0
        %1255 = vmatprep.subr.bf16.mxu0 0
        %1256 = vmatpush1.bf16.msra.mxu0 0
        %1257 = vmatprep.subr.bf16.mxu0 0
        %1258 = vmatpush1.bf16.msra.mxu0 0
        %1259 = vmatprep.subr.bf16.mxu0 0
        %1260 = vmatpush1.bf16.msra.mxu0 0
        %1261 = vmatprep.subr.bf16.mxu0 0
        %1262 = vmatpush1.bf16.msra.mxu0 0
        %1263 = vmatprep.subr.bf16.mxu0 0
        %1264 = vmatpush1.bf16.msra.mxu0 0
        %1265 = vmatprep.subr.bf16.mxu0 0
        %1266 = vmatpush1.bf16.msra.mxu0 0
        %1267 = vmatprep.mubr.bf16.mxu0 0
        %1268 = vmatmul.mubr.bf16.gmra.mrb[0].mxu0 %v621
        %v1269 = vpop.f32.mrb[0].mxu0
        %v1270 = vadd.f32 %v607, %v1269
        %v1271 = vpop.f32.mrb[0].mxu0
        %v1272 = vpop.f32.mrb[0].mxu0
        %v1273 = vadd.f32 %v612, %v1272
        %v1274 = vpop.f32.mrb[0].mxu0
        %1275 = vdwg.mxu0
        %vm1276 = vcmp.ge.f32.partialorder %v1270, 0.0
        %vm1277 = vcmp.ge.f32.partialorder %v1273, 0.0
        %v1278 = vmul.f32 %v1270, 0.2
        %v1279 = vmul.f32 %v1273, 0.2
        %v1280 = vsel %vm1276, %v1270, %v1278
        %v1281 = vsel %vm1277, %v1273, %v1279
        %v1282 = vpack.c.bf16 %v1281, %v1280
        %1283 = vmatprep.subr.bf16.mxu0 0
        %1284 = vmatpush1.bf16.msra.mxu0 %v1282
        %1285 = vmatprep.subr.bf16.mxu0 0
        %1286 = vmatpush1.bf16.msra.mxu0 0
        %1287 = vmatprep.subr.bf16.mxu0 0
        %1288 = vmatpush1.bf16.msra.mxu0 0
        %1289 = vmatprep.subr.bf16.mxu0 0
        %1290 = vmatpush1.bf16.msra.mxu0 0
        %1291 = vmatprep.subr.bf16.mxu0 0
        %1292 = vmatpush1.bf16.msra.mxu0 0
        %1293 = vmatprep.subr.bf16.mxu0 0
        %1294 = vmatpush1.bf16.msra.mxu0 0
        %1295 = vmatprep.subr.bf16.mxu0 0
        %1296 = vmatpush1.bf16.msra.mxu0 0
        %1297 = vmatprep.subr.bf16.mxu0 0
        %1298 = vmatpush1.bf16.msra.mxu0 0
        %1299 = vmatprep.subr.bf16.mxu0 0
        %1300 = vmatpush1.bf16.msra.mxu0 0
        %1301 = vmatprep.subr.bf16.mxu0 0
        %1302 = vmatpush1.bf16.msra.mxu0 0
        %1303 = vmatprep.subr.bf16.mxu0 0
        %1304 = vmatpush1.bf16.msra.mxu0 0
        %1305 = vmatprep.subr.bf16.mxu0 0
        %1306 = vmatpush1.bf16.msra.mxu0 0
        %1307 = vmatprep.subr.bf16.mxu0 0
        %1308 = vmatpush1.bf16.msra.mxu0 0
        %1309 = vmatprep.subr.bf16.mxu0 0
        %1310 = vmatpush1.bf16.msra.mxu0 0
        %1311 = vmatprep.subr.bf16.mxu0 0
        %1312 = vmatpush1.bf16.msra.mxu0 0
        %1313 = vmatprep.subr.bf16.mxu0 0
        %1314 = vmatpush1.bf16.msra.mxu0 0
        %1315 = vmatprep.mubr.bf16.mxu0 0
        %1316 = vmatmul.mubr.bf16.gmra.mrb[0].mxu0 %v703
        %v1317 = vpop.f32.mrb[0].mxu0
        %v1318 = vadd.f32 %v674, %v1317
        %v1319 = vpop.f32.mrb[0].mxu0
        %v1320 = vpop.f32.mrb[0].mxu0
        %v1321 = vadd.f32 %v679, %v1320
        %v1322 = vpop.f32.mrb[0].mxu0
        %1323 = vmatprep.mubr.bf16.mxu0 0
        %1324 = vmatmul.mubr.bf16.gmra.mrb[0].mxu0 %v706
        %v1325 = vpop.f32.mrb[0].mxu0
        %v1326 = vadd.f32 %v684, %v1325
        %v1327 = vpop.f32.mrb[0].mxu0
        %v1328 = vpop.f32.mrb[0].mxu0
        %v1329 = vadd.f32 %v689, %v1328
        %v1330 = vpop.f32.mrb[0].mxu0
        %1331 = vdwg.mxu0
        %vm1332 = vcmp.ge.f32.partialorder %v1318, 0.0
        %vm1333 = vcmp.ge.f32.partialorder %v1321, 0.0
        %vm1334 = vcmp.ge.f32.partialorder %v1326, 0.0
        %vm1335 = vcmp.ge.f32.partialorder %v1329, 0.0
        %v1336 = vmul.f32 %v1318, 0.2
        %v1337 = vmul.f32 %v1321, 0.2
        %v1338 = vmul.f32 %v1326, 0.2
        %v1339 = vmul.f32 %v1329, 0.2
        %v1340 = vsel %vm1332, %v1318, %v1336
        %v1341 = vsel %vm1333, %v1321, %v1337
        %v1342 = vsel %vm1334, %v1326, %v1338
        %v1343 = vsel %vm1335, %v1329, %v1339
        %v1344 = vadd.f32 %v1229, %v1340
        %v1345 = vadd.f32 %v1230, %v1341
        %v1346 = vadd.f32 %v1231, %v1342
        %v1347 = vadd.f32 %v1232, %v1343
        %v1348 = vpack.c.bf16 %v1345, %v1344
        %v1349 = vpack.c.bf16 %v1347, %v1346
        %1350 = vmatprep.subr.bf16.mxu0 0
        %1351 = vmatpush1.bf16.msra.mxu0 %v1348
        %1352 = vmatprep.subr.bf16.mxu0 0
        %1353 = vmatpush1.bf16.msra.mxu0 %v1349
        %1354 = vmatprep.subr.bf16.mxu0 0
        %1355 = vmatpush1.bf16.msra.mxu0 0
        %1356 = vmatprep.subr.bf16.mxu0 0
        %1357 = vmatpush1.bf16.msra.mxu0 0
        %1358 = vmatprep.subr.bf16.mxu0 0
        %1359 = vmatpush1.bf16.msra.mxu0 0
        %1360 = vmatprep.subr.bf16.mxu0 0
        %1361 = vmatpush1.bf16.msra.mxu0 0
        %1362 = vmatprep.subr.bf16.mxu0 0
        %1363 = vmatpush1.bf16.msra.mxu0 0
        %1364 = vmatprep.subr.bf16.mxu0 0
        %1365 = vmatpush1.bf16.msra.mxu0 0
        %1366 = vmatprep.subr.bf16.mxu0 0
        %1367 = vmatpush1.bf16.msra.mxu0 0
        %1368 = vmatprep.subr.bf16.mxu0 0
        %1369 = vmatpush1.bf16.msra.mxu0 0
        %1370 = vmatprep.subr.bf16.mxu0 0
        %1371 = vmatpush1.bf16.msra.mxu0 0
        %1372 = vmatprep.subr.bf16.mxu0 0
        %1373 = vmatpush1.bf16.msra.mxu0 0
        %1374 = vmatprep.subr.bf16.mxu0 0
        %1375 = vmatpush1.bf16.msra.mxu0 0
        %1376 = vmatprep.subr.bf16.mxu0 0
        %1377 = vmatpush1.bf16.msra.mxu0 0
        %1378 = vmatprep.subr.bf16.mxu0 0
        %1379 = vmatpush1.bf16.msra.mxu0 0
        %1380 = vmatprep.subr.bf16.mxu0 0
        %1381 = vmatpush1.bf16.msra.mxu0 0
        %1382 = vmatprep.mubr.bf16.mxu0 0
        %1383 = vmatmul.mubr.bf16.gmra.mrb[0].mxu0 %v791
        %v1384 = vpop.f32.mrb[0].mxu0
        %v1385 = vadd.f32 %v778, %v1384
        %v1386 = vpop.f32.mrb[0].mxu0
        %v1387 = vpop.f32.mrb[0].mxu0
        %v1388 = vadd.f32 %v783, %v1387
        %v1389 = vpop.f32.mrb[0].mxu0
        %1390 = vdwg.mxu0
        %vm1391 = vcmp.ge.f32.partialorder %v1385, 0.0
        %vm1392 = vcmp.ge.f32.partialorder %v1388, 0.0
        %v1393 = vmul.f32 %v1385, 0.2
        %v1394 = vmul.f32 %v1388, 0.2
        %v1395 = vsel %vm1391, %v1385, %v1393
        %v1396 = vsel %vm1392, %v1388, %v1394
        %v1397 = vpack.c.bf16 %v1396, %v1395
        %1398 = vmatprep.subr.bf16.mxu0 0
        %1399 = vmatpush1.bf16.msra.mxu0 %v1397
        %1400 = vmatprep.subr.bf16.mxu0 0
        %1401 = vmatpush1.bf16.msra.mxu0 0
        %1402 = vmatprep.subr.bf16.mxu0 0
        %1403 = vmatpush1.bf16.msra.mxu0 0
        %1404 = vmatprep.subr.bf16.mxu0 0
        %1405 = vmatpush1.bf16.msra.mxu0 0
        %1406 = vmatprep.subr.bf16.mxu0 0
        %1407 = vmatpush1.bf16.msra.mxu0 0
        %1408 = vmatprep.subr.bf16.mxu0 0
        %1409 = vmatpush1.bf16.msra.mxu0 0
        %1410 = vmatprep.subr.bf16.mxu0 0
        %1411 = vmatpush1.bf16.msra.mxu0 0
        %1412 = vmatprep.subr.bf16.mxu0 0
        %1413 = vmatpush1.bf16.msra.mxu0 0
        %1414 = vmatprep.subr.bf16.mxu0 0
        %1415 = vmatpush1.bf16.msra.mxu0 0
        %1416 = vmatprep.subr.bf16.mxu0 0
        %1417 = vmatpush1.bf16.msra.mxu0 0
        %1418 = vmatprep.subr.bf16.mxu0 0
        %1419 = vmatpush1.bf16.msra.mxu0 0
        %1420 = vmatprep.subr.bf16.mxu0 0
        %1421 = vmatpush1.bf16.msra.mxu0 0
        %1422 = vmatprep.subr.bf16.mxu0 0
        %1423 = vmatpush1.bf16.msra.mxu0 0
        %1424 = vmatprep.subr.bf16.mxu0 0
        %1425 = vmatpush1.bf16.msra.mxu0 0
        %1426 = vmatprep.subr.bf16.mxu0 0
        %1427 = vmatpush1.bf16.msra.mxu0 0
        %1428 = vmatprep.subr.bf16.mxu0 0
        %1429 = vmatpush1.bf16.msra.mxu0 0
        %1430 = vmatprep.mubr.bf16.mxu0 0
        %1431 = vmatmul.mubr.bf16.gmra.mrb[0].mxu0 %v872
        %v1432 = vpop.f32.mrb[0].mxu0
        %v1433 = vadd.f32 %v844, %v1432
        %v1434 = vpop.f32.mrb[0].mxu0
        %v1435 = vpop.f32.mrb[0].mxu0
        %v1436 = vadd.f32 %v849, %v1435
        %v1437 = vpop.f32.mrb[0].mxu0
        %1438 = vmatprep.mubr.bf16.mxu0 0
        %1439 = vmatmul.mubr.bf16.gmra.mrb[0].mxu0 %v875
        %v1440 = vpop.f32.mrb[0].mxu0
        %v1441 = vadd.f32 %v854, %v1440
        %v1442 = vpop.f32.mrb[0].mxu0
        %v1443 = vpop.f32.mrb[0].mxu0
        %v1444 = vadd.f32 %v859, %v1443
        %v1445 = vpop.f32.mrb[0].mxu0
        %1446 = vdwg.mxu0
        %vm1447 = vcmp.ge.f32.partialorder %v1433, 0.0
        %vm1448 = vcmp.ge.f32.partialorder %v1436, 0.0
        %vm1449 = vcmp.ge.f32.partialorder %v1441, 0.0
        %vm1450 = vcmp.ge.f32.partialorder %v1444, 0.0
        %v1451 = vmul.f32 %v1433, 0.2
        %v1452 = vmul.f32 %v1436, 0.2
        %v1453 = vmul.f32 %v1441, 0.2
        %v1454 = vmul.f32 %v1444, 0.2
        %v1455 = vsel %vm1447, %v1433, %v1451
        %v1456 = vsel %vm1448, %v1436, %v1452
        %v1457 = vsel %vm1449, %v1441, %v1453
        %v1458 = vsel %vm1450, %v1444, %v1454
        %v1459 = vadd.f32 %v1344, %v1455
        %v1460 = vadd.f32 %v1345, %v1456
        %v1461 = vadd.f32 %v1346, %v1457
        %v1462 = vadd.f32 %v1347, %v1458
        %v1463 = vpack.c.bf16 %v1460, %v1459
        %v1464 = vpack.c.bf16 %v1462, %v1461
        %1465 = vmatprep.subr.bf16.mxu0 0
        %1466 = vmatpush1.bf16.msra.mxu0 %v1463
        %1467 = vmatprep.subr.bf16.mxu0 0
        %1468 = vmatpush1.bf16.msra.mxu0 %v1464
        %1469 = vmatprep.subr.bf16.mxu0 0
        %1470 = vmatpush1.bf16.msra.mxu0 0
        %1471 = vmatprep.subr.bf16.mxu0 0
        %1472 = vmatpush1.bf16.msra.mxu0 0
        %1473 = vmatprep.subr.bf16.mxu0 0
        %1474 = vmatpush1.bf16.msra.mxu0 0
        %1475 = vmatprep.subr.bf16.mxu0 0
        %1476 = vmatpush1.bf16.msra.mxu0 0
        %1477 = vmatprep.subr.bf16.mxu0 0
        %1478 = vmatpush1.bf16.msra.mxu0 0
        %1479 = vmatprep.subr.bf16.mxu0 0
        %1480 = vmatpush1.bf16.msra.mxu0 0
        %1481 = vmatprep.subr.bf16.mxu0 0
        %1482 = vmatpush1.bf16.msra.mxu0 0
        %1483 = vmatprep.subr.bf16.mxu0 0
        %1484 = vmatpush1.bf16.msra.mxu0 0
        %1485 = vmatprep.subr.bf16.mxu0 0
        %1486 = vmatpush1.bf16.msra.mxu0 0
        %1487 = vmatprep.subr.bf16.mxu0 0
        %1488 = vmatpush1.bf16.msra.mxu0 0
        %1489 = vmatprep.subr.bf16.mxu0 0
        %1490 = vmatpush1.bf16.msra.mxu0 0
        %1491 = vmatprep.subr.bf16.mxu0 0
        %1492 = vmatpush1.bf16.msra.mxu0 0
        %1493 = vmatprep.subr.bf16.mxu0 0
        %1494 = vmatpush1.bf16.msra.mxu0 0
        %1495 = vmatprep.subr.bf16.mxu0 0
        %1496 = vmatpush1.bf16.msra.mxu0 0
        %1497 = vmatprep.mubr.bf16.mxu0 0
        %1498 = vmatmul.mubr.bf16.gmra.mrb[0].mxu0 %v960
        %v1499 = vpop.f32.mrb[0].mxu0
        %v1500 = vadd.f32 %v947, %v1499
        %v1501 = vpop.f32.mrb[0].mxu0
        %v1502 = vpop.f32.mrb[0].mxu0
        %v1503 = vadd.f32 %v952, %v1502
        %v1504 = vpop.f32.mrb[0].mxu0
        %1505 = vdwg.mxu0
        %vm1506 = vcmp.ge.f32.partialorder %v1500, 0.0
        %vm1507 = vcmp.ge.f32.partialorder %v1503, 0.0
        %v1508 = vmul.f32 %v1500, 0.2
        %v1509 = vmul.f32 %v1503, 0.2
        %v1510 = vsel %vm1506, %v1500, %v1508
        %v1511 = vsel %vm1507, %v1503, %v1509
        %v1512 = vpack.c.bf16 %v1511, %v1510
        %1513 = vmatprep.subr.bf16.mxu0 0
        %1514 = vmatpush1.bf16.msra.mxu0 %v1512
        %1515 = vmatprep.subr.bf16.mxu0 0
        %1516 = vmatpush1.bf16.msra.mxu0 0
        %1517 = vmatprep.subr.bf16.mxu0 0
        %1518 = vmatpush1.bf16.msra.mxu0 0
        %1519 = vmatprep.subr.bf16.mxu0 0
        %1520 = vmatpush1.bf16.msra.mxu0 0
        %1521 = vmatprep.subr.bf16.mxu0 0
        %1522 = vmatpush1.bf16.msra.mxu0 0
        %1523 = vmatprep.subr.bf16.mxu0 0
        %1524 = vmatpush1.bf16.msra.mxu0 0
        %1525 = vmatprep.subr.bf16.mxu0 0
        %1526 = vmatpush1.bf16.msra.mxu0 0
        %1527 = vmatprep.subr.bf16.mxu0 0
        %1528 = vmatpush1.bf16.msra.mxu0 0
        %1529 = vmatprep.subr.bf16.mxu0 0
        %1530 = vmatpush1.bf16.msra.mxu0 0
        %1531 = vmatprep.subr.bf16.mxu0 0
        %1532 = vmatpush1.bf16.msra.mxu0 0
        %1533 = vmatprep.subr.bf16.mxu0 0
        %1534 = vmatpush1.bf16.msra.mxu0 0
        %1535 = vmatprep.subr.bf16.mxu0 0
        %1536 = vmatpush1.bf16.msra.mxu0 0
        %1537 = vmatprep.subr.bf16.mxu0 0
        %1538 = vmatpush1.bf16.msra.mxu0 0
        %1539 = vmatprep.subr.bf16.mxu0 0
        %1540 = vmatpush1.bf16.msra.mxu0 0
        %1541 = vmatprep.subr.bf16.mxu0 0
        %1542 = vmatpush1.bf16.msra.mxu0 0
        %1543 = vmatprep.subr.bf16.mxu0 0
        %1544 = vmatpush1.bf16.msra.mxu0 0
        %1545 = vmatprep.mubr.bf16.mxu0 0
        %1546 = vmatmul.mubr.bf16.gmra.mrb[0].mxu0 %v1041
        %v1547 = vpop.f32.mrb[0].mxu0
        %v1548 = vadd.f32 %v1013, %v1547
        %v1549 = vpop.f32.mrb[0].mxu0
        %v1550 = vpop.f32.mrb[0].mxu0
        %v1551 = vadd.f32 %v1018, %v1550
        %v1552 = vpop.f32.mrb[0].mxu0
        %1553 = vmatprep.mubr.bf16.mxu0 0
        %1554 = vmatmul.mubr.bf16.gmra.mrb[0].mxu0 %v1044
        %v1555 = vpop.f32.mrb[0].mxu0
        %v1556 = vadd.f32 %v1023, %v1555
        %v1557 = vpop.f32.mrb[0].mxu0
        %v1558 = vpop.f32.mrb[0].mxu0
        %v1559 = vadd.f32 %v1028, %v1558
        %v1560 = vpop.f32.mrb[0].mxu0
        %1561 = vdwg.mxu0
        %vm1562 = vcmp.ge.f32.partialorder %v1548, 0.0
        %vm1563 = vcmp.ge.f32.partialorder %v1551, 0.0
        %vm1564 = vcmp.ge.f32.partialorder %v1556, 0.0
        %vm1565 = vcmp.ge.f32.partialorder %v1559, 0.0
        %v1566 = vmul.f32 %v1548, 0.2
        %v1567 = vmul.f32 %v1551, 0.2
        %v1568 = vmul.f32 %v1556, 0.2
        %v1569 = vmul.f32 %v1559, 0.2
        %v1570 = vsel %vm1562, %v1548, %v1566
        %v1571 = vsel %vm1563, %v1551, %v1567
        %v1572 = vsel %vm1564, %v1556, %v1568
        %v1573 = vsel %vm1565, %v1559, %v1569
        %v1574 = vadd.f32 %v1459, %v1570
        %v1575 = vadd.f32 %v1460, %v1571
        %v1576 = vadd.f32 %v1461, %v1572
        %v1577 = vadd.f32 %v1462, %v1573
        %v1578 = vpack.c.bf16 %v1575, %v1574
        %v1579 = vpack.c.bf16 %v1577, %v1576
        %1580 = vmatprep.subr.bf16.mxu0 0
        %1581 = vmatpush1.bf16.msra.mxu0 %v1578
        %1582 = vmatprep.subr.bf16.mxu0 0
        %1583 = vmatpush1.bf16.msra.mxu0 %v1579
        %1584 = vmatprep.subr.bf16.mxu0 0
        %1585 = vmatpush1.bf16.msra.mxu0 0
        %1586 = vmatprep.subr.bf16.mxu0 0
        %1587 = vmatpush1.bf16.msra.mxu0 0
        %1588 = vmatprep.subr.bf16.mxu0 0
        %1589 = vmatpush1.bf16.msra.mxu0 0
        %1590 = vmatprep.subr.bf16.mxu0 0
        %1591 = vmatpush1.bf16.msra.mxu0 0
        %1592 = vmatprep.subr.bf16.mxu0 0
        %1593 = vmatpush1.bf16.msra.mxu0 0
        %1594 = vmatprep.subr.bf16.mxu0 0
        %1595 = vmatpush1.bf16.msra.mxu0 0
        %1596 = vmatprep.subr.bf16.mxu0 0
        %1597 = vmatpush1.bf16.msra.mxu0 0
        %1598 = vmatprep.subr.bf16.mxu0 0
        %1599 = vmatpush1.bf16.msra.mxu0 0
        %1600 = vmatprep.subr.bf16.mxu0 0
        %1601 = vmatpush1.bf16.msra.mxu0 0
        %1602 = vmatprep.subr.bf16.mxu0 0
        %1603 = vmatpush1.bf16.msra.mxu0 0
        %1604 = vmatprep.subr.bf16.mxu0 0
        %1605 = vmatpush1.bf16.msra.mxu0 0
        %1606 = vmatprep.subr.bf16.mxu0 0
        %1607 = vmatpush1.bf16.msra.mxu0 0
        %1608 = vmatprep.subr.bf16.mxu0 0
        %1609 = vmatpush1.bf16.msra.mxu0 0
        %1610 = vmatprep.subr.bf16.mxu0 0
        %1611 = vmatpush1.bf16.msra.mxu0 0
        %1612 = vmatprep.mubr.bf16.mxu0 0
        %1613 = vmatmul.mubr.bf16.gmra.mrb[0].mxu0 %v1119
        %v1614 = vpop.f32.mrb[0].mxu0
        %v1615 = vadd.f32 %v1116, %v1614
        %v1616 = vpop.f32.mrb[0].mxu0
        %v1617 = vpop.f32.mrb[0].mxu0
        %v1618 = vpop.f32.mrb[0].mxu0
        %1619 = vdwg.mxu0
        %v1621 = vrot.slane %v1161, 1
        %v1623 = vsel %vm537, %v1621, 0
        %1625 = vmatprep.subr.bf16.mxu0 0
        %1626 = vmatpush1.bf16.msra.mxu0 %v1623
        %1627 = vmatprep.subr.bf16.mxu0 0
        %1628 = vmatpush1.bf16.msra.mxu0 0
        %1629 = vmatprep.subr.bf16.mxu0 0
        %1630 = vmatpush1.bf16.msra.mxu0 0
        %1631 = vmatprep.subr.bf16.mxu0 0
        %1632 = vmatpush1.bf16.msra.mxu0 0
        %1633 = vmatprep.subr.bf16.mxu0 0
        %1634 = vmatpush1.bf16.msra.mxu0 0
        %1635 = vmatprep.subr.bf16.mxu0 0
        %1636 = vmatpush1.bf16.msra.mxu0 0
        %1637 = vmatprep.subr.bf16.mxu0 0
        %1638 = vmatpush1.bf16.msra.mxu0 0
        %1639 = vmatprep.subr.bf16.mxu0 0
        %1640 = vmatpush1.bf16.msra.mxu0 0
        %1641 = vmatprep.subr.bf16.mxu0 0
        %1642 = vmatpush1.bf16.msra.mxu0 0
        %1643 = vmatprep.subr.bf16.mxu0 0
        %1644 = vmatpush1.bf16.msra.mxu0 0
        %1645 = vmatprep.subr.bf16.mxu0 0
        %1646 = vmatpush1.bf16.msra.mxu0 0
        %1647 = vmatprep.subr.bf16.mxu0 0
        %1648 = vmatpush1.bf16.msra.mxu0 0
        %1649 = vmatprep.subr.bf16.mxu0 0
        %1650 = vmatpush1.bf16.msra.mxu0 0
        %1651 = vmatprep.subr.bf16.mxu0 0
        %1652 = vmatpush1.bf16.msra.mxu0 0
        %1653 = vmatprep.subr.bf16.mxu0 0
        %1654 = vmatpush1.bf16.msra.mxu0 0
        %1655 = vmatprep.subr.bf16.mxu0 0
        %1656 = vmatpush1.bf16.msra.mxu0 0
        %1657 = vmatprep.mubr.bf16.mxu0 0
        %1658 = vmatmul.mubr.bf16.gmra.mrb[0].mxu0 %v532
        %v1659 = vpop.f32.mrb[0].mxu0
        %v1660 = vadd.f32 %v503, %v1659
        %v1661 = vpop.f32.mrb[0].mxu0
        %v1662 = vpop.f32.mrb[0].mxu0
        %v1663 = vadd.f32 %v508, %v1662
        %v1664 = vpop.f32.mrb[0].mxu0
        %1665 = vmatprep.mubr.bf16.mxu0 0
        %1666 = vmatmul.mubr.bf16.gmra.mrb[0].mxu0 %v535
        %v1667 = vpop.f32.mrb[0].mxu0
        %v1668 = vadd.f32 %v513, %v1667
        %v1669 = vpop.f32.mrb[0].mxu0
        %v1670 = vpop.f32.mrb[0].mxu0
        %v1671 = vadd.f32 %v518, %v1670
        %v1672 = vpop.f32.mrb[0].mxu0
        %1673 = vdwg.mxu0
        %vm1674 = vcmp.ge.f32.partialorder %v1660, 0.0
        %vm1675 = vcmp.ge.f32.partialorder %v1663, 0.0
        %vm1676 = vcmp.ge.f32.partialorder %v1668, 0.0
        %vm1677 = vcmp.ge.f32.partialorder %v1671, 0.0
        %v1678 = vmul.f32 %v1660, 0.1
        %v1679 = vmul.f32 %v1663, 0.1
        %v1680 = vmul.f32 %v1668, 0.1
        %v1681 = vmul.f32 %v1671, 0.1
        %v1682 = vsel %vm1674, %v1660, %v1678
        %v1683 = vsel %vm1675, %v1663, %v1679
        %v1684 = vsel %vm1676, %v1668, %v1680
        %v1685 = vsel %vm1677, %v1671, %v1681
        %v1686 = vpack.c.bf16 %v1683, %v1682
        %v1687 = vpack.c.bf16 %v1685, %v1684
        %1688 = vmatprep.subr.bf16.mxu0 0
        %1689 = vmatpush1.bf16.msra.mxu0 %v1686
        %1690 = vmatprep.subr.bf16.mxu0 0
        %1691 = vmatpush1.bf16.msra.mxu0 %v1687
        %1692 = vmatprep.subr.bf16.mxu0 0
        %1693 = vmatpush1.bf16.msra.mxu0 0
        %1694 = vmatprep.subr.bf16.mxu0 0
        %1695 = vmatpush1.bf16.msra.mxu0 0
        %1696 = vmatprep.subr.bf16.mxu0 0
        %1697 = vmatpush1.bf16.msra.mxu0 0
        %1698 = vmatprep.subr.bf16.mxu0 0
        %1699 = vmatpush1.bf16.msra.mxu0 0
        %1700 = vmatprep.subr.bf16.mxu0 0
        %1701 = vmatpush1.bf16.msra.mxu0 0
        %1702 = vmatprep.subr.bf16.mxu0 0
        %1703 = vmatpush1.bf16.msra.mxu0 0
        %1704 = vmatprep.subr.bf16.mxu0 0
        %1705 = vmatpush1.bf16.msra.mxu0 0
        %1706 = vmatprep.subr.bf16.mxu0 0
        %1707 = vmatpush1.bf16.msra.mxu0 0
        %1708 = vmatprep.subr.bf16.mxu0 0
        %1709 = vmatpush1.bf16.msra.mxu0 0
        %1710 = vmatprep.subr.bf16.mxu0 0
        %1711 = vmatpush1.bf16.msra.mxu0 0
        %1712 = vmatprep.subr.bf16.mxu0 0
        %1713 = vmatpush1.bf16.msra.mxu0 0
        %1714 = vmatprep.subr.bf16.mxu0 0
        %1715 = vmatpush1.bf16.msra.mxu0 0
        %1716 = vmatprep.subr.bf16.mxu0 0
        %1717 = vmatpush1.bf16.msra.mxu0 0
        %1718 = vmatprep.subr.bf16.mxu0 0
        %1719 = vmatpush1.bf16.msra.mxu0 0
        %1720 = vmatprep.mubr.bf16.mxu0 0
        %1721 = vmatmul.mubr.bf16.gmra.mrb[0].mxu0 %v621
        %v1722 = vpop.f32.mrb[0].mxu0
        %v1723 = vadd.f32 %v607, %v1722
        %v1724 = vpop.f32.mrb[0].mxu0
        %v1725 = vpop.f32.mrb[0].mxu0
        %v1726 = vadd.f32 %v612, %v1725
        %v1727 = vpop.f32.mrb[0].mxu0
        %1728 = vdwg.mxu0
        %vm1729 = vcmp.ge.f32.partialorder %v1723, 0.0
        %vm1730 = vcmp.ge.f32.partialorder %v1726, 0.0
        %v1731 = vmul.f32 %v1723, 0.2
        %v1732 = vmul.f32 %v1726, 0.2
        %v1733 = vsel %vm1729, %v1723, %v1731
        %v1734 = vsel %vm1730, %v1726, %v1732
        %v1735 = vpack.c.bf16 %v1734, %v1733
        %1736 = vmatprep.subr.bf16.mxu0 0
        %1737 = vmatpush1.bf16.msra.mxu0 %v1735
        %1738 = vmatprep.subr.bf16.mxu0 0
        %1739 = vmatpush1.bf16.msra.mxu0 0
        %1740 = vmatprep.subr.bf16.mxu0 0
        %1741 = vmatpush1.bf16.msra.mxu0 0
        %1742 = vmatprep.subr.bf16.mxu0 0
        %1743 = vmatpush1.bf16.msra.mxu0 0
        %1744 = vmatprep.subr.bf16.mxu0 0
        %1745 = vmatpush1.bf16.msra.mxu0 0
        %1746 = vmatprep.subr.bf16.mxu0 0
        %1747 = vmatpush1.bf16.msra.mxu0 0
        %1748 = vmatprep.subr.bf16.mxu0 0
        %1749 = vmatpush1.bf16.msra.mxu0 0
        %1750 = vmatprep.subr.bf16.mxu0 0
        %1751 = vmatpush1.bf16.msra.mxu0 0
        %1752 = vmatprep.subr.bf16.mxu0 0
        %1753 = vmatpush1.bf16.msra.mxu0 0
        %1754 = vmatprep.subr.bf16.mxu0 0
        %1755 = vmatpush1.bf16.msra.mxu0 0
        %1756 = vmatprep.subr.bf16.mxu0 0
        %1757 = vmatpush1.bf16.msra.mxu0 0
        %1758 = vmatprep.subr.bf16.mxu0 0
        %1759 = vmatpush1.bf16.msra.mxu0 0
        %1760 = vmatprep.subr.bf16.mxu0 0
        %1761 = vmatpush1.bf16.msra.mxu0 0
        %1762 = vmatprep.subr.bf16.mxu0 0
        %1763 = vmatpush1.bf16.msra.mxu0 0
        %1764 = vmatprep.subr.bf16.mxu0 0
        %1765 = vmatpush1.bf16.msra.mxu0 0
        %1766 = vmatprep.subr.bf16.mxu0 0
        %1767 = vmatpush1.bf16.msra.mxu0 0
        %1768 = vmatprep.mubr.bf16.mxu0 0
        %1769 = vmatmul.mubr.bf16.gmra.mrb[0].mxu0 %v703
        %v1770 = vpop.f32.mrb[0].mxu0
        %v1771 = vadd.f32 %v674, %v1770
        %v1772 = vpop.f32.mrb[0].mxu0
        %v1773 = vpop.f32.mrb[0].mxu0
        %v1774 = vadd.f32 %v679, %v1773
        %v1775 = vpop.f32.mrb[0].mxu0
        %1776 = vmatprep.mubr.bf16.mxu0 0
        %1777 = vmatmul.mubr.bf16.gmra.mrb[0].mxu0 %v706
        %v1778 = vpop.f32.mrb[0].mxu0
        %v1779 = vadd.f32 %v684, %v1778
        %v1780 = vpop.f32.mrb[0].mxu0
        %v1781 = vpop.f32.mrb[0].mxu0
        %v1782 = vadd.f32 %v689, %v1781
        %v1783 = vpop.f32.mrb[0].mxu0
        %1784 = vdwg.mxu0
        %vm1785 = vcmp.ge.f32.partialorder %v1771, 0.0
        %vm1786 = vcmp.ge.f32.partialorder %v1774, 0.0
        %vm1787 = vcmp.ge.f32.partialorder %v1779, 0.0
        %vm1788 = vcmp.ge.f32.partialorder %v1782, 0.0
        %v1789 = vmul.f32 %v1771, 0.2
        %v1790 = vmul.f32 %v1774, 0.2
        %v1791 = vmul.f32 %v1779, 0.2
        %v1792 = vmul.f32 %v1782, 0.2
        %v1793 = vsel %vm1785, %v1771, %v1789
        %v1794 = vsel %vm1786, %v1774, %v1790
        %v1795 = vsel %vm1787, %v1779, %v1791
        %v1796 = vsel %vm1788, %v1782, %v1792
        %v1797 = vadd.f32 %v1682, %v1793
        %v1798 = vadd.f32 %v1683, %v1794
        %v1799 = vadd.f32 %v1684, %v1795
        %v1800 = vadd.f32 %v1685, %v1796
        %v1801 = vpack.c.bf16 %v1798, %v1797
        %v1802 = vpack.c.bf16 %v1800, %v1799
        %1803 = vmatprep.subr.bf16.mxu0 0
        %1804 = vmatpush1.bf16.msra.mxu0 %v1801
        %1805 = vmatprep.subr.bf16.mxu0 0
        %1806 = vmatpush1.bf16.msra.mxu0 %v1802
        %1807 = vmatprep.subr.bf16.mxu0 0
        %1808 = vmatpush1.bf16.msra.mxu0 0
        %1809 = vmatprep.subr.bf16.mxu0 0
        %1810 = vmatpush1.bf16.msra.mxu0 0
        %1811 = vmatprep.subr.bf16.mxu0 0
        %1812 = vmatpush1.bf16.msra.mxu0 0
        %1813 = vmatprep.subr.bf16.mxu0 0
        %1814 = vmatpush1.bf16.msra.mxu0 0
        %1815 = vmatprep.subr.bf16.mxu0 0
        %1816 = vmatpush1.bf16.msra.mxu0 0
        %1817 = vmatprep.subr.bf16.mxu0 0
        %1818 = vmatpush1.bf16.msra.mxu0 0
        %1819 = vmatprep.subr.bf16.mxu0 0
        %1820 = vmatpush1.bf16.msra.mxu0 0
        %1821 = vmatprep.subr.bf16.mxu0 0
        %1822 = vmatpush1.bf16.msra.mxu0 0
        %1823 = vmatprep.subr.bf16.mxu0 0
        %1824 = vmatpush1.bf16.msra.mxu0 0
        %1825 = vmatprep.subr.bf16.mxu0 0
        %1826 = vmatpush1.bf16.msra.mxu0 0
        %1827 = vmatprep.subr.bf16.mxu0 0
        %1828 = vmatpush1.bf16.msra.mxu0 0
        %1829 = vmatprep.subr.bf16.mxu0 0
        %1830 = vmatpush1.bf16.msra.mxu0 0
        %1831 = vmatprep.subr.bf16.mxu0 0
        %1832 = vmatpush1.bf16.msra.mxu0 0
        %1833 = vmatprep.subr.bf16.mxu0 0
        %1834 = vmatpush1.bf16.msra.mxu0 0
        %1835 = vmatprep.mubr.bf16.mxu0 0
        %1836 = vmatmul.mubr.bf16.gmra.mrb[0].mxu0 %v791
        %v1837 = vpop.f32.mrb[0].mxu0
        %v1838 = vadd.f32 %v778, %v1837
        %v1839 = vpop.f32.mrb[0].mxu0
        %v1840 = vpop.f32.mrb[0].mxu0
        %v1841 = vadd.f32 %v783, %v1840
        %v1842 = vpop.f32.mrb[0].mxu0
        %1843 = vdwg.mxu0
        %vm1844 = vcmp.ge.f32.partialorder %v1838, 0.0
        %vm1845 = vcmp.ge.f32.partialorder %v1841, 0.0
        %v1846 = vmul.f32 %v1838, 0.2
        %v1847 = vmul.f32 %v1841, 0.2
        %v1848 = vsel %vm1844, %v1838, %v1846
        %v1849 = vsel %vm1845, %v1841, %v1847
        %v1850 = vpack.c.bf16 %v1849, %v1848
        %1851 = vmatprep.subr.bf16.mxu0 0
        %1852 = vmatpush1.bf16.msra.mxu0 %v1850
        %1853 = vmatprep.subr.bf16.mxu0 0
        %1854 = vmatpush1.bf16.msra.mxu0 0
        %1855 = vmatprep.subr.bf16.mxu0 0
        %1856 = vmatpush1.bf16.msra.mxu0 0
        %1857 = vmatprep.subr.bf16.mxu0 0
        %1858 = vmatpush1.bf16.msra.mxu0 0
        %1859 = vmatprep.subr.bf16.mxu0 0
        %1860 = vmatpush1.bf16.msra.mxu0 0
        %1861 = vmatprep.subr.bf16.mxu0 0
        %1862 = vmatpush1.bf16.msra.mxu0 0
        %1863 = vmatprep.subr.bf16.mxu0 0
        %1864 = vmatpush1.bf16.msra.mxu0 0
        %1865 = vmatprep.subr.bf16.mxu0 0
        %1866 = vmatpush1.bf16.msra.mxu0 0
        %1867 = vmatprep.subr.bf16.mxu0 0
        %1868 = vmatpush1.bf16.msra.mxu0 0
        %1869 = vmatprep.subr.bf16.mxu0 0
        %1870 = vmatpush1.bf16.msra.mxu0 0
        %1871 = vmatprep.subr.bf16.mxu0 0
        %1872 = vmatpush1.bf16.msra.mxu0 0
        %1873 = vmatprep.subr.bf16.mxu0 0
        %1874 = vmatpush1.bf16.msra.mxu0 0
        %1875 = vmatprep.subr.bf16.mxu0 0
        %1876 = vmatpush1.bf16.msra.mxu0 0
        %1877 = vmatprep.subr.bf16.mxu0 0
        %1878 = vmatpush1.bf16.msra.mxu0 0
        %1879 = vmatprep.subr.bf16.mxu0 0
        %1880 = vmatpush1.bf16.msra.mxu0 0
        %1881 = vmatprep.subr.bf16.mxu0 0
        %1882 = vmatpush1.bf16.msra.mxu0 0
        %1883 = vmatprep.mubr.bf16.mxu0 0
        %1884 = vmatmul.mubr.bf16.gmra.mrb[0].mxu0 %v872
        %v1885 = vpop.f32.mrb[0].mxu0
        %v1886 = vadd.f32 %v844, %v1885
        %v1887 = vpop.f32.mrb[0].mxu0
        %v1888 = vpop.f32.mrb[0].mxu0
        %v1889 = vadd.f32 %v849, %v1888
        %v1890 = vpop.f32.mrb[0].mxu0
        %1891 = vmatprep.mubr.bf16.mxu0 0
        %1892 = vmatmul.mubr.bf16.gmra.mrb[0].mxu0 %v875
        %v1893 = vpop.f32.mrb[0].mxu0
        %v1894 = vadd.f32 %v854, %v1893
        %v1895 = vpop.f32.mrb[0].mxu0
        %v1896 = vpop.f32.mrb[0].mxu0
        %v1897 = vadd.f32 %v859, %v1896
        %v1898 = vpop.f32.mrb[0].mxu0
        %1899 = vdwg.mxu0
        %vm1900 = vcmp.ge.f32.partialorder %v1886, 0.0
        %vm1901 = vcmp.ge.f32.partialorder %v1889, 0.0
        %vm1902 = vcmp.ge.f32.partialorder %v1894, 0.0
        %vm1903 = vcmp.ge.f32.partialorder %v1897, 0.0
        %v1904 = vmul.f32 %v1886, 0.2
        %v1905 = vmul.f32 %v1889, 0.2
        %v1906 = vmul.f32 %v1894, 0.2
        %v1907 = vmul.f32 %v1897, 0.2
        %v1908 = vsel %vm1900, %v1886, %v1904
        %v1909 = vsel %vm1901, %v1889, %v1905
        %v1910 = vsel %vm1902, %v1894, %v1906
        %v1911 = vsel %vm1903, %v1897, %v1907
        %v1912 = vadd.f32 %v1797, %v1908
        %v1913 = vadd.f32 %v1798, %v1909
        %v1914 = vadd.f32 %v1799, %v1910
        %v1915 = vadd.f32 %v1800, %v1911
        %v1916 = vpack.c.bf16 %v1913, %v1912
        %v1917 = vpack.c.bf16 %v1915, %v1914
        %1918 = vmatprep.subr.bf16.mxu0 0
        %1919 = vmatpush1.bf16.msra.mxu0 %v1916
        %1920 = vmatprep.subr.bf16.mxu0 0
        %1921 = vmatpush1.bf16.msra.mxu0 %v1917
        %1922 = vmatprep.subr.bf16.mxu0 0
        %1923 = vmatpush1.bf16.msra.mxu0 0
        %1924 = vmatprep.subr.bf16.mxu0 0
        %1925 = vmatpush1.bf16.msra.mxu0 0
        %1926 = vmatprep.subr.bf16.mxu0 0
        %1927 = vmatpush1.bf16.msra.mxu0 0
        %1928 = vmatprep.subr.bf16.mxu0 0
        %1929 = vmatpush1.bf16.msra.mxu0 0
        %1930 = vmatprep.subr.bf16.mxu0 0
        %1931 = vmatpush1.bf16.msra.mxu0 0
        %1932 = vmatprep.subr.bf16.mxu0 0
        %1933 = vmatpush1.bf16.msra.mxu0 0
        %1934 = vmatprep.subr.bf16.mxu0 0
        %1935 = vmatpush1.bf16.msra.mxu0 0
        %1936 = vmatprep.subr.bf16.mxu0 0
        %1937 = vmatpush1.bf16.msra.mxu0 0
        %1938 = vmatprep.subr.bf16.mxu0 0
        %1939 = vmatpush1.bf16.msra.mxu0 0
        %1940 = vmatprep.subr.bf16.mxu0 0
        %1941 = vmatpush1.bf16.msra.mxu0 0
        %1942 = vmatprep.subr.bf16.mxu0 0
        %1943 = vmatpush1.bf16.msra.mxu0 0
        %1944 = vmatprep.subr.bf16.mxu0 0
        %1945 = vmatpush1.bf16.msra.mxu0 0
        %1946 = vmatprep.subr.bf16.mxu0 0
        %1947 = vmatpush1.bf16.msra.mxu0 0
        %1948 = vmatprep.subr.bf16.mxu0 0
        %1949 = vmatpush1.bf16.msra.mxu0 0
        %1950 = vmatprep.mubr.bf16.mxu0 0
        %1951 = vmatmul.mubr.bf16.gmra.mrb[0].mxu0 %v960
        %v1952 = vpop.f32.mrb[0].mxu0
        %v1953 = vadd.f32 %v947, %v1952
        %v1954 = vpop.f32.mrb[0].mxu0
        %v1955 = vpop.f32.mrb[0].mxu0
        %v1956 = vadd.f32 %v952, %v1955
        %v1957 = vpop.f32.mrb[0].mxu0
        %1958 = vdwg.mxu0
        %vm1959 = vcmp.ge.f32.partialorder %v1953, 0.0
        %vm1960 = vcmp.ge.f32.partialorder %v1956, 0.0
        %v1961 = vmul.f32 %v1953, 0.2
        %v1962 = vmul.f32 %v1956, 0.2
        %v1963 = vsel %vm1959, %v1953, %v1961
        %v1964 = vsel %vm1960, %v1956, %v1962
        %v1965 = vpack.c.bf16 %v1964, %v1963
        %1966 = vmatprep.subr.bf16.mxu0 0
        %1967 = vmatpush1.bf16.msra.mxu0 %v1965
        %1968 = vmatprep.subr.bf16.mxu0 0
        %1969 = vmatpush1.bf16.msra.mxu0 0
        %1970 = vmatprep.subr.bf16.mxu0 0
        %1971 = vmatpush1.bf16.msra.mxu0 0
        %1972 = vmatprep.subr.bf16.mxu0 0
        %1973 = vmatpush1.bf16.msra.mxu0 0
        %1974 = vmatprep.subr.bf16.mxu0 0
        %1975 = vmatpush1.bf16.msra.mxu0 0
        %1976 = vmatprep.subr.bf16.mxu0 0
        %1977 = vmatpush1.bf16.msra.mxu0 0
        %1978 = vmatprep.subr.bf16.mxu0 0
        %1979 = vmatpush1.bf16.msra.mxu0 0
        %1980 = vmatprep.subr.bf16.mxu0 0
        %1981 = vmatpush1.bf16.msra.mxu0 0
        %1982 = vmatprep.subr.bf16.mxu0 0
        %1983 = vmatpush1.bf16.msra.mxu0 0
        %1984 = vmatprep.subr.bf16.mxu0 0
        %1985 = vmatpush1.bf16.msra.mxu0 0
        %1986 = vmatprep.subr.bf16.mxu0 0
        %1987 = vmatpush1.bf16.msra.mxu0 0
        %1988 = vmatprep.subr.bf16.mxu0 0
        %1989 = vmatpush1.bf16.msra.mxu0 0
        %1990 = vmatprep.subr.bf16.mxu0 0
        %1991 = vmatpush1.bf16.msra.mxu0 0
        %1992 = vmatprep.subr.bf16.mxu0 0
        %1993 = vmatpush1.bf16.msra.mxu0 0
        %1994 = vmatprep.subr.bf16.mxu0 0
        %1995 = vmatpush1.bf16.msra.mxu0 0
        %1996 = vmatprep.subr.bf16.mxu0 0
        %1997 = vmatpush1.bf16.msra.mxu0 0
        %1998 = vmatprep.mubr.bf16.mxu0 0
        %1999 = vmatmul.mubr.bf16.gmra.mrb[0].mxu0 %v1041
        %v2000 = vpop.f32.mrb[0].mxu0
        %v2001 = vadd.f32 %v1013, %v2000
        %v2002 = vpop.f32.mrb[0].mxu0
        %v2003 = vpop.f32.mrb[0].mxu0
        %v2004 = vadd.f32 %v1018, %v2003
        %v2005 = vpop.f32.mrb[0].mxu0
        %2006 = vmatprep.mubr.bf16.mxu0 0
        %2007 = vmatmul.mubr.bf16.gmra.mrb[0].mxu0 %v1044
        %v2008 = vpop.f32.mrb[0].mxu0
        %v2009 = vadd.f32 %v1023, %v2008
        %v2010 = vpop.f32.mrb[0].mxu0
        %v2011 = vpop.f32.mrb[0].mxu0
        %v2012 = vadd.f32 %v1028, %v2011
        %v2013 = vpop.f32.mrb[0].mxu0
        %2014 = vdwg.mxu0
        %vm2015 = vcmp.ge.f32.partialorder %v2001, 0.0
        %vm2016 = vcmp.ge.f32.partialorder %v2004, 0.0
        %vm2017 = vcmp.ge.f32.partialorder %v2009, 0.0
        %vm2018 = vcmp.ge.f32.partialorder %v2012, 0.0
        %v2019 = vmul.f32 %v2001, 0.2
        %v2020 = vmul.f32 %v2004, 0.2
        %v2021 = vmul.f32 %v2009, 0.2
        %v2022 = vmul.f32 %v2012, 0.2
        %v2023 = vsel %vm2015, %v2001, %v2019
        %v2024 = vsel %vm2016, %v2004, %v2020
        %v2025 = vsel %vm2017, %v2009, %v2021
        %v2026 = vsel %vm2018, %v2012, %v2022
        %v2027 = vadd.f32 %v1912, %v2023
        %v2028 = vadd.f32 %v1913, %v2024
        %v2029 = vadd.f32 %v1914, %v2025
        %v2030 = vadd.f32 %v1915, %v2026
        %v2031 = vpack.c.bf16 %v2028, %v2027
        %v2032 = vpack.c.bf16 %v2030, %v2029
        %2033 = vmatprep.subr.bf16.mxu0 0
        %2034 = vmatpush1.bf16.msra.mxu0 %v2031
        %2035 = vmatprep.subr.bf16.mxu0 0
        %2036 = vmatpush1.bf16.msra.mxu0 %v2032
        %2037 = vmatprep.subr.bf16.mxu0 0
        %2038 = vmatpush1.bf16.msra.mxu0 0
        %2039 = vmatprep.subr.bf16.mxu0 0
        %2040 = vmatpush1.bf16.msra.mxu0 0
        %2041 = vmatprep.subr.bf16.mxu0 0
        %2042 = vmatpush1.bf16.msra.mxu0 0
        %2043 = vmatprep.subr.bf16.mxu0 0
        %2044 = vmatpush1.bf16.msra.mxu0 0
        %2045 = vmatprep.subr.bf16.mxu0 0
        %2046 = vmatpush1.bf16.msra.mxu0 0
        %2047 = vmatprep.subr.bf16.mxu0 0
        %2048 = vmatpush1.bf16.msra.mxu0 0
        %2049 = vmatprep.subr.bf16.mxu0 0
        %2050 = vmatpush1.bf16.msra.mxu0 0
        %2051 = vmatprep.subr.bf16.mxu0 0
        %2052 = vmatpush1.bf16.msra.mxu0 0
        %2053 = vmatprep.subr.bf16.mxu0 0
        %2054 = vmatpush1.bf16.msra.mxu0 0
        %2055 = vmatprep.subr.bf16.mxu0 0
        %2056 = vmatpush1.bf16.msra.mxu0 0
        %2057 = vmatprep.subr.bf16.mxu0 0
        %2058 = vmatpush1.bf16.msra.mxu0 0
        %2059 = vmatprep.subr.bf16.mxu0 0
        %2060 = vmatpush1.bf16.msra.mxu0 0
        %2061 = vmatprep.subr.bf16.mxu0 0
        %2062 = vmatpush1.bf16.msra.mxu0 0
        %2063 = vmatprep.subr.bf16.mxu0 0
        %2064 = vmatpush1.bf16.msra.mxu0 0
        %2065 = vmatprep.mubr.bf16.mxu0 0
        %2066 = vmatmul.mubr.bf16.gmra.mrb[0].mxu0 %v1119
        %v2067 = vpop.f32.mrb[0].mxu0
        %v2068 = vadd.f32 %v1116, %v2067
        %v2069 = vpop.f32.mrb[0].mxu0
        %v2070 = vpop.f32.mrb[0].mxu0
        %v2071 = vpop.f32.mrb[0].mxu0
        %2072 = vdwg.mxu0
        %v2073 = vrot.slane %v1163, 1
        %v2074 = vrot.slane %v1165, 2
        %v2075 = vor.u32 %v2073, %v2074
        %v2077 = vsel %vm537, %v2075, 0
        %2079 = vmatprep.subr.bf16.mxu0 0
        %2080 = vmatpush1.bf16.msra.mxu0 %v2077
        %2081 = vmatprep.subr.bf16.mxu0 0
        %2082 = vmatpush1.bf16.msra.mxu0 0
        %2083 = vmatprep.subr.bf16.mxu0 0
        %2084 = vmatpush1.bf16.msra.mxu0 0
        %2085 = vmatprep.subr.bf16.mxu0 0
        %2086 = vmatpush1.bf16.msra.mxu0 0
        %2087 = vmatprep.subr.bf16.mxu0 0
        %2088 = vmatpush1.bf16.msra.mxu0 0
        %2089 = vmatprep.subr.bf16.mxu0 0
        %2090 = vmatpush1.bf16.msra.mxu0 0
        %2091 = vmatprep.subr.bf16.mxu0 0
        %2092 = vmatpush1.bf16.msra.mxu0 0
        %2093 = vmatprep.subr.bf16.mxu0 0
        %2094 = vmatpush1.bf16.msra.mxu0 0
        %2095 = vmatprep.subr.bf16.mxu0 0
        %2096 = vmatpush1.bf16.msra.mxu0 0
        %2097 = vmatprep.subr.bf16.mxu0 0
        %2098 = vmatpush1.bf16.msra.mxu0 0
        %2099 = vmatprep.subr.bf16.mxu0 0
        %2100 = vmatpush1.bf16.msra.mxu0 0
        %2101 = vmatprep.subr.bf16.mxu0 0
        %2102 = vmatpush1.bf16.msra.mxu0 0
        %2103 = vmatprep.subr.bf16.mxu0 0
        %2104 = vmatpush1.bf16.msra.mxu0 0
        %2105 = vmatprep.subr.bf16.mxu0 0
        %2106 = vmatpush1.bf16.msra.mxu0 0
        %2107 = vmatprep.subr.bf16.mxu0 0
        %2108 = vmatpush1.bf16.msra.mxu0 0
        %2109 = vmatprep.subr.bf16.mxu0 0
        %2110 = vmatpush1.bf16.msra.mxu0 0
        %2111 = vmatprep.mubr.bf16.mxu0 0
        %2112 = vmatmul.mubr.bf16.gmra.mrb[0].mxu0 %v532
        %v2113 = vpop.f32.mrb[0].mxu0
        %v2114 = vadd.f32 %v503, %v2113
        %v2115 = vpop.f32.mrb[0].mxu0
        %v2116 = vpop.f32.mrb[0].mxu0
        %v2117 = vadd.f32 %v508, %v2116
        %v2118 = vpop.f32.mrb[0].mxu0
        %2119 = vmatprep.mubr.bf16.mxu0 0
        %2120 = vmatmul.mubr.bf16.gmra.mrb[0].mxu0 %v535
        %v2121 = vpop.f32.mrb[0].mxu0
        %v2122 = vadd.f32 %v513, %v2121
        %v2123 = vpop.f32.mrb[0].mxu0
        %v2124 = vpop.f32.mrb[0].mxu0
        %v2125 = vadd.f32 %v518, %v2124
        %v2126 = vpop.f32.mrb[0].mxu0
        %2127 = vdwg.mxu0
        %vm2128 = vcmp.ge.f32.partialorder %v2114, 0.0
        %vm2129 = vcmp.ge.f32.partialorder %v2117, 0.0
        %vm2130 = vcmp.ge.f32.partialorder %v2122, 0.0
        %vm2131 = vcmp.ge.f32.partialorder %v2125, 0.0
        %v2132 = vmul.f32 %v2114, 0.1
        %v2133 = vmul.f32 %v2117, 0.1
        %v2134 = vmul.f32 %v2122, 0.1
        %v2135 = vmul.f32 %v2125, 0.1
        %v2136 = vsel %vm2128, %v2114, %v2132
        %v2137 = vsel %vm2129, %v2117, %v2133
        %v2138 = vsel %vm2130, %v2122, %v2134
        %v2139 = vsel %vm2131, %v2125, %v2135
        %v2140 = vpack.c.bf16 %v2137, %v2136
        %v2141 = vpack.c.bf16 %v2139, %v2138
        %2142 = vmatprep.subr.bf16.mxu0 0
        %2143 = vmatpush1.bf16.msra.mxu0 %v2140
        %2144 = vmatprep.subr.bf16.mxu0 0
        %2145 = vmatpush1.bf16.msra.mxu0 %v2141
        %2146 = vmatprep.subr.bf16.mxu0 0
        %2147 = vmatpush1.bf16.msra.mxu0 0
        %2148 = vmatprep.subr.bf16.mxu0 0
        %2149 = vmatpush1.bf16.msra.mxu0 0
        %2150 = vmatprep.subr.bf16.mxu0 0
        %2151 = vmatpush1.bf16.msra.mxu0 0
        %2152 = vmatprep.subr.bf16.mxu0 0
        %2153 = vmatpush1.bf16.msra.mxu0 0
        %2154 = vmatprep.subr.bf16.mxu0 0
        %2155 = vmatpush1.bf16.msra.mxu0 0
        %2156 = vmatprep.subr.bf16.mxu0 0
        %2157 = vmatpush1.bf16.msra.mxu0 0
        %2158 = vmatprep.subr.bf16.mxu0 0
        %2159 = vmatpush1.bf16.msra.mxu0 0
        %2160 = vmatprep.subr.bf16.mxu0 0
        %2161 = vmatpush1.bf16.msra.mxu0 0
        %2162 = vmatprep.subr.bf16.mxu0 0
        %2163 = vmatpush1.bf16.msra.mxu0 0
        %2164 = vmatprep.subr.bf16.mxu0 0
        %2165 = vmatpush1.bf16.msra.mxu0 0
        %2166 = vmatprep.subr.bf16.mxu0 0
        %2167 = vmatpush1.bf16.msra.mxu0 0
        %2168 = vmatprep.subr.bf16.mxu0 0
        %2169 = vmatpush1.bf16.msra.mxu0 0
        %2170 = vmatprep.subr.bf16.mxu0 0
        %2171 = vmatpush1.bf16.msra.mxu0 0
        %2172 = vmatprep.subr.bf16.mxu0 0
        %2173 = vmatpush1.bf16.msra.mxu0 0
        %2174 = vmatprep.mubr.bf16.mxu0 0
        %2175 = vmatmul.mubr.bf16.gmra.mrb[0].mxu0 %v621
        %v2176 = vpop.f32.mrb[0].mxu0
        %v2177 = vadd.f32 %v607, %v2176
        %v2178 = vpop.f32.mrb[0].mxu0
        %v2179 = vpop.f32.mrb[0].mxu0
        %v2180 = vadd.f32 %v612, %v2179
        %v2181 = vpop.f32.mrb[0].mxu0
        %2182 = vdwg.mxu0
        %vm2183 = vcmp.ge.f32.partialorder %v2177, 0.0
        %vm2184 = vcmp.ge.f32.partialorder %v2180, 0.0
        %v2185 = vmul.f32 %v2177, 0.2
        %v2186 = vmul.f32 %v2180, 0.2
        %v2187 = vsel %vm2183, %v2177, %v2185
        %v2188 = vsel %vm2184, %v2180, %v2186
        %v2189 = vpack.c.bf16 %v2188, %v2187
        %2190 = vmatprep.subr.bf16.mxu0 0
        %2191 = vmatpush1.bf16.msra.mxu0 %v2189
        %2192 = vmatprep.subr.bf16.mxu0 0
        %2193 = vmatpush1.bf16.msra.mxu0 0
        %2194 = vmatprep.subr.bf16.mxu0 0
        %2195 = vmatpush1.bf16.msra.mxu0 0
        %2196 = vmatprep.subr.bf16.mxu0 0
        %2197 = vmatpush1.bf16.msra.mxu0 0
        %2198 = vmatprep.subr.bf16.mxu0 0
        %2199 = vmatpush1.bf16.msra.mxu0 0
        %2200 = vmatprep.subr.bf16.mxu0 0
        %2201 = vmatpush1.bf16.msra.mxu0 0
        %2202 = vmatprep.subr.bf16.mxu0 0
        %2203 = vmatpush1.bf16.msra.mxu0 0
        %2204 = vmatprep.subr.bf16.mxu0 0
        %2205 = vmatpush1.bf16.msra.mxu0 0
        %2206 = vmatprep.subr.bf16.mxu0 0
        %2207 = vmatpush1.bf16.msra.mxu0 0
        %2208 = vmatprep.subr.bf16.mxu0 0
        %2209 = vmatpush1.bf16.msra.mxu0 0
        %2210 = vmatprep.subr.bf16.mxu0 0
        %2211 = vmatpush1.bf16.msra.mxu0 0
        %2212 = vmatprep.subr.bf16.mxu0 0
        %2213 = vmatpush1.bf16.msra.mxu0 0
        %2214 = vmatprep.subr.bf16.mxu0 0
        %2215 = vmatpush1.bf16.msra.mxu0 0
        %2216 = vmatprep.subr.bf16.mxu0 0
        %2217 = vmatpush1.bf16.msra.mxu0 0
        %2218 = vmatprep.subr.bf16.mxu0 0
        %2219 = vmatpush1.bf16.msra.mxu0 0
        %2220 = vmatprep.subr.bf16.mxu0 0
        %2221 = vmatpush1.bf16.msra.mxu0 0
        %2222 = vmatprep.mubr.bf16.mxu0 0
        %2223 = vmatmul.mubr.bf16.gmra.mrb[0].mxu0 %v703
        %v2224 = vpop.f32.mrb[0].mxu0
        %v2225 = vadd.f32 %v674, %v2224
        %v2226 = vpop.f32.mrb[0].mxu0
        %v2227 = vpop.f32.mrb[0].mxu0
        %v2228 = vadd.f32 %v679, %v2227
        %v2229 = vpop.f32.mrb[0].mxu0
        %2230 = vmatprep.mubr.bf16.mxu0 0
        %2231 = vmatmul.mubr.bf16.gmra.mrb[0].mxu0 %v706
        %v2232 = vpop.f32.mrb[0].mxu0
        %v2233 = vadd.f32 %v684, %v2232
        %v2234 = vpop.f32.mrb[0].mxu0
        %v2235 = vpop.f32.mrb[0].mxu0
        %v2236 = vadd.f32 %v689, %v2235
        %v2237 = vpop.f32.mrb[0].mxu0
        %2238 = vdwg.mxu0
        %vm2239 = vcmp.ge.f32.partialorder %v2225, 0.0
        %vm2240 = vcmp.ge.f32.partialorder %v2228, 0.0
        %vm2241 = vcmp.ge.f32.partialorder %v2233, 0.0
        %vm2242 = vcmp.ge.f32.partialorder %v2236, 0.0
        %v2243 = vmul.f32 %v2225, 0.2
        %v2244 = vmul.f32 %v2228, 0.2
        %v2245 = vmul.f32 %v2233, 0.2
        %v2246 = vmul.f32 %v2236, 0.2
        %v2247 = vsel %vm2239, %v2225, %v2243
        %v2248 = vsel %vm2240, %v2228, %v2244
        %v2249 = vsel %vm2241, %v2233, %v2245
        %v2250 = vsel %vm2242, %v2236, %v2246
        %v2251 = vadd.f32 %v2136, %v2247
        %v2252 = vadd.f32 %v2137, %v2248
        %v2253 = vadd.f32 %v2138, %v2249
        %v2254 = vadd.f32 %v2139, %v2250
        %v2255 = vpack.c.bf16 %v2252, %v2251
        %v2256 = vpack.c.bf16 %v2254, %v2253
        %2257 = vmatprep.subr.bf16.mxu0 0
        %2258 = vmatpush1.bf16.msra.mxu0 %v2255
        %2259 = vmatprep.subr.bf16.mxu0 0
        %2260 = vmatpush1.bf16.msra.mxu0 %v2256
        %2261 = vmatprep.subr.bf16.mxu0 0
        %2262 = vmatpush1.bf16.msra.mxu0 0
        %2263 = vmatprep.subr.bf16.mxu0 0
        %2264 = vmatpush1.bf16.msra.mxu0 0
        %2265 = vmatprep.subr.bf16.mxu0 0
        %2266 = vmatpush1.bf16.msra.mxu0 0
        %2267 = vmatprep.subr.bf16.mxu0 0
        %2268 = vmatpush1.bf16.msra.mxu0 0
        %2269 = vmatprep.subr.bf16.mxu0 0
        %2270 = vmatpush1.bf16.msra.mxu0 0
        %2271 = vmatprep.subr.bf16.mxu0 0
        %2272 = vmatpush1.bf16.msra.mxu0 0
        %2273 = vmatprep.subr.bf16.mxu0 0
        %2274 = vmatpush1.bf16.msra.mxu0 0
        %2275 = vmatprep.subr.bf16.mxu0 0
        %2276 = vmatpush1.bf16.msra.mxu0 0
        %2277 = vmatprep.subr.bf16.mxu0 0
        %2278 = vmatpush1.bf16.msra.mxu0 0
        %2279 = vmatprep.subr.bf16.mxu0 0
        %2280 = vmatpush1.bf16.msra.mxu0 0
        %2281 = vmatprep.subr.bf16.mxu0 0
        %2282 = vmatpush1.bf16.msra.mxu0 0
        %2283 = vmatprep.subr.bf16.mxu0 0
        %2284 = vmatpush1.bf16.msra.mxu0 0
        %2285 = vmatprep.subr.bf16.mxu0 0
        %2286 = vmatpush1.bf16.msra.mxu0 0
        %2287 = vmatprep.subr.bf16.mxu0 0
        %2288 = vmatpush1.bf16.msra.mxu0 0
        %2289 = vmatprep.mubr.bf16.mxu0 0
        %2290 = vmatmul.mubr.bf16.gmra.mrb[0].mxu0 %v791
        %v2291 = vpop.f32.mrb[0].mxu0
        %v2292 = vadd.f32 %v778, %v2291
        %v2293 = vpop.f32.mrb[0].mxu0
        %v2294 = vpop.f32.mrb[0].mxu0
        %v2295 = vadd.f32 %v783, %v2294
        %v2296 = vpop.f32.mrb[0].mxu0
        %2297 = vdwg.mxu0
        %vm2298 = vcmp.ge.f32.partialorder %v2292, 0.0
        %vm2299 = vcmp.ge.f32.partialorder %v2295, 0.0
        %v2300 = vmul.f32 %v2292, 0.2
        %v2301 = vmul.f32 %v2295, 0.2
        %v2302 = vsel %vm2298, %v2292, %v2300
        %v2303 = vsel %vm2299, %v2295, %v2301
        %v2304 = vpack.c.bf16 %v2303, %v2302
        %2305 = vmatprep.subr.bf16.mxu0 0
        %2306 = vmatpush1.bf16.msra.mxu0 %v2304
        %2307 = vmatprep.subr.bf16.mxu0 0
        %2308 = vmatpush1.bf16.msra.mxu0 0
        %2309 = vmatprep.subr.bf16.mxu0 0
        %2310 = vmatpush1.bf16.msra.mxu0 0
        %2311 = vmatprep.subr.bf16.mxu0 0
        %2312 = vmatpush1.bf16.msra.mxu0 0
        %2313 = vmatprep.subr.bf16.mxu0 0
        %2314 = vmatpush1.bf16.msra.mxu0 0
        %2315 = vmatprep.subr.bf16.mxu0 0
        %2316 = vmatpush1.bf16.msra.mxu0 0
        %2317 = vmatprep.subr.bf16.mxu0 0
        %2318 = vmatpush1.bf16.msra.mxu0 0
        %2319 = vmatprep.subr.bf16.mxu0 0
        %2320 = vmatpush1.bf16.msra.mxu0 0
        %2321 = vmatprep.subr.bf16.mxu0 0
        %2322 = vmatpush1.bf16.msra.mxu0 0
        %2323 = vmatprep.subr.bf16.mxu0 0
        %2324 = vmatpush1.bf16.msra.mxu0 0
        %2325 = vmatprep.subr.bf16.mxu0 0
        %2326 = vmatpush1.bf16.msra.mxu0 0
        %2327 = vmatprep.subr.bf16.mxu0 0
        %2328 = vmatpush1.bf16.msra.mxu0 0
        %2329 = vmatprep.subr.bf16.mxu0 0
        %2330 = vmatpush1.bf16.msra.mxu0 0
        %2331 = vmatprep.subr.bf16.mxu0 0
        %2332 = vmatpush1.bf16.msra.mxu0 0
        %2333 = vmatprep.subr.bf16.mxu0 0
        %2334 = vmatpush1.bf16.msra.mxu0 0
        %2335 = vmatprep.subr.bf16.mxu0 0
        %2336 = vmatpush1.bf16.msra.mxu0 0
        %2337 = vmatprep.mubr.bf16.mxu0 0
        %2338 = vmatmul.mubr.bf16.gmra.mrb[0].mxu0 %v872
        %v2339 = vpop.f32.mrb[0].mxu0
        %v2340 = vadd.f32 %v844, %v2339
        %v2341 = vpop.f32.mrb[0].mxu0
        %v2342 = vpop.f32.mrb[0].mxu0
        %v2343 = vadd.f32 %v849, %v2342
        %v2344 = vpop.f32.mrb[0].mxu0
        %2345 = vmatprep.mubr.bf16.mxu0 0
        %2346 = vmatmul.mubr.bf16.gmra.mrb[0].mxu0 %v875
        %v2347 = vpop.f32.mrb[0].mxu0
        %v2348 = vadd.f32 %v854, %v2347
        %v2349 = vpop.f32.mrb[0].mxu0
        %v2350 = vpop.f32.mrb[0].mxu0
        %v2351 = vadd.f32 %v859, %v2350
        %v2352 = vpop.f32.mrb[0].mxu0
        %2353 = vdwg.mxu0
        %vm2354 = vcmp.ge.f32.partialorder %v2340, 0.0
        %vm2355 = vcmp.ge.f32.partialorder %v2343, 0.0
        %vm2356 = vcmp.ge.f32.partialorder %v2348, 0.0
        %vm2357 = vcmp.ge.f32.partialorder %v2351, 0.0
        %v2358 = vmul.f32 %v2340, 0.2
        %v2359 = vmul.f32 %v2343, 0.2
        %v2360 = vmul.f32 %v2348, 0.2
        %v2361 = vmul.f32 %v2351, 0.2
        %v2362 = vsel %vm2354, %v2340, %v2358
        %v2363 = vsel %vm2355, %v2343, %v2359
        %v2364 = vsel %vm2356, %v2348, %v2360
        %v2365 = vsel %vm2357, %v2351, %v2361
        %v2366 = vadd.f32 %v2251, %v2362
        %v2367 = vadd.f32 %v2252, %v2363
        %v2368 = vadd.f32 %v2253, %v2364
        %v2369 = vadd.f32 %v2254, %v2365
        %v2370 = vpack.c.bf16 %v2367, %v2366
        %v2371 = vpack.c.bf16 %v2369, %v2368
        %2372 = vmatprep.subr.bf16.mxu0 0
        %2373 = vmatpush1.bf16.msra.mxu0 %v2370
        %2374 = vmatprep.subr.bf16.mxu0 0
        %2375 = vmatpush1.bf16.msra.mxu0 %v2371
        %2376 = vmatprep.subr.bf16.mxu0 0
        %2377 = vmatpush1.bf16.msra.mxu0 0
        %2378 = vmatprep.subr.bf16.mxu0 0
        %2379 = vmatpush1.bf16.msra.mxu0 0
        %2380 = vmatprep.subr.bf16.mxu0 0
        %2381 = vmatpush1.bf16.msra.mxu0 0
        %2382 = vmatprep.subr.bf16.mxu0 0
        %2383 = vmatpush1.bf16.msra.mxu0 0
        %2384 = vmatprep.subr.bf16.mxu0 0
        %2385 = vmatpush1.bf16.msra.mxu0 0
        %2386 = vmatprep.subr.bf16.mxu0 0
        %2387 = vmatpush1.bf16.msra.mxu0 0
        %2388 = vmatprep.subr.bf16.mxu0 0
        %2389 = vmatpush1.bf16.msra.mxu0 0
        %2390 = vmatprep.subr.bf16.mxu0 0
        %2391 = vmatpush1.bf16.msra.mxu0 0
        %2392 = vmatprep.subr.bf16.mxu0 0
        %2393 = vmatpush1.bf16.msra.mxu0 0
        %2394 = vmatprep.subr.bf16.mxu0 0
        %2395 = vmatpush1.bf16.msra.mxu0 0
        %2396 = vmatprep.subr.bf16.mxu0 0
        %2397 = vmatpush1.bf16.msra.mxu0 0
        %2398 = vmatprep.subr.bf16.mxu0 0
        %2399 = vmatpush1.bf16.msra.mxu0 0
        %2400 = vmatprep.subr.bf16.mxu0 0
        %2401 = vmatpush1.bf16.msra.mxu0 0
        %2402 = vmatprep.subr.bf16.mxu0 0
        %2403 = vmatpush1.bf16.msra.mxu0 0
        %2404 = vmatprep.mubr.bf16.mxu0 0
        %2405 = vmatmul.mubr.bf16.gmra.mrb[0].mxu0 %v960
        %v2406 = vpop.f32.mrb[0].mxu0
        %v2407 = vadd.f32 %v947, %v2406
        %v2408 = vpop.f32.mrb[0].mxu0
        %v2409 = vpop.f32.mrb[0].mxu0
        %v2410 = vadd.f32 %v952, %v2409
        %v2411 = vpop.f32.mrb[0].mxu0
        %2412 = vdwg.mxu0
        %vm2413 = vcmp.ge.f32.partialorder %v2407, 0.0
        %vm2414 = vcmp.ge.f32.partialorder %v2410, 0.0
        %v2415 = vmul.f32 %v2407, 0.2
        %v2416 = vmul.f32 %v2410, 0.2
        %v2417 = vsel %vm2413, %v2407, %v2415
        %v2418 = vsel %vm2414, %v2410, %v2416
        %v2419 = vpack.c.bf16 %v2418, %v2417
        %2420 = vmatprep.subr.bf16.mxu0 0
        %2421 = vmatpush1.bf16.msra.mxu0 %v2419
        %2422 = vmatprep.subr.bf16.mxu0 0
        %2423 = vmatpush1.bf16.msra.mxu0 0
        %2424 = vmatprep.subr.bf16.mxu0 0
        %2425 = vmatpush1.bf16.msra.mxu0 0
        %2426 = vmatprep.subr.bf16.mxu0 0
        %2427 = vmatpush1.bf16.msra.mxu0 0
        %2428 = vmatprep.subr.bf16.mxu0 0
        %2429 = vmatpush1.bf16.msra.mxu0 0
        %2430 = vmatprep.subr.bf16.mxu0 0
        %2431 = vmatpush1.bf16.msra.mxu0 0
        %2432 = vmatprep.subr.bf16.mxu0 0
        %2433 = vmatpush1.bf16.msra.mxu0 0
        %2434 = vmatprep.subr.bf16.mxu0 0
        %2435 = vmatpush1.bf16.msra.mxu0 0
        %2436 = vmatprep.subr.bf16.mxu0 0
        %2437 = vmatpush1.bf16.msra.mxu0 0
        %2438 = vmatprep.subr.bf16.mxu0 0
        %2439 = vmatpush1.bf16.msra.mxu0 0
        %2440 = vmatprep.subr.bf16.mxu0 0
        %2441 = vmatpush1.bf16.msra.mxu0 0
        %2442 = vmatprep.subr.bf16.mxu0 0
        %2443 = vmatpush1.bf16.msra.mxu0 0
        %2444 = vmatprep.subr.bf16.mxu0 0
        %2445 = vmatpush1.bf16.msra.mxu0 0
        %2446 = vmatprep.subr.bf16.mxu0 0
        %2447 = vmatpush1.bf16.msra.mxu0 0
        %2448 = vmatprep.subr.bf16.mxu0 0
        %2449 = vmatpush1.bf16.msra.mxu0 0
        %2450 = vmatprep.subr.bf16.mxu0 0
        %2451 = vmatpush1.bf16.msra.mxu0 0
        %2452 = vmatprep.mubr.bf16.mxu0 0
        %2453 = vmatmul.mubr.bf16.gmra.mrb[0].mxu0 %v1041
        %v2454 = vpop.f32.mrb[0].mxu0
        %v2455 = vadd.f32 %v1013, %v2454
        %v2456 = vpop.f32.mrb[0].mxu0
        %v2457 = vpop.f32.mrb[0].mxu0
        %v2458 = vadd.f32 %v1018, %v2457
        %v2459 = vpop.f32.mrb[0].mxu0
        %2460 = vmatprep.mubr.bf16.mxu0 0
        %2461 = vmatmul.mubr.bf16.gmra.mrb[0].mxu0 %v1044
        %v2462 = vpop.f32.mrb[0].mxu0
        %v2463 = vadd.f32 %v1023, %v2462
        %v2464 = vpop.f32.mrb[0].mxu0
        %v2465 = vpop.f32.mrb[0].mxu0
        %v2466 = vadd.f32 %v1028, %v2465
        %v2467 = vpop.f32.mrb[0].mxu0
        %2468 = vdwg.mxu0
        %vm2469 = vcmp.ge.f32.partialorder %v2455, 0.0
        %vm2470 = vcmp.ge.f32.partialorder %v2458, 0.0
        %vm2471 = vcmp.ge.f32.partialorder %v2463, 0.0
        %vm2472 = vcmp.ge.f32.partialorder %v2466, 0.0
        %v2473 = vmul.f32 %v2455, 0.2
        %v2474 = vmul.f32 %v2458, 0.2
        %v2475 = vmul.f32 %v2463, 0.2
        %v2476 = vmul.f32 %v2466, 0.2
        %v2477 = vsel %vm2469, %v2455, %v2473
        %v2478 = vsel %vm2470, %v2458, %v2474
        %v2479 = vsel %vm2471, %v2463, %v2475
        %v2480 = vsel %vm2472, %v2466, %v2476
        %v2481 = vadd.f32 %v2366, %v2477
        %v2482 = vadd.f32 %v2367, %v2478
        %v2483 = vadd.f32 %v2368, %v2479
        %v2484 = vadd.f32 %v2369, %v2480
        %v2485 = vpack.c.bf16 %v2482, %v2481
        %v2486 = vpack.c.bf16 %v2484, %v2483
        %2487 = vmatprep.subr.bf16.mxu0 0
        %2488 = vmatpush1.bf16.msra.mxu0 %v2485
        %2489 = vmatprep.subr.bf16.mxu0 0
        %2490 = vmatpush1.bf16.msra.mxu0 %v2486
        %2491 = vmatprep.subr.bf16.mxu0 0
        %2492 = vmatpush1.bf16.msra.mxu0 0
        %2493 = vmatprep.subr.bf16.mxu0 0
        %2494 = vmatpush1.bf16.msra.mxu0 0
        %2495 = vmatprep.subr.bf16.mxu0 0
        %2496 = vmatpush1.bf16.msra.mxu0 0
        %2497 = vmatprep.subr.bf16.mxu0 0
        %2498 = vmatpush1.bf16.msra.mxu0 0
        %2499 = vmatprep.subr.bf16.mxu0 0
        %2500 = vmatpush1.bf16.msra.mxu0 0
        %2501 = vmatprep.subr.bf16.mxu0 0
        %2502 = vmatpush1.bf16.msra.mxu0 0
        %2503 = vmatprep.subr.bf16.mxu0 0
        %2504 = vmatpush1.bf16.msra.mxu0 0
        %2505 = vmatprep.subr.bf16.mxu0 0
        %2506 = vmatpush1.bf16.msra.mxu0 0
        %2507 = vmatprep.subr.bf16.mxu0 0
        %2508 = vmatpush1.bf16.msra.mxu0 0
        %2509 = vmatprep.subr.bf16.mxu0 0
        %2510 = vmatpush1.bf16.msra.mxu0 0
        %2511 = vmatprep.subr.bf16.mxu0 0
        %2512 = vmatpush1.bf16.msra.mxu0 0
        %2513 = vmatprep.subr.bf16.mxu0 0
        %2514 = vmatpush1.bf16.msra.mxu0 0
        %2515 = vmatprep.subr.bf16.mxu0 0
        %2516 = vmatpush1.bf16.msra.mxu0 0
        %2517 = vmatprep.subr.bf16.mxu0 0
        %2518 = vmatpush1.bf16.msra.mxu0 0
        %2519 = vmatprep.mubr.bf16.mxu0 0
        %2520 = vmatmul.mubr.bf16.gmra.mrb[0].mxu0 %v1119
        %v2521 = vpop.f32.mrb[0].mxu0
        %v2522 = vadd.f32 %v1116, %v2521
        %v2523 = vpop.f32.mrb[0].mxu0
        %v2524 = vpop.f32.mrb[0].mxu0
        %v2525 = vpop.f32.mrb[0].mxu0
        %2526 = vdwg.mxu0
        %v2527 = vrot.slane %v1161, 2
        %v2529 = vsel %vm537, %v2527, 0
        %2531 = vmatprep.subr.bf16.mxu0 0
        %2532 = vmatpush1.bf16.msra.mxu0 %v2529
        %2533 = vmatprep.subr.bf16.mxu0 0
        %2534 = vmatpush1.bf16.msra.mxu0 0
        %2535 = vmatprep.subr.bf16.mxu0 0
        %2536 = vmatpush1.bf16.msra.mxu0 0
        %2537 = vmatprep.subr.bf16.mxu0 0
        %2538 = vmatpush1.bf16.msra.mxu0 0
        %2539 = vmatprep.subr.bf16.mxu0 0
        %2540 = vmatpush1.bf16.msra.mxu0 0
        %2541 = vmatprep.subr.bf16.mxu0 0
        %2542 = vmatpush1.bf16.msra.mxu0 0
        %2543 = vmatprep.subr.bf16.mxu0 0
        %2544 = vmatpush1.bf16.msra.mxu0 0
        %2545 = vmatprep.subr.bf16.mxu0 0
        %2546 = vmatpush1.bf16.msra.mxu0 0
        %2547 = vmatprep.subr.bf16.mxu0 0
        %2548 = vmatpush1.bf16.msra.mxu0 0
        %2549 = vmatprep.subr.bf16.mxu0 0
        %2550 = vmatpush1.bf16.msra.mxu0 0
        %2551 = vmatprep.subr.bf16.mxu0 0
        %2552 = vmatpush1.bf16.msra.mxu0 0
        %2553 = vmatprep.subr.bf16.mxu0 0
        %2554 = vmatpush1.bf16.msra.mxu0 0
        %2555 = vmatprep.subr.bf16.mxu0 0
        %2556 = vmatpush1.bf16.msra.mxu0 0
        %2557 = vmatprep.subr.bf16.mxu0 0
        %2558 = vmatpush1.bf16.msra.mxu0 0
        %2559 = vmatprep.subr.bf16.mxu0 0
        %2560 = vmatpush1.bf16.msra.mxu0 0
        %2561 = vmatprep.subr.bf16.mxu0 0
        %2562 = vmatpush1.bf16.msra.mxu0 0
        %2563 = vmatprep.mubr.bf16.mxu0 0
        %2564 = vmatmul.mubr.bf16.gmra.mrb[0].mxu0 %v532
        %v2565 = vpop.f32.mrb[0].mxu0
        %v2566 = vadd.f32 %v503, %v2565
        %v2567 = vpop.f32.mrb[0].mxu0
        %v2568 = vpop.f32.mrb[0].mxu0
        %v2569 = vadd.f32 %v508, %v2568
        %v2570 = vpop.f32.mrb[0].mxu0
        %2571 = vmatprep.mubr.bf16.mxu0 0
        %2572 = vmatmul.mubr.bf16.gmra.mrb[0].mxu0 %v535
        %v2573 = vpop.f32.mrb[0].mxu0
        %v2574 = vadd.f32 %v513, %v2573
        %v2575 = vpop.f32.mrb[0].mxu0
        %v2576 = vpop.f32.mrb[0].mxu0
        %v2577 = vadd.f32 %v518, %v2576
        %v2578 = vpop.f32.mrb[0].mxu0
        %2579 = vdwg.mxu0
        %vm2580 = vcmp.ge.f32.partialorder %v2566, 0.0
        %vm2581 = vcmp.ge.f32.partialorder %v2569, 0.0
        %vm2582 = vcmp.ge.f32.partialorder %v2574, 0.0
        %vm2583 = vcmp.ge.f32.partialorder %v2577, 0.0
        %v2584 = vmul.f32 %v2566, 0.1
        %v2585 = vmul.f32 %v2569, 0.1
        %v2586 = vmul.f32 %v2574, 0.1
        %v2587 = vmul.f32 %v2577, 0.1
        %v2588 = vsel %vm2580, %v2566, %v2584
        %v2589 = vsel %vm2581, %v2569, %v2585
        %v2590 = vsel %vm2582, %v2574, %v2586
        %v2591 = vsel %vm2583, %v2577, %v2587
        %v2592 = vpack.c.bf16 %v2589, %v2588
        %v2593 = vpack.c.bf16 %v2591, %v2590
        %2594 = vmatprep.subr.bf16.mxu0 0
        %2595 = vmatpush1.bf16.msra.mxu0 %v2592
        %2596 = vmatprep.subr.bf16.mxu0 0
        %2597 = vmatpush1.bf16.msra.mxu0 %v2593
        %2598 = vmatprep.subr.bf16.mxu0 0
        %2599 = vmatpush1.bf16.msra.mxu0 0
        %2600 = vmatprep.subr.bf16.mxu0 0
        %2601 = vmatpush1.bf16.msra.mxu0 0
        %2602 = vmatprep.subr.bf16.mxu0 0
        %2603 = vmatpush1.bf16.msra.mxu0 0
        %2604 = vmatprep.subr.bf16.mxu0 0
        %2605 = vmatpush1.bf16.msra.mxu0 0
        %2606 = vmatprep.subr.bf16.mxu0 0
        %2607 = vmatpush1.bf16.msra.mxu0 0
        %2608 = vmatprep.subr.bf16.mxu0 0
        %2609 = vmatpush1.bf16.msra.mxu0 0
        %2610 = vmatprep.subr.bf16.mxu0 0
        %2611 = vmatpush1.bf16.msra.mxu0 0
        %2612 = vmatprep.subr.bf16.mxu0 0
        %2613 = vmatpush1.bf16.msra.mxu0 0
        %2614 = vmatprep.subr.bf16.mxu0 0
        %2615 = vmatpush1.bf16.msra.mxu0 0
        %2616 = vmatprep.subr.bf16.mxu0 0
        %2617 = vmatpush1.bf16.msra.mxu0 0
        %2618 = vmatprep.subr.bf16.mxu0 0
        %2619 = vmatpush1.bf16.msra.mxu0 0
        %2620 = vmatprep.subr.bf16.mxu0 0
        %2621 = vmatpush1.bf16.msra.mxu0 0
        %2622 = vmatprep.subr.bf16.mxu0 0
        %2623 = vmatpush1.bf16.msra.mxu0 0
        %2624 = vmatprep.subr.bf16.mxu0 0
        %2625 = vmatpush1.bf16.msra.mxu0 0
        %2626 = vmatprep.mubr.bf16.mxu0 0
        %2627 = vmatmul.mubr.bf16.gmra.mrb[0].mxu0 %v621
        %v2628 = vpop.f32.mrb[0].mxu0
        %v2629 = vadd.f32 %v607, %v2628
        %v2630 = vpop.f32.mrb[0].mxu0
        %v2631 = vpop.f32.mrb[0].mxu0
        %v2632 = vadd.f32 %v612, %v2631
        %v2633 = vpop.f32.mrb[0].mxu0
        %2634 = vdwg.mxu0
        %vm2635 = vcmp.ge.f32.partialorder %v2629, 0.0
        %vm2636 = vcmp.ge.f32.partialorder %v2632, 0.0
        %v2637 = vmul.f32 %v2629, 0.2
        %v2638 = vmul.f32 %v2632, 0.2
        %v2639 = vsel %vm2635, %v2629, %v2637
        %v2640 = vsel %vm2636, %v2632, %v2638
        %v2641 = vpack.c.bf16 %v2640, %v2639
        %2642 = vmatprep.subr.bf16.mxu0 0
        %2643 = vmatpush1.bf16.msra.mxu0 %v2641
        %2644 = vmatprep.subr.bf16.mxu0 0
        %2645 = vmatpush1.bf16.msra.mxu0 0
        %2646 = vmatprep.subr.bf16.mxu0 0
        %2647 = vmatpush1.bf16.msra.mxu0 0
        %2648 = vmatprep.subr.bf16.mxu0 0
        %2649 = vmatpush1.bf16.msra.mxu0 0
        %2650 = vmatprep.subr.bf16.mxu0 0
        %2651 = vmatpush1.bf16.msra.mxu0 0
        %2652 = vmatprep.subr.bf16.mxu0 0
        %2653 = vmatpush1.bf16.msra.mxu0 0
        %2654 = vmatprep.subr.bf16.mxu0 0
        %2655 = vmatpush1.bf16.msra.mxu0 0
        %2656 = vmatprep.subr.bf16.mxu0 0
        %2657 = vmatpush1.bf16.msra.mxu0 0
        %2658 = vmatprep.subr.bf16.mxu0 0
        %2659 = vmatpush1.bf16.msra.mxu0 0
        %2660 = vmatprep.subr.bf16.mxu0 0
        %2661 = vmatpush1.bf16.msra.mxu0 0
        %2662 = vmatprep.subr.bf16.mxu0 0
        %2663 = vmatpush1.bf16.msra.mxu0 0
        %2664 = vmatprep.subr.bf16.mxu0 0
        %2665 = vmatpush1.bf16.msra.mxu0 0
        %2666 = vmatprep.subr.bf16.mxu0 0
        %2667 = vmatpush1.bf16.msra.mxu0 0
        %2668 = vmatprep.subr.bf16.mxu0 0
        %2669 = vmatpush1.bf16.msra.mxu0 0
        %2670 = vmatprep.subr.bf16.mxu0 0
        %2671 = vmatpush1.bf16.msra.mxu0 0
        %2672 = vmatprep.subr.bf16.mxu0 0
        %2673 = vmatpush1.bf16.msra.mxu0 0
        %2674 = vmatprep.mubr.bf16.mxu0 0
        %2675 = vmatmul.mubr.bf16.gmra.mrb[0].mxu0 %v703
        %v2676 = vpop.f32.mrb[0].mxu0
        %v2677 = vadd.f32 %v674, %v2676
        %v2678 = vpop.f32.mrb[0].mxu0
        %v2679 = vpop.f32.mrb[0].mxu0
        %v2680 = vadd.f32 %v679, %v2679
        %v2681 = vpop.f32.mrb[0].mxu0
        %2682 = vmatprep.mubr.bf16.mxu0 0
        %2683 = vmatmul.mubr.bf16.gmra.mrb[0].mxu0 %v706
        %v2684 = vpop.f32.mrb[0].mxu0
        %v2685 = vadd.f32 %v684, %v2684
        %v2686 = vpop.f32.mrb[0].mxu0
        %v2687 = vpop.f32.mrb[0].mxu0
        %v2688 = vadd.f32 %v689, %v2687
        %v2689 = vpop.f32.mrb[0].mxu0
        %2690 = vdwg.mxu0
        %vm2691 = vcmp.ge.f32.partialorder %v2677, 0.0
        %vm2692 = vcmp.ge.f32.partialorder %v2680, 0.0
        %vm2693 = vcmp.ge.f32.partialorder %v2685, 0.0
        %vm2694 = vcmp.ge.f32.partialorder %v2688, 0.0
        %v2695 = vmul.f32 %v2677, 0.2
        %v2696 = vmul.f32 %v2680, 0.2
        %v2697 = vmul.f32 %v2685, 0.2
        %v2698 = vmul.f32 %v2688, 0.2
        %v2699 = vsel %vm2691, %v2677, %v2695
        %v2700 = vsel %vm2692, %v2680, %v2696
        %v2701 = vsel %vm2693, %v2685, %v2697
        %v2702 = vsel %vm2694, %v2688, %v2698
        %v2703 = vadd.f32 %v2588, %v2699
        %v2704 = vadd.f32 %v2589, %v2700
        %v2705 = vadd.f32 %v2590, %v2701
        %v2706 = vadd.f32 %v2591, %v2702
        %v2707 = vpack.c.bf16 %v2704, %v2703
        %v2708 = vpack.c.bf16 %v2706, %v2705
        %2709 = vmatprep.subr.bf16.mxu0 0
        %2710 = vmatpush1.bf16.msra.mxu0 %v2707
        %2711 = vmatprep.subr.bf16.mxu0 0
        %2712 = vmatpush1.bf16.msra.mxu0 %v2708
        %2713 = vmatprep.subr.bf16.mxu0 0
        %2714 = vmatpush1.bf16.msra.mxu0 0
        %2715 = vmatprep.subr.bf16.mxu0 0
        %2716 = vmatpush1.bf16.msra.mxu0 0
        %2717 = vmatprep.subr.bf16.mxu0 0
        %2718 = vmatpush1.bf16.msra.mxu0 0
        %2719 = vmatprep.subr.bf16.mxu0 0
        %2720 = vmatpush1.bf16.msra.mxu0 0
        %2721 = vmatprep.subr.bf16.mxu0 0
        %2722 = vmatpush1.bf16.msra.mxu0 0
        %2723 = vmatprep.subr.bf16.mxu0 0
        %2724 = vmatpush1.bf16.msra.mxu0 0
        %2725 = vmatprep.subr.bf16.mxu0 0
        %2726 = vmatpush1.bf16.msra.mxu0 0
        %2727 = vmatprep.subr.bf16.mxu0 0
        %2728 = vmatpush1.bf16.msra.mxu0 0
        %2729 = vmatprep.subr.bf16.mxu0 0
        %2730 = vmatpush1.bf16.msra.mxu0 0
        %2731 = vmatprep.subr.bf16.mxu0 0
        %2732 = vmatpush1.bf16.msra.mxu0 0
        %2733 = vmatprep.subr.bf16.mxu0 0
        %2734 = vmatpush1.bf16.msra.mxu0 0
        %2735 = vmatprep.subr.bf16.mxu0 0
        %2736 = vmatpush1.bf16.msra.mxu0 0
        %2737 = vmatprep.subr.bf16.mxu0 0
        %2738 = vmatpush1.bf16.msra.mxu0 0
        %2739 = vmatprep.subr.bf16.mxu0 0
        %2740 = vmatpush1.bf16.msra.mxu0 0
        %2741 = vmatprep.mubr.bf16.mxu0 0
        %2742 = vmatmul.mubr.bf16.gmra.mrb[0].mxu0 %v791
        %v2743 = vpop.f32.mrb[0].mxu0
        %v2744 = vadd.f32 %v778, %v2743
        %v2745 = vpop.f32.mrb[0].mxu0
        %v2746 = vpop.f32.mrb[0].mxu0
        %v2747 = vadd.f32 %v783, %v2746
        %v2748 = vpop.f32.mrb[0].mxu0
        %2749 = vdwg.mxu0
        %vm2750 = vcmp.ge.f32.partialorder %v2744, 0.0
        %vm2751 = vcmp.ge.f32.partialorder %v2747, 0.0
        %v2752 = vmul.f32 %v2744, 0.2
        %v2753 = vmul.f32 %v2747, 0.2
        %v2754 = vsel %vm2750, %v2744, %v2752
        %v2755 = vsel %vm2751, %v2747, %v2753
        %v2756 = vpack.c.bf16 %v2755, %v2754
        %2757 = vmatprep.subr.bf16.mxu0 0
        %2758 = vmatpush1.bf16.msra.mxu0 %v2756
        %2759 = vmatprep.subr.bf16.mxu0 0
        %2760 = vmatpush1.bf16.msra.mxu0 0
        %2761 = vmatprep.subr.bf16.mxu0 0
        %2762 = vmatpush1.bf16.msra.mxu0 0
        %2763 = vmatprep.subr.bf16.mxu0 0
        %2764 = vmatpush1.bf16.msra.mxu0 0
        %2765 = vmatprep.subr.bf16.mxu0 0
        %2766 = vmatpush1.bf16.msra.mxu0 0
        %2767 = vmatprep.subr.bf16.mxu0 0
        %2768 = vmatpush1.bf16.msra.mxu0 0
        %2769 = vmatprep.subr.bf16.mxu0 0
        %2770 = vmatpush1.bf16.msra.mxu0 0
        %2771 = vmatprep.subr.bf16.mxu0 0
        %2772 = vmatpush1.bf16.msra.mxu0 0
        %2773 = vmatprep.subr.bf16.mxu0 0
        %2774 = vmatpush1.bf16.msra.mxu0 0
        %2775 = vmatprep.subr.bf16.mxu0 0
        %2776 = vmatpush1.bf16.msra.mxu0 0
        %2777 = vmatprep.subr.bf16.mxu0 0
        %2778 = vmatpush1.bf16.msra.mxu0 0
        %2779 = vmatprep.subr.bf16.mxu0 0
        %2780 = vmatpush1.bf16.msra.mxu0 0
        %2781 = vmatprep.subr.bf16.mxu0 0
        %2782 = vmatpush1.bf16.msra.mxu0 0
        %2783 = vmatprep.subr.bf16.mxu0 0
        %2784 = vmatpush1.bf16.msra.mxu0 0
        %2785 = vmatprep.subr.bf16.mxu0 0
        %2786 = vmatpush1.bf16.msra.mxu0 0
        %2787 = vmatprep.subr.bf16.mxu0 0
        %2788 = vmatpush1.bf16.msra.mxu0 0
        %2789 = vmatprep.mubr.bf16.mxu0 0
        %2790 = vmatmul.mubr.bf16.gmra.mrb[0].mxu0 %v872
        %v2791 = vpop.f32.mrb[0].mxu0
        %v2792 = vadd.f32 %v844, %v2791
        %v2793 = vpop.f32.mrb[0].mxu0
        %v2794 = vpop.f32.mrb[0].mxu0
        %v2795 = vadd.f32 %v849, %v2794
        %v2796 = vpop.f32.mrb[0].mxu0
        %2797 = vmatprep.mubr.bf16.mxu0 0
        %2798 = vmatmul.mubr.bf16.gmra.mrb[0].mxu0 %v875
        %v2799 = vpop.f32.mrb[0].mxu0
        %v2800 = vadd.f32 %v854, %v2799
        %v2801 = vpop.f32.mrb[0].mxu0
        %v2802 = vpop.f32.mrb[0].mxu0
        %v2803 = vadd.f32 %v859, %v2802
        %v2804 = vpop.f32.mrb[0].mxu0
        %2805 = vdwg.mxu0
        %vm2806 = vcmp.ge.f32.partialorder %v2792, 0.0
        %vm2807 = vcmp.ge.f32.partialorder %v2795, 0.0
        %vm2808 = vcmp.ge.f32.partialorder %v2800, 0.0
        %vm2809 = vcmp.ge.f32.partialorder %v2803, 0.0
        %v2810 = vmul.f32 %v2792, 0.2
        %v2811 = vmul.f32 %v2795, 0.2
        %v2812 = vmul.f32 %v2800, 0.2
        %v2813 = vmul.f32 %v2803, 0.2
        %v2814 = vsel %vm2806, %v2792, %v2810
        %v2815 = vsel %vm2807, %v2795, %v2811
        %v2816 = vsel %vm2808, %v2800, %v2812
        %v2817 = vsel %vm2809, %v2803, %v2813
        %v2818 = vadd.f32 %v2703, %v2814
        %v2819 = vadd.f32 %v2704, %v2815
        %v2820 = vadd.f32 %v2705, %v2816
        %v2821 = vadd.f32 %v2706, %v2817
        %v2822 = vpack.c.bf16 %v2819, %v2818
        %v2823 = vpack.c.bf16 %v2821, %v2820
        %2824 = vmatprep.subr.bf16.mxu0 0
        %2825 = vmatpush1.bf16.msra.mxu0 %v2822
        %2826 = vmatprep.subr.bf16.mxu0 0
        %2827 = vmatpush1.bf16.msra.mxu0 %v2823
        %2828 = vmatprep.subr.bf16.mxu0 0
        %2829 = vmatpush1.bf16.msra.mxu0 0
        %2830 = vmatprep.subr.bf16.mxu0 0
        %2831 = vmatpush1.bf16.msra.mxu0 0
        %2832 = vmatprep.subr.bf16.mxu0 0
        %2833 = vmatpush1.bf16.msra.mxu0 0
        %2834 = vmatprep.subr.bf16.mxu0 0
        %2835 = vmatpush1.bf16.msra.mxu0 0
        %2836 = vmatprep.subr.bf16.mxu0 0
        %2837 = vmatpush1.bf16.msra.mxu0 0
        %2838 = vmatprep.subr.bf16.mxu0 0
        %2839 = vmatpush1.bf16.msra.mxu0 0
        %2840 = vmatprep.subr.bf16.mxu0 0
        %2841 = vmatpush1.bf16.msra.mxu0 0
        %2842 = vmatprep.subr.bf16.mxu0 0
        %2843 = vmatpush1.bf16.msra.mxu0 0
        %2844 = vmatprep.subr.bf16.mxu0 0
        %2845 = vmatpush1.bf16.msra.mxu0 0
        %2846 = vmatprep.subr.bf16.mxu0 0
        %2847 = vmatpush1.bf16.msra.mxu0 0
        %2848 = vmatprep.subr.bf16.mxu0 0
        %2849 = vmatpush1.bf16.msra.mxu0 0
        %2850 = vmatprep.subr.bf16.mxu0 0
        %2851 = vmatpush1.bf16.msra.mxu0 0
        %2852 = vmatprep.subr.bf16.mxu0 0
        %2853 = vmatpush1.bf16.msra.mxu0 0
        %2854 = vmatprep.subr.bf16.mxu0 0
        %2855 = vmatpush1.bf16.msra.mxu0 0
        %2856 = vmatprep.mubr.bf16.mxu0 0
        %2857 = vmatmul.mubr.bf16.gmra.mrb[0].mxu0 %v960
        %v2858 = vpop.f32.mrb[0].mxu0
        %v2859 = vadd.f32 %v947, %v2858
        %v2860 = vpop.f32.mrb[0].mxu0
        %v2861 = vpop.f32.mrb[0].mxu0
        %v2862 = vadd.f32 %v952, %v2861
        %v2863 = vpop.f32.mrb[0].mxu0
        %2864 = vdwg.mxu0
        %vm2865 = vcmp.ge.f32.partialorder %v2859, 0.0
        %vm2866 = vcmp.ge.f32.partialorder %v2862, 0.0
        %v2867 = vmul.f32 %v2859, 0.2
        %v2868 = vmul.f32 %v2862, 0.2
        %v2869 = vsel %vm2865, %v2859, %v2867
        %v2870 = vsel %vm2866, %v2862, %v2868
        %v2871 = vpack.c.bf16 %v2870, %v2869
        %2872 = vmatprep.subr.bf16.mxu0 0
        %2873 = vmatpush1.bf16.msra.mxu0 %v2871
        %2874 = vmatprep.subr.bf16.mxu0 0
        %2875 = vmatpush1.bf16.msra.mxu0 0
        %2876 = vmatprep.subr.bf16.mxu0 0
        %2877 = vmatpush1.bf16.msra.mxu0 0
        %2878 = vmatprep.subr.bf16.mxu0 0
        %2879 = vmatpush1.bf16.msra.mxu0 0
        %2880 = vmatprep.subr.bf16.mxu0 0
        %2881 = vmatpush1.bf16.msra.mxu0 0
        %2882 = vmatprep.subr.bf16.mxu0 0
        %2883 = vmatpush1.bf16.msra.mxu0 0
        %2884 = vmatprep.subr.bf16.mxu0 0
        %2885 = vmatpush1.bf16.msra.mxu0 0
        %2886 = vmatprep.subr.bf16.mxu0 0
        %2887 = vmatpush1.bf16.msra.mxu0 0
        %2888 = vmatprep.subr.bf16.mxu0 0
        %2889 = vmatpush1.bf16.msra.mxu0 0
        %2890 = vmatprep.subr.bf16.mxu0 0
        %2891 = vmatpush1.bf16.msra.mxu0 0
        %2892 = vmatprep.subr.bf16.mxu0 0
        %2893 = vmatpush1.bf16.msra.mxu0 0
        %2894 = vmatprep.subr.bf16.mxu0 0
        %2895 = vmatpush1.bf16.msra.mxu0 0
        %2896 = vmatprep.subr.bf16.mxu0 0
        %2897 = vmatpush1.bf16.msra.mxu0 0
        %2898 = vmatprep.subr.bf16.mxu0 0
        %2899 = vmatpush1.bf16.msra.mxu0 0
        %2900 = vmatprep.subr.bf16.mxu0 0
        %2901 = vmatpush1.bf16.msra.mxu0 0
        %2902 = vmatprep.subr.bf16.mxu0 0
        %2903 = vmatpush1.bf16.msra.mxu0 0
        %2904 = vmatprep.mubr.bf16.mxu0 0
        %2905 = vmatmul.mubr.bf16.gmra.mrb[0].mxu0 %v1041
        %v2906 = vpop.f32.mrb[0].mxu0
        %v2907 = vadd.f32 %v1013, %v2906
        %v2908 = vpop.f32.mrb[0].mxu0
        %v2909 = vpop.f32.mrb[0].mxu0
        %v2910 = vadd.f32 %v1018, %v2909
        %v2911 = vpop.f32.mrb[0].mxu0
        %2912 = vmatprep.mubr.bf16.mxu0 0
        %2913 = vmatmul.mubr.bf16.gmra.mrb[0].mxu0 %v1044
        %v2914 = vpop.f32.mrb[0].mxu0
        %v2915 = vadd.f32 %v1023, %v2914
        %v2916 = vpop.f32.mrb[0].mxu0
        %v2917 = vpop.f32.mrb[0].mxu0
        %v2918 = vadd.f32 %v1028, %v2917
        %v2919 = vpop.f32.mrb[0].mxu0
        %2920 = vdwg.mxu0
        %vm2921 = vcmp.ge.f32.partialorder %v2907, 0.0
        %vm2922 = vcmp.ge.f32.partialorder %v2910, 0.0
        %vm2923 = vcmp.ge.f32.partialorder %v2915, 0.0
        %vm2924 = vcmp.ge.f32.partialorder %v2918, 0.0
        %v2925 = vmul.f32 %v2907, 0.2
        %v2926 = vmul.f32 %v2910, 0.2
        %v2927 = vmul.f32 %v2915, 0.2
        %v2928 = vmul.f32 %v2918, 0.2
        %v2929 = vsel %vm2921, %v2907, %v2925
        %v2930 = vsel %vm2922, %v2910, %v2926
        %v2931 = vsel %vm2923, %v2915, %v2927
        %v2932 = vsel %vm2924, %v2918, %v2928
        %v2933 = vadd.f32 %v2818, %v2929
        %v2934 = vadd.f32 %v2819, %v2930
        %v2935 = vadd.f32 %v2820, %v2931
        %v2936 = vadd.f32 %v2821, %v2932
        %v2937 = vpack.c.bf16 %v2934, %v2933
        %v2938 = vpack.c.bf16 %v2936, %v2935
        %2939 = vmatprep.subr.bf16.mxu0 0
        %2940 = vmatpush1.bf16.msra.mxu0 %v2937
        %2941 = vmatprep.subr.bf16.mxu0 0
        %2942 = vmatpush1.bf16.msra.mxu0 %v2938
        %2943 = vmatprep.subr.bf16.mxu0 0
        %2944 = vmatpush1.bf16.msra.mxu0 0
        %2945 = vmatprep.subr.bf16.mxu0 0
        %2946 = vmatpush1.bf16.msra.mxu0 0
        %2947 = vmatprep.subr.bf16.mxu0 0
        %2948 = vmatpush1.bf16.msra.mxu0 0
        %2949 = vmatprep.subr.bf16.mxu0 0
        %2950 = vmatpush1.bf16.msra.mxu0 0
        %2951 = vmatprep.subr.bf16.mxu0 0
        %2952 = vmatpush1.bf16.msra.mxu0 0
        %2953 = vmatprep.subr.bf16.mxu0 0
        %2954 = vmatpush1.bf16.msra.mxu0 0
        %2955 = vmatprep.subr.bf16.mxu0 0
        %2956 = vmatpush1.bf16.msra.mxu0 0
        %2957 = vmatprep.subr.bf16.mxu0 0
        %2958 = vmatpush1.bf16.msra.mxu0 0
        %2959 = vmatprep.subr.bf16.mxu0 0
        %2960 = vmatpush1.bf16.msra.mxu0 0
        %2961 = vmatprep.subr.bf16.mxu0 0
        %2962 = vmatpush1.bf16.msra.mxu0 0
        %2963 = vmatprep.subr.bf16.mxu0 0
        %2964 = vmatpush1.bf16.msra.mxu0 0
        %2965 = vmatprep.subr.bf16.mxu0 0
        %2966 = vmatpush1.bf16.msra.mxu0 0
        %2967 = vmatprep.subr.bf16.mxu0 0
        %2968 = vmatpush1.bf16.msra.mxu0 0
        %2969 = vmatprep.subr.bf16.mxu0 0
        %2970 = vmatpush1.bf16.msra.mxu0 0
        %2971 = vmatprep.mubr.bf16.mxu0 0
        %2972 = vmatmul.mubr.bf16.gmra.mrb[0].mxu0 %v1119
        %v2973 = vpop.f32.mrb[0].mxu0
        %v2974 = vadd.f32 %v1116, %v2973
        %v2975 = vpop.f32.mrb[0].mxu0
        %v2976 = vpop.f32.mrb[0].mxu0
        %v2977 = vpop.f32.mrb[0].mxu0
        %2978 = vdwg.mxu0
        %v2979 = vrot.slane %v1163, 2
        %v2980 = vrot.slane %v1165, 3
        %v2981 = vor.u32 %v2979, %v2980
        %v2983 = vsel %vm537, %v2981, 0
        %2985 = vmatprep.subr.bf16.mxu0 0
        %2986 = vmatpush1.bf16.msra.mxu0 %v2983
        %2987 = vmatprep.subr.bf16.mxu0 0
        %2988 = vmatpush1.bf16.msra.mxu0 0
        %2989 = vmatprep.subr.bf16.mxu0 0
        %2990 = vmatpush1.bf16.msra.mxu0 0
        %2991 = vmatprep.subr.bf16.mxu0 0
        %2992 = vmatpush1.bf16.msra.mxu0 0
        %2993 = vmatprep.subr.bf16.mxu0 0
        %2994 = vmatpush1.bf16.msra.mxu0 0
        %2995 = vmatprep.subr.bf16.mxu0 0
        %2996 = vmatpush1.bf16.msra.mxu0 0
        %2997 = vmatprep.subr.bf16.mxu0 0
        %2998 = vmatpush1.bf16.msra.mxu0 0
        %2999 = vmatprep.subr.bf16.mxu0 0
        %3000 = vmatpush1.bf16.msra.mxu0 0
        %3001 = vmatprep.subr.bf16.mxu0 0
        %3002 = vmatpush1.bf16.msra.mxu0 0
        %3003 = vmatprep.subr.bf16.mxu0 0
        %3004 = vmatpush1.bf16.msra.mxu0 0
        %3005 = vmatprep.subr.bf16.mxu0 0
        %3006 = vmatpush1.bf16.msra.mxu0 0
        %3007 = vmatprep.subr.bf16.mxu0 0
        %3008 = vmatpush1.bf16.msra.mxu0 0
        %3009 = vmatprep.subr.bf16.mxu0 0
        %3010 = vmatpush1.bf16.msra.mxu0 0
        %3011 = vmatprep.subr.bf16.mxu0 0
        %3012 = vmatpush1.bf16.msra.mxu0 0
        %3013 = vmatprep.subr.bf16.mxu0 0
        %3014 = vmatpush1.bf16.msra.mxu0 0
        %3015 = vmatprep.subr.bf16.mxu0 0
        %3016 = vmatpush1.bf16.msra.mxu0 0
        %3017 = vmatprep.mubr.bf16.mxu0 0
        %3018 = vmatmul.mubr.bf16.gmra.mrb[0].mxu0 %v532
        %v3019 = vpop.f32.mrb[0].mxu0
        %v3020 = vadd.f32 %v503, %v3019
        %v3021 = vpop.f32.mrb[0].mxu0
        %v3022 = vpop.f32.mrb[0].mxu0
        %v3023 = vadd.f32 %v508, %v3022
        %v3024 = vpop.f32.mrb[0].mxu0
        %3025 = vmatprep.mubr.bf16.mxu0 0
        %3026 = vmatmul.mubr.bf16.gmra.mrb[0].mxu0 %v535
        %v3027 = vpop.f32.mrb[0].mxu0
        %v3028 = vadd.f32 %v513, %v3027
        %v3029 = vpop.f32.mrb[0].mxu0
        %v3030 = vpop.f32.mrb[0].mxu0
        %v3031 = vadd.f32 %v518, %v3030
        %v3032 = vpop.f32.mrb[0].mxu0
        %3033 = vdwg.mxu0
        %vm3034 = vcmp.ge.f32.partialorder %v3020, 0.0
        %vm3035 = vcmp.ge.f32.partialorder %v3023, 0.0
        %vm3036 = vcmp.ge.f32.partialorder %v3028, 0.0
        %vm3037 = vcmp.ge.f32.partialorder %v3031, 0.0
        %v3038 = vmul.f32 %v3020, 0.1
        %v3039 = vmul.f32 %v3023, 0.1
        %v3040 = vmul.f32 %v3028, 0.1
        %v3041 = vmul.f32 %v3031, 0.1
        %v3042 = vsel %vm3034, %v3020, %v3038
        %v3043 = vsel %vm3035, %v3023, %v3039
        %v3044 = vsel %vm3036, %v3028, %v3040
        %v3045 = vsel %vm3037, %v3031, %v3041
        %v3046 = vpack.c.bf16 %v3043, %v3042
        %v3047 = vpack.c.bf16 %v3045, %v3044
        %3048 = vmatprep.subr.bf16.mxu0 0
        %3049 = vmatpush1.bf16.msra.mxu0 %v3046
        %3050 = vmatprep.subr.bf16.mxu0 0
        %3051 = vmatpush1.bf16.msra.mxu0 %v3047
        %3052 = vmatprep.subr.bf16.mxu0 0
        %3053 = vmatpush1.bf16.msra.mxu0 0
        %3054 = vmatprep.subr.bf16.mxu0 0
        %3055 = vmatpush1.bf16.msra.mxu0 0
        %3056 = vmatprep.subr.bf16.mxu0 0
        %3057 = vmatpush1.bf16.msra.mxu0 0
        %3058 = vmatprep.subr.bf16.mxu0 0
        %3059 = vmatpush1.bf16.msra.mxu0 0
        %3060 = vmatprep.subr.bf16.mxu0 0
        %3061 = vmatpush1.bf16.msra.mxu0 0
        %3062 = vmatprep.subr.bf16.mxu0 0
        %3063 = vmatpush1.bf16.msra.mxu0 0
        %3064 = vmatprep.subr.bf16.mxu0 0
        %3065 = vmatpush1.bf16.msra.mxu0 0
        %3066 = vmatprep.subr.bf16.mxu0 0
        %3067 = vmatpush1.bf16.msra.mxu0 0
        %3068 = vmatprep.subr.bf16.mxu0 0
        %3069 = vmatpush1.bf16.msra.mxu0 0
        %3070 = vmatprep.subr.bf16.mxu0 0
        %3071 = vmatpush1.bf16.msra.mxu0 0
        %3072 = vmatprep.subr.bf16.mxu0 0
        %3073 = vmatpush1.bf16.msra.mxu0 0
        %3074 = vmatprep.subr.bf16.mxu0 0
        %3075 = vmatpush1.bf16.msra.mxu0 0
        %3076 = vmatprep.subr.bf16.mxu0 0
        %3077 = vmatpush1.bf16.msra.mxu0 0
        %3078 = vmatprep.subr.bf16.mxu0 0
        %3079 = vmatpush1.bf16.msra.mxu0 0
        %3080 = vmatprep.mubr.bf16.mxu0 0
        %3081 = vmatmul.mubr.bf16.gmra.mrb[0].mxu0 %v621
        %v3082 = vpop.f32.mrb[0].mxu0
        %v3083 = vadd.f32 %v607, %v3082
        %v3084 = vpop.f32.mrb[0].mxu0
        %v3085 = vpop.f32.mrb[0].mxu0
        %v3086 = vadd.f32 %v612, %v3085
        %v3087 = vpop.f32.mrb[0].mxu0
        %3088 = vdwg.mxu0
        %vm3089 = vcmp.ge.f32.partialorder %v3083, 0.0
        %vm3090 = vcmp.ge.f32.partialorder %v3086, 0.0
        %v3091 = vmul.f32 %v3083, 0.2
        %v3092 = vmul.f32 %v3086, 0.2
        %v3093 = vsel %vm3089, %v3083, %v3091
        %v3094 = vsel %vm3090, %v3086, %v3092
        %v3095 = vpack.c.bf16 %v3094, %v3093
        %3096 = vmatprep.subr.bf16.mxu0 0
        %3097 = vmatpush1.bf16.msra.mxu0 %v3095
        %3098 = vmatprep.subr.bf16.mxu0 0
        %3099 = vmatpush1.bf16.msra.mxu0 0
        %3100 = vmatprep.subr.bf16.mxu0 0
        %3101 = vmatpush1.bf16.msra.mxu0 0
        %3102 = vmatprep.subr.bf16.mxu0 0
        %3103 = vmatpush1.bf16.msra.mxu0 0
        %3104 = vmatprep.subr.bf16.mxu0 0
        %3105 = vmatpush1.bf16.msra.mxu0 0
        %3106 = vmatprep.subr.bf16.mxu0 0
        %3107 = vmatpush1.bf16.msra.mxu0 0
        %3108 = vmatprep.subr.bf16.mxu0 0
        %3109 = vmatpush1.bf16.msra.mxu0 0
        %3110 = vmatprep.subr.bf16.mxu0 0
        %3111 = vmatpush1.bf16.msra.mxu0 0
        %3112 = vmatprep.subr.bf16.mxu0 0
        %3113 = vmatpush1.bf16.msra.mxu0 0
        %3114 = vmatprep.subr.bf16.mxu0 0
        %3115 = vmatpush1.bf16.msra.mxu0 0
        %3116 = vmatprep.subr.bf16.mxu0 0
        %3117 = vmatpush1.bf16.msra.mxu0 0
        %3118 = vmatprep.subr.bf16.mxu0 0
        %3119 = vmatpush1.bf16.msra.mxu0 0
        %3120 = vmatprep.subr.bf16.mxu0 0
        %3121 = vmatpush1.bf16.msra.mxu0 0
        %3122 = vmatprep.subr.bf16.mxu0 0
        %3123 = vmatpush1.bf16.msra.mxu0 0
        %3124 = vmatprep.subr.bf16.mxu0 0
        %3125 = vmatpush1.bf16.msra.mxu0 0
        %3126 = vmatprep.subr.bf16.mxu0 0
        %3127 = vmatpush1.bf16.msra.mxu0 0
        %3128 = vmatprep.mubr.bf16.mxu0 0
        %3129 = vmatmul.mubr.bf16.gmra.mrb[0].mxu0 %v703
        %v3130 = vpop.f32.mrb[0].mxu0
        %v3131 = vadd.f32 %v674, %v3130
        %v3132 = vpop.f32.mrb[0].mxu0
        %v3133 = vpop.f32.mrb[0].mxu0
        %v3134 = vadd.f32 %v679, %v3133
        %v3135 = vpop.f32.mrb[0].mxu0
        %3136 = vmatprep.mubr.bf16.mxu0 0
        %3137 = vmatmul.mubr.bf16.gmra.mrb[0].mxu0 %v706
        %v3138 = vpop.f32.mrb[0].mxu0
        %v3139 = vadd.f32 %v684, %v3138
        %v3140 = vpop.f32.mrb[0].mxu0
        %v3141 = vpop.f32.mrb[0].mxu0
        %v3142 = vadd.f32 %v689, %v3141
        %v3143 = vpop.f32.mrb[0].mxu0
        %3144 = vdwg.mxu0
        %vm3145 = vcmp.ge.f32.partialorder %v3131, 0.0
        %vm3146 = vcmp.ge.f32.partialorder %v3134, 0.0
        %vm3147 = vcmp.ge.f32.partialorder %v3139, 0.0
        %vm3148 = vcmp.ge.f32.partialorder %v3142, 0.0
        %v3149 = vmul.f32 %v3131, 0.2
        %v3150 = vmul.f32 %v3134, 0.2
        %v3151 = vmul.f32 %v3139, 0.2
        %v3152 = vmul.f32 %v3142, 0.2
        %v3153 = vsel %vm3145, %v3131, %v3149
        %v3154 = vsel %vm3146, %v3134, %v3150
        %v3155 = vsel %vm3147, %v3139, %v3151
        %v3156 = vsel %vm3148, %v3142, %v3152
        %v3157 = vadd.f32 %v3042, %v3153
        %v3158 = vadd.f32 %v3043, %v3154
        %v3159 = vadd.f32 %v3044, %v3155
        %v3160 = vadd.f32 %v3045, %v3156
        %v3161 = vpack.c.bf16 %v3158, %v3157
        %v3162 = vpack.c.bf16 %v3160, %v3159
        %3163 = vmatprep.subr.bf16.mxu0 0
        %3164 = vmatpush1.bf16.msra.mxu0 %v3161
        %3165 = vmatprep.subr.bf16.mxu0 0
        %3166 = vmatpush1.bf16.msra.mxu0 %v3162
        %3167 = vmatprep.subr.bf16.mxu0 0
        %3168 = vmatpush1.bf16.msra.mxu0 0
        %3169 = vmatprep.subr.bf16.mxu0 0
        %3170 = vmatpush1.bf16.msra.mxu0 0
        %3171 = vmatprep.subr.bf16.mxu0 0
        %3172 = vmatpush1.bf16.msra.mxu0 0
        %3173 = vmatprep.subr.bf16.mxu0 0
        %3174 = vmatpush1.bf16.msra.mxu0 0
        %3175 = vmatprep.subr.bf16.mxu0 0
        %3176 = vmatpush1.bf16.msra.mxu0 0
        %3177 = vmatprep.subr.bf16.mxu0 0
        %3178 = vmatpush1.bf16.msra.mxu0 0
        %3179 = vmatprep.subr.bf16.mxu0 0
        %3180 = vmatpush1.bf16.msra.mxu0 0
        %3181 = vmatprep.subr.bf16.mxu0 0
        %3182 = vmatpush1.bf16.msra.mxu0 0
        %3183 = vmatprep.subr.bf16.mxu0 0
        %3184 = vmatpush1.bf16.msra.mxu0 0
        %3185 = vmatprep.subr.bf16.mxu0 0
        %3186 = vmatpush1.bf16.msra.mxu0 0
        %3187 = vmatprep.subr.bf16.mxu0 0
        %3188 = vmatpush1.bf16.msra.mxu0 0
        %3189 = vmatprep.subr.bf16.mxu0 0
        %3190 = vmatpush1.bf16.msra.mxu0 0
        %3191 = vmatprep.subr.bf16.mxu0 0
        %3192 = vmatpush1.bf16.msra.mxu0 0
        %3193 = vmatprep.subr.bf16.mxu0 0
        %3194 = vmatpush1.bf16.msra.mxu0 0
        %3195 = vmatprep.mubr.bf16.mxu0 0
        %3196 = vmatmul.mubr.bf16.gmra.mrb[0].mxu0 %v791
        %v3197 = vpop.f32.mrb[0].mxu0
        %v3198 = vadd.f32 %v778, %v3197
        %v3199 = vpop.f32.mrb[0].mxu0
        %v3200 = vpop.f32.mrb[0].mxu0
        %v3201 = vadd.f32 %v783, %v3200
        %v3202 = vpop.f32.mrb[0].mxu0
        %3203 = vdwg.mxu0
        %vm3204 = vcmp.ge.f32.partialorder %v3198, 0.0
        %vm3205 = vcmp.ge.f32.partialorder %v3201, 0.0
        %v3206 = vmul.f32 %v3198, 0.2
        %v3207 = vmul.f32 %v3201, 0.2
        %v3208 = vsel %vm3204, %v3198, %v3206
        %v3209 = vsel %vm3205, %v3201, %v3207
        %v3210 = vpack.c.bf16 %v3209, %v3208
        %3211 = vmatprep.subr.bf16.mxu0 0
        %3212 = vmatpush1.bf16.msra.mxu0 %v3210
        %3213 = vmatprep.subr.bf16.mxu0 0
        %3214 = vmatpush1.bf16.msra.mxu0 0
        %3215 = vmatprep.subr.bf16.mxu0 0
        %3216 = vmatpush1.bf16.msra.mxu0 0
        %3217 = vmatprep.subr.bf16.mxu0 0
        %3218 = vmatpush1.bf16.msra.mxu0 0
        %3219 = vmatprep.subr.bf16.mxu0 0
        %3220 = vmatpush1.bf16.msra.mxu0 0
        %3221 = vmatprep.subr.bf16.mxu0 0
        %3222 = vmatpush1.bf16.msra.mxu0 0
        %3223 = vmatprep.subr.bf16.mxu0 0
        %3224 = vmatpush1.bf16.msra.mxu0 0
        %3225 = vmatprep.subr.bf16.mxu0 0
        %3226 = vmatpush1.bf16.msra.mxu0 0
        %3227 = vmatprep.subr.bf16.mxu0 0
        %3228 = vmatpush1.bf16.msra.mxu0 0
        %3229 = vmatprep.subr.bf16.mxu0 0
        %3230 = vmatpush1.bf16.msra.mxu0 0
        %3231 = vmatprep.subr.bf16.mxu0 0
        %3232 = vmatpush1.bf16.msra.mxu0 0
        %3233 = vmatprep.subr.bf16.mxu0 0
        %3234 = vmatpush1.bf16.msra.mxu0 0
        %3235 = vmatprep.subr.bf16.mxu0 0
        %3236 = vmatpush1.bf16.msra.mxu0 0
        %3237 = vmatprep.subr.bf16.mxu0 0
        %3238 = vmatpush1.bf16.msra.mxu0 0
        %3239 = vmatprep.subr.bf16.mxu0 0
        %3240 = vmatpush1.bf16.msra.mxu0 0
        %3241 = vmatprep.subr.bf16.mxu0 0
        %3242 = vmatpush1.bf16.msra.mxu0 0
        %3243 = vmatprep.mubr.bf16.mxu0 0
        %3244 = vmatmul.mubr.bf16.gmra.mrb[0].mxu0 %v872
        %v3245 = vpop.f32.mrb[0].mxu0
        %v3246 = vadd.f32 %v844, %v3245
        %v3247 = vpop.f32.mrb[0].mxu0
        %v3248 = vpop.f32.mrb[0].mxu0
        %v3249 = vadd.f32 %v849, %v3248
        %v3250 = vpop.f32.mrb[0].mxu0
        %3251 = vmatprep.mubr.bf16.mxu0 0
        %3252 = vmatmul.mubr.bf16.gmra.mrb[0].mxu0 %v875
        %v3253 = vpop.f32.mrb[0].mxu0
        %v3254 = vadd.f32 %v854, %v3253
        %v3255 = vpop.f32.mrb[0].mxu0
        %v3256 = vpop.f32.mrb[0].mxu0
        %v3257 = vadd.f32 %v859, %v3256
        %v3258 = vpop.f32.mrb[0].mxu0
        %3259 = vdwg.mxu0
        %vm3260 = vcmp.ge.f32.partialorder %v3246, 0.0
        %vm3261 = vcmp.ge.f32.partialorder %v3249, 0.0
        %vm3262 = vcmp.ge.f32.partialorder %v3254, 0.0
        %vm3263 = vcmp.ge.f32.partialorder %v3257, 0.0
        %v3264 = vmul.f32 %v3246, 0.2
        %v3265 = vmul.f32 %v3249, 0.2
        %v3266 = vmul.f32 %v3254, 0.2
        %v3267 = vmul.f32 %v3257, 0.2
        %v3268 = vsel %vm3260, %v3246, %v3264
        %v3269 = vsel %vm3261, %v3249, %v3265
        %v3270 = vsel %vm3262, %v3254, %v3266
        %v3271 = vsel %vm3263, %v3257, %v3267
        %v3272 = vadd.f32 %v3157, %v3268
        %v3273 = vadd.f32 %v3158, %v3269
        %v3274 = vadd.f32 %v3159, %v3270
        %v3275 = vadd.f32 %v3160, %v3271
        %v3276 = vpack.c.bf16 %v3273, %v3272
        %v3277 = vpack.c.bf16 %v3275, %v3274
        %3278 = vmatprep.subr.bf16.mxu0 0
        %3279 = vmatpush1.bf16.msra.mxu0 %v3276
        %3280 = vmatprep.subr.bf16.mxu0 0
        %3281 = vmatpush1.bf16.msra.mxu0 %v3277
        %3282 = vmatprep.subr.bf16.mxu0 0
        %3283 = vmatpush1.bf16.msra.mxu0 0
        %3284 = vmatprep.subr.bf16.mxu0 0
        %3285 = vmatpush1.bf16.msra.mxu0 0
        %3286 = vmatprep.subr.bf16.mxu0 0
        %3287 = vmatpush1.bf16.msra.mxu0 0
        %3288 = vmatprep.subr.bf16.mxu0 0
        %3289 = vmatpush1.bf16.msra.mxu0 0
        %3290 = vmatprep.subr.bf16.mxu0 0
        %3291 = vmatpush1.bf16.msra.mxu0 0
        %3292 = vmatprep.subr.bf16.mxu0 0
        %3293 = vmatpush1.bf16.msra.mxu0 0
        %3294 = vmatprep.subr.bf16.mxu0 0
        %3295 = vmatpush1.bf16.msra.mxu0 0
        %3296 = vmatprep.subr.bf16.mxu0 0
        %3297 = vmatpush1.bf16.msra.mxu0 0
        %3298 = vmatprep.subr.bf16.mxu0 0
        %3299 = vmatpush1.bf16.msra.mxu0 0
        %3300 = vmatprep.subr.bf16.mxu0 0
        %3301 = vmatpush1.bf16.msra.mxu0 0
        %3302 = vmatprep.subr.bf16.mxu0 0
        %3303 = vmatpush1.bf16.msra.mxu0 0
        %3304 = vmatprep.subr.bf16.mxu0 0
        %3305 = vmatpush1.bf16.msra.mxu0 0
        %3306 = vmatprep.subr.bf16.mxu0 0
        %3307 = vmatpush1.bf16.msra.mxu0 0
        %3308 = vmatprep.subr.bf16.mxu0 0
        %3309 = vmatpush1.bf16.msra.mxu0 0
        %3310 = vmatprep.mubr.bf16.mxu0 0
        %3311 = vmatmul.mubr.bf16.gmra.mrb[0].mxu0 %v960
        %v3312 = vpop.f32.mrb[0].mxu0
        %v3313 = vadd.f32 %v947, %v3312
        %v3314 = vpop.f32.mrb[0].mxu0
        %v3315 = vpop.f32.mrb[0].mxu0
        %v3316 = vadd.f32 %v952, %v3315
        %v3317 = vpop.f32.mrb[0].mxu0
        %3318 = vdwg.mxu0
        %vm3319 = vcmp.ge.f32.partialorder %v3313, 0.0
        %vm3320 = vcmp.ge.f32.partialorder %v3316, 0.0
        %v3321 = vmul.f32 %v3313, 0.2
        %v3322 = vmul.f32 %v3316, 0.2
        %v3323 = vsel %vm3319, %v3313, %v3321
        %v3324 = vsel %vm3320, %v3316, %v3322
        %v3325 = vpack.c.bf16 %v3324, %v3323
        %3326 = vmatprep.subr.bf16.mxu0 0
        %3327 = vmatpush1.bf16.msra.mxu0 %v3325
        %3328 = vmatprep.subr.bf16.mxu0 0
        %3329 = vmatpush1.bf16.msra.mxu0 0
        %3330 = vmatprep.subr.bf16.mxu0 0
        %3331 = vmatpush1.bf16.msra.mxu0 0
        %3332 = vmatprep.subr.bf16.mxu0 0
        %3333 = vmatpush1.bf16.msra.mxu0 0
        %3334 = vmatprep.subr.bf16.mxu0 0
        %3335 = vmatpush1.bf16.msra.mxu0 0
        %3336 = vmatprep.subr.bf16.mxu0 0
        %3337 = vmatpush1.bf16.msra.mxu0 0
        %3338 = vmatprep.subr.bf16.mxu0 0
        %3339 = vmatpush1.bf16.msra.mxu0 0
        %3340 = vmatprep.subr.bf16.mxu0 0
        %3341 = vmatpush1.bf16.msra.mxu0 0
        %3342 = vmatprep.subr.bf16.mxu0 0
        %3343 = vmatpush1.bf16.msra.mxu0 0
        %3344 = vmatprep.subr.bf16.mxu0 0
        %3345 = vmatpush1.bf16.msra.mxu0 0
        %3346 = vmatprep.subr.bf16.mxu0 0
        %3347 = vmatpush1.bf16.msra.mxu0 0
        %3348 = vmatprep.subr.bf16.mxu0 0
        %3349 = vmatpush1.bf16.msra.mxu0 0
        %3350 = vmatprep.subr.bf16.mxu0 0
        %3351 = vmatpush1.bf16.msra.mxu0 0
        %3352 = vmatprep.subr.bf16.mxu0 0
        %3353 = vmatpush1.bf16.msra.mxu0 0
        %3354 = vmatprep.subr.bf16.mxu0 0
        %3355 = vmatpush1.bf16.msra.mxu0 0
        %3356 = vmatprep.subr.bf16.mxu0 0
        %3357 = vmatpush1.bf16.msra.mxu0 0
        %3358 = vmatprep.mubr.bf16.mxu0 0
        %3359 = vmatmul.mubr.bf16.gmra.mrb[0].mxu0 %v1041
        %v3360 = vpop.f32.mrb[0].mxu0
        %v3361 = vadd.f32 %v1013, %v3360
        %v3362 = vpop.f32.mrb[0].mxu0
        %v3363 = vpop.f32.mrb[0].mxu0
        %v3364 = vadd.f32 %v1018, %v3363
        %v3365 = vpop.f32.mrb[0].mxu0
        %3366 = vmatprep.mubr.bf16.mxu0 0
        %3367 = vmatmul.mubr.bf16.gmra.mrb[0].mxu0 %v1044
        %v3368 = vpop.f32.mrb[0].mxu0
        %v3369 = vadd.f32 %v1023, %v3368
        %v3370 = vpop.f32.mrb[0].mxu0
        %v3371 = vpop.f32.mrb[0].mxu0
        %v3372 = vadd.f32 %v1028, %v3371
        %v3373 = vpop.f32.mrb[0].mxu0
        %3374 = vdwg.mxu0
        %vm3375 = vcmp.ge.f32.partialorder %v3361, 0.0
        %vm3376 = vcmp.ge.f32.partialorder %v3364, 0.0
        %vm3377 = vcmp.ge.f32.partialorder %v3369, 0.0
        %vm3378 = vcmp.ge.f32.partialorder %v3372, 0.0
        %v3379 = vmul.f32 %v3361, 0.2
        %v3380 = vmul.f32 %v3364, 0.2
        %v3381 = vmul.f32 %v3369, 0.2
        %v3382 = vmul.f32 %v3372, 0.2
        %v3383 = vsel %vm3375, %v3361, %v3379
        %v3384 = vsel %vm3376, %v3364, %v3380
        %v3385 = vsel %vm3377, %v3369, %v3381
        %v3386 = vsel %vm3378, %v3372, %v3382
        %v3387 = vadd.f32 %v3272, %v3383
        %v3388 = vadd.f32 %v3273, %v3384
        %v3389 = vadd.f32 %v3274, %v3385
        %v3390 = vadd.f32 %v3275, %v3386
        %v3391 = vpack.c.bf16 %v3388, %v3387
        %v3392 = vpack.c.bf16 %v3390, %v3389
        %3393 = vmatprep.subr.bf16.mxu0 0
        %3394 = vmatpush1.bf16.msra.mxu0 %v3391
        %3395 = vmatprep.subr.bf16.mxu0 0
        %3396 = vmatpush1.bf16.msra.mxu0 %v3392
        %3397 = vmatprep.subr.bf16.mxu0 0
        %3398 = vmatpush1.bf16.msra.mxu0 0
        %3399 = vmatprep.subr.bf16.mxu0 0
        %3400 = vmatpush1.bf16.msra.mxu0 0
        %3401 = vmatprep.subr.bf16.mxu0 0
        %3402 = vmatpush1.bf16.msra.mxu0 0
        %3403 = vmatprep.subr.bf16.mxu0 0
        %3404 = vmatpush1.bf16.msra.mxu0 0
        %3405 = vmatprep.subr.bf16.mxu0 0
        %3406 = vmatpush1.bf16.msra.mxu0 0
        %3407 = vmatprep.subr.bf16.mxu0 0
        %3408 = vmatpush1.bf16.msra.mxu0 0
        %3409 = vmatprep.subr.bf16.mxu0 0
        %3410 = vmatpush1.bf16.msra.mxu0 0
        %3411 = vmatprep.subr.bf16.mxu0 0
        %3412 = vmatpush1.bf16.msra.mxu0 0
        %3413 = vmatprep.subr.bf16.mxu0 0
        %3414 = vmatpush1.bf16.msra.mxu0 0
        %3415 = vmatprep.subr.bf16.mxu0 0
        %3416 = vmatpush1.bf16.msra.mxu0 0
        %3417 = vmatprep.subr.bf16.mxu0 0
        %3418 = vmatpush1.bf16.msra.mxu0 0
        %3419 = vmatprep.subr.bf16.mxu0 0
        %3420 = vmatpush1.bf16.msra.mxu0 0
        %3421 = vmatprep.subr.bf16.mxu0 0
        %3422 = vmatpush1.bf16.msra.mxu0 0
        %3423 = vmatprep.subr.bf16.mxu0 0
        %3424 = vmatpush1.bf16.msra.mxu0 0
        %3425 = vmatprep.mubr.bf16.mxu0 0
        %3426 = vmatmul.mubr.bf16.gmra.mrb[0].mxu0 %v1119
        %v3427 = vpop.f32.mrb[0].mxu0
        %v3428 = vadd.f32 %v1116, %v3427
        %v3429 = vpop.f32.mrb[0].mxu0
        %v3430 = vpop.f32.mrb[0].mxu0
        %v3431 = vpop.f32.mrb[0].mxu0
        %3432 = vdwg.mxu0
        %v3433 = vrot.slane %v1161, 3
        %v3435 = vsel %vm537, %v3433, 0
        %3437 = vmatprep.subr.bf16.mxu0 0
        %3438 = vmatpush1.bf16.msra.mxu0 %v3435
        %3439 = vmatprep.subr.bf16.mxu0 0
        %3440 = vmatpush1.bf16.msra.mxu0 0
        %3441 = vmatprep.subr.bf16.mxu0 0
        %3442 = vmatpush1.bf16.msra.mxu0 0
        %3443 = vmatprep.subr.bf16.mxu0 0
        %3444 = vmatpush1.bf16.msra.mxu0 0
        %3445 = vmatprep.subr.bf16.mxu0 0
        %3446 = vmatpush1.bf16.msra.mxu0 0
        %3447 = vmatprep.subr.bf16.mxu0 0
        %3448 = vmatpush1.bf16.msra.mxu0 0
        %3449 = vmatprep.subr.bf16.mxu0 0
        %3450 = vmatpush1.bf16.msra.mxu0 0
        %3451 = vmatprep.subr.bf16.mxu0 0
        %3452 = vmatpush1.bf16.msra.mxu0 0
        %3453 = vmatprep.subr.bf16.mxu0 0
        %3454 = vmatpush1.bf16.msra.mxu0 0
        %3455 = vmatprep.subr.bf16.mxu0 0
        %3456 = vmatpush1.bf16.msra.mxu0 0
        %3457 = vmatprep.subr.bf16.mxu0 0
        %3458 = vmatpush1.bf16.msra.mxu0 0
        %3459 = vmatprep.subr.bf16.mxu0 0
        %3460 = vmatpush1.bf16.msra.mxu0 0
        %3461 = vmatprep.subr.bf16.mxu0 0
        %3462 = vmatpush1.bf16.msra.mxu0 0
        %3463 = vmatprep.subr.bf16.mxu0 0
        %3464 = vmatpush1.bf16.msra.mxu0 0
        %3465 = vmatprep.subr.bf16.mxu0 0
        %3466 = vmatpush1.bf16.msra.mxu0 0
        %3467 = vmatprep.subr.bf16.mxu0 0
        %3468 = vmatpush1.bf16.msra.mxu0 0
        %3469 = vmatprep.mubr.bf16.mxu0 0
        %3470 = vmatmul.mubr.bf16.gmra.mrb[0].mxu0 %v532
        %v3471 = vpop.f32.mrb[0].mxu0
        %v3472 = vadd.f32 %v503, %v3471
        %v3473 = vpop.f32.mrb[0].mxu0
        %v3474 = vpop.f32.mrb[0].mxu0
        %v3475 = vadd.f32 %v508, %v3474
        %v3476 = vpop.f32.mrb[0].mxu0
        %3477 = vmatprep.mubr.bf16.mxu0 0
        %3478 = vmatmul.mubr.bf16.gmra.mrb[0].mxu0 %v535
        %v3479 = vpop.f32.mrb[0].mxu0
        %v3480 = vadd.f32 %v513, %v3479
        %v3481 = vpop.f32.mrb[0].mxu0
        %v3482 = vpop.f32.mrb[0].mxu0
        %v3483 = vadd.f32 %v518, %v3482
        %v3484 = vpop.f32.mrb[0].mxu0
        %3485 = vdwg.mxu0
        %vm3486 = vcmp.ge.f32.partialorder %v3472, 0.0
        %vm3487 = vcmp.ge.f32.partialorder %v3475, 0.0
        %vm3488 = vcmp.ge.f32.partialorder %v3480, 0.0
        %vm3489 = vcmp.ge.f32.partialorder %v3483, 0.0
        %v3490 = vmul.f32 %v3472, 0.1
        %v3491 = vmul.f32 %v3475, 0.1
        %v3492 = vmul.f32 %v3480, 0.1
        %v3493 = vmul.f32 %v3483, 0.1
        %v3494 = vsel %vm3486, %v3472, %v3490
        %v3495 = vsel %vm3487, %v3475, %v3491
        %v3496 = vsel %vm3488, %v3480, %v3492
        %v3497 = vsel %vm3489, %v3483, %v3493
        %v3498 = vpack.c.bf16 %v3495, %v3494
        %v3499 = vpack.c.bf16 %v3497, %v3496
        %3500 = vmatprep.subr.bf16.mxu0 0
        %3501 = vmatpush1.bf16.msra.mxu0 %v3498
        %3502 = vmatprep.subr.bf16.mxu0 0
        %3503 = vmatpush1.bf16.msra.mxu0 %v3499
        %3504 = vmatprep.subr.bf16.mxu0 0
        %3505 = vmatpush1.bf16.msra.mxu0 0
        %3506 = vmatprep.subr.bf16.mxu0 0
        %3507 = vmatpush1.bf16.msra.mxu0 0
        %3508 = vmatprep.subr.bf16.mxu0 0
        %3509 = vmatpush1.bf16.msra.mxu0 0
        %3510 = vmatprep.subr.bf16.mxu0 0
        %3511 = vmatpush1.bf16.msra.mxu0 0
        %3512 = vmatprep.subr.bf16.mxu0 0
        %3513 = vmatpush1.bf16.msra.mxu0 0
        %3514 = vmatprep.subr.bf16.mxu0 0
        %3515 = vmatpush1.bf16.msra.mxu0 0
        %3516 = vmatprep.subr.bf16.mxu0 0
        %3517 = vmatpush1.bf16.msra.mxu0 0
        %3518 = vmatprep.subr.bf16.mxu0 0
        %3519 = vmatpush1.bf16.msra.mxu0 0
        %3520 = vmatprep.subr.bf16.mxu0 0
        %3521 = vmatpush1.bf16.msra.mxu0 0
        %3522 = vmatprep.subr.bf16.mxu0 0
        %3523 = vmatpush1.bf16.msra.mxu0 0
        %3524 = vmatprep.subr.bf16.mxu0 0
        %3525 = vmatpush1.bf16.msra.mxu0 0
        %3526 = vmatprep.subr.bf16.mxu0 0
        %3527 = vmatpush1.bf16.msra.mxu0 0
        %3528 = vmatprep.subr.bf16.mxu0 0
        %3529 = vmatpush1.bf16.msra.mxu0 0
        %3530 = vmatprep.subr.bf16.mxu0 0
        %3531 = vmatpush1.bf16.msra.mxu0 0
        %3532 = vmatprep.mubr.bf16.mxu0 0
        %3533 = vmatmul.mubr.bf16.gmra.mrb[0].mxu0 %v621
        %v3534 = vpop.f32.mrb[0].mxu0
        %v3535 = vadd.f32 %v607, %v3534
        %v3536 = vpop.f32.mrb[0].mxu0
        %v3537 = vpop.f32.mrb[0].mxu0
        %v3538 = vadd.f32 %v612, %v3537
        %v3539 = vpop.f32.mrb[0].mxu0
        %3540 = vdwg.mxu0
        %vm3541 = vcmp.ge.f32.partialorder %v3535, 0.0
        %vm3542 = vcmp.ge.f32.partialorder %v3538, 0.0
        %v3543 = vmul.f32 %v3535, 0.2
        %v3544 = vmul.f32 %v3538, 0.2
        %v3545 = vsel %vm3541, %v3535, %v3543
        %v3546 = vsel %vm3542, %v3538, %v3544
        %v3547 = vpack.c.bf16 %v3546, %v3545
        %3548 = vmatprep.subr.bf16.mxu0 0
        %3549 = vmatpush1.bf16.msra.mxu0 %v3547
        %3550 = vmatprep.subr.bf16.mxu0 0
        %3551 = vmatpush1.bf16.msra.mxu0 0
        %3552 = vmatprep.subr.bf16.mxu0 0
        %3553 = vmatpush1.bf16.msra.mxu0 0
        %3554 = vmatprep.subr.bf16.mxu0 0
        %3555 = vmatpush1.bf16.msra.mxu0 0
        %3556 = vmatprep.subr.bf16.mxu0 0
        %3557 = vmatpush1.bf16.msra.mxu0 0
        %3558 = vmatprep.subr.bf16.mxu0 0
        %3559 = vmatpush1.bf16.msra.mxu0 0
        %3560 = vmatprep.subr.bf16.mxu0 0
        %3561 = vmatpush1.bf16.msra.mxu0 0
        %3562 = vmatprep.subr.bf16.mxu0 0
        %3563 = vmatpush1.bf16.msra.mxu0 0
        %3564 = vmatprep.subr.bf16.mxu0 0
        %3565 = vmatpush1.bf16.msra.mxu0 0
        %3566 = vmatprep.subr.bf16.mxu0 0
        %3567 = vmatpush1.bf16.msra.mxu0 0
        %3568 = vmatprep.subr.bf16.mxu0 0
        %3569 = vmatpush1.bf16.msra.mxu0 0
        %3570 = vmatprep.subr.bf16.mxu0 0
        %3571 = vmatpush1.bf16.msra.mxu0 0
        %3572 = vmatprep.subr.bf16.mxu0 0
        %3573 = vmatpush1.bf16.msra.mxu0 0
        %3574 = vmatprep.subr.bf16.mxu0 0
        %3575 = vmatpush1.bf16.msra.mxu0 0
        %3576 = vmatprep.subr.bf16.mxu0 0
        %3577 = vmatpush1.bf16.msra.mxu0 0
        %3578 = vmatprep.subr.bf16.mxu0 0
        %3579 = vmatpush1.bf16.msra.mxu0 0
        %3580 = vmatprep.mubr.bf16.mxu0 0
        %3581 = vmatmul.mubr.bf16.gmra.mrb[0].mxu0 %v703
        %v3582 = vpop.f32.mrb[0].mxu0
        %v3583 = vadd.f32 %v674, %v3582
        %v3584 = vpop.f32.mrb[0].mxu0
        %v3585 = vpop.f32.mrb[0].mxu0
        %v3586 = vadd.f32 %v679, %v3585
        %v3587 = vpop.f32.mrb[0].mxu0
        %3588 = vmatprep.mubr.bf16.mxu0 0
        %3589 = vmatmul.mubr.bf16.gmra.mrb[0].mxu0 %v706
        %v3590 = vpop.f32.mrb[0].mxu0
        %v3591 = vadd.f32 %v684, %v3590
        %v3592 = vpop.f32.mrb[0].mxu0
        %v3593 = vpop.f32.mrb[0].mxu0
        %v3594 = vadd.f32 %v689, %v3593
        %v3595 = vpop.f32.mrb[0].mxu0
        %3596 = vdwg.mxu0
        %vm3597 = vcmp.ge.f32.partialorder %v3583, 0.0
        %vm3598 = vcmp.ge.f32.partialorder %v3586, 0.0
        %vm3599 = vcmp.ge.f32.partialorder %v3591, 0.0
        %vm3600 = vcmp.ge.f32.partialorder %v3594, 0.0
        %v3601 = vmul.f32 %v3583, 0.2
        %v3602 = vmul.f32 %v3586, 0.2
        %v3603 = vmul.f32 %v3591, 0.2
        %v3604 = vmul.f32 %v3594, 0.2
        %v3605 = vsel %vm3597, %v3583, %v3601
        %v3606 = vsel %vm3598, %v3586, %v3602
        %v3607 = vsel %vm3599, %v3591, %v3603
        %v3608 = vsel %vm3600, %v3594, %v3604
        %v3609 = vadd.f32 %v3494, %v3605
        %v3610 = vadd.f32 %v3495, %v3606
        %v3611 = vadd.f32 %v3496, %v3607
        %v3612 = vadd.f32 %v3497, %v3608
        %v3613 = vpack.c.bf16 %v3610, %v3609
        %v3614 = vpack.c.bf16 %v3612, %v3611
        %3615 = vmatprep.subr.bf16.mxu0 0
        %3616 = vmatpush1.bf16.msra.mxu0 %v3613
        %3617 = vmatprep.subr.bf16.mxu0 0
        %3618 = vmatpush1.bf16.msra.mxu0 %v3614
        %3619 = vmatprep.subr.bf16.mxu0 0
        %3620 = vmatpush1.bf16.msra.mxu0 0
        %3621 = vmatprep.subr.bf16.mxu0 0
        %3622 = vmatpush1.bf16.msra.mxu0 0
        %3623 = vmatprep.subr.bf16.mxu0 0
        %3624 = vmatpush1.bf16.msra.mxu0 0
        %3625 = vmatprep.subr.bf16.mxu0 0
        %3626 = vmatpush1.bf16.msra.mxu0 0
        %3627 = vmatprep.subr.bf16.mxu0 0
        %3628 = vmatpush1.bf16.msra.mxu0 0
        %3629 = vmatprep.subr.bf16.mxu0 0
        %3630 = vmatpush1.bf16.msra.mxu0 0
        %3631 = vmatprep.subr.bf16.mxu0 0
        %3632 = vmatpush1.bf16.msra.mxu0 0
        %3633 = vmatprep.subr.bf16.mxu0 0
        %3634 = vmatpush1.bf16.msra.mxu0 0
        %3635 = vmatprep.subr.bf16.mxu0 0
        %3636 = vmatpush1.bf16.msra.mxu0 0
        %3637 = vmatprep.subr.bf16.mxu0 0
        %3638 = vmatpush1.bf16.msra.mxu0 0
        %3639 = vmatprep.subr.bf16.mxu0 0
        %3640 = vmatpush1.bf16.msra.mxu0 0
        %3641 = vmatprep.subr.bf16.mxu0 0
        %3642 = vmatpush1.bf16.msra.mxu0 0
        %3643 = vmatprep.subr.bf16.mxu0 0
        %3644 = vmatpush1.bf16.msra.mxu0 0
        %3645 = vmatprep.subr.bf16.mxu0 0
        %3646 = vmatpush1.bf16.msra.mxu0 0
        %3647 = vmatprep.mubr.bf16.mxu0 0
        %3648 = vmatmul.mubr.bf16.gmra.mrb[0].mxu0 %v791
        %v3649 = vpop.f32.mrb[0].mxu0
        %v3650 = vadd.f32 %v778, %v3649
        %v3651 = vpop.f32.mrb[0].mxu0
        %v3652 = vpop.f32.mrb[0].mxu0
        %v3653 = vadd.f32 %v783, %v3652
        %v3654 = vpop.f32.mrb[0].mxu0
        %3655 = vdwg.mxu0
        %vm3656 = vcmp.ge.f32.partialorder %v3650, 0.0
        %vm3657 = vcmp.ge.f32.partialorder %v3653, 0.0
        %v3658 = vmul.f32 %v3650, 0.2
        %v3659 = vmul.f32 %v3653, 0.2
        %v3660 = vsel %vm3656, %v3650, %v3658
        %v3661 = vsel %vm3657, %v3653, %v3659
        %v3662 = vpack.c.bf16 %v3661, %v3660
        %3663 = vmatprep.subr.bf16.mxu0 0
        %3664 = vmatpush1.bf16.msra.mxu0 %v3662
        %3665 = vmatprep.subr.bf16.mxu0 0
        %3666 = vmatpush1.bf16.msra.mxu0 0
        %3667 = vmatprep.subr.bf16.mxu0 0
        %3668 = vmatpush1.bf16.msra.mxu0 0
        %3669 = vmatprep.subr.bf16.mxu0 0
        %3670 = vmatpush1.bf16.msra.mxu0 0
        %3671 = vmatprep.subr.bf16.mxu0 0
        %3672 = vmatpush1.bf16.msra.mxu0 0
        %3673 = vmatprep.subr.bf16.mxu0 0
        %3674 = vmatpush1.bf16.msra.mxu0 0
        %3675 = vmatprep.subr.bf16.mxu0 0
        %3676 = vmatpush1.bf16.msra.mxu0 0
        %3677 = vmatprep.subr.bf16.mxu0 0
        %3678 = vmatpush1.bf16.msra.mxu0 0
        %3679 = vmatprep.subr.bf16.mxu0 0
        %3680 = vmatpush1.bf16.msra.mxu0 0
        %3681 = vmatprep.subr.bf16.mxu0 0
        %3682 = vmatpush1.bf16.msra.mxu0 0
        %3683 = vmatprep.subr.bf16.mxu0 0
        %3684 = vmatpush1.bf16.msra.mxu0 0
        %3685 = vmatprep.subr.bf16.mxu0 0
        %3686 = vmatpush1.bf16.msra.mxu0 0
        %3687 = vmatprep.subr.bf16.mxu0 0
        %3688 = vmatpush1.bf16.msra.mxu0 0
        %3689 = vmatprep.subr.bf16.mxu0 0
        %3690 = vmatpush1.bf16.msra.mxu0 0
        %3691 = vmatprep.subr.bf16.mxu0 0
        %3692 = vmatpush1.bf16.msra.mxu0 0
        %3693 = vmatprep.subr.bf16.mxu0 0
        %3694 = vmatpush1.bf16.msra.mxu0 0
        %3695 = vmatprep.mubr.bf16.mxu0 0
        %3696 = vmatmul.mubr.bf16.gmra.mrb[0].mxu0 %v872
        %v3697 = vpop.f32.mrb[0].mxu0
        %v3698 = vadd.f32 %v844, %v3697
        %v3699 = vpop.f32.mrb[0].mxu0
        %v3700 = vpop.f32.mrb[0].mxu0
        %v3701 = vadd.f32 %v849, %v3700
        %v3702 = vpop.f32.mrb[0].mxu0
        %3703 = vmatprep.mubr.bf16.mxu0 0
        %3704 = vmatmul.mubr.bf16.gmra.mrb[0].mxu0 %v875
        %v3705 = vpop.f32.mrb[0].mxu0
        %v3706 = vadd.f32 %v854, %v3705
        %v3707 = vpop.f32.mrb[0].mxu0
        %v3708 = vpop.f32.mrb[0].mxu0
        %v3709 = vadd.f32 %v859, %v3708
        %v3710 = vpop.f32.mrb[0].mxu0
        %3711 = vdwg.mxu0
        %vm3712 = vcmp.ge.f32.partialorder %v3698, 0.0
        %vm3713 = vcmp.ge.f32.partialorder %v3701, 0.0
        %vm3714 = vcmp.ge.f32.partialorder %v3706, 0.0
        %vm3715 = vcmp.ge.f32.partialorder %v3709, 0.0
        %v3716 = vmul.f32 %v3698, 0.2
        %v3717 = vmul.f32 %v3701, 0.2
        %v3718 = vmul.f32 %v3706, 0.2
        %v3719 = vmul.f32 %v3709, 0.2
        %v3720 = vsel %vm3712, %v3698, %v3716
        %v3721 = vsel %vm3713, %v3701, %v3717
        %v3722 = vsel %vm3714, %v3706, %v3718
        %v3723 = vsel %vm3715, %v3709, %v3719
        %v3724 = vadd.f32 %v3609, %v3720
        %v3725 = vadd.f32 %v3610, %v3721
        %v3726 = vadd.f32 %v3611, %v3722
        %v3727 = vadd.f32 %v3612, %v3723
        %v3728 = vpack.c.bf16 %v3725, %v3724
        %v3729 = vpack.c.bf16 %v3727, %v3726
        %3730 = vmatprep.subr.bf16.mxu0 0
        %3731 = vmatpush1.bf16.msra.mxu0 %v3728
        %3732 = vmatprep.subr.bf16.mxu0 0
        %3733 = vmatpush1.bf16.msra.mxu0 %v3729
        %3734 = vmatprep.subr.bf16.mxu0 0
        %3735 = vmatpush1.bf16.msra.mxu0 0
        %3736 = vmatprep.subr.bf16.mxu0 0
        %3737 = vmatpush1.bf16.msra.mxu0 0
        %3738 = vmatprep.subr.bf16.mxu0 0
        %3739 = vmatpush1.bf16.msra.mxu0 0
        %3740 = vmatprep.subr.bf16.mxu0 0
        %3741 = vmatpush1.bf16.msra.mxu0 0
        %3742 = vmatprep.subr.bf16.mxu0 0
        %3743 = vmatpush1.bf16.msra.mxu0 0
        %3744 = vmatprep.subr.bf16.mxu0 0
        %3745 = vmatpush1.bf16.msra.mxu0 0
        %3746 = vmatprep.subr.bf16.mxu0 0
        %3747 = vmatpush1.bf16.msra.mxu0 0
        %3748 = vmatprep.subr.bf16.mxu0 0
        %3749 = vmatpush1.bf16.msra.mxu0 0
        %3750 = vmatprep.subr.bf16.mxu0 0
        %3751 = vmatpush1.bf16.msra.mxu0 0
        %3752 = vmatprep.subr.bf16.mxu0 0
        %3753 = vmatpush1.bf16.msra.mxu0 0
        %3754 = vmatprep.subr.bf16.mxu0 0
        %3755 = vmatpush1.bf16.msra.mxu0 0
        %3756 = vmatprep.subr.bf16.mxu0 0
        %3757 = vmatpush1.bf16.msra.mxu0 0
        %3758 = vmatprep.subr.bf16.mxu0 0
        %3759 = vmatpush1.bf16.msra.mxu0 0
        %3760 = vmatprep.subr.bf16.mxu0 0
        %3761 = vmatpush1.bf16.msra.mxu0 0
        %3762 = vmatprep.mubr.bf16.mxu0 0
        %3763 = vmatmul.mubr.bf16.gmra.mrb[0].mxu0 %v960
        %v3764 = vpop.f32.mrb[0].mxu0
        %v3765 = vadd.f32 %v947, %v3764
        %v3766 = vpop.f32.mrb[0].mxu0
        %v3767 = vpop.f32.mrb[0].mxu0
        %v3768 = vadd.f32 %v952, %v3767
        %v3769 = vpop.f32.mrb[0].mxu0
        %3770 = vdwg.mxu0
        %vm3771 = vcmp.ge.f32.partialorder %v3765, 0.0
        %vm3772 = vcmp.ge.f32.partialorder %v3768, 0.0
        %v3773 = vmul.f32 %v3765, 0.2
        %v3774 = vmul.f32 %v3768, 0.2
        %v3775 = vsel %vm3771, %v3765, %v3773
        %v3776 = vsel %vm3772, %v3768, %v3774
        %v3777 = vpack.c.bf16 %v3776, %v3775
        %3778 = vmatprep.subr.bf16.mxu0 0
        %3779 = vmatpush1.bf16.msra.mxu0 %v3777
        %3780 = vmatprep.subr.bf16.mxu0 0
        %3781 = vmatpush1.bf16.msra.mxu0 0
        %3782 = vmatprep.subr.bf16.mxu0 0
        %3783 = vmatpush1.bf16.msra.mxu0 0
        %3784 = vmatprep.subr.bf16.mxu0 0
        %3785 = vmatpush1.bf16.msra.mxu0 0
        %3786 = vmatprep.subr.bf16.mxu0 0
        %3787 = vmatpush1.bf16.msra.mxu0 0
        %3788 = vmatprep.subr.bf16.mxu0 0
        %3789 = vmatpush1.bf16.msra.mxu0 0
        %3790 = vmatprep.subr.bf16.mxu0 0
        %3791 = vmatpush1.bf16.msra.mxu0 0
        %3792 = vmatprep.subr.bf16.mxu0 0
        %3793 = vmatpush1.bf16.msra.mxu0 0
        %3794 = vmatprep.subr.bf16.mxu0 0
        %3795 = vmatpush1.bf16.msra.mxu0 0
        %3796 = vmatprep.subr.bf16.mxu0 0
        %3797 = vmatpush1.bf16.msra.mxu0 0
        %3798 = vmatprep.subr.bf16.mxu0 0
        %3799 = vmatpush1.bf16.msra.mxu0 0
        %3800 = vmatprep.subr.bf16.mxu0 0
        %3801 = vmatpush1.bf16.msra.mxu0 0
        %3802 = vmatprep.subr.bf16.mxu0 0
        %3803 = vmatpush1.bf16.msra.mxu0 0
        %3804 = vmatprep.subr.bf16.mxu0 0
        %3805 = vmatpush1.bf16.msra.mxu0 0
        %3806 = vmatprep.subr.bf16.mxu0 0
        %3807 = vmatpush1.bf16.msra.mxu0 0
        %3808 = vmatprep.subr.bf16.mxu0 0
        %3809 = vmatpush1.bf16.msra.mxu0 0
        %3810 = vmatprep.mubr.bf16.mxu0 0
        %3811 = vmatmul.mubr.bf16.gmra.mrb[0].mxu0 %v1041
        %v3812 = vpop.f32.mrb[0].mxu0
        %v3813 = vadd.f32 %v1013, %v3812
        %v3814 = vpop.f32.mrb[0].mxu0
        %v3815 = vpop.f32.mrb[0].mxu0
        %v3816 = vadd.f32 %v1018, %v3815
        %v3817 = vpop.f32.mrb[0].mxu0
        %3818 = vmatprep.mubr.bf16.mxu0 0
        %3819 = vmatmul.mubr.bf16.gmra.mrb[0].mxu0 %v1044
        %v3820 = vpop.f32.mrb[0].mxu0
        %v3821 = vadd.f32 %v1023, %v3820
        %v3822 = vpop.f32.mrb[0].mxu0
        %v3823 = vpop.f32.mrb[0].mxu0
        %v3824 = vadd.f32 %v1028, %v3823
        %v3825 = vpop.f32.mrb[0].mxu0
        %3826 = vdwg.mxu0
        %vm3827 = vcmp.ge.f32.partialorder %v3813, 0.0
        %vm3828 = vcmp.ge.f32.partialorder %v3816, 0.0
        %vm3829 = vcmp.ge.f32.partialorder %v3821, 0.0
        %vm3830 = vcmp.ge.f32.partialorder %v3824, 0.0
        %v3831 = vmul.f32 %v3813, 0.2
        %v3832 = vmul.f32 %v3816, 0.2
        %v3833 = vmul.f32 %v3821, 0.2
        %v3834 = vmul.f32 %v3824, 0.2
        %v3835 = vsel %vm3827, %v3813, %v3831
        %v3836 = vsel %vm3828, %v3816, %v3832
        %v3837 = vsel %vm3829, %v3821, %v3833
        %v3838 = vsel %vm3830, %v3824, %v3834
        %v3839 = vadd.f32 %v3724, %v3835
        %v3840 = vadd.f32 %v3725, %v3836
        %v3841 = vadd.f32 %v3726, %v3837
        %v3842 = vadd.f32 %v3727, %v3838
        %v3843 = vpack.c.bf16 %v3840, %v3839
        %v3844 = vpack.c.bf16 %v3842, %v3841
        %3845 = vmatprep.subr.bf16.mxu0 0
        %3846 = vmatpush1.bf16.msra.mxu0 %v3843
        %3847 = vmatprep.subr.bf16.mxu0 0
        %3848 = vmatpush1.bf16.msra.mxu0 %v3844
        %3849 = vmatprep.subr.bf16.mxu0 0
        %3850 = vmatpush1.bf16.msra.mxu0 0
        %3851 = vmatprep.subr.bf16.mxu0 0
        %3852 = vmatpush1.bf16.msra.mxu0 0
        %3853 = vmatprep.subr.bf16.mxu0 0
        %3854 = vmatpush1.bf16.msra.mxu0 0
        %3855 = vmatprep.subr.bf16.mxu0 0
        %3856 = vmatpush1.bf16.msra.mxu0 0
        %3857 = vmatprep.subr.bf16.mxu0 0
        %3858 = vmatpush1.bf16.msra.mxu0 0
        %3859 = vmatprep.subr.bf16.mxu0 0
        %3860 = vmatpush1.bf16.msra.mxu0 0
        %3861 = vmatprep.subr.bf16.mxu0 0
        %3862 = vmatpush1.bf16.msra.mxu0 0
        %3863 = vmatprep.subr.bf16.mxu0 0
        %3864 = vmatpush1.bf16.msra.mxu0 0
        %3865 = vmatprep.subr.bf16.mxu0 0
        %3866 = vmatpush1.bf16.msra.mxu0 0
        %3867 = vmatprep.subr.bf16.mxu0 0
        %3868 = vmatpush1.bf16.msra.mxu0 0
        %3869 = vmatprep.subr.bf16.mxu0 0
        %3870 = vmatpush1.bf16.msra.mxu0 0
        %3871 = vmatprep.subr.bf16.mxu0 0
        %3872 = vmatpush1.bf16.msra.mxu0 0
        %3873 = vmatprep.subr.bf16.mxu0 0
        %3874 = vmatpush1.bf16.msra.mxu0 0
        %3875 = vmatprep.subr.bf16.mxu0 0
        %3876 = vmatpush1.bf16.msra.mxu0 0
        %3877 = vmatprep.mubr.bf16.mxu0 0
        %3878 = vmatmul.mubr.bf16.gmra.mrb[0].mxu0 %v1119
        %v3879 = vpop.f32.mrb[0].mxu0
        %v3880 = vadd.f32 %v1116, %v3879
        %v3881 = vpop.f32.mrb[0].mxu0
        %v3882 = vpop.f32.mrb[0].mxu0
        %v3883 = vpop.f32.mrb[0].mxu0
        %3884 = vdwg.mxu0
        %v3885 = vrot.slane %v1163, 3
        %v3886 = vrot.slane %v1165, 4
        %v3887 = vor.u32 %v3885, %v3886
        %v3889 = vsel %vm537, %v3887, 0
        %3891 = vmatprep.subr.bf16.mxu0 0
        %3892 = vmatpush1.bf16.msra.mxu0 %v3889
        %3893 = vmatprep.subr.bf16.mxu0 0
        %3894 = vmatpush1.bf16.msra.mxu0 0
        %3895 = vmatprep.subr.bf16.mxu0 0
        %3896 = vmatpush1.bf16.msra.mxu0 0
        %3897 = vmatprep.subr.bf16.mxu0 0
        %3898 = vmatpush1.bf16.msra.mxu0 0
        %3899 = vmatprep.subr.bf16.mxu0 0
        %3900 = vmatpush1.bf16.msra.mxu0 0
        %3901 = vmatprep.subr.bf16.mxu0 0
        %3902 = vmatpush1.bf16.msra.mxu0 0
        %3903 = vmatprep.subr.bf16.mxu0 0
        %3904 = vmatpush1.bf16.msra.mxu0 0
        %3905 = vmatprep.subr.bf16.mxu0 0
        %3906 = vmatpush1.bf16.msra.mxu0 0
        %3907 = vmatprep.subr.bf16.mxu0 0
        %3908 = vmatpush1.bf16.msra.mxu0 0
        %3909 = vmatprep.subr.bf16.mxu0 0
        %3910 = vmatpush1.bf16.msra.mxu0 0
        %3911 = vmatprep.subr.bf16.mxu0 0
        %3912 = vmatpush1.bf16.msra.mxu0 0
        %3913 = vmatprep.subr.bf16.mxu0 0
        %3914 = vmatpush1.bf16.msra.mxu0 0
        %3915 = vmatprep.subr.bf16.mxu0 0
        %3916 = vmatpush1.bf16.msra.mxu0 0
        %3917 = vmatprep.subr.bf16.mxu0 0
        %3918 = vmatpush1.bf16.msra.mxu0 0
        %3919 = vmatprep.subr.bf16.mxu0 0
        %3920 = vmatpush1.bf16.msra.mxu0 0
        %3921 = vmatprep.subr.bf16.mxu0 0
        %3922 = vmatpush1.bf16.msra.mxu0 0
        %3923 = vmatprep.mubr.bf16.mxu0 0
        %3924 = vmatmul.mubr.bf16.gmra.mrb[0].mxu0 %v532
        %v3925 = vpop.f32.mrb[0].mxu0
        %v3926 = vadd.f32 %v503, %v3925
        %v3927 = vpop.f32.mrb[0].mxu0
        %v3928 = vpop.f32.mrb[0].mxu0
        %v3929 = vadd.f32 %v508, %v3928
        %v3930 = vpop.f32.mrb[0].mxu0
        %3931 = vmatprep.mubr.bf16.mxu0 0
        %3932 = vmatmul.mubr.bf16.gmra.mrb[0].mxu0 %v535
        %v3933 = vpop.f32.mrb[0].mxu0
        %v3934 = vadd.f32 %v513, %v3933
        %v3935 = vpop.f32.mrb[0].mxu0
        %v3936 = vpop.f32.mrb[0].mxu0
        %v3937 = vadd.f32 %v518, %v3936
        %v3938 = vpop.f32.mrb[0].mxu0
        %3939 = vdwg.mxu0
        %vm3940 = vcmp.ge.f32.partialorder %v3926, 0.0
        %vm3941 = vcmp.ge.f32.partialorder %v3929, 0.0
        %vm3942 = vcmp.ge.f32.partialorder %v3934, 0.0
        %vm3943 = vcmp.ge.f32.partialorder %v3937, 0.0
        %v3944 = vmul.f32 %v3926, 0.1
        %v3945 = vmul.f32 %v3929, 0.1
        %v3946 = vmul.f32 %v3934, 0.1
        %v3947 = vmul.f32 %v3937, 0.1
        %v3948 = vsel %vm3940, %v3926, %v3944
        %v3949 = vsel %vm3941, %v3929, %v3945
        %v3950 = vsel %vm3942, %v3934, %v3946
        %v3951 = vsel %vm3943, %v3937, %v3947
        %v3952 = vpack.c.bf16 %v3949, %v3948
        %v3953 = vpack.c.bf16 %v3951, %v3950
        %3954 = vmatprep.subr.bf16.mxu0 0
        %3955 = vmatpush1.bf16.msra.mxu0 %v3952
        %3956 = vmatprep.subr.bf16.mxu0 0
        %3957 = vmatpush1.bf16.msra.mxu0 %v3953
        %3958 = vmatprep.subr.bf16.mxu0 0
        %3959 = vmatpush1.bf16.msra.mxu0 0
        %3960 = vmatprep.subr.bf16.mxu0 0
        %3961 = vmatpush1.bf16.msra.mxu0 0
        %3962 = vmatprep.subr.bf16.mxu0 0
        %3963 = vmatpush1.bf16.msra.mxu0 0
        %3964 = vmatprep.subr.bf16.mxu0 0
        %3965 = vmatpush1.bf16.msra.mxu0 0
        %3966 = vmatprep.subr.bf16.mxu0 0
        %3967 = vmatpush1.bf16.msra.mxu0 0
        %3968 = vmatprep.subr.bf16.mxu0 0
        %3969 = vmatpush1.bf16.msra.mxu0 0
        %3970 = vmatprep.subr.bf16.mxu0 0
        %3971 = vmatpush1.bf16.msra.mxu0 0
        %3972 = vmatprep.subr.bf16.mxu0 0
        %3973 = vmatpush1.bf16.msra.mxu0 0
        %3974 = vmatprep.subr.bf16.mxu0 0
        %3975 = vmatpush1.bf16.msra.mxu0 0
        %3976 = vmatprep.subr.bf16.mxu0 0
        %3977 = vmatpush1.bf16.msra.mxu0 0
        %3978 = vmatprep.subr.bf16.mxu0 0
        %3979 = vmatpush1.bf16.msra.mxu0 0
        %3980 = vmatprep.subr.bf16.mxu0 0
        %3981 = vmatpush1.bf16.msra.mxu0 0
        %3982 = vmatprep.subr.bf16.mxu0 0
        %3983 = vmatpush1.bf16.msra.mxu0 0
        %3984 = vmatprep.subr.bf16.mxu0 0
        %3985 = vmatpush1.bf16.msra.mxu0 0
        %3986 = vmatprep.mubr.bf16.mxu0 0
        %3987 = vmatmul.mubr.bf16.gmra.mrb[0].mxu0 %v621
        %v3988 = vpop.f32.mrb[0].mxu0
        %v3989 = vadd.f32 %v607, %v3988
        %v3990 = vpop.f32.mrb[0].mxu0
        %v3991 = vpop.f32.mrb[0].mxu0
        %v3992 = vadd.f32 %v612, %v3991
        %v3993 = vpop.f32.mrb[0].mxu0
        %3994 = vdwg.mxu0
        %vm3995 = vcmp.ge.f32.partialorder %v3989, 0.0
        %vm3996 = vcmp.ge.f32.partialorder %v3992, 0.0
        %v3997 = vmul.f32 %v3989, 0.2
        %v3998 = vmul.f32 %v3992, 0.2
        %v3999 = vsel %vm3995, %v3989, %v3997
        %v4000 = vsel %vm3996, %v3992, %v3998
        %v4001 = vpack.c.bf16 %v4000, %v3999
        %4002 = vmatprep.subr.bf16.mxu0 0
        %4003 = vmatpush1.bf16.msra.mxu0 %v4001
        %4004 = vmatprep.subr.bf16.mxu0 0
        %4005 = vmatpush1.bf16.msra.mxu0 0
        %4006 = vmatprep.subr.bf16.mxu0 0
        %4007 = vmatpush1.bf16.msra.mxu0 0
        %4008 = vmatprep.subr.bf16.mxu0 0
        %4009 = vmatpush1.bf16.msra.mxu0 0
        %4010 = vmatprep.subr.bf16.mxu0 0
        %4011 = vmatpush1.bf16.msra.mxu0 0
        %4012 = vmatprep.subr.bf16.mxu0 0
        %4013 = vmatpush1.bf16.msra.mxu0 0
        %4014 = vmatprep.subr.bf16.mxu0 0
        %4015 = vmatpush1.bf16.msra.mxu0 0
        %4016 = vmatprep.subr.bf16.mxu0 0
        %4017 = vmatpush1.bf16.msra.mxu0 0
        %4018 = vmatprep.subr.bf16.mxu0 0
        %4019 = vmatpush1.bf16.msra.mxu0 0
        %4020 = vmatprep.subr.bf16.mxu0 0
        %4021 = vmatpush1.bf16.msra.mxu0 0
        %4022 = vmatprep.subr.bf16.mxu0 0
        %4023 = vmatpush1.bf16.msra.mxu0 0
        %4024 = vmatprep.subr.bf16.mxu0 0
        %4025 = vmatpush1.bf16.msra.mxu0 0
        %4026 = vmatprep.subr.bf16.mxu0 0
        %4027 = vmatpush1.bf16.msra.mxu0 0
        %4028 = vmatprep.subr.bf16.mxu0 0
        %4029 = vmatpush1.bf16.msra.mxu0 0
        %4030 = vmatprep.subr.bf16.mxu0 0
        %4031 = vmatpush1.bf16.msra.mxu0 0
        %4032 = vmatprep.subr.bf16.mxu0 0
        %4033 = vmatpush1.bf16.msra.mxu0 0
        %4034 = vmatprep.mubr.bf16.mxu0 0
        %4035 = vmatmul.mubr.bf16.gmra.mrb[0].mxu0 %v703
        %v4036 = vpop.f32.mrb[0].mxu0
        %v4037 = vadd.f32 %v674, %v4036
        %v4038 = vpop.f32.mrb[0].mxu0
        %v4039 = vpop.f32.mrb[0].mxu0
        %v4040 = vadd.f32 %v679, %v4039
        %v4041 = vpop.f32.mrb[0].mxu0
        %4042 = vmatprep.mubr.bf16.mxu0 0
        %4043 = vmatmul.mubr.bf16.gmra.mrb[0].mxu0 %v706
        %v4044 = vpop.f32.mrb[0].mxu0
        %v4045 = vadd.f32 %v684, %v4044
        %v4046 = vpop.f32.mrb[0].mxu0
        %v4047 = vpop.f32.mrb[0].mxu0
        %v4048 = vadd.f32 %v689, %v4047
        %v4049 = vpop.f32.mrb[0].mxu0
        %4050 = vdwg.mxu0
        %vm4051 = vcmp.ge.f32.partialorder %v4037, 0.0
        %vm4052 = vcmp.ge.f32.partialorder %v4040, 0.0
        %vm4053 = vcmp.ge.f32.partialorder %v4045, 0.0
        %vm4054 = vcmp.ge.f32.partialorder %v4048, 0.0
        %v4055 = vmul.f32 %v4037, 0.2
        %v4056 = vmul.f32 %v4040, 0.2
        %v4057 = vmul.f32 %v4045, 0.2
        %v4058 = vmul.f32 %v4048, 0.2
        %v4059 = vsel %vm4051, %v4037, %v4055
        %v4060 = vsel %vm4052, %v4040, %v4056
        %v4061 = vsel %vm4053, %v4045, %v4057
        %v4062 = vsel %vm4054, %v4048, %v4058
        %v4063 = vadd.f32 %v3948, %v4059
        %v4064 = vadd.f32 %v3949, %v4060
        %v4065 = vadd.f32 %v3950, %v4061
        %v4066 = vadd.f32 %v3951, %v4062
        %v4067 = vpack.c.bf16 %v4064, %v4063
        %v4068 = vpack.c.bf16 %v4066, %v4065
        %4069 = vmatprep.subr.bf16.mxu0 0
        %4070 = vmatpush1.bf16.msra.mxu0 %v4067
        %4071 = vmatprep.subr.bf16.mxu0 0
        %4072 = vmatpush1.bf16.msra.mxu0 %v4068
        %4073 = vmatprep.subr.bf16.mxu0 0
        %4074 = vmatpush1.bf16.msra.mxu0 0
        %4075 = vmatprep.subr.bf16.mxu0 0
        %4076 = vmatpush1.bf16.msra.mxu0 0
        %4077 = vmatprep.subr.bf16.mxu0 0
        %4078 = vmatpush1.bf16.msra.mxu0 0
        %4079 = vmatprep.subr.bf16.mxu0 0
        %4080 = vmatpush1.bf16.msra.mxu0 0
        %4081 = vmatprep.subr.bf16.mxu0 0
        %4082 = vmatpush1.bf16.msra.mxu0 0
        %4083 = vmatprep.subr.bf16.mxu0 0
        %4084 = vmatpush1.bf16.msra.mxu0 0
        %4085 = vmatprep.subr.bf16.mxu0 0
        %4086 = vmatpush1.bf16.msra.mxu0 0
        %4087 = vmatprep.subr.bf16.mxu0 0
        %4088 = vmatpush1.bf16.msra.mxu0 0
        %4089 = vmatprep.subr.bf16.mxu0 0
        %4090 = vmatpush1.bf16.msra.mxu0 0
        %4091 = vmatprep.subr.bf16.mxu0 0
        %4092 = vmatpush1.bf16.msra.mxu0 0
        %4093 = vmatprep.subr.bf16.mxu0 0
        %4094 = vmatpush1.bf16.msra.mxu0 0
        %4095 = vmatprep.subr.bf16.mxu0 0
        %4096 = vmatpush1.bf16.msra.mxu0 0
        %4097 = vmatprep.subr.bf16.mxu0 0
        %4098 = vmatpush1.bf16.msra.mxu0 0
        %4099 = vmatprep.subr.bf16.mxu0 0
        %4100 = vmatpush1.bf16.msra.mxu0 0
        %4101 = vmatprep.mubr.bf16.mxu0 0
        %4102 = vmatmul.mubr.bf16.gmra.mrb[0].mxu0 %v791
        %v4103 = vpop.f32.mrb[0].mxu0
        %v4104 = vadd.f32 %v778, %v4103
        %v4105 = vpop.f32.mrb[0].mxu0
        %v4106 = vpop.f32.mrb[0].mxu0
        %v4107 = vadd.f32 %v783, %v4106
        %v4108 = vpop.f32.mrb[0].mxu0
        %4109 = vdwg.mxu0
        %vm4110 = vcmp.ge.f32.partialorder %v4104, 0.0
        %vm4111 = vcmp.ge.f32.partialorder %v4107, 0.0
        %v4112 = vmul.f32 %v4104, 0.2
        %v4113 = vmul.f32 %v4107, 0.2
        %v4114 = vsel %vm4110, %v4104, %v4112
        %v4115 = vsel %vm4111, %v4107, %v4113
        %v4116 = vpack.c.bf16 %v4115, %v4114
        %4117 = vmatprep.subr.bf16.mxu0 0
        %4118 = vmatpush1.bf16.msra.mxu0 %v4116
        %4119 = vmatprep.subr.bf16.mxu0 0
        %4120 = vmatpush1.bf16.msra.mxu0 0
        %4121 = vmatprep.subr.bf16.mxu0 0
        %4122 = vmatpush1.bf16.msra.mxu0 0
        %4123 = vmatprep.subr.bf16.mxu0 0
        %4124 = vmatpush1.bf16.msra.mxu0 0
        %4125 = vmatprep.subr.bf16.mxu0 0
        %4126 = vmatpush1.bf16.msra.mxu0 0
        %4127 = vmatprep.subr.bf16.mxu0 0
        %4128 = vmatpush1.bf16.msra.mxu0 0
        %4129 = vmatprep.subr.bf16.mxu0 0
        %4130 = vmatpush1.bf16.msra.mxu0 0
        %4131 = vmatprep.subr.bf16.mxu0 0
        %4132 = vmatpush1.bf16.msra.mxu0 0
        %4133 = vmatprep.subr.bf16.mxu0 0
        %4134 = vmatpush1.bf16.msra.mxu0 0
        %4135 = vmatprep.subr.bf16.mxu0 0
        %4136 = vmatpush1.bf16.msra.mxu0 0
        %4137 = vmatprep.subr.bf16.mxu0 0
        %4138 = vmatpush1.bf16.msra.mxu0 0
        %4139 = vmatprep.subr.bf16.mxu0 0
        %4140 = vmatpush1.bf16.msra.mxu0 0
        %4141 = vmatprep.subr.bf16.mxu0 0
        %4142 = vmatpush1.bf16.msra.mxu0 0
        %4143 = vmatprep.subr.bf16.mxu0 0
        %4144 = vmatpush1.bf16.msra.mxu0 0
        %4145 = vmatprep.subr.bf16.mxu0 0
        %4146 = vmatpush1.bf16.msra.mxu0 0
        %4147 = vmatprep.subr.bf16.mxu0 0
        %4148 = vmatpush1.bf16.msra.mxu0 0
        %4149 = vmatprep.mubr.bf16.mxu0 0
        %4150 = vmatmul.mubr.bf16.gmra.mrb[0].mxu0 %v872
        %v4151 = vpop.f32.mrb[0].mxu0
        %v4152 = vadd.f32 %v844, %v4151
        %v4153 = vpop.f32.mrb[0].mxu0
        %v4154 = vpop.f32.mrb[0].mxu0
        %v4155 = vadd.f32 %v849, %v4154
        %v4156 = vpop.f32.mrb[0].mxu0
        %4157 = vmatprep.mubr.bf16.mxu0 0
        %4158 = vmatmul.mubr.bf16.gmra.mrb[0].mxu0 %v875
        %v4159 = vpop.f32.mrb[0].mxu0
        %v4160 = vadd.f32 %v854, %v4159
        %v4161 = vpop.f32.mrb[0].mxu0
        %v4162 = vpop.f32.mrb[0].mxu0
        %v4163 = vadd.f32 %v859, %v4162
        %v4164 = vpop.f32.mrb[0].mxu0
        %4165 = vdwg.mxu0
        %vm4166 = vcmp.ge.f32.partialorder %v4152, 0.0
        %vm4167 = vcmp.ge.f32.partialorder %v4155, 0.0
        %vm4168 = vcmp.ge.f32.partialorder %v4160, 0.0
        %vm4169 = vcmp.ge.f32.partialorder %v4163, 0.0
        %v4170 = vmul.f32 %v4152, 0.2
        %v4171 = vmul.f32 %v4155, 0.2
        %v4172 = vmul.f32 %v4160, 0.2
        %v4173 = vmul.f32 %v4163, 0.2
        %v4174 = vsel %vm4166, %v4152, %v4170
        %v4175 = vsel %vm4167, %v4155, %v4171
        %v4176 = vsel %vm4168, %v4160, %v4172
        %v4177 = vsel %vm4169, %v4163, %v4173
        %v4178 = vadd.f32 %v4063, %v4174
        %v4179 = vadd.f32 %v4064, %v4175
        %v4180 = vadd.f32 %v4065, %v4176
        %v4181 = vadd.f32 %v4066, %v4177
        %v4182 = vpack.c.bf16 %v4179, %v4178
        %v4183 = vpack.c.bf16 %v4181, %v4180
        %4184 = vmatprep.subr.bf16.mxu0 0
        %4185 = vmatpush1.bf16.msra.mxu0 %v4182
        %4186 = vmatprep.subr.bf16.mxu0 0
        %4187 = vmatpush1.bf16.msra.mxu0 %v4183
        %4188 = vmatprep.subr.bf16.mxu0 0
        %4189 = vmatpush1.bf16.msra.mxu0 0
        %4190 = vmatprep.subr.bf16.mxu0 0
        %4191 = vmatpush1.bf16.msra.mxu0 0
        %4192 = vmatprep.subr.bf16.mxu0 0
        %4193 = vmatpush1.bf16.msra.mxu0 0
        %4194 = vmatprep.subr.bf16.mxu0 0
        %4195 = vmatpush1.bf16.msra.mxu0 0
        %4196 = vmatprep.subr.bf16.mxu0 0
        %4197 = vmatpush1.bf16.msra.mxu0 0
        %4198 = vmatprep.subr.bf16.mxu0 0
        %4199 = vmatpush1.bf16.msra.mxu0 0
        %4200 = vmatprep.subr.bf16.mxu0 0
        %4201 = vmatpush1.bf16.msra.mxu0 0
        %4202 = vmatprep.subr.bf16.mxu0 0
        %4203 = vmatpush1.bf16.msra.mxu0 0
        %4204 = vmatprep.subr.bf16.mxu0 0
        %4205 = vmatpush1.bf16.msra.mxu0 0
        %4206 = vmatprep.subr.bf16.mxu0 0
        %4207 = vmatpush1.bf16.msra.mxu0 0
        %4208 = vmatprep.subr.bf16.mxu0 0
        %4209 = vmatpush1.bf16.msra.mxu0 0
        %4210 = vmatprep.subr.bf16.mxu0 0
        %4211 = vmatpush1.bf16.msra.mxu0 0
        %4212 = vmatprep.subr.bf16.mxu0 0
        %4213 = vmatpush1.bf16.msra.mxu0 0
        %4214 = vmatprep.subr.bf16.mxu0 0
        %4215 = vmatpush1.bf16.msra.mxu0 0
        %4216 = vmatprep.mubr.bf16.mxu0 0
        %4217 = vmatmul.mubr.bf16.gmra.mrb[0].mxu0 %v960
        %v4218 = vpop.f32.mrb[0].mxu0
        %v4219 = vadd.f32 %v947, %v4218
        %v4220 = vpop.f32.mrb[0].mxu0
        %v4221 = vpop.f32.mrb[0].mxu0
        %v4222 = vadd.f32 %v952, %v4221
        %v4223 = vpop.f32.mrb[0].mxu0
        %4224 = vdwg.mxu0
        %vm4225 = vcmp.ge.f32.partialorder %v4219, 0.0
        %vm4226 = vcmp.ge.f32.partialorder %v4222, 0.0
        %v4227 = vmul.f32 %v4219, 0.2
        %v4228 = vmul.f32 %v4222, 0.2
        %v4229 = vsel %vm4225, %v4219, %v4227
        %v4230 = vsel %vm4226, %v4222, %v4228
        %v4231 = vpack.c.bf16 %v4230, %v4229
        %4232 = vmatprep.subr.bf16.mxu0 0
        %4233 = vmatpush1.bf16.msra.mxu0 %v4231
        %4234 = vmatprep.subr.bf16.mxu0 0
        %4235 = vmatpush1.bf16.msra.mxu0 0
        %4236 = vmatprep.subr.bf16.mxu0 0
        %4237 = vmatpush1.bf16.msra.mxu0 0
        %4238 = vmatprep.subr.bf16.mxu0 0
        %4239 = vmatpush1.bf16.msra.mxu0 0
        %4240 = vmatprep.subr.bf16.mxu0 0
        %4241 = vmatpush1.bf16.msra.mxu0 0
        %4242 = vmatprep.subr.bf16.mxu0 0
        %4243 = vmatpush1.bf16.msra.mxu0 0
        %4244 = vmatprep.subr.bf16.mxu0 0
        %4245 = vmatpush1.bf16.msra.mxu0 0
        %4246 = vmatprep.subr.bf16.mxu0 0
        %4247 = vmatpush1.bf16.msra.mxu0 0
        %4248 = vmatprep.subr.bf16.mxu0 0
        %4249 = vmatpush1.bf16.msra.mxu0 0
        %4250 = vmatprep.subr.bf16.mxu0 0
        %4251 = vmatpush1.bf16.msra.mxu0 0
        %4252 = vmatprep.subr.bf16.mxu0 0
        %4253 = vmatpush1.bf16.msra.mxu0 0
        %4254 = vmatprep.subr.bf16.mxu0 0
        %4255 = vmatpush1.bf16.msra.mxu0 0
        %4256 = vmatprep.subr.bf16.mxu0 0
        %4257 = vmatpush1.bf16.msra.mxu0 0
        %4258 = vmatprep.subr.bf16.mxu0 0
        %4259 = vmatpush1.bf16.msra.mxu0 0
        %4260 = vmatprep.subr.bf16.mxu0 0
        %4261 = vmatpush1.bf16.msra.mxu0 0
        %4262 = vmatprep.subr.bf16.mxu0 0
        %4263 = vmatpush1.bf16.msra.mxu0 0
        %4264 = vmatprep.mubr.bf16.mxu0 0
        %4265 = vmatmul.mubr.bf16.gmra.mrb[0].mxu0 %v1041
        %v4266 = vpop.f32.mrb[0].mxu0
        %v4267 = vadd.f32 %v1013, %v4266
        %v4268 = vpop.f32.mrb[0].mxu0
        %v4269 = vpop.f32.mrb[0].mxu0
        %v4270 = vadd.f32 %v1018, %v4269
        %v4271 = vpop.f32.mrb[0].mxu0
        %4272 = vmatprep.mubr.bf16.mxu0 0
        %4273 = vmatmul.mubr.bf16.gmra.mrb[0].mxu0 %v1044
        %v4274 = vpop.f32.mrb[0].mxu0
        %v4275 = vadd.f32 %v1023, %v4274
        %v4276 = vpop.f32.mrb[0].mxu0
        %v4277 = vpop.f32.mrb[0].mxu0
        %v4278 = vadd.f32 %v1028, %v4277
        %v4279 = vpop.f32.mrb[0].mxu0
        %4280 = vdwg.mxu0
        %vm4281 = vcmp.ge.f32.partialorder %v4267, 0.0
        %vm4282 = vcmp.ge.f32.partialorder %v4270, 0.0
        %vm4283 = vcmp.ge.f32.partialorder %v4275, 0.0
        %vm4284 = vcmp.ge.f32.partialorder %v4278, 0.0
        %v4285 = vmul.f32 %v4267, 0.2
        %v4286 = vmul.f32 %v4270, 0.2
        %v4287 = vmul.f32 %v4275, 0.2
        %v4288 = vmul.f32 %v4278, 0.2
        %v4289 = vsel %vm4281, %v4267, %v4285
        %v4290 = vsel %vm4282, %v4270, %v4286
        %v4291 = vsel %vm4283, %v4275, %v4287
        %v4292 = vsel %vm4284, %v4278, %v4288
        %v4293 = vadd.f32 %v4178, %v4289
        %v4294 = vadd.f32 %v4179, %v4290
        %v4295 = vadd.f32 %v4180, %v4291
        %v4296 = vadd.f32 %v4181, %v4292
        %v4297 = vpack.c.bf16 %v4294, %v4293
        %v4298 = vpack.c.bf16 %v4296, %v4295
        %4299 = vmatprep.subr.bf16.mxu0 0
        %4300 = vmatpush1.bf16.msra.mxu0 %v4297
        %4301 = vmatprep.subr.bf16.mxu0 0
        %4302 = vmatpush1.bf16.msra.mxu0 %v4298
        %4303 = vmatprep.subr.bf16.mxu0 0
        %4304 = vmatpush1.bf16.msra.mxu0 0
        %4305 = vmatprep.subr.bf16.mxu0 0
        %4306 = vmatpush1.bf16.msra.mxu0 0
        %4307 = vmatprep.subr.bf16.mxu0 0
        %4308 = vmatpush1.bf16.msra.mxu0 0
        %4309 = vmatprep.subr.bf16.mxu0 0
        %4310 = vmatpush1.bf16.msra.mxu0 0
        %4311 = vmatprep.subr.bf16.mxu0 0
        %4312 = vmatpush1.bf16.msra.mxu0 0
        %4313 = vmatprep.subr.bf16.mxu0 0
        %4314 = vmatpush1.bf16.msra.mxu0 0
        %4315 = vmatprep.subr.bf16.mxu0 0
        %4316 = vmatpush1.bf16.msra.mxu0 0
        %4317 = vmatprep.subr.bf16.mxu0 0
        %4318 = vmatpush1.bf16.msra.mxu0 0
        %4319 = vmatprep.subr.bf16.mxu0 0
        %4320 = vmatpush1.bf16.msra.mxu0 0
        %4321 = vmatprep.subr.bf16.mxu0 0
        %4322 = vmatpush1.bf16.msra.mxu0 0
        %4323 = vmatprep.subr.bf16.mxu0 0
        %4324 = vmatpush1.bf16.msra.mxu0 0
        %4325 = vmatprep.subr.bf16.mxu0 0
        %4326 = vmatpush1.bf16.msra.mxu0 0
        %4327 = vmatprep.subr.bf16.mxu0 0
        %4328 = vmatpush1.bf16.msra.mxu0 0
        %4329 = vmatprep.subr.bf16.mxu0 0
        %4330 = vmatpush1.bf16.msra.mxu0 0
        %4331 = vmatprep.mubr.bf16.mxu0 0
        %4332 = vmatmul.mubr.bf16.gmra.mrb[0].mxu0 %v1119
        %v4333 = vpop.f32.mrb[0].mxu0
        %v4334 = vadd.f32 %v1116, %v4333
        %v4335 = vpop.f32.mrb[0].mxu0
        %v4336 = vpop.f32.mrb[0].mxu0
        %v4337 = vpop.f32.mrb[0].mxu0
        %4338 = vdwg.mxu0
        %v4339 = vpack.c.bf16 %v452, %v452
        %v4341 = vsel %vm537, %v4339, 0
        %4343 = vmatprep.subr.bf16.mxu0 0
        %4344 = vmatpush1.bf16.msra.mxu0 %v4341
        %4345 = vmatprep.subr.bf16.mxu0 0
        %4346 = vmatpush1.bf16.msra.mxu0 0
        %4347 = vmatprep.subr.bf16.mxu0 0
        %4348 = vmatpush1.bf16.msra.mxu0 0
        %4349 = vmatprep.subr.bf16.mxu0 0
        %4350 = vmatpush1.bf16.msra.mxu0 0
        %4351 = vmatprep.subr.bf16.mxu0 0
        %4352 = vmatpush1.bf16.msra.mxu0 0
        %4353 = vmatprep.subr.bf16.mxu0 0
        %4354 = vmatpush1.bf16.msra.mxu0 0
        %4355 = vmatprep.subr.bf16.mxu0 0
        %4356 = vmatpush1.bf16.msra.mxu0 0
        %4357 = vmatprep.subr.bf16.mxu0 0
        %4358 = vmatpush1.bf16.msra.mxu0 0
        %4359 = vmatprep.subr.bf16.mxu0 0
        %4360 = vmatpush1.bf16.msra.mxu0 0
        %4361 = vmatprep.subr.bf16.mxu0 0
        %4362 = vmatpush1.bf16.msra.mxu0 0
        %4363 = vmatprep.subr.bf16.mxu0 0
        %4364 = vmatpush1.bf16.msra.mxu0 0
        %4365 = vmatprep.subr.bf16.mxu0 0
        %4366 = vmatpush1.bf16.msra.mxu0 0
        %4367 = vmatprep.subr.bf16.mxu0 0
        %4368 = vmatpush1.bf16.msra.mxu0 0
        %4369 = vmatprep.subr.bf16.mxu0 0
        %4370 = vmatpush1.bf16.msra.mxu0 0
        %4371 = vmatprep.subr.bf16.mxu0 0
        %4372 = vmatpush1.bf16.msra.mxu0 0
        %4373 = vmatprep.subr.bf16.mxu0 0
        %4374 = vmatpush1.bf16.msra.mxu0 0
        %4375 = vmatprep.mubr.bf16.mxu0 0
        %4376 = vmatmul.mubr.bf16.gmra.mrb[0].mxu0 %v532
        %v4377 = vpop.f32.mrb[0].mxu0
        %v4378 = vadd.f32 %v503, %v4377
        %v4379 = vpop.f32.mrb[0].mxu0
        %v4380 = vpop.f32.mrb[0].mxu0
        %v4381 = vadd.f32 %v508, %v4380
        %v4382 = vpop.f32.mrb[0].mxu0
        %4383 = vmatprep.mubr.bf16.mxu0 0
        %4384 = vmatmul.mubr.bf16.gmra.mrb[0].mxu0 %v535
        %v4385 = vpop.f32.mrb[0].mxu0
        %v4386 = vadd.f32 %v513, %v4385
        %v4387 = vpop.f32.mrb[0].mxu0
        %v4388 = vpop.f32.mrb[0].mxu0
        %v4389 = vadd.f32 %v518, %v4388
        %v4390 = vpop.f32.mrb[0].mxu0
        %4391 = vdwg.mxu0
        %vm4392 = vcmp.ge.f32.partialorder %v4378, 0.0
        %vm4393 = vcmp.ge.f32.partialorder %v4381, 0.0
        %vm4394 = vcmp.ge.f32.partialorder %v4386, 0.0
        %vm4395 = vcmp.ge.f32.partialorder %v4389, 0.0
        %v4396 = vmul.f32 %v4378, 0.1
        %v4397 = vmul.f32 %v4381, 0.1
        %v4398 = vmul.f32 %v4386, 0.1
        %v4399 = vmul.f32 %v4389, 0.1
        %v4400 = vsel %vm4392, %v4378, %v4396
        %v4401 = vsel %vm4393, %v4381, %v4397
        %v4402 = vsel %vm4394, %v4386, %v4398
        %v4403 = vsel %vm4395, %v4389, %v4399
        %v4404 = vpack.c.bf16 %v4401, %v4400
        %v4405 = vpack.c.bf16 %v4403, %v4402
        %4406 = vmatprep.subr.bf16.mxu0 0
        %4407 = vmatpush1.bf16.msra.mxu0 %v4404
        %4408 = vmatprep.subr.bf16.mxu0 0
        %4409 = vmatpush1.bf16.msra.mxu0 %v4405
        %4410 = vmatprep.subr.bf16.mxu0 0
        %4411 = vmatpush1.bf16.msra.mxu0 0
        %4412 = vmatprep.subr.bf16.mxu0 0
        %4413 = vmatpush1.bf16.msra.mxu0 0
        %4414 = vmatprep.subr.bf16.mxu0 0
        %4415 = vmatpush1.bf16.msra.mxu0 0
        %4416 = vmatprep.subr.bf16.mxu0 0
        %4417 = vmatpush1.bf16.msra.mxu0 0
        %4418 = vmatprep.subr.bf16.mxu0 0
        %4419 = vmatpush1.bf16.msra.mxu0 0
        %4420 = vmatprep.subr.bf16.mxu0 0
        %4421 = vmatpush1.bf16.msra.mxu0 0
        %4422 = vmatprep.subr.bf16.mxu0 0
        %4423 = vmatpush1.bf16.msra.mxu0 0
        %4424 = vmatprep.subr.bf16.mxu0 0
        %4425 = vmatpush1.bf16.msra.mxu0 0
        %4426 = vmatprep.subr.bf16.mxu0 0
        %4427 = vmatpush1.bf16.msra.mxu0 0
        %4428 = vmatprep.subr.bf16.mxu0 0
        %4429 = vmatpush1.bf16.msra.mxu0 0
        %4430 = vmatprep.subr.bf16.mxu0 0
        %4431 = vmatpush1.bf16.msra.mxu0 0
        %4432 = vmatprep.subr.bf16.mxu0 0
        %4433 = vmatpush1.bf16.msra.mxu0 0
        %4434 = vmatprep.subr.bf16.mxu0 0
        %4435 = vmatpush1.bf16.msra.mxu0 0
        %4436 = vmatprep.subr.bf16.mxu0 0
        %4437 = vmatpush1.bf16.msra.mxu0 0
        %4438 = vmatprep.mubr.bf16.mxu0 0
        %4439 = vmatmul.mubr.bf16.gmra.mrb[0].mxu0 %v621
        %v4440 = vpop.f32.mrb[0].mxu0
        %v4441 = vadd.f32 %v607, %v4440
        %v4442 = vpop.f32.mrb[0].mxu0
        %v4443 = vpop.f32.mrb[0].mxu0
        %v4444 = vadd.f32 %v612, %v4443
        %v4445 = vpop.f32.mrb[0].mxu0
        %4446 = vdwg.mxu0
        %vm4447 = vcmp.ge.f32.partialorder %v4441, 0.0
        %vm4448 = vcmp.ge.f32.partialorder %v4444, 0.0
        %v4449 = vmul.f32 %v4441, 0.2
        %v4450 = vmul.f32 %v4444, 0.2
        %v4451 = vsel %vm4447, %v4441, %v4449
        %v4452 = vsel %vm4448, %v4444, %v4450
        %v4453 = vpack.c.bf16 %v4452, %v4451
        %4454 = vmatprep.subr.bf16.mxu0 0
        %4455 = vmatpush1.bf16.msra.mxu0 %v4453
        %4456 = vmatprep.subr.bf16.mxu0 0
        %4457 = vmatpush1.bf16.msra.mxu0 0
        %4458 = vmatprep.subr.bf16.mxu0 0
        %4459 = vmatpush1.bf16.msra.mxu0 0
        %4460 = vmatprep.subr.bf16.mxu0 0
        %4461 = vmatpush1.bf16.msra.mxu0 0
        %4462 = vmatprep.subr.bf16.mxu0 0
        %4463 = vmatpush1.bf16.msra.mxu0 0
        %4464 = vmatprep.subr.bf16.mxu0 0
        %4465 = vmatpush1.bf16.msra.mxu0 0
        %4466 = vmatprep.subr.bf16.mxu0 0
        %4467 = vmatpush1.bf16.msra.mxu0 0
        %4468 = vmatprep.subr.bf16.mxu0 0
        %4469 = vmatpush1.bf16.msra.mxu0 0
        %4470 = vmatprep.subr.bf16.mxu0 0
        %4471 = vmatpush1.bf16.msra.mxu0 0
        %4472 = vmatprep.subr.bf16.mxu0 0
        %4473 = vmatpush1.bf16.msra.mxu0 0
        %4474 = vmatprep.subr.bf16.mxu0 0
        %4475 = vmatpush1.bf16.msra.mxu0 0
        %4476 = vmatprep.subr.bf16.mxu0 0
        %4477 = vmatpush1.bf16.msra.mxu0 0
        %4478 = vmatprep.subr.bf16.mxu0 0
        %4479 = vmatpush1.bf16.msra.mxu0 0
        %4480 = vmatprep.subr.bf16.mxu0 0
        %4481 = vmatpush1.bf16.msra.mxu0 0
        %4482 = vmatprep.subr.bf16.mxu0 0
        %4483 = vmatpush1.bf16.msra.mxu0 0
        %4484 = vmatprep.subr.bf16.mxu0 0
        %4485 = vmatpush1.bf16.msra.mxu0 0
        %4486 = vmatprep.mubr.bf16.mxu0 0
        %4487 = vmatmul.mubr.bf16.gmra.mrb[0].mxu0 %v703
        %v4488 = vpop.f32.mrb[0].mxu0
        %v4489 = vadd.f32 %v674, %v4488
        %v4490 = vpop.f32.mrb[0].mxu0
        %v4491 = vpop.f32.mrb[0].mxu0
        %v4492 = vadd.f32 %v679, %v4491
        %v4493 = vpop.f32.mrb[0].mxu0
        %4494 = vmatprep.mubr.bf16.mxu0 0
        %4495 = vmatmul.mubr.bf16.gmra.mrb[0].mxu0 %v706
        %v4496 = vpop.f32.mrb[0].mxu0
        %v4497 = vadd.f32 %v684, %v4496
        %v4498 = vpop.f32.mrb[0].mxu0
        %v4499 = vpop.f32.mrb[0].mxu0
        %v4500 = vadd.f32 %v689, %v4499
        %v4501 = vpop.f32.mrb[0].mxu0
        %4502 = vdwg.mxu0
        %vm4503 = vcmp.ge.f32.partialorder %v4489, 0.0
        %vm4504 = vcmp.ge.f32.partialorder %v4492, 0.0
        %vm4505 = vcmp.ge.f32.partialorder %v4497, 0.0
        %vm4506 = vcmp.ge.f32.partialorder %v4500, 0.0
        %v4507 = vmul.f32 %v4489, 0.2
        %v4508 = vmul.f32 %v4492, 0.2
        %v4509 = vmul.f32 %v4497, 0.2
        %v4510 = vmul.f32 %v4500, 0.2
        %v4511 = vsel %vm4503, %v4489, %v4507
        %v4512 = vsel %vm4504, %v4492, %v4508
        %v4513 = vsel %vm4505, %v4497, %v4509
        %v4514 = vsel %vm4506, %v4500, %v4510
        %v4515 = vadd.f32 %v4400, %v4511
        %v4516 = vadd.f32 %v4401, %v4512
        %v4517 = vadd.f32 %v4402, %v4513
        %v4518 = vadd.f32 %v4403, %v4514
        %v4519 = vpack.c.bf16 %v4516, %v4515
        %v4520 = vpack.c.bf16 %v4518, %v4517
        %4521 = vmatprep.subr.bf16.mxu0 0
        %4522 = vmatpush1.bf16.msra.mxu0 %v4519
        %4523 = vmatprep.subr.bf16.mxu0 0
        %4524 = vmatpush1.bf16.msra.mxu0 %v4520
        %4525 = vmatprep.subr.bf16.mxu0 0
        %4526 = vmatpush1.bf16.msra.mxu0 0
        %4527 = vmatprep.subr.bf16.mxu0 0
        %4528 = vmatpush1.bf16.msra.mxu0 0
        %4529 = vmatprep.subr.bf16.mxu0 0
        %4530 = vmatpush1.bf16.msra.mxu0 0
        %4531 = vmatprep.subr.bf16.mxu0 0
        %4532 = vmatpush1.bf16.msra.mxu0 0
        %4533 = vmatprep.subr.bf16.mxu0 0
        %4534 = vmatpush1.bf16.msra.mxu0 0
        %4535 = vmatprep.subr.bf16.mxu0 0
        %4536 = vmatpush1.bf16.msra.mxu0 0
        %4537 = vmatprep.subr.bf16.mxu0 0
        %4538 = vmatpush1.bf16.msra.mxu0 0
        %4539 = vmatprep.subr.bf16.mxu0 0
        %4540 = vmatpush1.bf16.msra.mxu0 0
        %4541 = vmatprep.subr.bf16.mxu0 0
        %4542 = vmatpush1.bf16.msra.mxu0 0
        %4543 = vmatprep.subr.bf16.mxu0 0
        %4544 = vmatpush1.bf16.msra.mxu0 0
        %4545 = vmatprep.subr.bf16.mxu0 0
        %4546 = vmatpush1.bf16.msra.mxu0 0
        %4547 = vmatprep.subr.bf16.mxu0 0
        %4548 = vmatpush1.bf16.msra.mxu0 0
        %4549 = vmatprep.subr.bf16.mxu0 0
        %4550 = vmatpush1.bf16.msra.mxu0 0
        %4551 = vmatprep.subr.bf16.mxu0 0
        %4552 = vmatpush1.bf16.msra.mxu0 0
        %4553 = vmatprep.mubr.bf16.mxu0 0
        %4554 = vmatmul.mubr.bf16.gmra.mrb[0].mxu0 %v791
        %v4555 = vpop.f32.mrb[0].mxu0
        %v4556 = vadd.f32 %v778, %v4555
        %v4557 = vpop.f32.mrb[0].mxu0
        %v4558 = vpop.f32.mrb[0].mxu0
        %v4559 = vadd.f32 %v783, %v4558
        %v4560 = vpop.f32.mrb[0].mxu0
        %4561 = vdwg.mxu0
        %vm4562 = vcmp.ge.f32.partialorder %v4556, 0.0
        %vm4563 = vcmp.ge.f32.partialorder %v4559, 0.0
        %v4564 = vmul.f32 %v4556, 0.2
        %v4565 = vmul.f32 %v4559, 0.2
        %v4566 = vsel %vm4562, %v4556, %v4564
        %v4567 = vsel %vm4563, %v4559, %v4565
        %v4568 = vpack.c.bf16 %v4567, %v4566
        %4569 = vmatprep.subr.bf16.mxu0 0
        %4570 = vmatpush1.bf16.msra.mxu0 %v4568
        %4571 = vmatprep.subr.bf16.mxu0 0
        %4572 = vmatpush1.bf16.msra.mxu0 0
        %4573 = vmatprep.subr.bf16.mxu0 0
        %4574 = vmatpush1.bf16.msra.mxu0 0
        %4575 = vmatprep.subr.bf16.mxu0 0
        %4576 = vmatpush1.bf16.msra.mxu0 0
        %4577 = vmatprep.subr.bf16.mxu0 0
        %4578 = vmatpush1.bf16.msra.mxu0 0
        %4579 = vmatprep.subr.bf16.mxu0 0
        %4580 = vmatpush1.bf16.msra.mxu0 0
        %4581 = vmatprep.subr.bf16.mxu0 0
        %4582 = vmatpush1.bf16.msra.mxu0 0
        %4583 = vmatprep.subr.bf16.mxu0 0
        %4584 = vmatpush1.bf16.msra.mxu0 0
        %4585 = vmatprep.subr.bf16.mxu0 0
        %4586 = vmatpush1.bf16.msra.mxu0 0
        %4587 = vmatprep.subr.bf16.mxu0 0
        %4588 = vmatpush1.bf16.msra.mxu0 0
        %4589 = vmatprep.subr.bf16.mxu0 0
        %4590 = vmatpush1.bf16.msra.mxu0 0
        %4591 = vmatprep.subr.bf16.mxu0 0
        %4592 = vmatpush1.bf16.msra.mxu0 0
        %4593 = vmatprep.subr.bf16.mxu0 0
        %4594 = vmatpush1.bf16.msra.mxu0 0
        %4595 = vmatprep.subr.bf16.mxu0 0
        %4596 = vmatpush1.bf16.msra.mxu0 0
        %4597 = vmatprep.subr.bf16.mxu0 0
        %4598 = vmatpush1.bf16.msra.mxu0 0
        %4599 = vmatprep.subr.bf16.mxu0 0
        %4600 = vmatpush1.bf16.msra.mxu0 0
        %4601 = vmatprep.mubr.bf16.mxu0 0
        %4602 = vmatmul.mubr.bf16.gmra.mrb[0].mxu0 %v872
        %v4603 = vpop.f32.mrb[0].mxu0
        %v4604 = vadd.f32 %v844, %v4603
        %v4605 = vpop.f32.mrb[0].mxu0
        %v4606 = vpop.f32.mrb[0].mxu0
        %v4607 = vadd.f32 %v849, %v4606
        %v4608 = vpop.f32.mrb[0].mxu0
        %4609 = vmatprep.mubr.bf16.mxu0 0
        %4610 = vmatmul.mubr.bf16.gmra.mrb[0].mxu0 %v875
        %v4611 = vpop.f32.mrb[0].mxu0
        %v4612 = vadd.f32 %v854, %v4611
        %v4613 = vpop.f32.mrb[0].mxu0
        %v4614 = vpop.f32.mrb[0].mxu0
        %v4615 = vadd.f32 %v859, %v4614
        %v4616 = vpop.f32.mrb[0].mxu0
        %4617 = vdwg.mxu0
        %vm4618 = vcmp.ge.f32.partialorder %v4604, 0.0
        %vm4619 = vcmp.ge.f32.partialorder %v4607, 0.0
        %vm4620 = vcmp.ge.f32.partialorder %v4612, 0.0
        %vm4621 = vcmp.ge.f32.partialorder %v4615, 0.0
        %v4622 = vmul.f32 %v4604, 0.2
        %v4623 = vmul.f32 %v4607, 0.2
        %v4624 = vmul.f32 %v4612, 0.2
        %v4625 = vmul.f32 %v4615, 0.2
        %v4626 = vsel %vm4618, %v4604, %v4622
        %v4627 = vsel %vm4619, %v4607, %v4623
        %v4628 = vsel %vm4620, %v4612, %v4624
        %v4629 = vsel %vm4621, %v4615, %v4625
        %v4630 = vadd.f32 %v4515, %v4626
        %v4631 = vadd.f32 %v4516, %v4627
        %v4632 = vadd.f32 %v4517, %v4628
        %v4633 = vadd.f32 %v4518, %v4629
        %v4634 = vpack.c.bf16 %v4631, %v4630
        %v4635 = vpack.c.bf16 %v4633, %v4632
        %4636 = vmatprep.subr.bf16.mxu0 0
        %4637 = vmatpush1.bf16.msra.mxu0 %v4634
        %4638 = vmatprep.subr.bf16.mxu0 0
        %4639 = vmatpush1.bf16.msra.mxu0 %v4635
        %4640 = vmatprep.subr.bf16.mxu0 0
        %4641 = vmatpush1.bf16.msra.mxu0 0
        %4642 = vmatprep.subr.bf16.mxu0 0
        %4643 = vmatpush1.bf16.msra.mxu0 0
        %4644 = vmatprep.subr.bf16.mxu0 0
        %4645 = vmatpush1.bf16.msra.mxu0 0
        %4646 = vmatprep.subr.bf16.mxu0 0
        %4647 = vmatpush1.bf16.msra.mxu0 0
        %4648 = vmatprep.subr.bf16.mxu0 0
        %4649 = vmatpush1.bf16.msra.mxu0 0
        %4650 = vmatprep.subr.bf16.mxu0 0
        %4651 = vmatpush1.bf16.msra.mxu0 0
        %4652 = vmatprep.subr.bf16.mxu0 0
        %4653 = vmatpush1.bf16.msra.mxu0 0
        %4654 = vmatprep.subr.bf16.mxu0 0
        %4655 = vmatpush1.bf16.msra.mxu0 0
        %4656 = vmatprep.subr.bf16.mxu0 0
        %4657 = vmatpush1.bf16.msra.mxu0 0
        %4658 = vmatprep.subr.bf16.mxu0 0
        %4659 = vmatpush1.bf16.msra.mxu0 0
        %4660 = vmatprep.subr.bf16.mxu0 0
        %4661 = vmatpush1.bf16.msra.mxu0 0
        %4662 = vmatprep.subr.bf16.mxu0 0
        %4663 = vmatpush1.bf16.msra.mxu0 0
        %4664 = vmatprep.subr.bf16.mxu0 0
        %4665 = vmatpush1.bf16.msra.mxu0 0
        %4666 = vmatprep.subr.bf16.mxu0 0
        %4667 = vmatpush1.bf16.msra.mxu0 0
        %4668 = vmatprep.mubr.bf16.mxu0 0
        %4669 = vmatmul.mubr.bf16.gmra.mrb[0].mxu0 %v960
        %v4670 = vpop.f32.mrb[0].mxu0
        %v4671 = vadd.f32 %v947, %v4670
        %v4672 = vpop.f32.mrb[0].mxu0
        %v4673 = vpop.f32.mrb[0].mxu0
        %v4674 = vadd.f32 %v952, %v4673
        %v4675 = vpop.f32.mrb[0].mxu0
        %4676 = vdwg.mxu0
        %vm4677 = vcmp.ge.f32.partialorder %v4671, 0.0
        %vm4678 = vcmp.ge.f32.partialorder %v4674, 0.0
        %v4679 = vmul.f32 %v4671, 0.2
        %v4680 = vmul.f32 %v4674, 0.2
        %v4681 = vsel %vm4677, %v4671, %v4679
        %v4682 = vsel %vm4678, %v4674, %v4680
        %v4683 = vpack.c.bf16 %v4682, %v4681
        %4684 = vmatprep.subr.bf16.mxu0 0
        %4685 = vmatpush1.bf16.msra.mxu0 %v4683
        %4686 = vmatprep.subr.bf16.mxu0 0
        %4687 = vmatpush1.bf16.msra.mxu0 0
        %4688 = vmatprep.subr.bf16.mxu0 0
        %4689 = vmatpush1.bf16.msra.mxu0 0
        %4690 = vmatprep.subr.bf16.mxu0 0
        %4691 = vmatpush1.bf16.msra.mxu0 0
        %4692 = vmatprep.subr.bf16.mxu0 0
        %4693 = vmatpush1.bf16.msra.mxu0 0
        %4694 = vmatprep.subr.bf16.mxu0 0
        %4695 = vmatpush1.bf16.msra.mxu0 0
        %4696 = vmatprep.subr.bf16.mxu0 0
        %4697 = vmatpush1.bf16.msra.mxu0 0
        %4698 = vmatprep.subr.bf16.mxu0 0
        %4699 = vmatpush1.bf16.msra.mxu0 0
        %4700 = vmatprep.subr.bf16.mxu0 0
        %4701 = vmatpush1.bf16.msra.mxu0 0
        %4702 = vmatprep.subr.bf16.mxu0 0
        %4703 = vmatpush1.bf16.msra.mxu0 0
        %4704 = vmatprep.subr.bf16.mxu0 0
        %4705 = vmatpush1.bf16.msra.mxu0 0
        %4706 = vmatprep.subr.bf16.mxu0 0
        %4707 = vmatpush1.bf16.msra.mxu0 0
        %4708 = vmatprep.subr.bf16.mxu0 0
        %4709 = vmatpush1.bf16.msra.mxu0 0
        %4710 = vmatprep.subr.bf16.mxu0 0
        %4711 = vmatpush1.bf16.msra.mxu0 0
        %4712 = vmatprep.subr.bf16.mxu0 0
        %4713 = vmatpush1.bf16.msra.mxu0 0
        %4714 = vmatprep.subr.bf16.mxu0 0
        %4715 = vmatpush1.bf16.msra.mxu0 0
        %4716 = vmatprep.mubr.bf16.mxu0 0
        %4717 = vmatmul.mubr.bf16.gmra.mrb[0].mxu0 %v1041
        %v4718 = vpop.f32.mrb[0].mxu0
        %v4719 = vadd.f32 %v1013, %v4718
        %v4720 = vpop.f32.mrb[0].mxu0
        %v4721 = vpop.f32.mrb[0].mxu0
        %v4722 = vadd.f32 %v1018, %v4721
        %v4723 = vpop.f32.mrb[0].mxu0
        %4724 = vmatprep.mubr.bf16.mxu0 0
        %4725 = vmatmul.mubr.bf16.gmra.mrb[0].mxu0 %v1044
        %v4726 = vpop.f32.mrb[0].mxu0
        %v4727 = vadd.f32 %v1023, %v4726
        %v4728 = vpop.f32.mrb[0].mxu0
        %v4729 = vpop.f32.mrb[0].mxu0
        %v4730 = vadd.f32 %v1028, %v4729
        %v4731 = vpop.f32.mrb[0].mxu0
        %4732 = vdwg.mxu0
        %vm4733 = vcmp.ge.f32.partialorder %v4719, 0.0
        %vm4734 = vcmp.ge.f32.partialorder %v4722, 0.0
        %vm4735 = vcmp.ge.f32.partialorder %v4727, 0.0
        %vm4736 = vcmp.ge.f32.partialorder %v4730, 0.0
        %v4737 = vmul.f32 %v4719, 0.2
        %v4738 = vmul.f32 %v4722, 0.2
        %v4739 = vmul.f32 %v4727, 0.2
        %v4740 = vmul.f32 %v4730, 0.2
        %v4741 = vsel %vm4733, %v4719, %v4737
        %v4742 = vsel %vm4734, %v4722, %v4738
        %v4743 = vsel %vm4735, %v4727, %v4739
        %v4744 = vsel %vm4736, %v4730, %v4740
        %v4745 = vadd.f32 %v4630, %v4741
        %v4746 = vadd.f32 %v4631, %v4742
        %v4747 = vadd.f32 %v4632, %v4743
        %v4748 = vadd.f32 %v4633, %v4744
        %v4749 = vpack.c.bf16 %v4746, %v4745
        %v4750 = vpack.c.bf16 %v4748, %v4747
        %4751 = vmatprep.subr.bf16.mxu0 0
        %4752 = vmatpush1.bf16.msra.mxu0 %v4749
        %4753 = vmatprep.subr.bf16.mxu0 0
        %4754 = vmatpush1.bf16.msra.mxu0 %v4750
        %4755 = vmatprep.subr.bf16.mxu0 0
        %4756 = vmatpush1.bf16.msra.mxu0 0
        %4757 = vmatprep.subr.bf16.mxu0 0
        %4758 = vmatpush1.bf16.msra.mxu0 0
        %4759 = vmatprep.subr.bf16.mxu0 0
        %4760 = vmatpush1.bf16.msra.mxu0 0
        %4761 = vmatprep.subr.bf16.mxu0 0
        %4762 = vmatpush1.bf16.msra.mxu0 0
        %4763 = vmatprep.subr.bf16.mxu0 0
        %4764 = vmatpush1.bf16.msra.mxu0 0
        %4765 = vmatprep.subr.bf16.mxu0 0
        %4766 = vmatpush1.bf16.msra.mxu0 0
        %4767 = vmatprep.subr.bf16.mxu0 0
        %4768 = vmatpush1.bf16.msra.mxu0 0
        %4769 = vmatprep.subr.bf16.mxu0 0
        %4770 = vmatpush1.bf16.msra.mxu0 0
        %4771 = vmatprep.subr.bf16.mxu0 0
        %4772 = vmatpush1.bf16.msra.mxu0 0
        %4773 = vmatprep.subr.bf16.mxu0 0
        %4774 = vmatpush1.bf16.msra.mxu0 0
        %4775 = vmatprep.subr.bf16.mxu0 0
        %4776 = vmatpush1.bf16.msra.mxu0 0
        %4777 = vmatprep.subr.bf16.mxu0 0
        %4778 = vmatpush1.bf16.msra.mxu0 0
        %4779 = vmatprep.subr.bf16.mxu0 0
        %4780 = vmatpush1.bf16.msra.mxu0 0
        %4781 = vmatprep.subr.bf16.mxu0 0
        %4782 = vmatpush1.bf16.msra.mxu0 0
        %4783 = vmatprep.mubr.bf16.mxu0 0
        %4784 = vmatmul.mubr.bf16.gmra.mrb[0].mxu0 %v1119
        %v4785 = vpop.f32.mrb[0].mxu0
        %v4786 = vadd.f32 %v1116, %v4785
        %v4787 = vpop.f32.mrb[0].mxu0
        %v4788 = vpop.f32.mrb[0].mxu0
        %v4789 = vpop.f32.mrb[0].mxu0
        %4790 = vdwg.mxu0
        %v4791 = vld [vmem:[%s2] sm:$0xff]
        %v4792 = vld [vmem:[%s2 + $0x8] sm:$0xff]
        %vm4793 = vcmask 588800
        %v4795 = vsel %vm4793, %v4791, 0
        %v4798 = vsel %vm4793, %v4792, 0
        %4800 = vmatprep.subr.mxu0 0.0
        %4801 = vmatpush1.msra.mxu0 %v1156
        %4802 = vmatprep.subr.mxu0 0.0
        %4803 = vmatpush1.msra.mxu0 %v1615
        %4804 = vmatprep.subr.mxu0 0.0
        %4805 = vmatpush1.msra.mxu0 %v2068
        %4806 = vmatprep.subr.mxu0 0.0
        %4807 = vmatpush1.msra.mxu0 %v2522
        %4808 = vmatprep.subr.mxu0 0.0
        %4809 = vmatpush1.msra.mxu0 %v2974
        %4810 = vmatprep.subr.mxu0 0.0
        %4811 = vmatpush1.msra.mxu0 %v3428
        %4812 = vmatprep.subr.mxu0 0.0
        %4813 = vmatpush1.msra.mxu0 %v3880
        %4814 = vmatprep.subr.mxu0 0.0
        %4815 = vmatpush1.msra.mxu0 %v4334
        %4816 = vmatprep.subr.mxu0 0.0
        %4817 = vmatpush1.msra.mxu0 %v4786
        %4818 = vmatprep.subr.mxu0 0.0
        %4819 = vmatpush1.msra.mxu0 0.0
        %4820 = vmatprep.subr.mxu0 0.0
        %4821 = vmatpush1.msra.mxu0 0.0
        %4822 = vmatprep.subr.mxu0 0.0
        %4823 = vmatpush1.msra.mxu0 0.0
        %4824 = vmatprep.subr.mxu0 0.0
        %4825 = vmatpush1.msra.mxu0 0.0
        %4826 = vmatprep.subr.mxu0 0.0
        %4827 = vmatpush1.msra.mxu0 0.0
        %4828 = vmatprep.subr.mxu0 0.0
        %4829 = vmatpush1.msra.mxu0 0.0
        %4830 = vmatprep.subr.mxu0 0.0
        %4831 = vmatpush1.msra.mxu0 0.0
        %4832 = vmatprep.subr.mxu0 0.0
        %4833 = vmatpush1.msra.mxu0 0.0
        %4834 = vmatprep.subr.mxu0 0.0
        %4835 = vmatpush1.msra.mxu0 0.0
        %4836 = vmatprep.subr.mxu0 0.0
        %4837 = vmatpush1.msra.mxu0 0.0
        %4838 = vmatprep.subr.mxu0 0.0
        %4839 = vmatpush1.msra.mxu0 0.0
        %4840 = vmatprep.subr.mxu0 0.0
        %4841 = vmatpush1.msra.mxu0 0.0
        %4842 = vmatprep.subr.mxu0 0.0
        %4843 = vmatpush1.msra.mxu0 0.0
        %4844 = vmatprep.subr.mxu0 0.0
        %4845 = vmatpush1.msra.mxu0 0.0
        %4846 = vmatprep.subr.mxu0 0.0
        %4847 = vmatpush1.msra.mxu0 0.0
        %4848 = vmatprep.subr.mxu0 0.0
        %4849 = vmatpush1.msra.mxu0 0.0
        %4850 = vmatprep.subr.mxu0 0.0
        %4851 = vmatpush1.msra.mxu0 0.0
        %4852 = vmatprep.subr.mxu0 0.0
        %4853 = vmatpush1.msra.mxu0 0.0
        %4854 = vmatprep.subr.mxu0 0.0
        %4855 = vmatpush1.msra.mxu0 0.0
        %4856 = vmatprep.subr.mxu0 0.0
        %4857 = vmatpush1.msra.mxu0 0.0
        %4858 = vmatprep.subr.mxu0 0.0
        %4859 = vmatpush1.msra.mxu0 0.0
        %4860 = vmatprep.subr.mxu0 0.0
        %4861 = vmatpush1.msra.mxu0 0.0
        %4862 = vmatprep.subr.mxu0 0.0
        %4863 = vmatpush1.msra.mxu0 0.0
        %4864 = vmatprep.mubr.f32.mxu0 0.0
        %4865 = vmatmul.mubr.f32.gmra.mrb[0].mxu0 %v4795
        %v4866 = vpop.f32.mrb[0].mxu0
        %v4867 = vadd.f32 0.0, %v4866
        %v4868 = vpop.f32.mrb[0].mxu0
        %4869 = vmatprep.mubr.f32.mxu0 0.0
        %4870 = vmatmul.mubr.f32.gmra.mrb[0].mxu0 %v4798
        %v4871 = vpop.f32.mrb[0].mxu0
        %v4872 = vadd.f32 0.0, %v4871
        %v4873 = vpop.f32.mrb[0].mxu0
        %4874 = vdwg.mxu0
        %4875 = vst [vmem:[%s415] sm:$0xff] %v4867
        %4876 = vst [vmem:[%s415 + $0x8] sm:$0xff] %v4872
        %s4877 = sand.u32 %s220, 1
        %s4878 = sand.u32 %s220, 1
        %s4879 = smul.addr %s4878, 16
        %s4880 = scalar_lea.vmem [#allocation5], %s4879
        // Predicated region
        $region87: #{smoothnet_smpl_forward.1} parent=81 // pred_check
          %p4881 = pneg %p230
        $region88: #{smoothnet_smpl_forward.1} parent=81 // pred_check_branch
          %4883 = sbr.rel (%p4881) target = $region90
        $region89: #{smoothnet_smpl_forward.1} parent=81 // pred_region
          %s4884 = smul.addr %s25, 8
          %s4885 = scalar_lea.vmem %s8, %s4884
          // Predicated region
          $region91: #{smoothnet_smpl_forward.1} parent=89 // pred_check
            _
          $region92: #{smoothnet_smpl_forward.1} parent=89 // pred_check_branch
            %4887 = sbr.rel (0) target = $region94
          $region93: #{smoothnet_smpl_forward.1} parent=89 // pred_region
            // Predicated region
            $region95: #{smoothnet_smpl_forward.1} parent=93 // pred_check
              _
            $region96: #{smoothnet_smpl_forward.1} parent=93 // pred_check_branch
              %4889 = sbr.rel (0) target = $region98
            $region97: #{smoothnet_smpl_forward.1} parent=93 // pred_region
              // Predicated region
              $region110: #{smoothnet_smpl_forward.1} parent=97 // pred_check
                _
              $region111: #{smoothnet_smpl_forward.1} parent=97 // pred_check_branch
                %4906 = sbr.rel (0) target = $region113
              $region112: #{smoothnet_smpl_forward.1} parent=97 // pred_region
                loop: start=0, step=1, limit=1
                $region114: #{smoothnet_smpl_forward.1} parent=112 // loop_pre_header
                  _
                $region115: #{smoothnet_smpl_forward.1} parent=112 // loop_header
                  %s4908 = sphi 0, %s4912
                  %p4909 = scmp.ge.s32.totalorder %s4908, 1
                  %s4913 = sphi %s4880, %s4880
                  %s4914 = sphi %s4885, %s4885
                $region116: #{smoothnet_smpl_forward.1} parent=112 // loop_header_branch
                  %4911 = sbr.rel (%p4909) target = $region120
                $region117: #{smoothnet_smpl_forward.1} parent=112 // loop_body
                  %v4915 = vld [vmem:[%s4913] sm:$0xff]
                  %4916 = vst [vmem:[%s4914] sm:$0xff] %v4915
                  %v4917 = vld [vmem:[%s4913 + $0x8] sm:$0xff]
                  %4918 = vst [vmem:[%s4914 + $0x20] sm:$0xff] %v4917
                $region118: #{smoothnet_smpl_forward.1} parent=112 // loop_footer
                  %s4912 = sadd.s32 1, %s4908
                $region119: #{smoothnet_smpl_forward.1} parent=112 // loop_footer_branch
                  %4907 = sbr.rel target = $region115
                $region120: #{smoothnet_smpl_forward.1} parent=112 // loop_exit
                  _
              $region113: #{smoothnet_smpl_forward.1} parent=97 // pred_fallthru
                _
              // Predicated region
              $region121: #{smoothnet_smpl_forward.1} parent=97 // pred_check
                _
              $region122: #{smoothnet_smpl_forward.1} parent=97 // pred_check_branch
                %4920 = sbr.rel target = $region124
              $region123: #{smoothnet_smpl_forward.1} parent=97 // pred_region
                _
              $region124: #{smoothnet_smpl_forward.1} parent=97 // pred_fallthru
                _
            $region98: #{smoothnet_smpl_forward.1} parent=93 // pred_fallthru
              _
            // Predicated region
            $region99: #{smoothnet_smpl_forward.1} parent=93 // pred_check
              _
            $region100: #{smoothnet_smpl_forward.1} parent=93 // pred_check_branch
              %4891 = sbr.rel target = $region102
            $region101: #{smoothnet_smpl_forward.1} parent=93 // pred_region
              loop: start=0, step=1, limit=1
              $region103: #{smoothnet_smpl_forward.1} parent=101 // loop_pre_header
                _
              $region104: #{smoothnet_smpl_forward.1} parent=101 // loop_header
                %s4894 = sphi 0, %s4898
                %p4895 = scmp.ge.s32.totalorder %s4894, 1
                %s4899 = sphi %s4880, %s4880
                %s4900 = sphi %s4885, %s4885
              $region105: #{smoothnet_smpl_forward.1} parent=101 // loop_header_branch
                %4897 = sbr.rel (%p4895) target = $region109
              $region106: #{smoothnet_smpl_forward.1} parent=101 // loop_body
                %v4901 = vld [vmem:[%s4899] sm:$0xff]
                %4902 = vst [vmem:[%s4900] sm:$0xff] %v4901
                %v4903 = vld [vmem:[%s4899 + $0x8] sm:$0xff]
                %4904 = vst [vmem:[%s4900 + $0x20] sm:$0xff] %v4903
              $region107: #{smoothnet_smpl_forward.1} parent=101 // loop_footer
                %s4898 = sadd.s32 1, %s4894
              $region108: #{smoothnet_smpl_forward.1} parent=101 // loop_footer_branch
                %4893 = sbr.rel target = $region104
              $region109: #{smoothnet_smpl_forward.1} parent=101 // loop_exit
                _
            $region102: #{smoothnet_smpl_forward.1} parent=93 // pred_fallthru
              _
          $region94: #{smoothnet_smpl_forward.1} parent=89 // pred_fallthru
            _
          %4921 = vnop
        $region90: #{smoothnet_smpl_forward.1} parent=81 // pred_fallthru
          _
      $region82: #{smoothnet_smpl_forward.1} parent=5 // pred_fallthru
        _
      %p4922 = scmp.le.s32.totalorder 2, %s20
      // Predicated region
      $region125: #{smoothnet_smpl_forward.1} parent=5 // pred_check
        %p4923 = pneg %p4922
      $region126: #{smoothnet_smpl_forward.1} parent=5 // pred_check_branch
        %4925 = sbr.rel (%p4923) target = $region128
      $region127: #{smoothnet_smpl_forward.1} parent=5 // pred_region
        %s4926 = ssub.s32 %s20, 2
        // Predicated region
        $region129: #{smoothnet_smpl_forward.1} parent=127 // pred_check
          %p4927 = pneg %p236
        $region130: #{smoothnet_smpl_forward.1} parent=127 // pred_check_branch
          %4929 = sbr.rel (%p4927) target = $region132
        $region131: #{smoothnet_smpl_forward.1} parent=127 // pred_region
          %s4930 = sand.u32 %s221, 1
          %s4931 = sand.u32 %s221, 1
          %s4932 = smul.addr %s4931, 16
          %s4933 = scalar_lea.vmem [#allocation5], %s4932
        $region132: #{smoothnet_smpl_forward.1} parent=127 // pred_fallthru
          _
      $region128: #{smoothnet_smpl_forward.1} parent=5 // pred_fallthru
        _
    $region6: #{smoothnet_smpl_forward.1} parent=1 // loop_footer
      %s24 = sadd.s32 1, %s20
    $region7: #{smoothnet_smpl_forward.1} parent=1 // loop_footer_branch
      %19 = sbr.rel target = $region3
    $region8: #{smoothnet_smpl_forward.1} parent=1 // loop_exit
      _

</llo_original>
